<compile_context>
chip_gen: v7x
topology: tpu7x:2x2x1
jax: 0.10.0
libtpu: 0.0.40
codegen_flags: <defaults>
</compile_context>

<pallas_src>
import math

import jax
import jax.numpy as jnp
from jax.experimental import pallas as pl
from jax.experimental.pallas import tpu as pltpu


# ----------------------------------------------------------------------------
# helpers
# ----------------------------------------------------------------------------
def cell_centered_unit_grid(sizes):
    """Cell-centered grid on the unit hypercube, shape (len(sizes), *sizes)."""
    axes = [(jnp.arange(s, dtype=jnp.float32) + 0.5) / s for s in sizes]
    grids = jnp.meshgrid(*axes, indexing="ij")
    return jnp.stack(grids, axis=0)


def _erf_gelu(x):
    # matches torch.nn.GELU() default (erf formulation)
    return 0.5 * x * (1.0 + jax.lax.erf(x * (1.0 / math.sqrt(2.0))))


def _tanh_gelu(x):
    # tanh-approximate GELU: tanh lowers to the (otherwise idle) EUP slot instead of
    # erf's ~20-op VPU polynomial, which dominates h generation at small B*O.
    c = math.sqrt(2.0 / math.pi)
    return 0.5 * x * (1.0 + jnp.tanh(c * (x + 0.044715 * (x * x * x))))


def _largest_divisor(n, target, multiple):
    """Largest d <= target with d | n and multiple | d, else None."""
    best = None
    for d in range(multiple, min(n, target) + 1, multiple):
        if n % d == 0:
            best = d
    return best


# ----------------------------------------------------------------------------
# fused Pallas kernel: on-the-fly kernel-weight generation + integral operator
# ----------------------------------------------------------------------------
def _make_fused_kernel(t2, hid, a_resident, approx_gelu, use_bf16_mxu):
    t2h = t2 * hid
    gelu = _tanh_gelu if approx_gelu else _erf_gelu

    def kernel(pre1_ref, pre2_ref, a_ref, beff_ref, out_ref):
        k = pl.program_id(1)

        @pl.when(k == 0)
        def _():
            out_ref[...] = jnp.zeros_like(out_ref)

        # On-the-fly LHS for this (p1-tile x p2-tile) block of coordinate pairs:
        #   pre[p2*HID + j, p1] = pre1[j, p1] + pre2[p2, j]
        # pre1_ref : (HID, T1)   -- replicated T2x along sublanes in-kernel (no HBM replication)
        # pre2_ref : (T2*HID, 1) -- broadcast along lanes
        pre = jnp.tile(pre1_ref[...], (t2, 1)) + pre2_ref[...]      # (T2*HID, T1)
        h = gelu(pre)

        if a_resident:
            off = k * t2h
            if t2h % 128 == 0:
                off = pl.multiple_of(off, 128)
            a_blk = a_ref[:, pl.ds(off, t2h)]                       # (BO, T2*HID)
        else:
            a_blk = a_ref[...]                                      # (BO, T2*HID)

        if use_bf16_mxu:
            a_blk = a_blk.astype(jnp.bfloat16)
            h = h.astype(jnp.bfloat16)

        # Canonical (BO, K) x (K, T1) MXU dot; accumulate directly into the resident
        # lane-dense f32 output block (its block index is constant along k).
        out_ref[...] += jax.lax.dot_general(
            a_blk, h,
            dimension_numbers=(((1,), (0,)), ((), ())),
            preferred_element_type=jnp.float32)

        @pl.when(k == pl.num_programs(1) - 1)
        def _():
            out_ref[...] += beff_ref[...]

    return kernel


# ----------------------------------------------------------------------------
# wrapper
# ----------------------------------------------------------------------------
def linear_operator_2d(v, params, in_channels, out_channels, *,
                       block_p1=256, block_p2=64,
                       approx_gelu=True, use_bf16_mxu=False):
    """Forward pass of LinearOperator2d. v: (B, in_channels, H, W) NCHW."""
    B, I, H, W = v.shape
    assert I == in_channels
    O = out_channels
    HW = H * W
    HID = params["w1"].shape[1]          # 64
    BO = B * O
    f32 = jnp.float32

    # ---- generation-aware VMEM budget (v7x: 64 MiB; v5e/v6e: 128 MiB) ----
    try:
        vmem_cap = int(pltpu.get_tpu_info().vmem_capacity_bytes)
    except Exception:
        vmem_cap = 64 * 1024 * 1024
    vmem_limit = min(int(0.75 * vmem_cap), 100 * 1024 * 1024)

    a_bytes = BO * HW * HID * 4
    a_resident = a_bytes <= max(vmem_cap // 8, 4 * 1024 * 1024)

    # ---- tile sizes (respect (8,128); keep n1 >= 2 when possible for v7x megacore) ----
    t1_cap = block_p1
    if HW >= 256:
        t1_cap = min(t1_cap, HW // 2)
    T1 = (_largest_divisor(HW, t1_cap, 128)
          or _largest_divisor(HW, block_p1, 128) or HW)

    def pick_t2(cap):
        return (_largest_divisor(HW, cap, 4)
                or _largest_divisor(HW, cap, 2) or HW)

    bo_pad = -(-BO // 8) * 8

    def vmem_est(t1, t2):
        t2h = t2 * HID
        return (2 * HID * t1 * 4            # pre1 block, double-buffered
                + 2 * t2h * 128 * 4         # pre2 column block (lane-padded), double-buffered
                + 2 * bo_pad * t1 * 4       # resident output block
                + (a_bytes if a_resident else 2 * bo_pad * t2h * 4)
                + 4 * t2h * t1 * 4)         # in-kernel temporaries (pre, h, ...)

    cap2 = block_p2
    T2 = pick_t2(cap2)
    while vmem_est(T1, T2) > int(0.8 * vmem_limit) and cap2 >= 8 and T2 > 4:
        cap2 = max(cap2 // 2, 4)
        T2 = pick_t2(cap2)

    n1, n2 = HW // T1, HW // T2
    T2H = T2 * HID

    w1 = params["w1"].astype(f32)                    # (4, HID)
    b1 = params["b1"].astype(f32)                    # (HID,)
    w2 = params["w2"].astype(f32)                    # (HID, O*I)
    b2 = params["b2"].astype(f32)                    # (O*I,)

    # ---- cell-centered coords in [-1, 1]; separable first-layer pre-activations
    #      (tiny HWxHID precompute; no HW^2-sized tensor is built in HBM) ----
    yc = 2.0 * ((jnp.arange(H, dtype=f32) + 0.5) / H) - 1.0
    xc = 2.0 * ((jnp.arange(W, dtype=f32) + 0.5) / W) - 1.0
    y = jnp.repeat(yc, W)                            # (HW,) h-major
    x = jnp.tile(xc, H)                              # (HW,)
    pre1 = y[:, None] * w1[0][None, :] + x[:, None] * w1[1][None, :]             # (HW, HID)
    pre2 = y[:, None] * w1[2][None, :] + x[:, None] * w1[3][None, :] + b1[None]  # (HW, HID)

    pre1_t = pre1.T                                  # (HID, HW): p1 on lanes, not replicated
    pre2_col = pre2.reshape(HW * HID, 1)             # row index = p2*HID + j

    # Fold 1/(H*W) and the i-contraction of the second MLP layer into a small tensor:
    #   A[(b,o), p2*HID + j] = (1/HW) * sum_i w2[j, o*I + i] * v[b, i, p2]
    # TODO(synk): this factor-I folding and the pre1/pre2 precompute are tiny wrapper-side
    # XLA glue (O(B*O*HW*HID)); everything HW^2-sized runs inside the Pallas kernel.
    inv = 1.0 / HW
    w2r = (w2 * inv).reshape(HID, O, I)
    v2 = v.astype(f32).reshape(B, I, HW)
    a = jnp.einsum("joi,bip->bopj", w2r, v2).reshape(BO, HW * HID)

    # effective bias = module bias + contribution of the second-layer bias b2
    beff = v2.sum(-1) @ (b2 * inv).reshape(O, I).T   # (B, O)
    if params.get("bias") is not None:
        beff = beff + params["bias"].astype(f32).reshape(1, O)
    beff = beff.reshape(BO, 1)

    if a_resident:
        a_spec = pl.BlockSpec((BO, HW * HID), lambda i, k: (0, 0))   # fully VMEM-resident
    else:
        a_spec = pl.BlockSpec((BO, T2H), lambda i, k: (0, k))        # streamed per k-tile

    kernel = _make_fused_kernel(T2, HID, a_resident, approx_gelu, use_bf16_mxu)

    cost = pl.CostEstimate(
        flops=int(2 * BO * HW * HW * HID + 10 * HW * HW * HID),
        transcendentals=int(HW * HW * HID),
        bytes_accessed=int(4 * (HW * HID                                    # pre1 (once per i-sweep)
                                + n1 * HW * HID                             # pre2 (per i-sweep)
                                + (1 if a_resident else n1) * BO * HW * HID  # folded w2*v
                                + BO * HW + BO)))

    out_flat = pl.pallas_call(
        kernel,
        out_shape=jax.ShapeDtypeStruct((BO, HW), f32),
        grid=(n1, n2),
        in_specs=[
            pl.BlockSpec((HID, T1), lambda i, k: (0, i)),    # pre1^T tile (no T2 replication)
            pl.BlockSpec((T2H, 1), lambda i, k: (k, 0)),     # pre2 column tile
            a_spec,                                          # folded w2*v
            pl.BlockSpec((BO, 1), lambda i, k: (0, 0)),      # effective bias
        ],
        out_specs=pl.BlockSpec((BO, T1), lambda i, k: (0, i)),
        compiler_params=pltpu.CompilerParams(
            dimension_semantics=("parallel", "arbitrary"),
            vmem_limit_bytes=vmem_limit),
        cost_estimate=cost,
    )(pre1_t, pre2_col, a, beff)

    return out_flat.reshape(B, O, H, W)


# ----------------------------------------------------------------------------
# pure-JAX reference (exact erf GELU, matching the torch module)
# ----------------------------------------------------------------------------
def linear_operator_2d_ref(v, params, in_channels, out_channels):
    B, I, H, W = v.shape
    O = out_channels
    coords = 2.0 * cell_centered_unit_grid((H, W, H, W)) - 1.0
    coords = jnp.transpose(coords, (1, 2, 3, 4, 0))
    h = _erf_gelu(coords @ params["w1"] + params["b1"])
    kernel = (h @ params["w2"] + params["b2"]).reshape(H, W, H, W, O, I)
    out = jnp.einsum("hwxyoi,bixy->bohw", kernel, v) / (H * W)
    if params["bias"] is not None:
        out = out + params["bias"][None]
    return out


# ----------------------------------------------------------------------------
if __name__ == "__main__":
    in_channels, out_channels = 4, 4
    B, H, W = 2, 16, 16
    C = in_channels * out_channels

    key = jax.random.PRNGKey(0)
    k1, k2, k3, k4, k5, kx = jax.random.split(key, 6)

    # deterministic, torch-Linear-style uniform init (weights stored as (in, out))
    s1 = 1.0 / math.sqrt(4)
    s2 = 1.0 / math.sqrt(64)
    sb = 1.0 / math.sqrt(in_channels)
    params = {
        "w1": jax.random.uniform(k1, (4, 64), jnp.float32, -s1, s1),
        "b1": jax.random.uniform(k2, (64,), jnp.float32, -s1, s1),
        "w2": jax.random.uniform(k3, (64, C), jnp.float32, -s2, s2),
        "b2": jax.random.uniform(k4, (C,), jnp.float32, -s2, s2),
        "bias": jax.random.uniform(k5, (out_channels, 1, 1), jnp.float32, -sb, sb),
    }

    v = jax.random.normal(kx, (B, in_channels, H, W), jnp.float32)

    out = jax.block_until_ready(
        linear_operator_2d(v, params, in_channels, out_channels))
    ref = jax.block_until_ready(
        linear_operator_2d_ref(v, params, in_channels, out_channels))

    assert out.shape == (B, out_channels, H, W)
    assert jnp.allclose(out, ref, rtol=2e-3, atol=2e-3), "mismatch vs reference"

    print("KERNEL_OK")
</pallas_src>

<mosaic_0001>
module attributes {stable_mosaic.version = 11 : i64} {
  func.func @kernel(%arg0: i32, %arg1: i32, %arg2: memref<64x128xf32, #tpu.memory_space<vmem>>, %arg3: memref<4096x1xf32, #tpu.memory_space<vmem>>, %arg4: memref<8x16384xf32, #tpu.memory_space<vmem>>, %arg5: memref<8x1xf32, #tpu.memory_space<vmem>>, %arg6: memref<8x128xf32, #tpu.memory_space<vmem>>) attributes {dimension_semantics = [#tpu.dimension_semantics<parallel>, #tpu.dimension_semantics<arbitrary>], iteration_bounds = array<i64: 2, 4>, scalar_prefetch = 0 : i64, scratch_operands = 0 : i64, tpu.core_type = #tpu.core_type<tc>, window_params = [{transform_indices = @transform_0, window_bounds = array<i64: 64, 128>}, {transform_indices = @transform_1, window_bounds = array<i64: 4096, 1>}, {pipeline_mode = #tpu.pipeline_mode<synchronous>, transform_indices = @transform_2, window_bounds = array<i64: 8, 16384>}, {pipeline_mode = #tpu.pipeline_mode<synchronous>, transform_indices = @transform_3, window_bounds = array<i64: 8, 1>}, {transform_indices = @transform_4, window_bounds = array<i64: 8, 128>}]} {
    %c0_i32 = arith.constant 0 : i32
    %0 = arith.cmpi eq, %arg1, %c0_i32 : i32
    %1 = arith.extui %0 : i1 to i32
    %c0_i32_0 = arith.constant 0 : i32
    %2 = arith.cmpi ne, %1, %c0_i32_0 : i32
    scf.if %2 {
      %cst_14 = arith.constant 0.000000e+00 : f32
      %32 = vector.broadcast %cst_14 : f32 to vector<8x128xf32>
      %c0_15 = arith.constant 0 : index
      %c0_16 = arith.constant 0 : index
      %33 = vector.load %arg6[%c0_15, %c0_16] : memref<8x128xf32, #tpu.memory_space<vmem>>, vector<8x128xf32>
      tpu.vector_store %arg6[%c0_15, %c0_16], %32 {strides = array<i32>} : memref<8x128xf32, #tpu.memory_space<vmem>>, vector<8x128xf32>,
    } else {
    }
    %c0 = arith.constant 0 : index
    %c0_1 = arith.constant 0 : index
    %3 = vector.load %arg2[%c0, %c0_1] : memref<64x128xf32, #tpu.memory_space<vmem>>, vector<64x128xf32>
    %4 = tpu.concatenate %3, %3, %3, %3, %3, %3, %3, %3, %3, %3, %3, %3, %3, %3, %3, %3, %3, %3, %3, %3, %3, %3, %3, %3, %3, %3, %3, %3, %3, %3, %3, %3, %3, %3, %3, %3, %3, %3, %3, %3, %3, %3, %3, %3, %3, %3, %3, %3, %3, %3, %3, %3, %3, %3, %3, %3, %3, %3, %3, %3, %3, %3, %3, %3 in 0 : vector<64x128xf32>, vector<64x128xf32>, vector<64x128xf32>, vector<64x128xf32>, vector<64x128xf32>, vector<64x128xf32>, vector<64x128xf32>, vector<64x128xf32>, vector<64x128xf32>, vector<64x128xf32>, vector<64x128xf32>, vector<64x128xf32>, vector<64x128xf32>, vector<64x128xf32>, vector<64x128xf32>, vector<64x128xf32>, vector<64x128xf32>, vector<64x128xf32>, vector<64x128xf32>, vector<64x128xf32>, vector<64x128xf32>, vector<64x128xf32>, vector<64x128xf32>, vector<64x128xf32>, vector<64x128xf32>, vector<64x128xf32>, vector<64x128xf32>, vector<64x128xf32>, vector<64x128xf32>, vector<64x128xf32>, vector<64x128xf32>, vector<64x128xf32>, vector<64x128xf32>, vector<64x128xf32>, vector<64x128xf32>, vector<64x128xf32>, vector<64x128xf32>, vector<64x128xf32>, vector<64x128xf32>, vector<64x128xf32>, vector<64x128xf32>, vector<64x128xf32>, vector<64x128xf32>, vector<64x128xf32>, vector<64x128xf32>, vector<64x128xf32>, vector<64x128xf32>, vector<64x128xf32>, vector<64x128xf32>, vector<64x128xf32>, vector<64x128xf32>, vector<64x128xf32>, vector<64x128xf32>, vector<64x128xf32>, vector<64x128xf32>, vector<64x128xf32>, vector<64x128xf32>, vector<64x128xf32>, vector<64x128xf32>, vector<64x128xf32>, vector<64x128xf32>, vector<64x128xf32>, vector<64x128xf32>, vector<64x128xf32> -> vector<4096x128xf32>
    %c0_2 = arith.constant 0 : index
    %c0_3 = arith.constant 0 : index
    %5 = vector.load %arg3[%c0_2, %c0_3] : memref<4096x1xf32, #tpu.memory_space<vmem>>, vector<4096x1xf32>
    %6 = vector.broadcast %5 : vector<4096x1xf32> to vector<4096x128xf32>
    %7 = arith.addf %4, %6 : vector<4096x128xf32>
    %cst = arith.constant 5.000000e-01 : f32
    %8 = vector.broadcast %cst : f32 to vector<4096x128xf32>
    %9 = arith.mulf %8, %7 : vector<4096x128xf32>
    %10 = arith.mulf %7, %7 : vector<4096x128xf32>
    %11 = arith.mulf %10, %7 : vector<4096x128xf32>
    %cst_4 = arith.constant 4.471500e-02 : f32
    %12 = vector.broadcast %cst_4 : f32 to vector<4096x128xf32>
    %13 = arith.mulf %12, %11 : vector<4096x128xf32>
    %14 = arith.addf %7, %13 : vector<4096x128xf32>
    %cst_5 = arith.constant 0.797884583 : f32
    %15 = vector.broadcast %cst_5 : f32 to vector<4096x128xf32>
    %16 = arith.mulf %15, %14 : vector<4096x128xf32>
    %17 = math.tanh %16 : vector<4096x128xf32>
    %cst_6 = arith.constant 1.000000e+00 : f32
    %18 = vector.broadcast %cst_6 : f32 to vector<4096x128xf32>
    %19 = arith.addf %18, %17 : vector<4096x128xf32>
    %20 = arith.mulf %9, %19 : vector<4096x128xf32>
    %c4096_i32 = arith.constant 4096 : i32
    %21 = arith.muli %arg1, %c4096_i32 : i32
    %22 = tpu.assume_multiple %21, 128 : i32
    %c0_7 = arith.constant 0 : index
    %23 = arith.index_cast %22 : i32 to index
    %24 = vector.load %arg4[%c0_7, %23] : memref<8x16384xf32, #tpu.memory_space<vmem>>, vector<8x4096xf32>
    %c0_8 = arith.constant 0 : index
    %c0_9 = arith.constant 0 : index
    %25 = vector.load %arg6[%c0_8, %c0_9] : memref<8x128xf32, #tpu.memory_space<vmem>>, vector<8x128xf32>
    %cst_10 = arith.constant dense<0.000000e+00> : vector<8x128xf32>
    %26 = tpu.matmul %24, %20, %cst_10 {dimension_numbers = #tpu.dot_dimension_numbers<[1], [0], [0], [1], [0, 0, 1, 1], [], []>} : vector<8x4096xf32>, vector<4096x128xf32>, vector<8x128xf32> -> vector<8x128xf32>
    %27 = arith.addf %25, %26 : vector<8x128xf32>
    %c0_11 = arith.constant 0 : index
    %c0_12 = arith.constant 0 : index
    %28 = vector.load %arg6[%c0_11, %c0_12] : memref<8x128xf32, #tpu.memory_space<vmem>>, vector<8x128xf32>
    tpu.vector_store %arg6[%c0_11, %c0_12], %27 {strides = array<i32>} : memref<8x128xf32, #tpu.memory_space<vmem>>, vector<8x128xf32>,
    %c3_i32 = arith.constant 3 : i32
    %29 = arith.cmpi eq, %arg1, %c3_i32 : i32
    %30 = arith.extui %29 : i1 to i32
    %c0_i32_13 = arith.constant 0 : i32
    %31 = arith.cmpi ne, %30, %c0_i32_13 : i32
    scf.if %31 {
      %c0_14 = arith.constant 0 : index
      %c0_15 = arith.constant 0 : index
      %32 = vector.load %arg6[%c0_14, %c0_15] : memref<8x128xf32, #tpu.memory_space<vmem>>, vector<8x128xf32>
      %c0_16 = arith.constant 0 : index
      %c0_17 = arith.constant 0 : index
      %33 = vector.load %arg5[%c0_16, %c0_17] : memref<8x1xf32, #tpu.memory_space<vmem>>, vector<8x1xf32>
      %34 = vector.broadcast %33 : vector<8x1xf32> to vector<8x128xf32>
      %35 = arith.addf %32, %34 : vector<8x128xf32>
      %c0_18 = arith.constant 0 : index
      %c0_19 = arith.constant 0 : index
      %36 = vector.load %arg6[%c0_18, %c0_19] : memref<8x128xf32, #tpu.memory_space<vmem>>, vector<8x128xf32>
      tpu.vector_store %arg6[%c0_18, %c0_19], %35 {strides = array<i32>} : memref<8x128xf32, #tpu.memory_space<vmem>>, vector<8x128xf32>,
    } else {
    }
    return
  }
  func.func @transform_0(%arg0: i32, %arg1: i32) -> (i32, i32) {
    %c0_i32 = arith.constant 0 : i32
    %c0_i32_0 = arith.constant 0 : i32
    return %c0_i32, %arg0 : i32, i32
  }
  func.func @transform_1(%arg0: i32, %arg1: i32) -> (i32, i32) {
    %c0_i32 = arith.constant 0 : i32
    %c0_i32_0 = arith.constant 0 : i32
    return %arg1, %c0_i32 : i32, i32
  }
  func.func @transform_2(%arg0: i32, %arg1: i32) -> (i32, i32) {
    %c0_i32 = arith.constant 0 : i32
    %c0_i32_0 = arith.constant 0 : i32
    %c0_i32_1 = arith.constant 0 : i32
    return %c0_i32, %c0_i32_0 : i32, i32
  }
  func.func @transform_3(%arg0: i32, %arg1: i32) -> (i32, i32) {
    %c0_i32 = arith.constant 0 : i32
    %c0_i32_0 = arith.constant 0 : i32
    %c0_i32_1 = arith.constant 0 : i32
    return %c0_i32, %c0_i32_0 : i32, i32
  }
  func.func @transform_4(%arg0: i32, %arg1: i32) -> (i32, i32) {
    %c0_i32 = arith.constant 0 : i32
    %c0_i32_0 = arith.constant 0 : i32
    return %c0_i32, %arg0 : i32, i32
  }
}

</mosaic_0001>

<llo_original>
// kernel: tpu_custom_call.1
$region0: #{tpu_custom_call.1}
  #allocation0 [shape = 'u32[]', space=smem, size = 0x4, offset = 0x4, fixed_abs, tag = 'smem constant byte address 0x4 - core index']
  #allocation1 [shape = 'u32[144,128]{1,0:T(1,128)}', space=vmem, size = 0x12000, scoped, tag = 'internal scratch']
  %s0 = inlined_call_operand.vmem [shape: f32[64,256], index: 0, kind: input, shape index: {}]
  %s1 = inlined_call_operand.vmem [shape: f32[16384,1], index: 1, kind: input, shape index: {}]
  %s2 = inlined_call_operand.vmem [shape: f32[8,16384], index: 2, kind: input, shape index: {}]
  %s3 = inlined_call_operand.vmem [shape: f32[8,1], index: 3, kind: input, shape index: {}]
  %s4 = inlined_call_operand.hbm [shape: f32[8,256], index: 4, kind: output, shape index: {}]
  %s5 = sld [smem:[#allocation0]]
  $region95: #{tpu_custom_call.1} parent=0
    _
  %s7 = ssub.s32 1, %s5
  %s8 = scalar_select 0, %s7, %s5
  $region1: #{tpu_custom_call.1} parent=0
    #allocation2 [shape = 'u8[65536]{0}', space=vmem, size = 0x10000, scoped, tag = 'input window, operand 0']
    #allocation3 [shape = 'u8[8192]{0}', space=vmem, size = 0x2000, scoped, tag = 'output window, operand 0']
    #allocation4 [shape = 's32[2]{0}', space=sflag, size = 0x8, scoped, tag = 'scoped memory for tpu_custom_call.1']
    %9 = vsyncpa [#allocation4], 0
    %s10 = scalar_lea.sflag [#allocation4], 1
    %11 = vsyncpa %s10, 0
    loop: start=0, step=1, limit=10
    $region2: #{tpu_custom_call.1} parent=1 // loop_pre_header
      _
    $region3: #{tpu_custom_call.1} parent=1 // loop_header
      %s13 = sphi 0, %s17
      %p14 = scmp.ge.s32.totalorder %s13, 10
      %s20 = sphi 0, %s32
      %s21 = sphi 0, %s28
      %s22 = sphi 0, %s20
      %s23 = sphi 0, %s21
      %s24 = sphi 0, %s22
      %s25 = sphi 0, %s23
      %s35 = sphi 0, %s37
      %s38 = sphi 0, %s35
      %s39 = sphi 0, %s38
      %s55 = sphi 0, %s39
      %s61 = sphi 0, %s63
      %s64 = sphi 0, %s61
      %s65 = sphi 0, %s64
      %s81 = sphi 0, %s65
      %s85 = sphi 0, %s85
      %s87 = sphi 0, %s85
      %s88 = sphi 0, %s87
      %s102 = sphi 0, %s88
      %s106 = sphi 0, %s106
      %s108 = sphi 0, %s106
      %s109 = sphi 0, %s108
      %s123 = sphi 0, %s109
      %s129 = sphi 0, %s131
      %s132 = sphi 0, %s129
      %s133 = sphi 0, %s132
      %s149 = sphi 0, %s133
    $region4: #{tpu_custom_call.1} parent=1 // loop_header_branch
      %16 = sbr.rel (%p14) target = $region8
    $region5: #{tpu_custom_call.1} parent=1 // loop_body
      %s18 = ssub.s32 %s13, 1
      %s19 = ssub.s32 %s13, 2
      %s26 = sadd.s32 1, %s21
      %p27 = scmp.ge.s32.totalorder %s26, 4
      %s28 = scalar_select %p27, 0, %s26
      %s29 = sadd.s32 1, %s20
      %s30 = scalar_select %p27, %s29, %s20
      %p31 = scmp.ge.s32.totalorder %s30, 2
      %s32 = scalar_select %p31, 0, %s30
      %s33 = ssub.s32 %s20, %s32
      %p34 = scmp.eq.s32.totalorder %s33, 0
      %s36 = sadd.s32 %s35, 1
      %s37 = scalar_select %p34, %s35, %s36
      %p40 = pneg %p34
      %p41 = scmp.eq.s32.totalorder %s13, 7
      %p42 = por %p40, %p41
      %p43 = scmp.ne.s32.totalorder %s35, %s38
      %p44 = scmp.eq.s32.totalorder %s13, 0
      %p45 = por %p43, %p44
      %p46 = scmp.ne.s32.totalorder %s35, %s38
      %p47 = scmp.eq.s32.totalorder %s18, 7
      %p48 = por %p46, %p47
      %p49 = scmp.ne.s32.totalorder %s38, %s39
      %p50 = scmp.eq.s32.totalorder %s18, 0
      %p51 = por %p49, %p50
      %p52 = scmp.ne.s32.totalorder %s38, %s39
      %p53 = scmp.eq.s32.totalorder %s19, 7
      %p54 = por %p52, %p53
      %p56 = scmp.ne.s32.totalorder %s39, %s55
      %p57 = scmp.eq.s32.totalorder %s19, 0
      %p58 = por %p56, %p57
      %s59 = ssub.s32 %s21, %s28
      %p60 = scmp.eq.s32.totalorder %s59, 0
      %s62 = sadd.s32 %s61, 1
      %s63 = scalar_select %p60, %s61, %s62
      %p66 = pneg %p60
      %p67 = scmp.eq.s32.totalorder %s13, 7
      %p68 = por %p66, %p67
      %p69 = scmp.ne.s32.totalorder %s61, %s64
      %p70 = scmp.eq.s32.totalorder %s13, 0
      %p71 = por %p69, %p70
      %p72 = scmp.ne.s32.totalorder %s61, %s64
      %p73 = scmp.eq.s32.totalorder %s18, 7
      %p74 = por %p72, %p73
      %p75 = scmp.ne.s32.totalorder %s64, %s65
      %p76 = scmp.eq.s32.totalorder %s18, 0
      %p77 = por %p75, %p76
      %p78 = scmp.ne.s32.totalorder %s64, %s65
      %p79 = scmp.eq.s32.totalorder %s19, 7
      %p80 = por %p78, %p79
      %p82 = scmp.ne.s32.totalorder %s65, %s81
      %p83 = scmp.eq.s32.totalorder %s19, 0
      %p84 = por %p82, %p83
      %s86 = sadd.s32 %s85, 1
      %p89 = scmp.eq.s32.totalorder %s13, 7
      %p90 = scmp.ne.s32.totalorder %s85, %s87
      %p91 = scmp.eq.s32.totalorder %s13, 0
      %p92 = por %p90, %p91
      %p93 = scmp.ne.s32.totalorder %s85, %s87
      %p94 = scmp.eq.s32.totalorder %s18, 7
      %p95 = por %p93, %p94
      %p96 = scmp.ne.s32.totalorder %s87, %s88
      %p97 = scmp.eq.s32.totalorder %s18, 0
      %p98 = por %p96, %p97
      %p99 = scmp.ne.s32.totalorder %s87, %s88
      %p100 = scmp.eq.s32.totalorder %s19, 7
      %p101 = por %p99, %p100
      %p103 = scmp.ne.s32.totalorder %s88, %s102
      %p104 = scmp.eq.s32.totalorder %s19, 0
      %p105 = por %p103, %p104
      %s107 = sadd.s32 %s106, 1
      %p110 = scmp.eq.s32.totalorder %s13, 7
      %p111 = scmp.ne.s32.totalorder %s106, %s108
      %p112 = scmp.eq.s32.totalorder %s13, 0
      %p113 = por %p111, %p112
      %p114 = scmp.ne.s32.totalorder %s106, %s108
      %p115 = scmp.eq.s32.totalorder %s18, 7
      %p116 = por %p114, %p115
      %p117 = scmp.ne.s32.totalorder %s108, %s109
      %p118 = scmp.eq.s32.totalorder %s18, 0
      %p119 = por %p117, %p118
      %p120 = scmp.ne.s32.totalorder %s108, %s109
      %p121 = scmp.eq.s32.totalorder %s19, 7
      %p122 = por %p120, %p121
      %p124 = scmp.ne.s32.totalorder %s109, %s123
      %p125 = scmp.eq.s32.totalorder %s19, 0
      %p126 = por %p124, %p125
      %s127 = ssub.s32 %s20, %s32
      %p128 = scmp.eq.s32.totalorder %s127, 0
      %s130 = sadd.s32 %s129, 1
      %s131 = scalar_select %p128, %s129, %s130
      %p134 = pneg %p128
      %p135 = scmp.eq.s32.totalorder %s13, 7
      %p136 = por %p134, %p135
      %p137 = scmp.ne.s32.totalorder %s129, %s132
      %p138 = scmp.eq.s32.totalorder %s13, 0
      %p139 = por %p137, %p138
      %p140 = scmp.ne.s32.totalorder %s129, %s132
      %p141 = scmp.eq.s32.totalorder %s18, 7
      %p142 = por %p140, %p141
      %p143 = scmp.ne.s32.totalorder %s132, %s133
      %p144 = scmp.eq.s32.totalorder %s18, 0
      %p145 = por %p143, %p144
      %p146 = scmp.ne.s32.totalorder %s132, %s133
      %p147 = scmp.eq.s32.totalorder %s19, 7
      %p148 = por %p146, %p147
      %p150 = scmp.ne.s32.totalorder %s133, %s149
      %p151 = scmp.eq.s32.totalorder %s19, 0
      %p152 = por %p150, %p151
      %p153 = scmp.le.s32.totalorder 1, %s13
      %p154 = scmp.lt.s32.totalorder %s13, 9
      %p155 = pnand %p153, %p154
      %p156 = pneg %p155
      // Predicated region
      $region9: #{tpu_custom_call.1} parent=5 // pred_check
        _
      $region10: #{tpu_custom_call.1} parent=5 // pred_check_branch
        %158 = sbr.rel (%p155) target = $region12
      $region11: #{tpu_custom_call.1} parent=5 // pred_region
        %s159 = ssub.s32 %s13, 1
        // Predicated region
        $region13: #{tpu_custom_call.1} parent=11 // pred_check
          %p160 = pneg %p98
        $region14: #{tpu_custom_call.1} parent=11 // pred_check_branch
          %162 = sbr.rel (%p160) target = $region16
        $region15: #{tpu_custom_call.1} parent=11 // pred_region
          _
        $region16: #{tpu_custom_call.1} parent=11 // pred_fallthru
          _
        // Predicated region
        $region17: #{tpu_custom_call.1} parent=11 // pred_check
          %p163 = pneg %p119
        $region18: #{tpu_custom_call.1} parent=11 // pred_check_branch
          %165 = sbr.rel (%p163) target = $region20
        $region19: #{tpu_custom_call.1} parent=11 // pred_region
          _
        $region20: #{tpu_custom_call.1} parent=11 // pred_fallthru
          _
      $region12: #{tpu_custom_call.1} parent=5 // pred_fallthru
        _
      %p166 = scmp.lt.s32.totalorder %s13, 8
      // Predicated region
      $region21: #{tpu_custom_call.1} parent=5 // pred_check
        %p167 = pneg %p166
      $region22: #{tpu_custom_call.1} parent=5 // pred_check_branch
        %169 = sbr.rel (%p167) target = $region24
      $region23: #{tpu_custom_call.1} parent=5 // pred_region
        // Predicated region
        $region25: #{tpu_custom_call.1} parent=23 // pred_check
          %p170 = pneg %p45
        $region26: #{tpu_custom_call.1} parent=23 // pred_check_branch
          %172 = sbr.rel (%p170) target = $region28
        $region27: #{tpu_custom_call.1} parent=23 // pred_region
          %s173 = sand.u32 %s35, 1
          %s174 = sand.u32 %s35, 1
          %s175 = smul.addr %s174, 64
          %s176 = scalar_lea.vmem [#allocation2], %s175
          %s177 = smul.addr %s20, 8
          %s178 = scalar_lea.vmem %s0, %s177
          // Predicated region
          $region29: #{tpu_custom_call.1} parent=27 // pred_check
            _
          $region30: #{tpu_custom_call.1} parent=27 // pred_check_branch
            %180 = sbr.rel (0) target = $region32
          $region31: #{tpu_custom_call.1} parent=27 // pred_region
            // Predicated region
            $region33: #{tpu_custom_call.1} parent=31 // pred_check
              _
            $region34: #{tpu_custom_call.1} parent=31 // pred_check_branch
              %182 = sbr.rel (0) target = $region36
            $region35: #{tpu_custom_call.1} parent=31 // pred_region
              // Predicated region
              $region48: #{tpu_custom_call.1} parent=35 // pred_check
                _
              $region49: #{tpu_custom_call.1} parent=35 // pred_check_branch
                %211 = sbr.rel (0) target = $region51
              $region50: #{tpu_custom_call.1} parent=35 // pred_region
                loop: start=0, step=1, limit=1
                $region52: #{tpu_custom_call.1} parent=50 // loop_pre_header
                  _
                $region53: #{tpu_custom_call.1} parent=50 // loop_header
                  %s213 = sphi 0, %s217
                  %p214 = scmp.ge.s32.totalorder %s213, 1
                  %s218 = sphi %s178, %s178
                  %s219 = sphi %s176, %s176
                $region54: #{tpu_custom_call.1} parent=50 // loop_header_branch
                  %216 = sbr.rel (%p214) target = $region58
                $region55: #{tpu_custom_call.1} parent=50 // loop_body
                  %v220 = vld [vmem:[%s218] sm:$0xff]
                  %221 = vst [vmem:[%s219] sm:$0xff] %v220
                  %v222 = vld [vmem:[%s218 + $0x10] sm:$0xff]
                  %223 = vst [vmem:[%s219 + $0x8] sm:$0xff] %v222
                  %v224 = vld [vmem:[%s218 + $0x20] sm:$0xff]
                  %225 = vst [vmem:[%s219 + $0x10] sm:$0xff] %v224
                  %v226 = vld [vmem:[%s218 + $0x30] sm:$0xff]
                  %227 = vst [vmem:[%s219 + $0x18] sm:$0xff] %v226
                  %v228 = vld [vmem:[%s218 + $0x40] sm:$0xff]
                  %229 = vst [vmem:[%s219 + $0x20] sm:$0xff] %v228
                  %v230 = vld [vmem:[%s218 + $0x50] sm:$0xff]
                  %231 = vst [vmem:[%s219 + $0x28] sm:$0xff] %v230
                  %v232 = vld [vmem:[%s218 + $0x60] sm:$0xff]
                  %233 = vst [vmem:[%s219 + $0x30] sm:$0xff] %v232
                  %v234 = vld [vmem:[%s218 + $0x70] sm:$0xff]
                  %235 = vst [vmem:[%s219 + $0x38] sm:$0xff] %v234
                $region56: #{tpu_custom_call.1} parent=50 // loop_footer
                  %s217 = sadd.s32 1, %s213
                $region57: #{tpu_custom_call.1} parent=50 // loop_footer_branch
                  %212 = sbr.rel target = $region53
                $region58: #{tpu_custom_call.1} parent=50 // loop_exit
                  _
              $region51: #{tpu_custom_call.1} parent=35 // pred_fallthru
                _
              // Predicated region
              $region59: #{tpu_custom_call.1} parent=35 // pred_check
                _
              $region60: #{tpu_custom_call.1} parent=35 // pred_check_branch
                %237 = sbr.rel target = $region62
              $region61: #{tpu_custom_call.1} parent=35 // pred_region
                _
              $region62: #{tpu_custom_call.1} parent=35 // pred_fallthru
                _
            $region36: #{tpu_custom_call.1} parent=31 // pred_fallthru
              _
            // Predicated region
            $region37: #{tpu_custom_call.1} parent=31 // pred_check
              _
            $region38: #{tpu_custom_call.1} parent=31 // pred_check_branch
              %184 = sbr.rel target = $region40
            $region39: #{tpu_custom_call.1} parent=31 // pred_region
              loop: start=0, step=1, limit=1
              $region41: #{tpu_custom_call.1} parent=39 // loop_pre_header
                _
              $region42: #{tpu_custom_call.1} parent=39 // loop_header
                %s187 = sphi 0, %s191
                %p188 = scmp.ge.s32.totalorder %s187, 1
                %s192 = sphi %s178, %s178
                %s193 = sphi %s176, %s176
              $region43: #{tpu_custom_call.1} parent=39 // loop_header_branch
                %190 = sbr.rel (%p188) target = $region47
              $region44: #{tpu_custom_call.1} parent=39 // loop_body
                %v194 = vld [vmem:[%s192] sm:$0xff]
                %195 = vst [vmem:[%s193] sm:$0xff] %v194
                %v196 = vld [vmem:[%s192 + $0x10] sm:$0xff]
                %197 = vst [vmem:[%s193 + $0x8] sm:$0xff] %v196
                %v198 = vld [vmem:[%s192 + $0x20] sm:$0xff]
                %199 = vst [vmem:[%s193 + $0x10] sm:$0xff] %v198
                %v200 = vld [vmem:[%s192 + $0x30] sm:$0xff]
                %201 = vst [vmem:[%s193 + $0x18] sm:$0xff] %v200
                %v202 = vld [vmem:[%s192 + $0x40] sm:$0xff]
                %203 = vst [vmem:[%s193 + $0x20] sm:$0xff] %v202
                %v204 = vld [vmem:[%s192 + $0x50] sm:$0xff]
                %205 = vst [vmem:[%s193 + $0x28] sm:$0xff] %v204
                %v206 = vld [vmem:[%s192 + $0x60] sm:$0xff]
                %207 = vst [vmem:[%s193 + $0x30] sm:$0xff] %v206
                %v208 = vld [vmem:[%s192 + $0x70] sm:$0xff]
                %209 = vst [vmem:[%s193 + $0x38] sm:$0xff] %v208
              $region45: #{tpu_custom_call.1} parent=39 // loop_footer
                %s191 = sadd.s32 1, %s187
              $region46: #{tpu_custom_call.1} parent=39 // loop_footer_branch
                %186 = sbr.rel target = $region42
              $region47: #{tpu_custom_call.1} parent=39 // loop_exit
                _
            $region40: #{tpu_custom_call.1} parent=31 // pred_fallthru
              _
          $region32: #{tpu_custom_call.1} parent=27 // pred_fallthru
            _
          %238 = vnop
        $region28: #{tpu_custom_call.1} parent=23 // pred_fallthru
          _
        // Predicated region
        $region63: #{tpu_custom_call.1} parent=23 // pred_check
          %p239 = pneg %p71
        $region64: #{tpu_custom_call.1} parent=23 // pred_check_branch
          %241 = sbr.rel (%p239) target = $region66
        $region65: #{tpu_custom_call.1} parent=23 // pred_region
          %s242 = smul.u32 512, %s21
          %p243 = scmp.lt.s32.totalorder %s242, 2047
          %s244 = scalar_select %p243, %s242, 2047
          %s245 = smul.addr %s244, 8
          %s246 = scalar_lea.vmem %s1, %s245
          %s247 = smul.u32 512, %s21
        $region66: #{tpu_custom_call.1} parent=23 // pred_fallthru
          _
      $region24: #{tpu_custom_call.1} parent=5 // pred_fallthru
        _
      %p248 = scmp.le.s32.totalorder 1, %s13
      %p249 = scmp.lt.s32.totalorder %s13, 9
      %p250 = pnand %p248, %p249
      %p251 = pneg %p250
      // Predicated region
      $region67: #{tpu_custom_call.1} parent=5 // pred_check
        _
      $region68: #{tpu_custom_call.1} parent=5 // pred_check_branch
        %253 = sbr.rel (%p250) target = $region70
      $region69: #{tpu_custom_call.1} parent=5 // pred_region
        %s254 = ssub.s32 %s13, 1
        %s255 = sand.u32 %s38, 1
        %s256 = sand.u32 %s38, 1
        %s257 = smul.addr %s256, 64
        %s258 = scalar_lea.vmem [#allocation2], %s257
        // Predicated region
        $region71: #{tpu_custom_call.1} parent=69 // pred_check
          %p259 = pneg %p51
        $region72: #{tpu_custom_call.1} parent=69 // pred_check_branch
          %261 = sbr.rel (%p259) target = $region74
        $region73: #{tpu_custom_call.1} parent=69 // pred_region
          _
        $region74: #{tpu_custom_call.1} parent=69 // pred_fallthru
          _
        %s262 = sand.u32 %s38, 1
        %s263 = sand.u32 %s38, 1
        %s264 = smul.addr %s263, 64
        %s265 = scalar_lea.vmem [#allocation2], %s264
        %p266 = pneg %p51
        %p267 = pneg %p48
        %s268 = smul.u32 512, %s23
        %p269 = scmp.lt.s32.totalorder %s268, 2047
        %s270 = scalar_select %p269, %s268, 2047
        %s271 = smul.addr %s270, 8
        %s272 = scalar_lea.vmem %s1, %s271
        %p273 = pneg %p77
        %p274 = pneg %p74
        %p275 = pneg %p98
        %p276 = pneg %p95
        %p277 = pneg %p119
        %p278 = pneg %p116
        %p279 = pneg %p145
        %p280 = pneg %p142
        %s281 = sand.u32 %s132, 1
        %s282 = scalar_lea.sflag [#allocation4], %s281
        %s283 = sand.u32 %s132, 1
        %s284 = smul.addr %s283, 8
        %s285 = scalar_lea.vmem [#allocation3], %s284
        %s286 = smul.u32 512, %s23
        %p287 = scmp.lt.s32.totalorder %s286, 2047
        %s288 = scalar_select %p287, %s286, 2047
        %s289 = smul.addr %s288, 8
        %s290 = scalar_lea.vmem %s1, %s289
        %s291 = smul.u32 512, %s23
        %p292 = scmp.eq.s32.totalorder %s23, 0
        // Predicated region
        $region75: #{tpu_custom_call.1} parent=69 // pred_check
          %p293 = pneg %p292
        $region76: #{tpu_custom_call.1} parent=69 // pred_check_branch
          %295 = sbr.rel (%p293) target = $region78
        $region77: #{tpu_custom_call.1} parent=69 // pred_region
          %296 = vst [vmem:[%s285] sm:$0xff] 0.0
        $region78: #{tpu_custom_call.1} parent=69 // pred_fallthru
          _
        %v297 = vld [vmem:[%s258] sm:$0xff]
        %v298 = vld [vmem:[%s258 + $0x8] sm:$0xff]
        %v299 = vld [vmem:[%s258 + $0x10] sm:$0xff]
        %v300 = vld [vmem:[%s258 + $0x18] sm:$0xff]
        %v301 = vld [vmem:[%s258 + $0x20] sm:$0xff]
        %v302 = vld [vmem:[%s258 + $0x28] sm:$0xff]
        %v303 = vld [vmem:[%s258 + $0x30] sm:$0xff]
        %v304 = vld [vmem:[%s258 + $0x38] sm:$0xff]
        %v305 = vld [vmem:[%s290] sm:$0xff]
        %v306 = vld [vmem:[%s290 + $0x8] sm:$0xff]
        %v307 = vld [vmem:[%s290 + $0x10] sm:$0xff]
        %v308 = vld [vmem:[%s290 + $0x18] sm:$0xff]
        %v309 = vld [vmem:[%s290 + $0x20] sm:$0xff]
        %v310 = vld [vmem:[%s290 + $0x28] sm:$0xff]
        %v311 = vld [vmem:[%s290 + $0x30] sm:$0xff]
        %v312 = vld [vmem:[%s290 + $0x38] sm:$0xff]
        %v313 = vld [vmem:[%s290 + $0x40] sm:$0xff]
        %v314 = vld [vmem:[%s290 + $0x48] sm:$0xff]
        %v315 = vld [vmem:[%s290 + $0x50] sm:$0xff]
        %v316 = vld [vmem:[%s290 + $0x58] sm:$0xff]
        %v317 = vld [vmem:[%s290 + $0x60] sm:$0xff]
        %v318 = vld [vmem:[%s290 + $0x68] sm:$0xff]
        %v319 = vld [vmem:[%s290 + $0x70] sm:$0xff]
        %v320 = vld [vmem:[%s290 + $0x78] sm:$0xff]
        %v321 = vld [vmem:[%s290 + $0x80] sm:$0xff]
        %v322 = vld [vmem:[%s290 + $0x88] sm:$0xff]
        %v323 = vld [vmem:[%s290 + $0x90] sm:$0xff]
        %v324 = vld [vmem:[%s290 + $0x98] sm:$0xff]
        %v325 = vld [vmem:[%s290 + $0xa0] sm:$0xff]
        %v326 = vld [vmem:[%s290 + $0xa8] sm:$0xff]
        %v327 = vld [vmem:[%s290 + $0xb0] sm:$0xff]
        %v328 = vld [vmem:[%s290 + $0xb8] sm:$0xff]
        %v329 = vld [vmem:[%s290 + $0xc0] sm:$0xff]
        %v330 = vld [vmem:[%s290 + $0xc8] sm:$0xff]
        %v331 = vld [vmem:[%s290 + $0xd0] sm:$0xff]
        %v332 = vld [vmem:[%s290 + $0xd8] sm:$0xff]
        %v333 = vld [vmem:[%s290 + $0xe0] sm:$0xff]
        %v334 = vld [vmem:[%s290 + $0xe8] sm:$0xff]
        %v335 = vld [vmem:[%s290 + $0xf0] sm:$0xff]
        %v336 = vld [vmem:[%s290 + $0xf8] sm:$0xff]
        %v337 = vld [vmem:[%s290 + $0x100] sm:$0xff]
        %v338 = vld [vmem:[%s290 + $0x108] sm:$0xff]
        %v339 = vld [vmem:[%s290 + $0x110] sm:$0xff]
        %v340 = vld [vmem:[%s290 + $0x118] sm:$0xff]
        %v341 = vld [vmem:[%s290 + $0x120] sm:$0xff]
        %v342 = vld [vmem:[%s290 + $0x128] sm:$0xff]
        %v343 = vld [vmem:[%s290 + $0x130] sm:$0xff]
        %v344 = vld [vmem:[%s290 + $0x138] sm:$0xff]
        %v345 = vld [vmem:[%s290 + $0x140] sm:$0xff]
        %v346 = vld [vmem:[%s290 + $0x148] sm:$0xff]
        %v347 = vld [vmem:[%s290 + $0x150] sm:$0xff]
        %v348 = vld [vmem:[%s290 + $0x158] sm:$0xff]
        %v349 = vld [vmem:[%s290 + $0x160] sm:$0xff]
        %v350 = vld [vmem:[%s290 + $0x168] sm:$0xff]
        %v351 = vld [vmem:[%s290 + $0x170] sm:$0xff]
        %v352 = vld [vmem:[%s290 + $0x178] sm:$0xff]
        %v353 = vld [vmem:[%s290 + $0x180] sm:$0xff]
        %v354 = vld [vmem:[%s290 + $0x188] sm:$0xff]
        %v355 = vld [vmem:[%s290 + $0x190] sm:$0xff]
        %v356 = vld [vmem:[%s290 + $0x198] sm:$0xff]
        %v357 = vld [vmem:[%s290 + $0x1a0] sm:$0xff]
        %v358 = vld [vmem:[%s290 + $0x1a8] sm:$0xff]
        %v359 = vld [vmem:[%s290 + $0x1b0] sm:$0xff]
        %v360 = vld [vmem:[%s290 + $0x1b8] sm:$0xff]
        %v361 = vld [vmem:[%s290 + $0x1c0] sm:$0xff]
        %v362 = vld [vmem:[%s290 + $0x1c8] sm:$0xff]
        %v363 = vld [vmem:[%s290 + $0x1d0] sm:$0xff]
        %v364 = vld [vmem:[%s290 + $0x1d8] sm:$0xff]
        %v365 = vld [vmem:[%s290 + $0x1e0] sm:$0xff]
        %v366 = vld [vmem:[%s290 + $0x1e8] sm:$0xff]
        %v367 = vld [vmem:[%s290 + $0x1f0] sm:$0xff]
        %v368 = vld [vmem:[%s290 + $0x1f8] sm:$0xff]
        %v369 = vld [vmem:[%s290 + $0x200] sm:$0xff]
        %v370 = vld [vmem:[%s290 + $0x208] sm:$0xff]
        %v371 = vld [vmem:[%s290 + $0x210] sm:$0xff]
        %v372 = vld [vmem:[%s290 + $0x218] sm:$0xff]
        %v373 = vld [vmem:[%s290 + $0x220] sm:$0xff]
        %v374 = vld [vmem:[%s290 + $0x228] sm:$0xff]
        %v375 = vld [vmem:[%s290 + $0x230] sm:$0xff]
        %v376 = vld [vmem:[%s290 + $0x238] sm:$0xff]
        %v377 = vld [vmem:[%s290 + $0x240] sm:$0xff]
        %v378 = vld [vmem:[%s290 + $0x248] sm:$0xff]
        %v379 = vld [vmem:[%s290 + $0x250] sm:$0xff]
        %v380 = vld [vmem:[%s290 + $0x258] sm:$0xff]
        %v381 = vld [vmem:[%s290 + $0x260] sm:$0xff]
        %v382 = vld [vmem:[%s290 + $0x268] sm:$0xff]
        %v383 = vld [vmem:[%s290 + $0x270] sm:$0xff]
        %v384 = vld [vmem:[%s290 + $0x278] sm:$0xff]
        %v385 = vld [vmem:[%s290 + $0x280] sm:$0xff]
        %v386 = vld [vmem:[%s290 + $0x288] sm:$0xff]
        %v387 = vld [vmem:[%s290 + $0x290] sm:$0xff]
        %v388 = vld [vmem:[%s290 + $0x298] sm:$0xff]
        %v389 = vld [vmem:[%s290 + $0x2a0] sm:$0xff]
        %v390 = vld [vmem:[%s290 + $0x2a8] sm:$0xff]
        %v391 = vld [vmem:[%s290 + $0x2b0] sm:$0xff]
        %v392 = vld [vmem:[%s290 + $0x2b8] sm:$0xff]
        %v393 = vld [vmem:[%s290 + $0x2c0] sm:$0xff]
        %v394 = vld [vmem:[%s290 + $0x2c8] sm:$0xff]
        %v395 = vld [vmem:[%s290 + $0x2d0] sm:$0xff]
        %v396 = vld [vmem:[%s290 + $0x2d8] sm:$0xff]
        %v397 = vld [vmem:[%s290 + $0x2e0] sm:$0xff]
        %v398 = vld [vmem:[%s290 + $0x2e8] sm:$0xff]
        %v399 = vld [vmem:[%s290 + $0x2f0] sm:$0xff]
        %v400 = vld [vmem:[%s290 + $0x2f8] sm:$0xff]
        %v401 = vld [vmem:[%s290 + $0x300] sm:$0xff]
        %v402 = vld [vmem:[%s290 + $0x308] sm:$0xff]
        %v403 = vld [vmem:[%s290 + $0x310] sm:$0xff]
        %v404 = vld [vmem:[%s290 + $0x318] sm:$0xff]
        %v405 = vld [vmem:[%s290 + $0x320] sm:$0xff]
        %v406 = vld [vmem:[%s290 + $0x328] sm:$0xff]
        %v407 = vld [vmem:[%s290 + $0x330] sm:$0xff]
        %v408 = vld [vmem:[%s290 + $0x338] sm:$0xff]
        %v409 = vld [vmem:[%s290 + $0x340] sm:$0xff]
        %v410 = vld [vmem:[%s290 + $0x348] sm:$0xff]
        %v411 = vld [vmem:[%s290 + $0x350] sm:$0xff]
        %v412 = vld [vmem:[%s290 + $0x358] sm:$0xff]
        %v413 = vld [vmem:[%s290 + $0x360] sm:$0xff]
        %v414 = vld [vmem:[%s290 + $0x368] sm:$0xff]
        %v415 = vld [vmem:[%s290 + $0x370] sm:$0xff]
        %v416 = vld [vmem:[%s290 + $0x378] sm:$0xff]
        %v417 = vld [vmem:[%s290 + $0x380] sm:$0xff]
        %v418 = vld [vmem:[%s290 + $0x388] sm:$0xff]
        %v419 = vld [vmem:[%s290 + $0x390] sm:$0xff]
        %v420 = vld [vmem:[%s290 + $0x398] sm:$0xff]
        %v421 = vld [vmem:[%s290 + $0x3a0] sm:$0xff]
        %v422 = vld [vmem:[%s290 + $0x3a8] sm:$0xff]
        %v423 = vld [vmem:[%s290 + $0x3b0] sm:$0xff]
        %v424 = vld [vmem:[%s290 + $0x3b8] sm:$0xff]
        %v425 = vld [vmem:[%s290 + $0x3c0] sm:$0xff]
        %v426 = vld [vmem:[%s290 + $0x3c8] sm:$0xff]
        %v427 = vld [vmem:[%s290 + $0x3d0] sm:$0xff]
        %v428 = vld [vmem:[%s290 + $0x3d8] sm:$0xff]
        %v429 = vld [vmem:[%s290 + $0x3e0] sm:$0xff]
        %v430 = vld [vmem:[%s290 + $0x3e8] sm:$0xff]
        %v431 = vld [vmem:[%s290 + $0x3f0] sm:$0xff]
        %v432 = vld [vmem:[%s290 + $0x3f8] sm:$0xff]
        %v433 = vld [vmem:[%s290 + $0x400] sm:$0xff]
        %v434 = vld [vmem:[%s290 + $0x408] sm:$0xff]
        %v435 = vld [vmem:[%s290 + $0x410] sm:$0xff]
        %v436 = vld [vmem:[%s290 + $0x418] sm:$0xff]
        %v437 = vld [vmem:[%s290 + $0x420] sm:$0xff]
        %v438 = vld [vmem:[%s290 + $0x428] sm:$0xff]
        %v439 = vld [vmem:[%s290 + $0x430] sm:$0xff]
        %v440 = vld [vmem:[%s290 + $0x438] sm:$0xff]
        %v441 = vld [vmem:[%s290 + $0x440] sm:$0xff]
        %v442 = vld [vmem:[%s290 + $0x448] sm:$0xff]
        %v443 = vld [vmem:[%s290 + $0x450] sm:$0xff]
        %v444 = vld [vmem:[%s290 + $0x458] sm:$0xff]
        %v445 = vld [vmem:[%s290 + $0x460] sm:$0xff]
        %v446 = vld [vmem:[%s290 + $0x468] sm:$0xff]
        %v447 = vld [vmem:[%s290 + $0x470] sm:$0xff]
        %v448 = vld [vmem:[%s290 + $0x478] sm:$0xff]
        %v449 = vld [vmem:[%s290 + $0x480] sm:$0xff]
        %v450 = vld [vmem:[%s290 + $0x488] sm:$0xff]
        %v451 = vld [vmem:[%s290 + $0x490] sm:$0xff]
        %v452 = vld [vmem:[%s290 + $0x498] sm:$0xff]
        %v453 = vld [vmem:[%s290 + $0x4a0] sm:$0xff]
        %v454 = vld [vmem:[%s290 + $0x4a8] sm:$0xff]
        %v455 = vld [vmem:[%s290 + $0x4b0] sm:$0xff]
        %v456 = vld [vmem:[%s290 + $0x4b8] sm:$0xff]
        %v457 = vld [vmem:[%s290 + $0x4c0] sm:$0xff]
        %v458 = vld [vmem:[%s290 + $0x4c8] sm:$0xff]
        %v459 = vld [vmem:[%s290 + $0x4d0] sm:$0xff]
        %v460 = vld [vmem:[%s290 + $0x4d8] sm:$0xff]
        %v461 = vld [vmem:[%s290 + $0x4e0] sm:$0xff]
        %v462 = vld [vmem:[%s290 + $0x4e8] sm:$0xff]
        %v463 = vld [vmem:[%s290 + $0x4f0] sm:$0xff]
        %v464 = vld [vmem:[%s290 + $0x4f8] sm:$0xff]
        %v465 = vld [vmem:[%s290 + $0x500] sm:$0xff]
        %v466 = vld [vmem:[%s290 + $0x508] sm:$0xff]
        %v467 = vld [vmem:[%s290 + $0x510] sm:$0xff]
        %v468 = vld [vmem:[%s290 + $0x518] sm:$0xff]
        %v469 = vld [vmem:[%s290 + $0x520] sm:$0xff]
        %v470 = vld [vmem:[%s290 + $0x528] sm:$0xff]
        %v471 = vld [vmem:[%s290 + $0x530] sm:$0xff]
        %v472 = vld [vmem:[%s290 + $0x538] sm:$0xff]
        %v473 = vld [vmem:[%s290 + $0x540] sm:$0xff]
        %v474 = vld [vmem:[%s290 + $0x548] sm:$0xff]
        %v475 = vld [vmem:[%s290 + $0x550] sm:$0xff]
        %v476 = vld [vmem:[%s290 + $0x558] sm:$0xff]
        %v477 = vld [vmem:[%s290 + $0x560] sm:$0xff]
        %v478 = vld [vmem:[%s290 + $0x568] sm:$0xff]
        %v479 = vld [vmem:[%s290 + $0x570] sm:$0xff]
        %v480 = vld [vmem:[%s290 + $0x578] sm:$0xff]
        %v481 = vld [vmem:[%s290 + $0x580] sm:$0xff]
        %v482 = vld [vmem:[%s290 + $0x588] sm:$0xff]
        %v483 = vld [vmem:[%s290 + $0x590] sm:$0xff]
        %v484 = vld [vmem:[%s290 + $0x598] sm:$0xff]
        %v485 = vld [vmem:[%s290 + $0x5a0] sm:$0xff]
        %v486 = vld [vmem:[%s290 + $0x5a8] sm:$0xff]
        %v487 = vld [vmem:[%s290 + $0x5b0] sm:$0xff]
        %v488 = vld [vmem:[%s290 + $0x5b8] sm:$0xff]
        %v489 = vld [vmem:[%s290 + $0x5c0] sm:$0xff]
        %v490 = vld [vmem:[%s290 + $0x5c8] sm:$0xff]
        %v491 = vld [vmem:[%s290 + $0x5d0] sm:$0xff]
        %v492 = vld [vmem:[%s290 + $0x5d8] sm:$0xff]
        %v493 = vld [vmem:[%s290 + $0x5e0] sm:$0xff]
        %v494 = vld [vmem:[%s290 + $0x5e8] sm:$0xff]
        %v495 = vld [vmem:[%s290 + $0x5f0] sm:$0xff]
        %v496 = vld [vmem:[%s290 + $0x5f8] sm:$0xff]
        %v497 = vld [vmem:[%s290 + $0x600] sm:$0xff]
        %v498 = vld [vmem:[%s290 + $0x608] sm:$0xff]
        %v499 = vld [vmem:[%s290 + $0x610] sm:$0xff]
        %v500 = vld [vmem:[%s290 + $0x618] sm:$0xff]
        %v501 = vld [vmem:[%s290 + $0x620] sm:$0xff]
        %v502 = vld [vmem:[%s290 + $0x628] sm:$0xff]
        %v503 = vld [vmem:[%s290 + $0x630] sm:$0xff]
        %v504 = vld [vmem:[%s290 + $0x638] sm:$0xff]
        %v505 = vld [vmem:[%s290 + $0x640] sm:$0xff]
        %v506 = vld [vmem:[%s290 + $0x648] sm:$0xff]
        %v507 = vld [vmem:[%s290 + $0x650] sm:$0xff]
        %v508 = vld [vmem:[%s290 + $0x658] sm:$0xff]
        %v509 = vld [vmem:[%s290 + $0x660] sm:$0xff]
        %v510 = vld [vmem:[%s290 + $0x668] sm:$0xff]
        %v511 = vld [vmem:[%s290 + $0x670] sm:$0xff]
        %v512 = vld [vmem:[%s290 + $0x678] sm:$0xff]
        %v513 = vld [vmem:[%s290 + $0x680] sm:$0xff]
        %v514 = vld [vmem:[%s290 + $0x688] sm:$0xff]
        %v515 = vld [vmem:[%s290 + $0x690] sm:$0xff]
        %v516 = vld [vmem:[%s290 + $0x698] sm:$0xff]
        %v517 = vld [vmem:[%s290 + $0x6a0] sm:$0xff]
        %v518 = vld [vmem:[%s290 + $0x6a8] sm:$0xff]
        %v519 = vld [vmem:[%s290 + $0x6b0] sm:$0xff]
        %v520 = vld [vmem:[%s290 + $0x6b8] sm:$0xff]
        %v521 = vld [vmem:[%s290 + $0x6c0] sm:$0xff]
        %v522 = vld [vmem:[%s290 + $0x6c8] sm:$0xff]
        %v523 = vld [vmem:[%s290 + $0x6d0] sm:$0xff]
        %v524 = vld [vmem:[%s290 + $0x6d8] sm:$0xff]
        %v525 = vld [vmem:[%s290 + $0x6e0] sm:$0xff]
        %v526 = vld [vmem:[%s290 + $0x6e8] sm:$0xff]
        %v527 = vld [vmem:[%s290 + $0x6f0] sm:$0xff]
        %v528 = vld [vmem:[%s290 + $0x6f8] sm:$0xff]
        %v529 = vld [vmem:[%s290 + $0x700] sm:$0xff]
        %v530 = vld [vmem:[%s290 + $0x708] sm:$0xff]
        %v531 = vld [vmem:[%s290 + $0x710] sm:$0xff]
        %v532 = vld [vmem:[%s290 + $0x718] sm:$0xff]
        %v533 = vld [vmem:[%s290 + $0x720] sm:$0xff]
        %v534 = vld [vmem:[%s290 + $0x728] sm:$0xff]
        %v535 = vld [vmem:[%s290 + $0x730] sm:$0xff]
        %v536 = vld [vmem:[%s290 + $0x738] sm:$0xff]
        %v537 = vld [vmem:[%s290 + $0x740] sm:$0xff]
        %v538 = vld [vmem:[%s290 + $0x748] sm:$0xff]
        %v539 = vld [vmem:[%s290 + $0x750] sm:$0xff]
        %v540 = vld [vmem:[%s290 + $0x758] sm:$0xff]
        %v541 = vld [vmem:[%s290 + $0x760] sm:$0xff]
        %v542 = vld [vmem:[%s290 + $0x768] sm:$0xff]
        %v543 = vld [vmem:[%s290 + $0x770] sm:$0xff]
        %v544 = vld [vmem:[%s290 + $0x778] sm:$0xff]
        %v545 = vld [vmem:[%s290 + $0x780] sm:$0xff]
        %v546 = vld [vmem:[%s290 + $0x788] sm:$0xff]
        %v547 = vld [vmem:[%s290 + $0x790] sm:$0xff]
        %v548 = vld [vmem:[%s290 + $0x798] sm:$0xff]
        %v549 = vld [vmem:[%s290 + $0x7a0] sm:$0xff]
        %v550 = vld [vmem:[%s290 + $0x7a8] sm:$0xff]
        %v551 = vld [vmem:[%s290 + $0x7b0] sm:$0xff]
        %v552 = vld [vmem:[%s290 + $0x7b8] sm:$0xff]
        %v553 = vld [vmem:[%s290 + $0x7c0] sm:$0xff]
        %v554 = vld [vmem:[%s290 + $0x7c8] sm:$0xff]
        %v555 = vld [vmem:[%s290 + $0x7d0] sm:$0xff]
        %v556 = vld [vmem:[%s290 + $0x7d8] sm:$0xff]
        %v557 = vld [vmem:[%s290 + $0x7e0] sm:$0xff]
        %v558 = vld [vmem:[%s290 + $0x7e8] sm:$0xff]
        %v559 = vld [vmem:[%s290 + $0x7f0] sm:$0xff]
        %v560 = vld [vmem:[%s290 + $0x7f8] sm:$0xff]
        %v561 = vld [vmem:[%s290 + $0x800] sm:$0xff]
        %v562 = vld [vmem:[%s290 + $0x808] sm:$0xff]
        %v563 = vld [vmem:[%s290 + $0x810] sm:$0xff]
        %v564 = vld [vmem:[%s290 + $0x818] sm:$0xff]
        %v565 = vld [vmem:[%s290 + $0x820] sm:$0xff]
        %v566 = vld [vmem:[%s290 + $0x828] sm:$0xff]
        %v567 = vld [vmem:[%s290 + $0x830] sm:$0xff]
        %v568 = vld [vmem:[%s290 + $0x838] sm:$0xff]
        %v569 = vld [vmem:[%s290 + $0x840] sm:$0xff]
        %v570 = vld [vmem:[%s290 + $0x848] sm:$0xff]
        %v571 = vld [vmem:[%s290 + $0x850] sm:$0xff]
        %v572 = vld [vmem:[%s290 + $0x858] sm:$0xff]
        %v573 = vld [vmem:[%s290 + $0x860] sm:$0xff]
        %v574 = vld [vmem:[%s290 + $0x868] sm:$0xff]
        %v575 = vld [vmem:[%s290 + $0x870] sm:$0xff]
        %v576 = vld [vmem:[%s290 + $0x878] sm:$0xff]
        %v577 = vld [vmem:[%s290 + $0x880] sm:$0xff]
        %v578 = vld [vmem:[%s290 + $0x888] sm:$0xff]
        %v579 = vld [vmem:[%s290 + $0x890] sm:$0xff]
        %v580 = vld [vmem:[%s290 + $0x898] sm:$0xff]
        %v581 = vld [vmem:[%s290 + $0x8a0] sm:$0xff]
        %v582 = vld [vmem:[%s290 + $0x8a8] sm:$0xff]
        %v583 = vld [vmem:[%s290 + $0x8b0] sm:$0xff]
        %v584 = vld [vmem:[%s290 + $0x8b8] sm:$0xff]
        %v585 = vld [vmem:[%s290 + $0x8c0] sm:$0xff]
        %v586 = vld [vmem:[%s290 + $0x8c8] sm:$0xff]
        %v587 = vld [vmem:[%s290 + $0x8d0] sm:$0xff]
        %v588 = vld [vmem:[%s290 + $0x8d8] sm:$0xff]
        %v589 = vld [vmem:[%s290 + $0x8e0] sm:$0xff]
        %v590 = vld [vmem:[%s290 + $0x8e8] sm:$0xff]
        %v591 = vld [vmem:[%s290 + $0x8f0] sm:$0xff]
        %v592 = vld [vmem:[%s290 + $0x8f8] sm:$0xff]
        %v593 = vld [vmem:[%s290 + $0x900] sm:$0xff]
        %v594 = vld [vmem:[%s290 + $0x908] sm:$0xff]
        %v595 = vld [vmem:[%s290 + $0x910] sm:$0xff]
        %v596 = vld [vmem:[%s290 + $0x918] sm:$0xff]
        %v597 = vld [vmem:[%s290 + $0x920] sm:$0xff]
        %v598 = vld [vmem:[%s290 + $0x928] sm:$0xff]
        %v599 = vld [vmem:[%s290 + $0x930] sm:$0xff]
        %v600 = vld [vmem:[%s290 + $0x938] sm:$0xff]
        %v601 = vld [vmem:[%s290 + $0x940] sm:$0xff]
        %v602 = vld [vmem:[%s290 + $0x948] sm:$0xff]
        %v603 = vld [vmem:[%s290 + $0x950] sm:$0xff]
        %v604 = vld [vmem:[%s290 + $0x958] sm:$0xff]
        %v605 = vld [vmem:[%s290 + $0x960] sm:$0xff]
        %v606 = vld [vmem:[%s290 + $0x968] sm:$0xff]
        %v607 = vld [vmem:[%s290 + $0x970] sm:$0xff]
        %v608 = vld [vmem:[%s290 + $0x978] sm:$0xff]
        %v609 = vld [vmem:[%s290 + $0x980] sm:$0xff]
        %v610 = vld [vmem:[%s290 + $0x988] sm:$0xff]
        %v611 = vld [vmem:[%s290 + $0x990] sm:$0xff]
        %v612 = vld [vmem:[%s290 + $0x998] sm:$0xff]
        %v613 = vld [vmem:[%s290 + $0x9a0] sm:$0xff]
        %v614 = vld [vmem:[%s290 + $0x9a8] sm:$0xff]
        %v615 = vld [vmem:[%s290 + $0x9b0] sm:$0xff]
        %v616 = vld [vmem:[%s290 + $0x9b8] sm:$0xff]
        %v617 = vld [vmem:[%s290 + $0x9c0] sm:$0xff]
        %v618 = vld [vmem:[%s290 + $0x9c8] sm:$0xff]
        %v619 = vld [vmem:[%s290 + $0x9d0] sm:$0xff]
        %v620 = vld [vmem:[%s290 + $0x9d8] sm:$0xff]
        %v621 = vld [vmem:[%s290 + $0x9e0] sm:$0xff]
        %v622 = vld [vmem:[%s290 + $0x9e8] sm:$0xff]
        %v623 = vld [vmem:[%s290 + $0x9f0] sm:$0xff]
        %v624 = vld [vmem:[%s290 + $0x9f8] sm:$0xff]
        %v625 = vld [vmem:[%s290 + $0xa00] sm:$0xff]
        %v626 = vld [vmem:[%s290 + $0xa08] sm:$0xff]
        %v627 = vld [vmem:[%s290 + $0xa10] sm:$0xff]
        %v628 = vld [vmem:[%s290 + $0xa18] sm:$0xff]
        %v629 = vld [vmem:[%s290 + $0xa20] sm:$0xff]
        %v630 = vld [vmem:[%s290 + $0xa28] sm:$0xff]
        %v631 = vld [vmem:[%s290 + $0xa30] sm:$0xff]
        %v632 = vld [vmem:[%s290 + $0xa38] sm:$0xff]
        %v633 = vld [vmem:[%s290 + $0xa40] sm:$0xff]
        %v634 = vld [vmem:[%s290 + $0xa48] sm:$0xff]
        %v635 = vld [vmem:[%s290 + $0xa50] sm:$0xff]
        %v636 = vld [vmem:[%s290 + $0xa58] sm:$0xff]
        %v637 = vld [vmem:[%s290 + $0xa60] sm:$0xff]
        %v638 = vld [vmem:[%s290 + $0xa68] sm:$0xff]
        %v639 = vld [vmem:[%s290 + $0xa70] sm:$0xff]
        %v640 = vld [vmem:[%s290 + $0xa78] sm:$0xff]
        %v641 = vld [vmem:[%s290 + $0xa80] sm:$0xff]
        %v642 = vld [vmem:[%s290 + $0xa88] sm:$0xff]
        %v643 = vld [vmem:[%s290 + $0xa90] sm:$0xff]
        %v644 = vld [vmem:[%s290 + $0xa98] sm:$0xff]
        %v645 = vld [vmem:[%s290 + $0xaa0] sm:$0xff]
        %v646 = vld [vmem:[%s290 + $0xaa8] sm:$0xff]
        %v647 = vld [vmem:[%s290 + $0xab0] sm:$0xff]
        %v648 = vld [vmem:[%s290 + $0xab8] sm:$0xff]
        %v649 = vld [vmem:[%s290 + $0xac0] sm:$0xff]
        %v650 = vld [vmem:[%s290 + $0xac8] sm:$0xff]
        %v651 = vld [vmem:[%s290 + $0xad0] sm:$0xff]
        %v652 = vld [vmem:[%s290 + $0xad8] sm:$0xff]
        %v653 = vld [vmem:[%s290 + $0xae0] sm:$0xff]
        %v654 = vld [vmem:[%s290 + $0xae8] sm:$0xff]
        %v655 = vld [vmem:[%s290 + $0xaf0] sm:$0xff]
        %v656 = vld [vmem:[%s290 + $0xaf8] sm:$0xff]
        %v657 = vld [vmem:[%s290 + $0xb00] sm:$0xff]
        %v658 = vld [vmem:[%s290 + $0xb08] sm:$0xff]
        %v659 = vld [vmem:[%s290 + $0xb10] sm:$0xff]
        %v660 = vld [vmem:[%s290 + $0xb18] sm:$0xff]
        %v661 = vld [vmem:[%s290 + $0xb20] sm:$0xff]
        %v662 = vld [vmem:[%s290 + $0xb28] sm:$0xff]
        %v663 = vld [vmem:[%s290 + $0xb30] sm:$0xff]
        %v664 = vld [vmem:[%s290 + $0xb38] sm:$0xff]
        %v665 = vld [vmem:[%s290 + $0xb40] sm:$0xff]
        %v666 = vld [vmem:[%s290 + $0xb48] sm:$0xff]
        %v667 = vld [vmem:[%s290 + $0xb50] sm:$0xff]
        %v668 = vld [vmem:[%s290 + $0xb58] sm:$0xff]
        %v669 = vld [vmem:[%s290 + $0xb60] sm:$0xff]
        %v670 = vld [vmem:[%s290 + $0xb68] sm:$0xff]
        %v671 = vld [vmem:[%s290 + $0xb70] sm:$0xff]
        %v672 = vld [vmem:[%s290 + $0xb78] sm:$0xff]
        %v673 = vld [vmem:[%s290 + $0xb80] sm:$0xff]
        %v674 = vld [vmem:[%s290 + $0xb88] sm:$0xff]
        %v675 = vld [vmem:[%s290 + $0xb90] sm:$0xff]
        %v676 = vld [vmem:[%s290 + $0xb98] sm:$0xff]
        %v677 = vld [vmem:[%s290 + $0xba0] sm:$0xff]
        %v678 = vld [vmem:[%s290 + $0xba8] sm:$0xff]
        %v679 = vld [vmem:[%s290 + $0xbb0] sm:$0xff]
        %v680 = vld [vmem:[%s290 + $0xbb8] sm:$0xff]
        %v681 = vld [vmem:[%s290 + $0xbc0] sm:$0xff]
        %v682 = vld [vmem:[%s290 + $0xbc8] sm:$0xff]
        %v683 = vld [vmem:[%s290 + $0xbd0] sm:$0xff]
        %v684 = vld [vmem:[%s290 + $0xbd8] sm:$0xff]
        %v685 = vld [vmem:[%s290 + $0xbe0] sm:$0xff]
        %v686 = vld [vmem:[%s290 + $0xbe8] sm:$0xff]
        %v687 = vld [vmem:[%s290 + $0xbf0] sm:$0xff]
        %v688 = vld [vmem:[%s290 + $0xbf8] sm:$0xff]
        %v689 = vld [vmem:[%s290 + $0xc00] sm:$0xff]
        %v690 = vld [vmem:[%s290 + $0xc08] sm:$0xff]
        %v691 = vld [vmem:[%s290 + $0xc10] sm:$0xff]
        %v692 = vld [vmem:[%s290 + $0xc18] sm:$0xff]
        %v693 = vld [vmem:[%s290 + $0xc20] sm:$0xff]
        %v694 = vld [vmem:[%s290 + $0xc28] sm:$0xff]
        %v695 = vld [vmem:[%s290 + $0xc30] sm:$0xff]
        %v696 = vld [vmem:[%s290 + $0xc38] sm:$0xff]
        %v697 = vld [vmem:[%s290 + $0xc40] sm:$0xff]
        %v698 = vld [vmem:[%s290 + $0xc48] sm:$0xff]
        %v699 = vld [vmem:[%s290 + $0xc50] sm:$0xff]
        %v700 = vld [vmem:[%s290 + $0xc58] sm:$0xff]
        %v701 = vld [vmem:[%s290 + $0xc60] sm:$0xff]
        %v702 = vld [vmem:[%s290 + $0xc68] sm:$0xff]
        %v703 = vld [vmem:[%s290 + $0xc70] sm:$0xff]
        %v704 = vld [vmem:[%s290 + $0xc78] sm:$0xff]
        %v705 = vld [vmem:[%s290 + $0xc80] sm:$0xff]
        %v706 = vld [vmem:[%s290 + $0xc88] sm:$0xff]
        %v707 = vld [vmem:[%s290 + $0xc90] sm:$0xff]
        %v708 = vld [vmem:[%s290 + $0xc98] sm:$0xff]
        %v709 = vld [vmem:[%s290 + $0xca0] sm:$0xff]
        %v710 = vld [vmem:[%s290 + $0xca8] sm:$0xff]
        %v711 = vld [vmem:[%s290 + $0xcb0] sm:$0xff]
        %v712 = vld [vmem:[%s290 + $0xcb8] sm:$0xff]
        %v713 = vld [vmem:[%s290 + $0xcc0] sm:$0xff]
        %v714 = vld [vmem:[%s290 + $0xcc8] sm:$0xff]
        %v715 = vld [vmem:[%s290 + $0xcd0] sm:$0xff]
        %v716 = vld [vmem:[%s290 + $0xcd8] sm:$0xff]
        %v717 = vld [vmem:[%s290 + $0xce0] sm:$0xff]
        %v718 = vld [vmem:[%s290 + $0xce8] sm:$0xff]
        %v719 = vld [vmem:[%s290 + $0xcf0] sm:$0xff]
        %v720 = vld [vmem:[%s290 + $0xcf8] sm:$0xff]
        %v721 = vld [vmem:[%s290 + $0xd00] sm:$0xff]
        %v722 = vld [vmem:[%s290 + $0xd08] sm:$0xff]
        %v723 = vld [vmem:[%s290 + $0xd10] sm:$0xff]
        %v724 = vld [vmem:[%s290 + $0xd18] sm:$0xff]
        %v725 = vld [vmem:[%s290 + $0xd20] sm:$0xff]
        %v726 = vld [vmem:[%s290 + $0xd28] sm:$0xff]
        %v727 = vld [vmem:[%s290 + $0xd30] sm:$0xff]
        %v728 = vld [vmem:[%s290 + $0xd38] sm:$0xff]
        %v729 = vld [vmem:[%s290 + $0xd40] sm:$0xff]
        %v730 = vld [vmem:[%s290 + $0xd48] sm:$0xff]
        %v731 = vld [vmem:[%s290 + $0xd50] sm:$0xff]
        %v732 = vld [vmem:[%s290 + $0xd58] sm:$0xff]
        %v733 = vld [vmem:[%s290 + $0xd60] sm:$0xff]
        %v734 = vld [vmem:[%s290 + $0xd68] sm:$0xff]
        %v735 = vld [vmem:[%s290 + $0xd70] sm:$0xff]
        %v736 = vld [vmem:[%s290 + $0xd78] sm:$0xff]
        %v737 = vld [vmem:[%s290 + $0xd80] sm:$0xff]
        %v738 = vld [vmem:[%s290 + $0xd88] sm:$0xff]
        %v739 = vld [vmem:[%s290 + $0xd90] sm:$0xff]
        %v740 = vld [vmem:[%s290 + $0xd98] sm:$0xff]
        %v741 = vld [vmem:[%s290 + $0xda0] sm:$0xff]
        %v742 = vld [vmem:[%s290 + $0xda8] sm:$0xff]
        %v743 = vld [vmem:[%s290 + $0xdb0] sm:$0xff]
        %v744 = vld [vmem:[%s290 + $0xdb8] sm:$0xff]
        %v745 = vld [vmem:[%s290 + $0xdc0] sm:$0xff]
        %v746 = vld [vmem:[%s290 + $0xdc8] sm:$0xff]
        %v747 = vld [vmem:[%s290 + $0xdd0] sm:$0xff]
        %v748 = vld [vmem:[%s290 + $0xdd8] sm:$0xff]
        %v749 = vld [vmem:[%s290 + $0xde0] sm:$0xff]
        %v750 = vld [vmem:[%s290 + $0xde8] sm:$0xff]
        %v751 = vld [vmem:[%s290 + $0xdf0] sm:$0xff]
        %v752 = vld [vmem:[%s290 + $0xdf8] sm:$0xff]
        %v753 = vld [vmem:[%s290 + $0xe00] sm:$0xff]
        %v754 = vld [vmem:[%s290 + $0xe08] sm:$0xff]
        %v755 = vld [vmem:[%s290 + $0xe10] sm:$0xff]
        %v756 = vld [vmem:[%s290 + $0xe18] sm:$0xff]
        %v757 = vld [vmem:[%s290 + $0xe20] sm:$0xff]
        %v758 = vld [vmem:[%s290 + $0xe28] sm:$0xff]
        %v759 = vld [vmem:[%s290 + $0xe30] sm:$0xff]
        %v760 = vld [vmem:[%s290 + $0xe38] sm:$0xff]
        %v761 = vld [vmem:[%s290 + $0xe40] sm:$0xff]
        %v762 = vld [vmem:[%s290 + $0xe48] sm:$0xff]
        %v763 = vld [vmem:[%s290 + $0xe50] sm:$0xff]
        %v764 = vld [vmem:[%s290 + $0xe58] sm:$0xff]
        %v765 = vld [vmem:[%s290 + $0xe60] sm:$0xff]
        %v766 = vld [vmem:[%s290 + $0xe68] sm:$0xff]
        %v767 = vld [vmem:[%s290 + $0xe70] sm:$0xff]
        %v768 = vld [vmem:[%s290 + $0xe78] sm:$0xff]
        %v769 = vld [vmem:[%s290 + $0xe80] sm:$0xff]
        %v770 = vld [vmem:[%s290 + $0xe88] sm:$0xff]
        %v771 = vld [vmem:[%s290 + $0xe90] sm:$0xff]
        %v772 = vld [vmem:[%s290 + $0xe98] sm:$0xff]
        %v773 = vld [vmem:[%s290 + $0xea0] sm:$0xff]
        %v774 = vld [vmem:[%s290 + $0xea8] sm:$0xff]
        %v775 = vld [vmem:[%s290 + $0xeb0] sm:$0xff]
        %v776 = vld [vmem:[%s290 + $0xeb8] sm:$0xff]
        %v777 = vld [vmem:[%s290 + $0xec0] sm:$0xff]
        %v778 = vld [vmem:[%s290 + $0xec8] sm:$0xff]
        %v779 = vld [vmem:[%s290 + $0xed0] sm:$0xff]
        %v780 = vld [vmem:[%s290 + $0xed8] sm:$0xff]
        %v781 = vld [vmem:[%s290 + $0xee0] sm:$0xff]
        %v782 = vld [vmem:[%s290 + $0xee8] sm:$0xff]
        %v783 = vld [vmem:[%s290 + $0xef0] sm:$0xff]
        %v784 = vld [vmem:[%s290 + $0xef8] sm:$0xff]
        %v785 = vld [vmem:[%s290 + $0xf00] sm:$0xff]
        %v786 = vld [vmem:[%s290 + $0xf08] sm:$0xff]
        %v787 = vld [vmem:[%s290 + $0xf10] sm:$0xff]
        %v788 = vld [vmem:[%s290 + $0xf18] sm:$0xff]
        %v789 = vld [vmem:[%s290 + $0xf20] sm:$0xff]
        %v790 = vld [vmem:[%s290 + $0xf28] sm:$0xff]
        %v791 = vld [vmem:[%s290 + $0xf30] sm:$0xff]
        %v792 = vld [vmem:[%s290 + $0xf38] sm:$0xff]
        %v793 = vld [vmem:[%s290 + $0xf40] sm:$0xff]
        %v794 = vld [vmem:[%s290 + $0xf48] sm:$0xff]
        %v795 = vld [vmem:[%s290 + $0xf50] sm:$0xff]
        %v796 = vld [vmem:[%s290 + $0xf58] sm:$0xff]
        %v797 = vld [vmem:[%s290 + $0xf60] sm:$0xff]
        %v798 = vld [vmem:[%s290 + $0xf68] sm:$0xff]
        %v799 = vld [vmem:[%s290 + $0xf70] sm:$0xff]
        %v800 = vld [vmem:[%s290 + $0xf78] sm:$0xff]
        %v801 = vld [vmem:[%s290 + $0xf80] sm:$0xff]
        %v802 = vld [vmem:[%s290 + $0xf88] sm:$0xff]
        %v803 = vld [vmem:[%s290 + $0xf90] sm:$0xff]
        %v804 = vld [vmem:[%s290 + $0xf98] sm:$0xff]
        %v805 = vld [vmem:[%s290 + $0xfa0] sm:$0xff]
        %v806 = vld [vmem:[%s290 + $0xfa8] sm:$0xff]
        %v807 = vld [vmem:[%s290 + $0xfb0] sm:$0xff]
        %v808 = vld [vmem:[%s290 + $0xfb8] sm:$0xff]
        %v809 = vld [vmem:[%s290 + $0xfc0] sm:$0xff]
        %v810 = vld [vmem:[%s290 + $0xfc8] sm:$0xff]
        %v811 = vld [vmem:[%s290 + $0xfd0] sm:$0xff]
        %v812 = vld [vmem:[%s290 + $0xfd8] sm:$0xff]
        %v813 = vld [vmem:[%s290 + $0xfe0] sm:$0xff]
        %v814 = vld [vmem:[%s290 + $0xfe8] sm:$0xff]
        %v815 = vld [vmem:[%s290 + $0xff0] sm:$0xff]
        %v816 = vld [vmem:[%s290 + $0xff8] sm:$0xff]
        %818 = vset.pattern.permute.xlu0 0
        %819 = vperm.xlu0 %818, %v305
        %v820 = vpop.permute.xlu0 %819
        %823 = vset.pattern.permute.xlu0 0
        %824 = vperm.xlu0 %823, %v306
        %v825 = vpop.permute.xlu0 %824
        %828 = vset.pattern.permute.xlu0 0
        %829 = vperm.xlu0 %828, %v307
        %v830 = vpop.permute.xlu0 %829
        %833 = vset.pattern.permute.xlu0 0
        %834 = vperm.xlu0 %833, %v308
        %v835 = vpop.permute.xlu0 %834
        %838 = vset.pattern.permute.xlu0 0
        %839 = vperm.xlu0 %838, %v309
        %v840 = vpop.permute.xlu0 %839
        %843 = vset.pattern.permute.xlu0 0
        %844 = vperm.xlu0 %843, %v310
        %v845 = vpop.permute.xlu0 %844
        %848 = vset.pattern.permute.xlu0 0
        %849 = vperm.xlu0 %848, %v311
        %v850 = vpop.permute.xlu0 %849
        %853 = vset.pattern.permute.xlu0 0
        %854 = vperm.xlu0 %853, %v312
        %v855 = vpop.permute.xlu0 %854
        %858 = vset.pattern.permute.xlu0 0
        %859 = vperm.xlu0 %858, %v313
        %v860 = vpop.permute.xlu0 %859
        %863 = vset.pattern.permute.xlu0 0
        %864 = vperm.xlu0 %863, %v314
        %v865 = vpop.permute.xlu0 %864
        %868 = vset.pattern.permute.xlu0 0
        %869 = vperm.xlu0 %868, %v315
        %v870 = vpop.permute.xlu0 %869
        %873 = vset.pattern.permute.xlu0 0
        %874 = vperm.xlu0 %873, %v316
        %v875 = vpop.permute.xlu0 %874
        %878 = vset.pattern.permute.xlu0 0
        %879 = vperm.xlu0 %878, %v317
        %v880 = vpop.permute.xlu0 %879
        %883 = vset.pattern.permute.xlu0 0
        %884 = vperm.xlu0 %883, %v318
        %v885 = vpop.permute.xlu0 %884
        %888 = vset.pattern.permute.xlu0 0
        %889 = vperm.xlu0 %888, %v319
        %v890 = vpop.permute.xlu0 %889
        %893 = vset.pattern.permute.xlu0 0
        %894 = vperm.xlu0 %893, %v320
        %v895 = vpop.permute.xlu0 %894
        %898 = vset.pattern.permute.xlu0 0
        %899 = vperm.xlu0 %898, %v321
        %v900 = vpop.permute.xlu0 %899
        %903 = vset.pattern.permute.xlu0 0
        %904 = vperm.xlu0 %903, %v322
        %v905 = vpop.permute.xlu0 %904
        %908 = vset.pattern.permute.xlu0 0
        %909 = vperm.xlu0 %908, %v323
        %v910 = vpop.permute.xlu0 %909
        %913 = vset.pattern.permute.xlu0 0
        %914 = vperm.xlu0 %913, %v324
        %v915 = vpop.permute.xlu0 %914
        %918 = vset.pattern.permute.xlu0 0
        %919 = vperm.xlu0 %918, %v325
        %v920 = vpop.permute.xlu0 %919
        %923 = vset.pattern.permute.xlu0 0
        %924 = vperm.xlu0 %923, %v326
        %v925 = vpop.permute.xlu0 %924
        %928 = vset.pattern.permute.xlu0 0
        %929 = vperm.xlu0 %928, %v327
        %v930 = vpop.permute.xlu0 %929
        %933 = vset.pattern.permute.xlu0 0
        %934 = vperm.xlu0 %933, %v328
        %v935 = vpop.permute.xlu0 %934
        %938 = vset.pattern.permute.xlu0 0
        %939 = vperm.xlu0 %938, %v329
        %v940 = vpop.permute.xlu0 %939
        %943 = vset.pattern.permute.xlu0 0
        %944 = vperm.xlu0 %943, %v330
        %v945 = vpop.permute.xlu0 %944
        %948 = vset.pattern.permute.xlu0 0
        %949 = vperm.xlu0 %948, %v331
        %v950 = vpop.permute.xlu0 %949
        %953 = vset.pattern.permute.xlu0 0
        %954 = vperm.xlu0 %953, %v332
        %v955 = vpop.permute.xlu0 %954
        %958 = vset.pattern.permute.xlu0 0
        %959 = vperm.xlu0 %958, %v333
        %v960 = vpop.permute.xlu0 %959
        %963 = vset.pattern.permute.xlu0 0
        %964 = vperm.xlu0 %963, %v334
        %v965 = vpop.permute.xlu0 %964
        %968 = vset.pattern.permute.xlu0 0
        %969 = vperm.xlu0 %968, %v335
        %v970 = vpop.permute.xlu0 %969
        %973 = vset.pattern.permute.xlu0 0
        %974 = vperm.xlu0 %973, %v336
        %v975 = vpop.permute.xlu0 %974
        %978 = vset.pattern.permute.xlu0 0
        %979 = vperm.xlu0 %978, %v337
        %v980 = vpop.permute.xlu0 %979
        %983 = vset.pattern.permute.xlu0 0
        %984 = vperm.xlu0 %983, %v338
        %v985 = vpop.permute.xlu0 %984
        %988 = vset.pattern.permute.xlu0 0
        %989 = vperm.xlu0 %988, %v339
        %v990 = vpop.permute.xlu0 %989
        %993 = vset.pattern.permute.xlu0 0
        %994 = vperm.xlu0 %993, %v340
        %v995 = vpop.permute.xlu0 %994
        %998 = vset.pattern.permute.xlu0 0
        %999 = vperm.xlu0 %998, %v341
        %v1000 = vpop.permute.xlu0 %999
        %1003 = vset.pattern.permute.xlu0 0
        %1004 = vperm.xlu0 %1003, %v342
        %v1005 = vpop.permute.xlu0 %1004
        %1008 = vset.pattern.permute.xlu0 0
        %1009 = vperm.xlu0 %1008, %v343
        %v1010 = vpop.permute.xlu0 %1009
        %1013 = vset.pattern.permute.xlu0 0
        %1014 = vperm.xlu0 %1013, %v344
        %v1015 = vpop.permute.xlu0 %1014
        %1018 = vset.pattern.permute.xlu0 0
        %1019 = vperm.xlu0 %1018, %v345
        %v1020 = vpop.permute.xlu0 %1019
        %1023 = vset.pattern.permute.xlu0 0
        %1024 = vperm.xlu0 %1023, %v346
        %v1025 = vpop.permute.xlu0 %1024
        %1028 = vset.pattern.permute.xlu0 0
        %1029 = vperm.xlu0 %1028, %v347
        %v1030 = vpop.permute.xlu0 %1029
        %1033 = vset.pattern.permute.xlu0 0
        %1034 = vperm.xlu0 %1033, %v348
        %v1035 = vpop.permute.xlu0 %1034
        %1038 = vset.pattern.permute.xlu0 0
        %1039 = vperm.xlu0 %1038, %v349
        %v1040 = vpop.permute.xlu0 %1039
        %1043 = vset.pattern.permute.xlu0 0
        %1044 = vperm.xlu0 %1043, %v350
        %v1045 = vpop.permute.xlu0 %1044
        %1048 = vset.pattern.permute.xlu0 0
        %1049 = vperm.xlu0 %1048, %v351
        %v1050 = vpop.permute.xlu0 %1049
        %1053 = vset.pattern.permute.xlu0 0
        %1054 = vperm.xlu0 %1053, %v352
        %v1055 = vpop.permute.xlu0 %1054
        %1058 = vset.pattern.permute.xlu0 0
        %1059 = vperm.xlu0 %1058, %v353
        %v1060 = vpop.permute.xlu0 %1059
        %1063 = vset.pattern.permute.xlu0 0
        %1064 = vperm.xlu0 %1063, %v354
        %v1065 = vpop.permute.xlu0 %1064
        %1068 = vset.pattern.permute.xlu0 0
        %1069 = vperm.xlu0 %1068, %v355
        %v1070 = vpop.permute.xlu0 %1069
        %1073 = vset.pattern.permute.xlu0 0
        %1074 = vperm.xlu0 %1073, %v356
        %v1075 = vpop.permute.xlu0 %1074
        %1078 = vset.pattern.permute.xlu0 0
        %1079 = vperm.xlu0 %1078, %v357
        %v1080 = vpop.permute.xlu0 %1079
        %1083 = vset.pattern.permute.xlu0 0
        %1084 = vperm.xlu0 %1083, %v358
        %v1085 = vpop.permute.xlu0 %1084
        %1088 = vset.pattern.permute.xlu0 0
        %1089 = vperm.xlu0 %1088, %v359
        %v1090 = vpop.permute.xlu0 %1089
        %1093 = vset.pattern.permute.xlu0 0
        %1094 = vperm.xlu0 %1093, %v360
        %v1095 = vpop.permute.xlu0 %1094
        %1098 = vset.pattern.permute.xlu0 0
        %1099 = vperm.xlu0 %1098, %v361
        %v1100 = vpop.permute.xlu0 %1099
        %1103 = vset.pattern.permute.xlu0 0
        %1104 = vperm.xlu0 %1103, %v362
        %v1105 = vpop.permute.xlu0 %1104
        %1108 = vset.pattern.permute.xlu0 0
        %1109 = vperm.xlu0 %1108, %v363
        %v1110 = vpop.permute.xlu0 %1109
        %1113 = vset.pattern.permute.xlu0 0
        %1114 = vperm.xlu0 %1113, %v364
        %v1115 = vpop.permute.xlu0 %1114
        %1118 = vset.pattern.permute.xlu0 0
        %1119 = vperm.xlu0 %1118, %v365
        %v1120 = vpop.permute.xlu0 %1119
        %1123 = vset.pattern.permute.xlu0 0
        %1124 = vperm.xlu0 %1123, %v366
        %v1125 = vpop.permute.xlu0 %1124
        %1128 = vset.pattern.permute.xlu0 0
        %1129 = vperm.xlu0 %1128, %v367
        %v1130 = vpop.permute.xlu0 %1129
        %1133 = vset.pattern.permute.xlu0 0
        %1134 = vperm.xlu0 %1133, %v368
        %v1135 = vpop.permute.xlu0 %1134
        %1138 = vset.pattern.permute.xlu0 0
        %1139 = vperm.xlu0 %1138, %v369
        %v1140 = vpop.permute.xlu0 %1139
        %1143 = vset.pattern.permute.xlu0 0
        %1144 = vperm.xlu0 %1143, %v370
        %v1145 = vpop.permute.xlu0 %1144
        %1148 = vset.pattern.permute.xlu0 0
        %1149 = vperm.xlu0 %1148, %v371
        %v1150 = vpop.permute.xlu0 %1149
        %1153 = vset.pattern.permute.xlu0 0
        %1154 = vperm.xlu0 %1153, %v372
        %v1155 = vpop.permute.xlu0 %1154
        %1158 = vset.pattern.permute.xlu0 0
        %1159 = vperm.xlu0 %1158, %v373
        %v1160 = vpop.permute.xlu0 %1159
        %1163 = vset.pattern.permute.xlu0 0
        %1164 = vperm.xlu0 %1163, %v374
        %v1165 = vpop.permute.xlu0 %1164
        %1168 = vset.pattern.permute.xlu0 0
        %1169 = vperm.xlu0 %1168, %v375
        %v1170 = vpop.permute.xlu0 %1169
        %1173 = vset.pattern.permute.xlu0 0
        %1174 = vperm.xlu0 %1173, %v376
        %v1175 = vpop.permute.xlu0 %1174
        %1178 = vset.pattern.permute.xlu0 0
        %1179 = vperm.xlu0 %1178, %v377
        %v1180 = vpop.permute.xlu0 %1179
        %1183 = vset.pattern.permute.xlu0 0
        %1184 = vperm.xlu0 %1183, %v378
        %v1185 = vpop.permute.xlu0 %1184
        %1188 = vset.pattern.permute.xlu0 0
        %1189 = vperm.xlu0 %1188, %v379
        %v1190 = vpop.permute.xlu0 %1189
        %1193 = vset.pattern.permute.xlu0 0
        %1194 = vperm.xlu0 %1193, %v380
        %v1195 = vpop.permute.xlu0 %1194
        %1198 = vset.pattern.permute.xlu0 0
        %1199 = vperm.xlu0 %1198, %v381
        %v1200 = vpop.permute.xlu0 %1199
        %1203 = vset.pattern.permute.xlu0 0
        %1204 = vperm.xlu0 %1203, %v382
        %v1205 = vpop.permute.xlu0 %1204
        %1208 = vset.pattern.permute.xlu0 0
        %1209 = vperm.xlu0 %1208, %v383
        %v1210 = vpop.permute.xlu0 %1209
        %1213 = vset.pattern.permute.xlu0 0
        %1214 = vperm.xlu0 %1213, %v384
        %v1215 = vpop.permute.xlu0 %1214
        %1218 = vset.pattern.permute.xlu0 0
        %1219 = vperm.xlu0 %1218, %v385
        %v1220 = vpop.permute.xlu0 %1219
        %1223 = vset.pattern.permute.xlu0 0
        %1224 = vperm.xlu0 %1223, %v386
        %v1225 = vpop.permute.xlu0 %1224
        %1228 = vset.pattern.permute.xlu0 0
        %1229 = vperm.xlu0 %1228, %v387
        %v1230 = vpop.permute.xlu0 %1229
        %1233 = vset.pattern.permute.xlu0 0
        %1234 = vperm.xlu0 %1233, %v388
        %v1235 = vpop.permute.xlu0 %1234
        %1238 = vset.pattern.permute.xlu0 0
        %1239 = vperm.xlu0 %1238, %v389
        %v1240 = vpop.permute.xlu0 %1239
        %1243 = vset.pattern.permute.xlu0 0
        %1244 = vperm.xlu0 %1243, %v390
        %v1245 = vpop.permute.xlu0 %1244
        %1248 = vset.pattern.permute.xlu0 0
        %1249 = vperm.xlu0 %1248, %v391
        %v1250 = vpop.permute.xlu0 %1249
        %1253 = vset.pattern.permute.xlu0 0
        %1254 = vperm.xlu0 %1253, %v392
        %v1255 = vpop.permute.xlu0 %1254
        %1258 = vset.pattern.permute.xlu0 0
        %1259 = vperm.xlu0 %1258, %v393
        %v1260 = vpop.permute.xlu0 %1259
        %1263 = vset.pattern.permute.xlu0 0
        %1264 = vperm.xlu0 %1263, %v394
        %v1265 = vpop.permute.xlu0 %1264
        %1268 = vset.pattern.permute.xlu0 0
        %1269 = vperm.xlu0 %1268, %v395
        %v1270 = vpop.permute.xlu0 %1269
        %1273 = vset.pattern.permute.xlu0 0
        %1274 = vperm.xlu0 %1273, %v396
        %v1275 = vpop.permute.xlu0 %1274
        %1278 = vset.pattern.permute.xlu0 0
        %1279 = vperm.xlu0 %1278, %v397
        %v1280 = vpop.permute.xlu0 %1279
        %1283 = vset.pattern.permute.xlu0 0
        %1284 = vperm.xlu0 %1283, %v398
        %v1285 = vpop.permute.xlu0 %1284
        %1288 = vset.pattern.permute.xlu0 0
        %1289 = vperm.xlu0 %1288, %v399
        %v1290 = vpop.permute.xlu0 %1289
        %1293 = vset.pattern.permute.xlu0 0
        %1294 = vperm.xlu0 %1293, %v400
        %v1295 = vpop.permute.xlu0 %1294
        %1298 = vset.pattern.permute.xlu0 0
        %1299 = vperm.xlu0 %1298, %v401
        %v1300 = vpop.permute.xlu0 %1299
        %1303 = vset.pattern.permute.xlu0 0
        %1304 = vperm.xlu0 %1303, %v402
        %v1305 = vpop.permute.xlu0 %1304
        %1308 = vset.pattern.permute.xlu0 0
        %1309 = vperm.xlu0 %1308, %v403
        %v1310 = vpop.permute.xlu0 %1309
        %1313 = vset.pattern.permute.xlu0 0
        %1314 = vperm.xlu0 %1313, %v404
        %v1315 = vpop.permute.xlu0 %1314
        %1318 = vset.pattern.permute.xlu0 0
        %1319 = vperm.xlu0 %1318, %v405
        %v1320 = vpop.permute.xlu0 %1319
        %1323 = vset.pattern.permute.xlu0 0
        %1324 = vperm.xlu0 %1323, %v406
        %v1325 = vpop.permute.xlu0 %1324
        %1328 = vset.pattern.permute.xlu0 0
        %1329 = vperm.xlu0 %1328, %v407
        %v1330 = vpop.permute.xlu0 %1329
        %1333 = vset.pattern.permute.xlu0 0
        %1334 = vperm.xlu0 %1333, %v408
        %v1335 = vpop.permute.xlu0 %1334
        %1338 = vset.pattern.permute.xlu0 0
        %1339 = vperm.xlu0 %1338, %v409
        %v1340 = vpop.permute.xlu0 %1339
        %1343 = vset.pattern.permute.xlu0 0
        %1344 = vperm.xlu0 %1343, %v410
        %v1345 = vpop.permute.xlu0 %1344
        %1348 = vset.pattern.permute.xlu0 0
        %1349 = vperm.xlu0 %1348, %v411
        %v1350 = vpop.permute.xlu0 %1349
        %1353 = vset.pattern.permute.xlu0 0
        %1354 = vperm.xlu0 %1353, %v412
        %v1355 = vpop.permute.xlu0 %1354
        %1358 = vset.pattern.permute.xlu0 0
        %1359 = vperm.xlu0 %1358, %v413
        %v1360 = vpop.permute.xlu0 %1359
        %1363 = vset.pattern.permute.xlu0 0
        %1364 = vperm.xlu0 %1363, %v414
        %v1365 = vpop.permute.xlu0 %1364
        %1368 = vset.pattern.permute.xlu0 0
        %1369 = vperm.xlu0 %1368, %v415
        %v1370 = vpop.permute.xlu0 %1369
        %1373 = vset.pattern.permute.xlu0 0
        %1374 = vperm.xlu0 %1373, %v416
        %v1375 = vpop.permute.xlu0 %1374
        %1378 = vset.pattern.permute.xlu0 0
        %1379 = vperm.xlu0 %1378, %v417
        %v1380 = vpop.permute.xlu0 %1379
        %1383 = vset.pattern.permute.xlu0 0
        %1384 = vperm.xlu0 %1383, %v418
        %v1385 = vpop.permute.xlu0 %1384
        %1388 = vset.pattern.permute.xlu0 0
        %1389 = vperm.xlu0 %1388, %v419
        %v1390 = vpop.permute.xlu0 %1389
        %1393 = vset.pattern.permute.xlu0 0
        %1394 = vperm.xlu0 %1393, %v420
        %v1395 = vpop.permute.xlu0 %1394
        %1398 = vset.pattern.permute.xlu0 0
        %1399 = vperm.xlu0 %1398, %v421
        %v1400 = vpop.permute.xlu0 %1399
        %1403 = vset.pattern.permute.xlu0 0
        %1404 = vperm.xlu0 %1403, %v422
        %v1405 = vpop.permute.xlu0 %1404
        %1408 = vset.pattern.permute.xlu0 0
        %1409 = vperm.xlu0 %1408, %v423
        %v1410 = vpop.permute.xlu0 %1409
        %1413 = vset.pattern.permute.xlu0 0
        %1414 = vperm.xlu0 %1413, %v424
        %v1415 = vpop.permute.xlu0 %1414
        %1418 = vset.pattern.permute.xlu0 0
        %1419 = vperm.xlu0 %1418, %v425
        %v1420 = vpop.permute.xlu0 %1419
        %1423 = vset.pattern.permute.xlu0 0
        %1424 = vperm.xlu0 %1423, %v426
        %v1425 = vpop.permute.xlu0 %1424
        %1428 = vset.pattern.permute.xlu0 0
        %1429 = vperm.xlu0 %1428, %v427
        %v1430 = vpop.permute.xlu0 %1429
        %1433 = vset.pattern.permute.xlu0 0
        %1434 = vperm.xlu0 %1433, %v428
        %v1435 = vpop.permute.xlu0 %1434
        %1438 = vset.pattern.permute.xlu0 0
        %1439 = vperm.xlu0 %1438, %v429
        %v1440 = vpop.permute.xlu0 %1439
        %1443 = vset.pattern.permute.xlu0 0
        %1444 = vperm.xlu0 %1443, %v430
        %v1445 = vpop.permute.xlu0 %1444
        %1448 = vset.pattern.permute.xlu0 0
        %1449 = vperm.xlu0 %1448, %v431
        %v1450 = vpop.permute.xlu0 %1449
        %1453 = vset.pattern.permute.xlu0 0
        %1454 = vperm.xlu0 %1453, %v432
        %v1455 = vpop.permute.xlu0 %1454
        %1458 = vset.pattern.permute.xlu0 0
        %1459 = vperm.xlu0 %1458, %v433
        %v1460 = vpop.permute.xlu0 %1459
        %1463 = vset.pattern.permute.xlu0 0
        %1464 = vperm.xlu0 %1463, %v434
        %v1465 = vpop.permute.xlu0 %1464
        %1468 = vset.pattern.permute.xlu0 0
        %1469 = vperm.xlu0 %1468, %v435
        %v1470 = vpop.permute.xlu0 %1469
        %1473 = vset.pattern.permute.xlu0 0
        %1474 = vperm.xlu0 %1473, %v436
        %v1475 = vpop.permute.xlu0 %1474
        %1478 = vset.pattern.permute.xlu0 0
        %1479 = vperm.xlu0 %1478, %v437
        %v1480 = vpop.permute.xlu0 %1479
        %1483 = vset.pattern.permute.xlu0 0
        %1484 = vperm.xlu0 %1483, %v438
        %v1485 = vpop.permute.xlu0 %1484
        %1488 = vset.pattern.permute.xlu0 0
        %1489 = vperm.xlu0 %1488, %v439
        %v1490 = vpop.permute.xlu0 %1489
        %1493 = vset.pattern.permute.xlu0 0
        %1494 = vperm.xlu0 %1493, %v440
        %v1495 = vpop.permute.xlu0 %1494
        %1498 = vset.pattern.permute.xlu0 0
        %1499 = vperm.xlu0 %1498, %v441
        %v1500 = vpop.permute.xlu0 %1499
        %1503 = vset.pattern.permute.xlu0 0
        %1504 = vperm.xlu0 %1503, %v442
        %v1505 = vpop.permute.xlu0 %1504
        %1508 = vset.pattern.permute.xlu0 0
        %1509 = vperm.xlu0 %1508, %v443
        %v1510 = vpop.permute.xlu0 %1509
        %1513 = vset.pattern.permute.xlu0 0
        %1514 = vperm.xlu0 %1513, %v444
        %v1515 = vpop.permute.xlu0 %1514
        %1518 = vset.pattern.permute.xlu0 0
        %1519 = vperm.xlu0 %1518, %v445
        %v1520 = vpop.permute.xlu0 %1519
        %1523 = vset.pattern.permute.xlu0 0
        %1524 = vperm.xlu0 %1523, %v446
        %v1525 = vpop.permute.xlu0 %1524
        %1528 = vset.pattern.permute.xlu0 0
        %1529 = vperm.xlu0 %1528, %v447
        %v1530 = vpop.permute.xlu0 %1529
        %1533 = vset.pattern.permute.xlu0 0
        %1534 = vperm.xlu0 %1533, %v448
        %v1535 = vpop.permute.xlu0 %1534
        %1538 = vset.pattern.permute.xlu0 0
        %1539 = vperm.xlu0 %1538, %v449
        %v1540 = vpop.permute.xlu0 %1539
        %1543 = vset.pattern.permute.xlu0 0
        %1544 = vperm.xlu0 %1543, %v450
        %v1545 = vpop.permute.xlu0 %1544
        %1548 = vset.pattern.permute.xlu0 0
        %1549 = vperm.xlu0 %1548, %v451
        %v1550 = vpop.permute.xlu0 %1549
        %1553 = vset.pattern.permute.xlu0 0
        %1554 = vperm.xlu0 %1553, %v452
        %v1555 = vpop.permute.xlu0 %1554
        %1558 = vset.pattern.permute.xlu0 0
        %1559 = vperm.xlu0 %1558, %v453
        %v1560 = vpop.permute.xlu0 %1559
        %1563 = vset.pattern.permute.xlu0 0
        %1564 = vperm.xlu0 %1563, %v454
        %v1565 = vpop.permute.xlu0 %1564
        %1568 = vset.pattern.permute.xlu0 0
        %1569 = vperm.xlu0 %1568, %v455
        %v1570 = vpop.permute.xlu0 %1569
        %1573 = vset.pattern.permute.xlu0 0
        %1574 = vperm.xlu0 %1573, %v456
        %v1575 = vpop.permute.xlu0 %1574
        %1578 = vset.pattern.permute.xlu0 0
        %1579 = vperm.xlu0 %1578, %v457
        %v1580 = vpop.permute.xlu0 %1579
        %1583 = vset.pattern.permute.xlu0 0
        %1584 = vperm.xlu0 %1583, %v458
        %v1585 = vpop.permute.xlu0 %1584
        %1588 = vset.pattern.permute.xlu0 0
        %1589 = vperm.xlu0 %1588, %v459
        %v1590 = vpop.permute.xlu0 %1589
        %1593 = vset.pattern.permute.xlu0 0
        %1594 = vperm.xlu0 %1593, %v460
        %v1595 = vpop.permute.xlu0 %1594
        %1598 = vset.pattern.permute.xlu0 0
        %1599 = vperm.xlu0 %1598, %v461
        %v1600 = vpop.permute.xlu0 %1599
        %1603 = vset.pattern.permute.xlu0 0
        %1604 = vperm.xlu0 %1603, %v462
        %v1605 = vpop.permute.xlu0 %1604
        %1608 = vset.pattern.permute.xlu0 0
        %1609 = vperm.xlu0 %1608, %v463
        %v1610 = vpop.permute.xlu0 %1609
        %1613 = vset.pattern.permute.xlu0 0
        %1614 = vperm.xlu0 %1613, %v464
        %v1615 = vpop.permute.xlu0 %1614
        %1618 = vset.pattern.permute.xlu0 0
        %1619 = vperm.xlu0 %1618, %v465
        %v1620 = vpop.permute.xlu0 %1619
        %1623 = vset.pattern.permute.xlu0 0
        %1624 = vperm.xlu0 %1623, %v466
        %v1625 = vpop.permute.xlu0 %1624
        %1628 = vset.pattern.permute.xlu0 0
        %1629 = vperm.xlu0 %1628, %v467
        %v1630 = vpop.permute.xlu0 %1629
        %1633 = vset.pattern.permute.xlu0 0
        %1634 = vperm.xlu0 %1633, %v468
        %v1635 = vpop.permute.xlu0 %1634
        %1638 = vset.pattern.permute.xlu0 0
        %1639 = vperm.xlu0 %1638, %v469
        %v1640 = vpop.permute.xlu0 %1639
        %1643 = vset.pattern.permute.xlu0 0
        %1644 = vperm.xlu0 %1643, %v470
        %v1645 = vpop.permute.xlu0 %1644
        %1648 = vset.pattern.permute.xlu0 0
        %1649 = vperm.xlu0 %1648, %v471
        %v1650 = vpop.permute.xlu0 %1649
        %1653 = vset.pattern.permute.xlu0 0
        %1654 = vperm.xlu0 %1653, %v472
        %v1655 = vpop.permute.xlu0 %1654
        %1658 = vset.pattern.permute.xlu0 0
        %1659 = vperm.xlu0 %1658, %v473
        %v1660 = vpop.permute.xlu0 %1659
        %1663 = vset.pattern.permute.xlu0 0
        %1664 = vperm.xlu0 %1663, %v474
        %v1665 = vpop.permute.xlu0 %1664
        %1668 = vset.pattern.permute.xlu0 0
        %1669 = vperm.xlu0 %1668, %v475
        %v1670 = vpop.permute.xlu0 %1669
        %1673 = vset.pattern.permute.xlu0 0
        %1674 = vperm.xlu0 %1673, %v476
        %v1675 = vpop.permute.xlu0 %1674
        %1678 = vset.pattern.permute.xlu0 0
        %1679 = vperm.xlu0 %1678, %v477
        %v1680 = vpop.permute.xlu0 %1679
        %1683 = vset.pattern.permute.xlu0 0
        %1684 = vperm.xlu0 %1683, %v478
        %v1685 = vpop.permute.xlu0 %1684
        %1688 = vset.pattern.permute.xlu0 0
        %1689 = vperm.xlu0 %1688, %v479
        %v1690 = vpop.permute.xlu0 %1689
        %1693 = vset.pattern.permute.xlu0 0
        %1694 = vperm.xlu0 %1693, %v480
        %v1695 = vpop.permute.xlu0 %1694
        %1698 = vset.pattern.permute.xlu0 0
        %1699 = vperm.xlu0 %1698, %v481
        %v1700 = vpop.permute.xlu0 %1699
        %1703 = vset.pattern.permute.xlu0 0
        %1704 = vperm.xlu0 %1703, %v482
        %v1705 = vpop.permute.xlu0 %1704
        %1708 = vset.pattern.permute.xlu0 0
        %1709 = vperm.xlu0 %1708, %v483
        %v1710 = vpop.permute.xlu0 %1709
        %1713 = vset.pattern.permute.xlu0 0
        %1714 = vperm.xlu0 %1713, %v484
        %v1715 = vpop.permute.xlu0 %1714
        %1718 = vset.pattern.permute.xlu0 0
        %1719 = vperm.xlu0 %1718, %v485
        %v1720 = vpop.permute.xlu0 %1719
        %1723 = vset.pattern.permute.xlu0 0
        %1724 = vperm.xlu0 %1723, %v486
        %v1725 = vpop.permute.xlu0 %1724
        %1728 = vset.pattern.permute.xlu0 0
        %1729 = vperm.xlu0 %1728, %v487
        %v1730 = vpop.permute.xlu0 %1729
        %1733 = vset.pattern.permute.xlu0 0
        %1734 = vperm.xlu0 %1733, %v488
        %v1735 = vpop.permute.xlu0 %1734
        %1738 = vset.pattern.permute.xlu0 0
        %1739 = vperm.xlu0 %1738, %v489
        %v1740 = vpop.permute.xlu0 %1739
        %1743 = vset.pattern.permute.xlu0 0
        %1744 = vperm.xlu0 %1743, %v490
        %v1745 = vpop.permute.xlu0 %1744
        %1748 = vset.pattern.permute.xlu0 0
        %1749 = vperm.xlu0 %1748, %v491
        %v1750 = vpop.permute.xlu0 %1749
        %1753 = vset.pattern.permute.xlu0 0
        %1754 = vperm.xlu0 %1753, %v492
        %v1755 = vpop.permute.xlu0 %1754
        %1758 = vset.pattern.permute.xlu0 0
        %1759 = vperm.xlu0 %1758, %v493
        %v1760 = vpop.permute.xlu0 %1759
        %1763 = vset.pattern.permute.xlu0 0
        %1764 = vperm.xlu0 %1763, %v494
        %v1765 = vpop.permute.xlu0 %1764
        %1768 = vset.pattern.permute.xlu0 0
        %1769 = vperm.xlu0 %1768, %v495
        %v1770 = vpop.permute.xlu0 %1769
        %1773 = vset.pattern.permute.xlu0 0
        %1774 = vperm.xlu0 %1773, %v496
        %v1775 = vpop.permute.xlu0 %1774
        %1778 = vset.pattern.permute.xlu0 0
        %1779 = vperm.xlu0 %1778, %v497
        %v1780 = vpop.permute.xlu0 %1779
        %1783 = vset.pattern.permute.xlu0 0
        %1784 = vperm.xlu0 %1783, %v498
        %v1785 = vpop.permute.xlu0 %1784
        %1788 = vset.pattern.permute.xlu0 0
        %1789 = vperm.xlu0 %1788, %v499
        %v1790 = vpop.permute.xlu0 %1789
        %1793 = vset.pattern.permute.xlu0 0
        %1794 = vperm.xlu0 %1793, %v500
        %v1795 = vpop.permute.xlu0 %1794
        %1798 = vset.pattern.permute.xlu0 0
        %1799 = vperm.xlu0 %1798, %v501
        %v1800 = vpop.permute.xlu0 %1799
        %1803 = vset.pattern.permute.xlu0 0
        %1804 = vperm.xlu0 %1803, %v502
        %v1805 = vpop.permute.xlu0 %1804
        %1808 = vset.pattern.permute.xlu0 0
        %1809 = vperm.xlu0 %1808, %v503
        %v1810 = vpop.permute.xlu0 %1809
        %1813 = vset.pattern.permute.xlu0 0
        %1814 = vperm.xlu0 %1813, %v504
        %v1815 = vpop.permute.xlu0 %1814
        %1818 = vset.pattern.permute.xlu0 0
        %1819 = vperm.xlu0 %1818, %v505
        %v1820 = vpop.permute.xlu0 %1819
        %1823 = vset.pattern.permute.xlu0 0
        %1824 = vperm.xlu0 %1823, %v506
        %v1825 = vpop.permute.xlu0 %1824
        %1828 = vset.pattern.permute.xlu0 0
        %1829 = vperm.xlu0 %1828, %v507
        %v1830 = vpop.permute.xlu0 %1829
        %1833 = vset.pattern.permute.xlu0 0
        %1834 = vperm.xlu0 %1833, %v508
        %v1835 = vpop.permute.xlu0 %1834
        %1838 = vset.pattern.permute.xlu0 0
        %1839 = vperm.xlu0 %1838, %v509
        %v1840 = vpop.permute.xlu0 %1839
        %1843 = vset.pattern.permute.xlu0 0
        %1844 = vperm.xlu0 %1843, %v510
        %v1845 = vpop.permute.xlu0 %1844
        %1848 = vset.pattern.permute.xlu0 0
        %1849 = vperm.xlu0 %1848, %v511
        %v1850 = vpop.permute.xlu0 %1849
        %1853 = vset.pattern.permute.xlu0 0
        %1854 = vperm.xlu0 %1853, %v512
        %v1855 = vpop.permute.xlu0 %1854
        %1858 = vset.pattern.permute.xlu0 0
        %1859 = vperm.xlu0 %1858, %v513
        %v1860 = vpop.permute.xlu0 %1859
        %1863 = vset.pattern.permute.xlu0 0
        %1864 = vperm.xlu0 %1863, %v514
        %v1865 = vpop.permute.xlu0 %1864
        %1868 = vset.pattern.permute.xlu0 0
        %1869 = vperm.xlu0 %1868, %v515
        %v1870 = vpop.permute.xlu0 %1869
        %1873 = vset.pattern.permute.xlu0 0
        %1874 = vperm.xlu0 %1873, %v516
        %v1875 = vpop.permute.xlu0 %1874
        %1878 = vset.pattern.permute.xlu0 0
        %1879 = vperm.xlu0 %1878, %v517
        %v1880 = vpop.permute.xlu0 %1879
        %1883 = vset.pattern.permute.xlu0 0
        %1884 = vperm.xlu0 %1883, %v518
        %v1885 = vpop.permute.xlu0 %1884
        %1888 = vset.pattern.permute.xlu0 0
        %1889 = vperm.xlu0 %1888, %v519
        %v1890 = vpop.permute.xlu0 %1889
        %1893 = vset.pattern.permute.xlu0 0
        %1894 = vperm.xlu0 %1893, %v520
        %v1895 = vpop.permute.xlu0 %1894
        %1898 = vset.pattern.permute.xlu0 0
        %1899 = vperm.xlu0 %1898, %v521
        %v1900 = vpop.permute.xlu0 %1899
        %1903 = vset.pattern.permute.xlu0 0
        %1904 = vperm.xlu0 %1903, %v522
        %v1905 = vpop.permute.xlu0 %1904
        %1908 = vset.pattern.permute.xlu0 0
        %1909 = vperm.xlu0 %1908, %v523
        %v1910 = vpop.permute.xlu0 %1909
        %1913 = vset.pattern.permute.xlu0 0
        %1914 = vperm.xlu0 %1913, %v524
        %v1915 = vpop.permute.xlu0 %1914
        %1918 = vset.pattern.permute.xlu0 0
        %1919 = vperm.xlu0 %1918, %v525
        %v1920 = vpop.permute.xlu0 %1919
        %1923 = vset.pattern.permute.xlu0 0
        %1924 = vperm.xlu0 %1923, %v526
        %v1925 = vpop.permute.xlu0 %1924
        %1928 = vset.pattern.permute.xlu0 0
        %1929 = vperm.xlu0 %1928, %v527
        %v1930 = vpop.permute.xlu0 %1929
        %1933 = vset.pattern.permute.xlu0 0
        %1934 = vperm.xlu0 %1933, %v528
        %v1935 = vpop.permute.xlu0 %1934
        %1938 = vset.pattern.permute.xlu0 0
        %1939 = vperm.xlu0 %1938, %v529
        %v1940 = vpop.permute.xlu0 %1939
        %1943 = vset.pattern.permute.xlu0 0
        %1944 = vperm.xlu0 %1943, %v530
        %v1945 = vpop.permute.xlu0 %1944
        %1948 = vset.pattern.permute.xlu0 0
        %1949 = vperm.xlu0 %1948, %v531
        %v1950 = vpop.permute.xlu0 %1949
        %1953 = vset.pattern.permute.xlu0 0
        %1954 = vperm.xlu0 %1953, %v532
        %v1955 = vpop.permute.xlu0 %1954
        %1958 = vset.pattern.permute.xlu0 0
        %1959 = vperm.xlu0 %1958, %v533
        %v1960 = vpop.permute.xlu0 %1959
        %1963 = vset.pattern.permute.xlu0 0
        %1964 = vperm.xlu0 %1963, %v534
        %v1965 = vpop.permute.xlu0 %1964
        %1968 = vset.pattern.permute.xlu0 0
        %1969 = vperm.xlu0 %1968, %v535
        %v1970 = vpop.permute.xlu0 %1969
        %1973 = vset.pattern.permute.xlu0 0
        %1974 = vperm.xlu0 %1973, %v536
        %v1975 = vpop.permute.xlu0 %1974
        %1978 = vset.pattern.permute.xlu0 0
        %1979 = vperm.xlu0 %1978, %v537
        %v1980 = vpop.permute.xlu0 %1979
        %1983 = vset.pattern.permute.xlu0 0
        %1984 = vperm.xlu0 %1983, %v538
        %v1985 = vpop.permute.xlu0 %1984
        %1988 = vset.pattern.permute.xlu0 0
        %1989 = vperm.xlu0 %1988, %v539
        %v1990 = vpop.permute.xlu0 %1989
        %1993 = vset.pattern.permute.xlu0 0
        %1994 = vperm.xlu0 %1993, %v540
        %v1995 = vpop.permute.xlu0 %1994
        %1998 = vset.pattern.permute.xlu0 0
        %1999 = vperm.xlu0 %1998, %v541
        %v2000 = vpop.permute.xlu0 %1999
        %2003 = vset.pattern.permute.xlu0 0
        %2004 = vperm.xlu0 %2003, %v542
        %v2005 = vpop.permute.xlu0 %2004
        %2008 = vset.pattern.permute.xlu0 0
        %2009 = vperm.xlu0 %2008, %v543
        %v2010 = vpop.permute.xlu0 %2009
        %2013 = vset.pattern.permute.xlu0 0
        %2014 = vperm.xlu0 %2013, %v544
        %v2015 = vpop.permute.xlu0 %2014
        %2018 = vset.pattern.permute.xlu0 0
        %2019 = vperm.xlu0 %2018, %v545
        %v2020 = vpop.permute.xlu0 %2019
        %2023 = vset.pattern.permute.xlu0 0
        %2024 = vperm.xlu0 %2023, %v546
        %v2025 = vpop.permute.xlu0 %2024
        %2028 = vset.pattern.permute.xlu0 0
        %2029 = vperm.xlu0 %2028, %v547
        %v2030 = vpop.permute.xlu0 %2029
        %2033 = vset.pattern.permute.xlu0 0
        %2034 = vperm.xlu0 %2033, %v548
        %v2035 = vpop.permute.xlu0 %2034
        %2038 = vset.pattern.permute.xlu0 0
        %2039 = vperm.xlu0 %2038, %v549
        %v2040 = vpop.permute.xlu0 %2039
        %2043 = vset.pattern.permute.xlu0 0
        %2044 = vperm.xlu0 %2043, %v550
        %v2045 = vpop.permute.xlu0 %2044
        %2048 = vset.pattern.permute.xlu0 0
        %2049 = vperm.xlu0 %2048, %v551
        %v2050 = vpop.permute.xlu0 %2049
        %2053 = vset.pattern.permute.xlu0 0
        %2054 = vperm.xlu0 %2053, %v552
        %v2055 = vpop.permute.xlu0 %2054
        %2058 = vset.pattern.permute.xlu0 0
        %2059 = vperm.xlu0 %2058, %v553
        %v2060 = vpop.permute.xlu0 %2059
        %2063 = vset.pattern.permute.xlu0 0
        %2064 = vperm.xlu0 %2063, %v554
        %v2065 = vpop.permute.xlu0 %2064
        %2068 = vset.pattern.permute.xlu0 0
        %2069 = vperm.xlu0 %2068, %v555
        %v2070 = vpop.permute.xlu0 %2069
        %2073 = vset.pattern.permute.xlu0 0
        %2074 = vperm.xlu0 %2073, %v556
        %v2075 = vpop.permute.xlu0 %2074
        %2078 = vset.pattern.permute.xlu0 0
        %2079 = vperm.xlu0 %2078, %v557
        %v2080 = vpop.permute.xlu0 %2079
        %2083 = vset.pattern.permute.xlu0 0
        %2084 = vperm.xlu0 %2083, %v558
        %v2085 = vpop.permute.xlu0 %2084
        %2088 = vset.pattern.permute.xlu0 0
        %2089 = vperm.xlu0 %2088, %v559
        %v2090 = vpop.permute.xlu0 %2089
        %2093 = vset.pattern.permute.xlu0 0
        %2094 = vperm.xlu0 %2093, %v560
        %v2095 = vpop.permute.xlu0 %2094
        %2098 = vset.pattern.permute.xlu0 0
        %2099 = vperm.xlu0 %2098, %v561
        %v2100 = vpop.permute.xlu0 %2099
        %2103 = vset.pattern.permute.xlu0 0
        %2104 = vperm.xlu0 %2103, %v562
        %v2105 = vpop.permute.xlu0 %2104
        %2108 = vset.pattern.permute.xlu0 0
        %2109 = vperm.xlu0 %2108, %v563
        %v2110 = vpop.permute.xlu0 %2109
        %2113 = vset.pattern.permute.xlu0 0
        %2114 = vperm.xlu0 %2113, %v564
        %v2115 = vpop.permute.xlu0 %2114
        %2118 = vset.pattern.permute.xlu0 0
        %2119 = vperm.xlu0 %2118, %v565
        %v2120 = vpop.permute.xlu0 %2119
        %2123 = vset.pattern.permute.xlu0 0
        %2124 = vperm.xlu0 %2123, %v566
        %v2125 = vpop.permute.xlu0 %2124
        %2128 = vset.pattern.permute.xlu0 0
        %2129 = vperm.xlu0 %2128, %v567
        %v2130 = vpop.permute.xlu0 %2129
        %2133 = vset.pattern.permute.xlu0 0
        %2134 = vperm.xlu0 %2133, %v568
        %v2135 = vpop.permute.xlu0 %2134
        %2138 = vset.pattern.permute.xlu0 0
        %2139 = vperm.xlu0 %2138, %v569
        %v2140 = vpop.permute.xlu0 %2139
        %2143 = vset.pattern.permute.xlu0 0
        %2144 = vperm.xlu0 %2143, %v570
        %v2145 = vpop.permute.xlu0 %2144
        %2148 = vset.pattern.permute.xlu0 0
        %2149 = vperm.xlu0 %2148, %v571
        %v2150 = vpop.permute.xlu0 %2149
        %2153 = vset.pattern.permute.xlu0 0
        %2154 = vperm.xlu0 %2153, %v572
        %v2155 = vpop.permute.xlu0 %2154
        %2158 = vset.pattern.permute.xlu0 0
        %2159 = vperm.xlu0 %2158, %v573
        %v2160 = vpop.permute.xlu0 %2159
        %2163 = vset.pattern.permute.xlu0 0
        %2164 = vperm.xlu0 %2163, %v574
        %v2165 = vpop.permute.xlu0 %2164
        %2168 = vset.pattern.permute.xlu0 0
        %2169 = vperm.xlu0 %2168, %v575
        %v2170 = vpop.permute.xlu0 %2169
        %2173 = vset.pattern.permute.xlu0 0
        %2174 = vperm.xlu0 %2173, %v576
        %v2175 = vpop.permute.xlu0 %2174
        %2178 = vset.pattern.permute.xlu0 0
        %2179 = vperm.xlu0 %2178, %v577
        %v2180 = vpop.permute.xlu0 %2179
        %2183 = vset.pattern.permute.xlu0 0
        %2184 = vperm.xlu0 %2183, %v578
        %v2185 = vpop.permute.xlu0 %2184
        %2188 = vset.pattern.permute.xlu0 0
        %2189 = vperm.xlu0 %2188, %v579
        %v2190 = vpop.permute.xlu0 %2189
        %2193 = vset.pattern.permute.xlu0 0
        %2194 = vperm.xlu0 %2193, %v580
        %v2195 = vpop.permute.xlu0 %2194
        %2198 = vset.pattern.permute.xlu0 0
        %2199 = vperm.xlu0 %2198, %v581
        %v2200 = vpop.permute.xlu0 %2199
        %2203 = vset.pattern.permute.xlu0 0
        %2204 = vperm.xlu0 %2203, %v582
        %v2205 = vpop.permute.xlu0 %2204
        %2208 = vset.pattern.permute.xlu0 0
        %2209 = vperm.xlu0 %2208, %v583
        %v2210 = vpop.permute.xlu0 %2209
        %2213 = vset.pattern.permute.xlu0 0
        %2214 = vperm.xlu0 %2213, %v584
        %v2215 = vpop.permute.xlu0 %2214
        %2218 = vset.pattern.permute.xlu0 0
        %2219 = vperm.xlu0 %2218, %v585
        %v2220 = vpop.permute.xlu0 %2219
        %2223 = vset.pattern.permute.xlu0 0
        %2224 = vperm.xlu0 %2223, %v586
        %v2225 = vpop.permute.xlu0 %2224
        %2228 = vset.pattern.permute.xlu0 0
        %2229 = vperm.xlu0 %2228, %v587
        %v2230 = vpop.permute.xlu0 %2229
        %2233 = vset.pattern.permute.xlu0 0
        %2234 = vperm.xlu0 %2233, %v588
        %v2235 = vpop.permute.xlu0 %2234
        %2238 = vset.pattern.permute.xlu0 0
        %2239 = vperm.xlu0 %2238, %v589
        %v2240 = vpop.permute.xlu0 %2239
        %2243 = vset.pattern.permute.xlu0 0
        %2244 = vperm.xlu0 %2243, %v590
        %v2245 = vpop.permute.xlu0 %2244
        %2248 = vset.pattern.permute.xlu0 0
        %2249 = vperm.xlu0 %2248, %v591
        %v2250 = vpop.permute.xlu0 %2249
        %2253 = vset.pattern.permute.xlu0 0
        %2254 = vperm.xlu0 %2253, %v592
        %v2255 = vpop.permute.xlu0 %2254
        %2258 = vset.pattern.permute.xlu0 0
        %2259 = vperm.xlu0 %2258, %v593
        %v2260 = vpop.permute.xlu0 %2259
        %2263 = vset.pattern.permute.xlu0 0
        %2264 = vperm.xlu0 %2263, %v594
        %v2265 = vpop.permute.xlu0 %2264
        %2268 = vset.pattern.permute.xlu0 0
        %2269 = vperm.xlu0 %2268, %v595
        %v2270 = vpop.permute.xlu0 %2269
        %2273 = vset.pattern.permute.xlu0 0
        %2274 = vperm.xlu0 %2273, %v596
        %v2275 = vpop.permute.xlu0 %2274
        %2278 = vset.pattern.permute.xlu0 0
        %2279 = vperm.xlu0 %2278, %v597
        %v2280 = vpop.permute.xlu0 %2279
        %2283 = vset.pattern.permute.xlu0 0
        %2284 = vperm.xlu0 %2283, %v598
        %v2285 = vpop.permute.xlu0 %2284
        %2288 = vset.pattern.permute.xlu0 0
        %2289 = vperm.xlu0 %2288, %v599
        %v2290 = vpop.permute.xlu0 %2289
        %2293 = vset.pattern.permute.xlu0 0
        %2294 = vperm.xlu0 %2293, %v600
        %v2295 = vpop.permute.xlu0 %2294
        %2298 = vset.pattern.permute.xlu0 0
        %2299 = vperm.xlu0 %2298, %v601
        %v2300 = vpop.permute.xlu0 %2299
        %2303 = vset.pattern.permute.xlu0 0
        %2304 = vperm.xlu0 %2303, %v602
        %v2305 = vpop.permute.xlu0 %2304
        %2308 = vset.pattern.permute.xlu0 0
        %2309 = vperm.xlu0 %2308, %v603
        %v2310 = vpop.permute.xlu0 %2309
        %2313 = vset.pattern.permute.xlu0 0
        %2314 = vperm.xlu0 %2313, %v604
        %v2315 = vpop.permute.xlu0 %2314
        %2318 = vset.pattern.permute.xlu0 0
        %2319 = vperm.xlu0 %2318, %v605
        %v2320 = vpop.permute.xlu0 %2319
        %2323 = vset.pattern.permute.xlu0 0
        %2324 = vperm.xlu0 %2323, %v606
        %v2325 = vpop.permute.xlu0 %2324
        %2328 = vset.pattern.permute.xlu0 0
        %2329 = vperm.xlu0 %2328, %v607
        %v2330 = vpop.permute.xlu0 %2329
        %2333 = vset.pattern.permute.xlu0 0
        %2334 = vperm.xlu0 %2333, %v608
        %v2335 = vpop.permute.xlu0 %2334
        %2338 = vset.pattern.permute.xlu0 0
        %2339 = vperm.xlu0 %2338, %v609
        %v2340 = vpop.permute.xlu0 %2339
        %2343 = vset.pattern.permute.xlu0 0
        %2344 = vperm.xlu0 %2343, %v610
        %v2345 = vpop.permute.xlu0 %2344
        %2348 = vset.pattern.permute.xlu0 0
        %2349 = vperm.xlu0 %2348, %v611
        %v2350 = vpop.permute.xlu0 %2349
        %2353 = vset.pattern.permute.xlu0 0
        %2354 = vperm.xlu0 %2353, %v612
        %v2355 = vpop.permute.xlu0 %2354
        %2358 = vset.pattern.permute.xlu0 0
        %2359 = vperm.xlu0 %2358, %v613
        %v2360 = vpop.permute.xlu0 %2359
        %2363 = vset.pattern.permute.xlu0 0
        %2364 = vperm.xlu0 %2363, %v614
        %v2365 = vpop.permute.xlu0 %2364
        %2368 = vset.pattern.permute.xlu0 0
        %2369 = vperm.xlu0 %2368, %v615
        %v2370 = vpop.permute.xlu0 %2369
        %2373 = vset.pattern.permute.xlu0 0
        %2374 = vperm.xlu0 %2373, %v616
        %v2375 = vpop.permute.xlu0 %2374
        %2378 = vset.pattern.permute.xlu0 0
        %2379 = vperm.xlu0 %2378, %v617
        %v2380 = vpop.permute.xlu0 %2379
        %2383 = vset.pattern.permute.xlu0 0
        %2384 = vperm.xlu0 %2383, %v618
        %v2385 = vpop.permute.xlu0 %2384
        %2388 = vset.pattern.permute.xlu0 0
        %2389 = vperm.xlu0 %2388, %v619
        %v2390 = vpop.permute.xlu0 %2389
        %2393 = vset.pattern.permute.xlu0 0
        %2394 = vperm.xlu0 %2393, %v620
        %v2395 = vpop.permute.xlu0 %2394
        %2398 = vset.pattern.permute.xlu0 0
        %2399 = vperm.xlu0 %2398, %v621
        %v2400 = vpop.permute.xlu0 %2399
        %2403 = vset.pattern.permute.xlu0 0
        %2404 = vperm.xlu0 %2403, %v622
        %v2405 = vpop.permute.xlu0 %2404
        %2408 = vset.pattern.permute.xlu0 0
        %2409 = vperm.xlu0 %2408, %v623
        %v2410 = vpop.permute.xlu0 %2409
        %2413 = vset.pattern.permute.xlu0 0
        %2414 = vperm.xlu0 %2413, %v624
        %v2415 = vpop.permute.xlu0 %2414
        %2418 = vset.pattern.permute.xlu0 0
        %2419 = vperm.xlu0 %2418, %v625
        %v2420 = vpop.permute.xlu0 %2419
        %2423 = vset.pattern.permute.xlu0 0
        %2424 = vperm.xlu0 %2423, %v626
        %v2425 = vpop.permute.xlu0 %2424
        %2428 = vset.pattern.permute.xlu0 0
        %2429 = vperm.xlu0 %2428, %v627
        %v2430 = vpop.permute.xlu0 %2429
        %2433 = vset.pattern.permute.xlu0 0
        %2434 = vperm.xlu0 %2433, %v628
        %v2435 = vpop.permute.xlu0 %2434
        %2438 = vset.pattern.permute.xlu0 0
        %2439 = vperm.xlu0 %2438, %v629
        %v2440 = vpop.permute.xlu0 %2439
        %2443 = vset.pattern.permute.xlu0 0
        %2444 = vperm.xlu0 %2443, %v630
        %v2445 = vpop.permute.xlu0 %2444
        %2448 = vset.pattern.permute.xlu0 0
        %2449 = vperm.xlu0 %2448, %v631
        %v2450 = vpop.permute.xlu0 %2449
        %2453 = vset.pattern.permute.xlu0 0
        %2454 = vperm.xlu0 %2453, %v632
        %v2455 = vpop.permute.xlu0 %2454
        %2458 = vset.pattern.permute.xlu0 0
        %2459 = vperm.xlu0 %2458, %v633
        %v2460 = vpop.permute.xlu0 %2459
        %2463 = vset.pattern.permute.xlu0 0
        %2464 = vperm.xlu0 %2463, %v634
        %v2465 = vpop.permute.xlu0 %2464
        %2468 = vset.pattern.permute.xlu0 0
        %2469 = vperm.xlu0 %2468, %v635
        %v2470 = vpop.permute.xlu0 %2469
        %2473 = vset.pattern.permute.xlu0 0
        %2474 = vperm.xlu0 %2473, %v636
        %v2475 = vpop.permute.xlu0 %2474
        %2478 = vset.pattern.permute.xlu0 0
        %2479 = vperm.xlu0 %2478, %v637
        %v2480 = vpop.permute.xlu0 %2479
        %2483 = vset.pattern.permute.xlu0 0
        %2484 = vperm.xlu0 %2483, %v638
        %v2485 = vpop.permute.xlu0 %2484
        %2488 = vset.pattern.permute.xlu0 0
        %2489 = vperm.xlu0 %2488, %v639
        %v2490 = vpop.permute.xlu0 %2489
        %2493 = vset.pattern.permute.xlu0 0
        %2494 = vperm.xlu0 %2493, %v640
        %v2495 = vpop.permute.xlu0 %2494
        %2498 = vset.pattern.permute.xlu0 0
        %2499 = vperm.xlu0 %2498, %v641
        %v2500 = vpop.permute.xlu0 %2499
        %2503 = vset.pattern.permute.xlu0 0
        %2504 = vperm.xlu0 %2503, %v642
        %v2505 = vpop.permute.xlu0 %2504
        %2508 = vset.pattern.permute.xlu0 0
        %2509 = vperm.xlu0 %2508, %v643
        %v2510 = vpop.permute.xlu0 %2509
        %2513 = vset.pattern.permute.xlu0 0
        %2514 = vperm.xlu0 %2513, %v644
        %v2515 = vpop.permute.xlu0 %2514
        %2518 = vset.pattern.permute.xlu0 0
        %2519 = vperm.xlu0 %2518, %v645
        %v2520 = vpop.permute.xlu0 %2519
        %2523 = vset.pattern.permute.xlu0 0
        %2524 = vperm.xlu0 %2523, %v646
        %v2525 = vpop.permute.xlu0 %2524
        %2528 = vset.pattern.permute.xlu0 0
        %2529 = vperm.xlu0 %2528, %v647
        %v2530 = vpop.permute.xlu0 %2529
        %2533 = vset.pattern.permute.xlu0 0
        %2534 = vperm.xlu0 %2533, %v648
        %v2535 = vpop.permute.xlu0 %2534
        %2538 = vset.pattern.permute.xlu0 0
        %2539 = vperm.xlu0 %2538, %v649
        %v2540 = vpop.permute.xlu0 %2539
        %2543 = vset.pattern.permute.xlu0 0
        %2544 = vperm.xlu0 %2543, %v650
        %v2545 = vpop.permute.xlu0 %2544
        %2548 = vset.pattern.permute.xlu0 0
        %2549 = vperm.xlu0 %2548, %v651
        %v2550 = vpop.permute.xlu0 %2549
        %2553 = vset.pattern.permute.xlu0 0
        %2554 = vperm.xlu0 %2553, %v652
        %v2555 = vpop.permute.xlu0 %2554
        %2558 = vset.pattern.permute.xlu0 0
        %2559 = vperm.xlu0 %2558, %v653
        %v2560 = vpop.permute.xlu0 %2559
        %2563 = vset.pattern.permute.xlu0 0
        %2564 = vperm.xlu0 %2563, %v654
        %v2565 = vpop.permute.xlu0 %2564
        %2568 = vset.pattern.permute.xlu0 0
        %2569 = vperm.xlu0 %2568, %v655
        %v2570 = vpop.permute.xlu0 %2569
        %2573 = vset.pattern.permute.xlu0 0
        %2574 = vperm.xlu0 %2573, %v656
        %v2575 = vpop.permute.xlu0 %2574
        %2578 = vset.pattern.permute.xlu0 0
        %2579 = vperm.xlu0 %2578, %v657
        %v2580 = vpop.permute.xlu0 %2579
        %2583 = vset.pattern.permute.xlu0 0
        %2584 = vperm.xlu0 %2583, %v658
        %v2585 = vpop.permute.xlu0 %2584
        %2588 = vset.pattern.permute.xlu0 0
        %2589 = vperm.xlu0 %2588, %v659
        %v2590 = vpop.permute.xlu0 %2589
        %2593 = vset.pattern.permute.xlu0 0
        %2594 = vperm.xlu0 %2593, %v660
        %v2595 = vpop.permute.xlu0 %2594
        %2598 = vset.pattern.permute.xlu0 0
        %2599 = vperm.xlu0 %2598, %v661
        %v2600 = vpop.permute.xlu0 %2599
        %2603 = vset.pattern.permute.xlu0 0
        %2604 = vperm.xlu0 %2603, %v662
        %v2605 = vpop.permute.xlu0 %2604
        %2608 = vset.pattern.permute.xlu0 0
        %2609 = vperm.xlu0 %2608, %v663
        %v2610 = vpop.permute.xlu0 %2609
        %2613 = vset.pattern.permute.xlu0 0
        %2614 = vperm.xlu0 %2613, %v664
        %v2615 = vpop.permute.xlu0 %2614
        %2618 = vset.pattern.permute.xlu0 0
        %2619 = vperm.xlu0 %2618, %v665
        %v2620 = vpop.permute.xlu0 %2619
        %2623 = vset.pattern.permute.xlu0 0
        %2624 = vperm.xlu0 %2623, %v666
        %v2625 = vpop.permute.xlu0 %2624
        %2628 = vset.pattern.permute.xlu0 0
        %2629 = vperm.xlu0 %2628, %v667
        %v2630 = vpop.permute.xlu0 %2629
        %2633 = vset.pattern.permute.xlu0 0
        %2634 = vperm.xlu0 %2633, %v668
        %v2635 = vpop.permute.xlu0 %2634
        %2638 = vset.pattern.permute.xlu0 0
        %2639 = vperm.xlu0 %2638, %v669
        %v2640 = vpop.permute.xlu0 %2639
        %2643 = vset.pattern.permute.xlu0 0
        %2644 = vperm.xlu0 %2643, %v670
        %v2645 = vpop.permute.xlu0 %2644
        %2648 = vset.pattern.permute.xlu0 0
        %2649 = vperm.xlu0 %2648, %v671
        %v2650 = vpop.permute.xlu0 %2649
        %2653 = vset.pattern.permute.xlu0 0
        %2654 = vperm.xlu0 %2653, %v672
        %v2655 = vpop.permute.xlu0 %2654
        %2658 = vset.pattern.permute.xlu0 0
        %2659 = vperm.xlu0 %2658, %v673
        %v2660 = vpop.permute.xlu0 %2659
        %2663 = vset.pattern.permute.xlu0 0
        %2664 = vperm.xlu0 %2663, %v674
        %v2665 = vpop.permute.xlu0 %2664
        %2668 = vset.pattern.permute.xlu0 0
        %2669 = vperm.xlu0 %2668, %v675
        %v2670 = vpop.permute.xlu0 %2669
        %2673 = vset.pattern.permute.xlu0 0
        %2674 = vperm.xlu0 %2673, %v676
        %v2675 = vpop.permute.xlu0 %2674
        %2678 = vset.pattern.permute.xlu0 0
        %2679 = vperm.xlu0 %2678, %v677
        %v2680 = vpop.permute.xlu0 %2679
        %2683 = vset.pattern.permute.xlu0 0
        %2684 = vperm.xlu0 %2683, %v678
        %v2685 = vpop.permute.xlu0 %2684
        %2688 = vset.pattern.permute.xlu0 0
        %2689 = vperm.xlu0 %2688, %v679
        %v2690 = vpop.permute.xlu0 %2689
        %2693 = vset.pattern.permute.xlu0 0
        %2694 = vperm.xlu0 %2693, %v680
        %v2695 = vpop.permute.xlu0 %2694
        %2698 = vset.pattern.permute.xlu0 0
        %2699 = vperm.xlu0 %2698, %v681
        %v2700 = vpop.permute.xlu0 %2699
        %2703 = vset.pattern.permute.xlu0 0
        %2704 = vperm.xlu0 %2703, %v682
        %v2705 = vpop.permute.xlu0 %2704
        %2708 = vset.pattern.permute.xlu0 0
        %2709 = vperm.xlu0 %2708, %v683
        %v2710 = vpop.permute.xlu0 %2709
        %2713 = vset.pattern.permute.xlu0 0
        %2714 = vperm.xlu0 %2713, %v684
        %v2715 = vpop.permute.xlu0 %2714
        %2718 = vset.pattern.permute.xlu0 0
        %2719 = vperm.xlu0 %2718, %v685
        %v2720 = vpop.permute.xlu0 %2719
        %2723 = vset.pattern.permute.xlu0 0
        %2724 = vperm.xlu0 %2723, %v686
        %v2725 = vpop.permute.xlu0 %2724
        %2728 = vset.pattern.permute.xlu0 0
        %2729 = vperm.xlu0 %2728, %v687
        %v2730 = vpop.permute.xlu0 %2729
        %2733 = vset.pattern.permute.xlu0 0
        %2734 = vperm.xlu0 %2733, %v688
        %v2735 = vpop.permute.xlu0 %2734
        %2738 = vset.pattern.permute.xlu0 0
        %2739 = vperm.xlu0 %2738, %v689
        %v2740 = vpop.permute.xlu0 %2739
        %2743 = vset.pattern.permute.xlu0 0
        %2744 = vperm.xlu0 %2743, %v690
        %v2745 = vpop.permute.xlu0 %2744
        %2748 = vset.pattern.permute.xlu0 0
        %2749 = vperm.xlu0 %2748, %v691
        %v2750 = vpop.permute.xlu0 %2749
        %2753 = vset.pattern.permute.xlu0 0
        %2754 = vperm.xlu0 %2753, %v692
        %v2755 = vpop.permute.xlu0 %2754
        %2758 = vset.pattern.permute.xlu0 0
        %2759 = vperm.xlu0 %2758, %v693
        %v2760 = vpop.permute.xlu0 %2759
        %2763 = vset.pattern.permute.xlu0 0
        %2764 = vperm.xlu0 %2763, %v694
        %v2765 = vpop.permute.xlu0 %2764
        %2768 = vset.pattern.permute.xlu0 0
        %2769 = vperm.xlu0 %2768, %v695
        %v2770 = vpop.permute.xlu0 %2769
        %2773 = vset.pattern.permute.xlu0 0
        %2774 = vperm.xlu0 %2773, %v696
        %v2775 = vpop.permute.xlu0 %2774
        %2778 = vset.pattern.permute.xlu0 0
        %2779 = vperm.xlu0 %2778, %v697
        %v2780 = vpop.permute.xlu0 %2779
        %2783 = vset.pattern.permute.xlu0 0
        %2784 = vperm.xlu0 %2783, %v698
        %v2785 = vpop.permute.xlu0 %2784
        %2788 = vset.pattern.permute.xlu0 0
        %2789 = vperm.xlu0 %2788, %v699
        %v2790 = vpop.permute.xlu0 %2789
        %2793 = vset.pattern.permute.xlu0 0
        %2794 = vperm.xlu0 %2793, %v700
        %v2795 = vpop.permute.xlu0 %2794
        %2798 = vset.pattern.permute.xlu0 0
        %2799 = vperm.xlu0 %2798, %v701
        %v2800 = vpop.permute.xlu0 %2799
        %2803 = vset.pattern.permute.xlu0 0
        %2804 = vperm.xlu0 %2803, %v702
        %v2805 = vpop.permute.xlu0 %2804
        %2808 = vset.pattern.permute.xlu0 0
        %2809 = vperm.xlu0 %2808, %v703
        %v2810 = vpop.permute.xlu0 %2809
        %2813 = vset.pattern.permute.xlu0 0
        %2814 = vperm.xlu0 %2813, %v704
        %v2815 = vpop.permute.xlu0 %2814
        %2818 = vset.pattern.permute.xlu0 0
        %2819 = vperm.xlu0 %2818, %v705
        %v2820 = vpop.permute.xlu0 %2819
        %2823 = vset.pattern.permute.xlu0 0
        %2824 = vperm.xlu0 %2823, %v706
        %v2825 = vpop.permute.xlu0 %2824
        %2828 = vset.pattern.permute.xlu0 0
        %2829 = vperm.xlu0 %2828, %v707
        %v2830 = vpop.permute.xlu0 %2829
        %2833 = vset.pattern.permute.xlu0 0
        %2834 = vperm.xlu0 %2833, %v708
        %v2835 = vpop.permute.xlu0 %2834
        %2838 = vset.pattern.permute.xlu0 0
        %2839 = vperm.xlu0 %2838, %v709
        %v2840 = vpop.permute.xlu0 %2839
        %2843 = vset.pattern.permute.xlu0 0
        %2844 = vperm.xlu0 %2843, %v710
        %v2845 = vpop.permute.xlu0 %2844
        %2848 = vset.pattern.permute.xlu0 0
        %2849 = vperm.xlu0 %2848, %v711
        %v2850 = vpop.permute.xlu0 %2849
        %2853 = vset.pattern.permute.xlu0 0
        %2854 = vperm.xlu0 %2853, %v712
        %v2855 = vpop.permute.xlu0 %2854
        %2858 = vset.pattern.permute.xlu0 0
        %2859 = vperm.xlu0 %2858, %v713
        %v2860 = vpop.permute.xlu0 %2859
        %2863 = vset.pattern.permute.xlu0 0
        %2864 = vperm.xlu0 %2863, %v714
        %v2865 = vpop.permute.xlu0 %2864
        %2868 = vset.pattern.permute.xlu0 0
        %2869 = vperm.xlu0 %2868, %v715
        %v2870 = vpop.permute.xlu0 %2869
        %2873 = vset.pattern.permute.xlu0 0
        %2874 = vperm.xlu0 %2873, %v716
        %v2875 = vpop.permute.xlu0 %2874
        %2878 = vset.pattern.permute.xlu0 0
        %2879 = vperm.xlu0 %2878, %v717
        %v2880 = vpop.permute.xlu0 %2879
        %2883 = vset.pattern.permute.xlu0 0
        %2884 = vperm.xlu0 %2883, %v718
        %v2885 = vpop.permute.xlu0 %2884
        %2888 = vset.pattern.permute.xlu0 0
        %2889 = vperm.xlu0 %2888, %v719
        %v2890 = vpop.permute.xlu0 %2889
        %2893 = vset.pattern.permute.xlu0 0
        %2894 = vperm.xlu0 %2893, %v720
        %v2895 = vpop.permute.xlu0 %2894
        %2898 = vset.pattern.permute.xlu0 0
        %2899 = vperm.xlu0 %2898, %v721
        %v2900 = vpop.permute.xlu0 %2899
        %2903 = vset.pattern.permute.xlu0 0
        %2904 = vperm.xlu0 %2903, %v722
        %v2905 = vpop.permute.xlu0 %2904
        %2908 = vset.pattern.permute.xlu0 0
        %2909 = vperm.xlu0 %2908, %v723
        %v2910 = vpop.permute.xlu0 %2909
        %2913 = vset.pattern.permute.xlu0 0
        %2914 = vperm.xlu0 %2913, %v724
        %v2915 = vpop.permute.xlu0 %2914
        %2918 = vset.pattern.permute.xlu0 0
        %2919 = vperm.xlu0 %2918, %v725
        %v2920 = vpop.permute.xlu0 %2919
        %2923 = vset.pattern.permute.xlu0 0
        %2924 = vperm.xlu0 %2923, %v726
        %v2925 = vpop.permute.xlu0 %2924
        %2928 = vset.pattern.permute.xlu0 0
        %2929 = vperm.xlu0 %2928, %v727
        %v2930 = vpop.permute.xlu0 %2929
        %2933 = vset.pattern.permute.xlu0 0
        %2934 = vperm.xlu0 %2933, %v728
        %v2935 = vpop.permute.xlu0 %2934
        %2938 = vset.pattern.permute.xlu0 0
        %2939 = vperm.xlu0 %2938, %v729
        %v2940 = vpop.permute.xlu0 %2939
        %2943 = vset.pattern.permute.xlu0 0
        %2944 = vperm.xlu0 %2943, %v730
        %v2945 = vpop.permute.xlu0 %2944
        %2948 = vset.pattern.permute.xlu0 0
        %2949 = vperm.xlu0 %2948, %v731
        %v2950 = vpop.permute.xlu0 %2949
        %2953 = vset.pattern.permute.xlu0 0
        %2954 = vperm.xlu0 %2953, %v732
        %v2955 = vpop.permute.xlu0 %2954
        %2958 = vset.pattern.permute.xlu0 0
        %2959 = vperm.xlu0 %2958, %v733
        %v2960 = vpop.permute.xlu0 %2959
        %2963 = vset.pattern.permute.xlu0 0
        %2964 = vperm.xlu0 %2963, %v734
        %v2965 = vpop.permute.xlu0 %2964
        %2968 = vset.pattern.permute.xlu0 0
        %2969 = vperm.xlu0 %2968, %v735
        %v2970 = vpop.permute.xlu0 %2969
        %2973 = vset.pattern.permute.xlu0 0
        %2974 = vperm.xlu0 %2973, %v736
        %v2975 = vpop.permute.xlu0 %2974
        %2978 = vset.pattern.permute.xlu0 0
        %2979 = vperm.xlu0 %2978, %v737
        %v2980 = vpop.permute.xlu0 %2979
        %2983 = vset.pattern.permute.xlu0 0
        %2984 = vperm.xlu0 %2983, %v738
        %v2985 = vpop.permute.xlu0 %2984
        %2988 = vset.pattern.permute.xlu0 0
        %2989 = vperm.xlu0 %2988, %v739
        %v2990 = vpop.permute.xlu0 %2989
        %2993 = vset.pattern.permute.xlu0 0
        %2994 = vperm.xlu0 %2993, %v740
        %v2995 = vpop.permute.xlu0 %2994
        %2998 = vset.pattern.permute.xlu0 0
        %2999 = vperm.xlu0 %2998, %v741
        %v3000 = vpop.permute.xlu0 %2999
        %3003 = vset.pattern.permute.xlu0 0
        %3004 = vperm.xlu0 %3003, %v742
        %v3005 = vpop.permute.xlu0 %3004
        %3008 = vset.pattern.permute.xlu0 0
        %3009 = vperm.xlu0 %3008, %v743
        %v3010 = vpop.permute.xlu0 %3009
        %3013 = vset.pattern.permute.xlu0 0
        %3014 = vperm.xlu0 %3013, %v744
        %v3015 = vpop.permute.xlu0 %3014
        %3018 = vset.pattern.permute.xlu0 0
        %3019 = vperm.xlu0 %3018, %v745
        %v3020 = vpop.permute.xlu0 %3019
        %3023 = vset.pattern.permute.xlu0 0
        %3024 = vperm.xlu0 %3023, %v746
        %v3025 = vpop.permute.xlu0 %3024
        %3028 = vset.pattern.permute.xlu0 0
        %3029 = vperm.xlu0 %3028, %v747
        %v3030 = vpop.permute.xlu0 %3029
        %3033 = vset.pattern.permute.xlu0 0
        %3034 = vperm.xlu0 %3033, %v748
        %v3035 = vpop.permute.xlu0 %3034
        %3038 = vset.pattern.permute.xlu0 0
        %3039 = vperm.xlu0 %3038, %v749
        %v3040 = vpop.permute.xlu0 %3039
        %3043 = vset.pattern.permute.xlu0 0
        %3044 = vperm.xlu0 %3043, %v750
        %v3045 = vpop.permute.xlu0 %3044
        %3048 = vset.pattern.permute.xlu0 0
        %3049 = vperm.xlu0 %3048, %v751
        %v3050 = vpop.permute.xlu0 %3049
        %3053 = vset.pattern.permute.xlu0 0
        %3054 = vperm.xlu0 %3053, %v752
        %v3055 = vpop.permute.xlu0 %3054
        %3058 = vset.pattern.permute.xlu0 0
        %3059 = vperm.xlu0 %3058, %v753
        %v3060 = vpop.permute.xlu0 %3059
        %3063 = vset.pattern.permute.xlu0 0
        %3064 = vperm.xlu0 %3063, %v754
        %v3065 = vpop.permute.xlu0 %3064
        %3068 = vset.pattern.permute.xlu0 0
        %3069 = vperm.xlu0 %3068, %v755
        %v3070 = vpop.permute.xlu0 %3069
        %3073 = vset.pattern.permute.xlu0 0
        %3074 = vperm.xlu0 %3073, %v756
        %v3075 = vpop.permute.xlu0 %3074
        %3078 = vset.pattern.permute.xlu0 0
        %3079 = vperm.xlu0 %3078, %v757
        %v3080 = vpop.permute.xlu0 %3079
        %3083 = vset.pattern.permute.xlu0 0
        %3084 = vperm.xlu0 %3083, %v758
        %v3085 = vpop.permute.xlu0 %3084
        %3088 = vset.pattern.permute.xlu0 0
        %3089 = vperm.xlu0 %3088, %v759
        %v3090 = vpop.permute.xlu0 %3089
        %3093 = vset.pattern.permute.xlu0 0
        %3094 = vperm.xlu0 %3093, %v760
        %v3095 = vpop.permute.xlu0 %3094
        %3098 = vset.pattern.permute.xlu0 0
        %3099 = vperm.xlu0 %3098, %v761
        %v3100 = vpop.permute.xlu0 %3099
        %3103 = vset.pattern.permute.xlu0 0
        %3104 = vperm.xlu0 %3103, %v762
        %v3105 = vpop.permute.xlu0 %3104
        %3108 = vset.pattern.permute.xlu0 0
        %3109 = vperm.xlu0 %3108, %v763
        %v3110 = vpop.permute.xlu0 %3109
        %3113 = vset.pattern.permute.xlu0 0
        %3114 = vperm.xlu0 %3113, %v764
        %v3115 = vpop.permute.xlu0 %3114
        %3118 = vset.pattern.permute.xlu0 0
        %3119 = vperm.xlu0 %3118, %v765
        %v3120 = vpop.permute.xlu0 %3119
        %3123 = vset.pattern.permute.xlu0 0
        %3124 = vperm.xlu0 %3123, %v766
        %v3125 = vpop.permute.xlu0 %3124
        %3128 = vset.pattern.permute.xlu0 0
        %3129 = vperm.xlu0 %3128, %v767
        %v3130 = vpop.permute.xlu0 %3129
        %3133 = vset.pattern.permute.xlu0 0
        %3134 = vperm.xlu0 %3133, %v768
        %v3135 = vpop.permute.xlu0 %3134
        %3138 = vset.pattern.permute.xlu0 0
        %3139 = vperm.xlu0 %3138, %v769
        %v3140 = vpop.permute.xlu0 %3139
        %3143 = vset.pattern.permute.xlu0 0
        %3144 = vperm.xlu0 %3143, %v770
        %v3145 = vpop.permute.xlu0 %3144
        %3148 = vset.pattern.permute.xlu0 0
        %3149 = vperm.xlu0 %3148, %v771
        %v3150 = vpop.permute.xlu0 %3149
        %3153 = vset.pattern.permute.xlu0 0
        %3154 = vperm.xlu0 %3153, %v772
        %v3155 = vpop.permute.xlu0 %3154
        %3158 = vset.pattern.permute.xlu0 0
        %3159 = vperm.xlu0 %3158, %v773
        %v3160 = vpop.permute.xlu0 %3159
        %3163 = vset.pattern.permute.xlu0 0
        %3164 = vperm.xlu0 %3163, %v774
        %v3165 = vpop.permute.xlu0 %3164
        %3168 = vset.pattern.permute.xlu0 0
        %3169 = vperm.xlu0 %3168, %v775
        %v3170 = vpop.permute.xlu0 %3169
        %3173 = vset.pattern.permute.xlu0 0
        %3174 = vperm.xlu0 %3173, %v776
        %v3175 = vpop.permute.xlu0 %3174
        %3178 = vset.pattern.permute.xlu0 0
        %3179 = vperm.xlu0 %3178, %v777
        %v3180 = vpop.permute.xlu0 %3179
        %3183 = vset.pattern.permute.xlu0 0
        %3184 = vperm.xlu0 %3183, %v778
        %v3185 = vpop.permute.xlu0 %3184
        %3188 = vset.pattern.permute.xlu0 0
        %3189 = vperm.xlu0 %3188, %v779
        %v3190 = vpop.permute.xlu0 %3189
        %3193 = vset.pattern.permute.xlu0 0
        %3194 = vperm.xlu0 %3193, %v780
        %v3195 = vpop.permute.xlu0 %3194
        %3198 = vset.pattern.permute.xlu0 0
        %3199 = vperm.xlu0 %3198, %v781
        %v3200 = vpop.permute.xlu0 %3199
        %3203 = vset.pattern.permute.xlu0 0
        %3204 = vperm.xlu0 %3203, %v782
        %v3205 = vpop.permute.xlu0 %3204
        %3208 = vset.pattern.permute.xlu0 0
        %3209 = vperm.xlu0 %3208, %v783
        %v3210 = vpop.permute.xlu0 %3209
        %3213 = vset.pattern.permute.xlu0 0
        %3214 = vperm.xlu0 %3213, %v784
        %v3215 = vpop.permute.xlu0 %3214
        %3218 = vset.pattern.permute.xlu0 0
        %3219 = vperm.xlu0 %3218, %v785
        %v3220 = vpop.permute.xlu0 %3219
        %3223 = vset.pattern.permute.xlu0 0
        %3224 = vperm.xlu0 %3223, %v786
        %v3225 = vpop.permute.xlu0 %3224
        %3228 = vset.pattern.permute.xlu0 0
        %3229 = vperm.xlu0 %3228, %v787
        %v3230 = vpop.permute.xlu0 %3229
        %3233 = vset.pattern.permute.xlu0 0
        %3234 = vperm.xlu0 %3233, %v788
        %v3235 = vpop.permute.xlu0 %3234
        %3238 = vset.pattern.permute.xlu0 0
        %3239 = vperm.xlu0 %3238, %v789
        %v3240 = vpop.permute.xlu0 %3239
        %3243 = vset.pattern.permute.xlu0 0
        %3244 = vperm.xlu0 %3243, %v790
        %v3245 = vpop.permute.xlu0 %3244
        %3248 = vset.pattern.permute.xlu0 0
        %3249 = vperm.xlu0 %3248, %v791
        %v3250 = vpop.permute.xlu0 %3249
        %3253 = vset.pattern.permute.xlu0 0
        %3254 = vperm.xlu0 %3253, %v792
        %v3255 = vpop.permute.xlu0 %3254
        %3258 = vset.pattern.permute.xlu0 0
        %3259 = vperm.xlu0 %3258, %v793
        %v3260 = vpop.permute.xlu0 %3259
        %3263 = vset.pattern.permute.xlu0 0
        %3264 = vperm.xlu0 %3263, %v794
        %v3265 = vpop.permute.xlu0 %3264
        %3268 = vset.pattern.permute.xlu0 0
        %3269 = vperm.xlu0 %3268, %v795
        %v3270 = vpop.permute.xlu0 %3269
        %3273 = vset.pattern.permute.xlu0 0
        %3274 = vperm.xlu0 %3273, %v796
        %v3275 = vpop.permute.xlu0 %3274
        %3278 = vset.pattern.permute.xlu0 0
        %3279 = vperm.xlu0 %3278, %v797
        %v3280 = vpop.permute.xlu0 %3279
        %3283 = vset.pattern.permute.xlu0 0
        %3284 = vperm.xlu0 %3283, %v798
        %v3285 = vpop.permute.xlu0 %3284
        %3288 = vset.pattern.permute.xlu0 0
        %3289 = vperm.xlu0 %3288, %v799
        %v3290 = vpop.permute.xlu0 %3289
        %3293 = vset.pattern.permute.xlu0 0
        %3294 = vperm.xlu0 %3293, %v800
        %v3295 = vpop.permute.xlu0 %3294
        %3298 = vset.pattern.permute.xlu0 0
        %3299 = vperm.xlu0 %3298, %v801
        %v3300 = vpop.permute.xlu0 %3299
        %3303 = vset.pattern.permute.xlu0 0
        %3304 = vperm.xlu0 %3303, %v802
        %v3305 = vpop.permute.xlu0 %3304
        %3308 = vset.pattern.permute.xlu0 0
        %3309 = vperm.xlu0 %3308, %v803
        %v3310 = vpop.permute.xlu0 %3309
        %3313 = vset.pattern.permute.xlu0 0
        %3314 = vperm.xlu0 %3313, %v804
        %v3315 = vpop.permute.xlu0 %3314
        %3318 = vset.pattern.permute.xlu0 0
        %3319 = vperm.xlu0 %3318, %v805
        %v3320 = vpop.permute.xlu0 %3319
        %3323 = vset.pattern.permute.xlu0 0
        %3324 = vperm.xlu0 %3323, %v806
        %v3325 = vpop.permute.xlu0 %3324
        %3328 = vset.pattern.permute.xlu0 0
        %3329 = vperm.xlu0 %3328, %v807
        %v3330 = vpop.permute.xlu0 %3329
        %3333 = vset.pattern.permute.xlu0 0
        %3334 = vperm.xlu0 %3333, %v808
        %v3335 = vpop.permute.xlu0 %3334
        %3338 = vset.pattern.permute.xlu0 0
        %3339 = vperm.xlu0 %3338, %v809
        %v3340 = vpop.permute.xlu0 %3339
        %3343 = vset.pattern.permute.xlu0 0
        %3344 = vperm.xlu0 %3343, %v810
        %v3345 = vpop.permute.xlu0 %3344
        %3348 = vset.pattern.permute.xlu0 0
        %3349 = vperm.xlu0 %3348, %v811
        %v3350 = vpop.permute.xlu0 %3349
        %3353 = vset.pattern.permute.xlu0 0
        %3354 = vperm.xlu0 %3353, %v812
        %v3355 = vpop.permute.xlu0 %3354
        %3358 = vset.pattern.permute.xlu0 0
        %3359 = vperm.xlu0 %3358, %v813
        %v3360 = vpop.permute.xlu0 %3359
        %3363 = vset.pattern.permute.xlu0 0
        %3364 = vperm.xlu0 %3363, %v814
        %v3365 = vpop.permute.xlu0 %3364
        %3368 = vset.pattern.permute.xlu0 0
        %3369 = vperm.xlu0 %3368, %v815
        %v3370 = vpop.permute.xlu0 %3369
        %3373 = vset.pattern.permute.xlu0 0
        %3374 = vperm.xlu0 %3373, %v816
        %v3375 = vpop.permute.xlu0 %3374
        %v3377 = vadd.f32 %v297, %v820
        %v3378 = vadd.f32 %v298, %v825
        %v3379 = vadd.f32 %v299, %v830
        %v3380 = vadd.f32 %v300, %v835
        %v3381 = vadd.f32 %v301, %v840
        %v3382 = vadd.f32 %v302, %v845
        %v3383 = vadd.f32 %v303, %v850
        %v3384 = vadd.f32 %v304, %v855
        %v3385 = vadd.f32 %v297, %v860
        %v3386 = vadd.f32 %v298, %v865
        %v3387 = vadd.f32 %v299, %v870
        %v3388 = vadd.f32 %v300, %v875
        %v3389 = vadd.f32 %v301, %v880
        %v3390 = vadd.f32 %v302, %v885
        %v3391 = vadd.f32 %v303, %v890
        %v3392 = vadd.f32 %v304, %v895
        %v3393 = vadd.f32 %v297, %v900
        %v3394 = vadd.f32 %v298, %v905
        %v3395 = vadd.f32 %v299, %v910
        %v3396 = vadd.f32 %v300, %v915
        %v3397 = vadd.f32 %v301, %v920
        %v3398 = vadd.f32 %v302, %v925
        %v3399 = vadd.f32 %v303, %v930
        %v3400 = vadd.f32 %v304, %v935
        %v3401 = vadd.f32 %v297, %v940
        %v3402 = vadd.f32 %v298, %v945
        %v3403 = vadd.f32 %v299, %v950
        %v3404 = vadd.f32 %v300, %v955
        %v3405 = vadd.f32 %v301, %v960
        %v3406 = vadd.f32 %v302, %v965
        %v3407 = vadd.f32 %v303, %v970
        %v3408 = vadd.f32 %v304, %v975
        %v3409 = vadd.f32 %v297, %v980
        %v3410 = vadd.f32 %v298, %v985
        %v3411 = vadd.f32 %v299, %v990
        %v3412 = vadd.f32 %v300, %v995
        %v3413 = vadd.f32 %v301, %v1000
        %v3414 = vadd.f32 %v302, %v1005
        %v3415 = vadd.f32 %v303, %v1010
        %v3416 = vadd.f32 %v304, %v1015
        %v3417 = vadd.f32 %v297, %v1020
        %v3418 = vadd.f32 %v298, %v1025
        %v3419 = vadd.f32 %v299, %v1030
        %v3420 = vadd.f32 %v300, %v1035
        %v3421 = vadd.f32 %v301, %v1040
        %v3422 = vadd.f32 %v302, %v1045
        %v3423 = vadd.f32 %v303, %v1050
        %v3424 = vadd.f32 %v304, %v1055
        %v3425 = vadd.f32 %v297, %v1060
        %v3426 = vadd.f32 %v298, %v1065
        %v3427 = vadd.f32 %v299, %v1070
        %v3428 = vadd.f32 %v300, %v1075
        %v3429 = vadd.f32 %v301, %v1080
        %v3430 = vadd.f32 %v302, %v1085
        %v3431 = vadd.f32 %v303, %v1090
        %v3432 = vadd.f32 %v304, %v1095
        %v3433 = vadd.f32 %v297, %v1100
        %v3434 = vadd.f32 %v298, %v1105
        %v3435 = vadd.f32 %v299, %v1110
        %v3436 = vadd.f32 %v300, %v1115
        %v3437 = vadd.f32 %v301, %v1120
        %v3438 = vadd.f32 %v302, %v1125
        %v3439 = vadd.f32 %v303, %v1130
        %v3440 = vadd.f32 %v304, %v1135
        %v3441 = vadd.f32 %v297, %v1140
        %v3442 = vadd.f32 %v298, %v1145
        %v3443 = vadd.f32 %v299, %v1150
        %v3444 = vadd.f32 %v300, %v1155
        %v3445 = vadd.f32 %v301, %v1160
        %v3446 = vadd.f32 %v302, %v1165
        %v3447 = vadd.f32 %v303, %v1170
        %v3448 = vadd.f32 %v304, %v1175
        %v3449 = vadd.f32 %v297, %v1180
        %v3450 = vadd.f32 %v298, %v1185
        %v3451 = vadd.f32 %v299, %v1190
        %v3452 = vadd.f32 %v300, %v1195
        %v3453 = vadd.f32 %v301, %v1200
        %v3454 = vadd.f32 %v302, %v1205
        %v3455 = vadd.f32 %v303, %v1210
        %v3456 = vadd.f32 %v304, %v1215
        %v3457 = vadd.f32 %v297, %v1220
        %v3458 = vadd.f32 %v298, %v1225
        %v3459 = vadd.f32 %v299, %v1230
        %v3460 = vadd.f32 %v300, %v1235
        %v3461 = vadd.f32 %v301, %v1240
        %v3462 = vadd.f32 %v302, %v1245
        %v3463 = vadd.f32 %v303, %v1250
        %v3464 = vadd.f32 %v304, %v1255
        %v3465 = vadd.f32 %v297, %v1260
        %v3466 = vadd.f32 %v298, %v1265
        %v3467 = vadd.f32 %v299, %v1270
        %v3468 = vadd.f32 %v300, %v1275
        %v3469 = vadd.f32 %v301, %v1280
        %v3470 = vadd.f32 %v302, %v1285
        %v3471 = vadd.f32 %v303, %v1290
        %v3472 = vadd.f32 %v304, %v1295
        %v3473 = vadd.f32 %v297, %v1300
        %v3474 = vadd.f32 %v298, %v1305
        %v3475 = vadd.f32 %v299, %v1310
        %v3476 = vadd.f32 %v300, %v1315
        %v3477 = vadd.f32 %v301, %v1320
        %v3478 = vadd.f32 %v302, %v1325
        %v3479 = vadd.f32 %v303, %v1330
        %v3480 = vadd.f32 %v304, %v1335
        %v3481 = vadd.f32 %v297, %v1340
        %v3482 = vadd.f32 %v298, %v1345
        %v3483 = vadd.f32 %v299, %v1350
        %v3484 = vadd.f32 %v300, %v1355
        %v3485 = vadd.f32 %v301, %v1360
        %v3486 = vadd.f32 %v302, %v1365
        %v3487 = vadd.f32 %v303, %v1370
        %v3488 = vadd.f32 %v304, %v1375
        %v3489 = vadd.f32 %v297, %v1380
        %v3490 = vadd.f32 %v298, %v1385
        %v3491 = vadd.f32 %v299, %v1390
        %v3492 = vadd.f32 %v300, %v1395
        %v3493 = vadd.f32 %v301, %v1400
        %v3494 = vadd.f32 %v302, %v1405
        %v3495 = vadd.f32 %v303, %v1410
        %v3496 = vadd.f32 %v304, %v1415
        %v3497 = vadd.f32 %v297, %v1420
        %v3498 = vadd.f32 %v298, %v1425
        %v3499 = vadd.f32 %v299, %v1430
        %v3500 = vadd.f32 %v300, %v1435
        %v3501 = vadd.f32 %v301, %v1440
        %v3502 = vadd.f32 %v302, %v1445
        %v3503 = vadd.f32 %v303, %v1450
        %v3504 = vadd.f32 %v304, %v1455
        %v3505 = vadd.f32 %v297, %v1460
        %v3506 = vadd.f32 %v298, %v1465
        %v3507 = vadd.f32 %v299, %v1470
        %v3508 = vadd.f32 %v300, %v1475
        %v3509 = vadd.f32 %v301, %v1480
        %v3510 = vadd.f32 %v302, %v1485
        %v3511 = vadd.f32 %v303, %v1490
        %v3512 = vadd.f32 %v304, %v1495
        %v3513 = vadd.f32 %v297, %v1500
        %v3514 = vadd.f32 %v298, %v1505
        %v3515 = vadd.f32 %v299, %v1510
        %v3516 = vadd.f32 %v300, %v1515
        %v3517 = vadd.f32 %v301, %v1520
        %v3518 = vadd.f32 %v302, %v1525
        %v3519 = vadd.f32 %v303, %v1530
        %v3520 = vadd.f32 %v304, %v1535
        %v3521 = vadd.f32 %v297, %v1540
        %v3522 = vadd.f32 %v298, %v1545
        %v3523 = vadd.f32 %v299, %v1550
        %v3524 = vadd.f32 %v300, %v1555
        %v3525 = vadd.f32 %v301, %v1560
        %v3526 = vadd.f32 %v302, %v1565
        %v3527 = vadd.f32 %v303, %v1570
        %v3528 = vadd.f32 %v304, %v1575
        %v3529 = vadd.f32 %v297, %v1580
        %v3530 = vadd.f32 %v298, %v1585
        %v3531 = vadd.f32 %v299, %v1590
        %v3532 = vadd.f32 %v300, %v1595
        %v3533 = vadd.f32 %v301, %v1600
        %v3534 = vadd.f32 %v302, %v1605
        %v3535 = vadd.f32 %v303, %v1610
        %v3536 = vadd.f32 %v304, %v1615
        %v3537 = vadd.f32 %v297, %v1620
        %v3538 = vadd.f32 %v298, %v1625
        %v3539 = vadd.f32 %v299, %v1630
        %v3540 = vadd.f32 %v300, %v1635
        %v3541 = vadd.f32 %v301, %v1640
        %v3542 = vadd.f32 %v302, %v1645
        %v3543 = vadd.f32 %v303, %v1650
        %v3544 = vadd.f32 %v304, %v1655
        %v3545 = vadd.f32 %v297, %v1660
        %v3546 = vadd.f32 %v298, %v1665
        %v3547 = vadd.f32 %v299, %v1670
        %v3548 = vadd.f32 %v300, %v1675
        %v3549 = vadd.f32 %v301, %v1680
        %v3550 = vadd.f32 %v302, %v1685
        %v3551 = vadd.f32 %v303, %v1690
        %v3552 = vadd.f32 %v304, %v1695
        %v3553 = vadd.f32 %v297, %v1700
        %v3554 = vadd.f32 %v298, %v1705
        %v3555 = vadd.f32 %v299, %v1710
        %v3556 = vadd.f32 %v300, %v1715
        %v3557 = vadd.f32 %v301, %v1720
        %v3558 = vadd.f32 %v302, %v1725
        %v3559 = vadd.f32 %v303, %v1730
        %v3560 = vadd.f32 %v304, %v1735
        %v3561 = vadd.f32 %v297, %v1740
        %v3562 = vadd.f32 %v298, %v1745
        %v3563 = vadd.f32 %v299, %v1750
        %v3564 = vadd.f32 %v300, %v1755
        %v3565 = vadd.f32 %v301, %v1760
        %v3566 = vadd.f32 %v302, %v1765
        %v3567 = vadd.f32 %v303, %v1770
        %v3568 = vadd.f32 %v304, %v1775
        %v3569 = vadd.f32 %v297, %v1780
        %v3570 = vadd.f32 %v298, %v1785
        %v3571 = vadd.f32 %v299, %v1790
        %v3572 = vadd.f32 %v300, %v1795
        %v3573 = vadd.f32 %v301, %v1800
        %v3574 = vadd.f32 %v302, %v1805
        %v3575 = vadd.f32 %v303, %v1810
        %v3576 = vadd.f32 %v304, %v1815
        %v3577 = vadd.f32 %v297, %v1820
        %v3578 = vadd.f32 %v298, %v1825
        %v3579 = vadd.f32 %v299, %v1830
        %v3580 = vadd.f32 %v300, %v1835
        %v3581 = vadd.f32 %v301, %v1840
        %v3582 = vadd.f32 %v302, %v1845
        %v3583 = vadd.f32 %v303, %v1850
        %v3584 = vadd.f32 %v304, %v1855
        %v3585 = vadd.f32 %v297, %v1860
        %v3586 = vadd.f32 %v298, %v1865
        %v3587 = vadd.f32 %v299, %v1870
        %v3588 = vadd.f32 %v300, %v1875
        %v3589 = vadd.f32 %v301, %v1880
        %v3590 = vadd.f32 %v302, %v1885
        %v3591 = vadd.f32 %v303, %v1890
        %v3592 = vadd.f32 %v304, %v1895
        %v3593 = vadd.f32 %v297, %v1900
        %v3594 = vadd.f32 %v298, %v1905
        %v3595 = vadd.f32 %v299, %v1910
        %v3596 = vadd.f32 %v300, %v1915
        %v3597 = vadd.f32 %v301, %v1920
        %v3598 = vadd.f32 %v302, %v1925
        %v3599 = vadd.f32 %v303, %v1930
        %v3600 = vadd.f32 %v304, %v1935
        %v3601 = vadd.f32 %v297, %v1940
        %v3602 = vadd.f32 %v298, %v1945
        %v3603 = vadd.f32 %v299, %v1950
        %v3604 = vadd.f32 %v300, %v1955
        %v3605 = vadd.f32 %v301, %v1960
        %v3606 = vadd.f32 %v302, %v1965
        %v3607 = vadd.f32 %v303, %v1970
        %v3608 = vadd.f32 %v304, %v1975
        %v3609 = vadd.f32 %v297, %v1980
        %v3610 = vadd.f32 %v298, %v1985
        %v3611 = vadd.f32 %v299, %v1990
        %v3612 = vadd.f32 %v300, %v1995
        %v3613 = vadd.f32 %v301, %v2000
        %v3614 = vadd.f32 %v302, %v2005
        %v3615 = vadd.f32 %v303, %v2010
        %v3616 = vadd.f32 %v304, %v2015
        %v3617 = vadd.f32 %v297, %v2020
        %v3618 = vadd.f32 %v298, %v2025
        %v3619 = vadd.f32 %v299, %v2030
        %v3620 = vadd.f32 %v300, %v2035
        %v3621 = vadd.f32 %v301, %v2040
        %v3622 = vadd.f32 %v302, %v2045
        %v3623 = vadd.f32 %v303, %v2050
        %v3624 = vadd.f32 %v304, %v2055
        %v3625 = vadd.f32 %v297, %v2060
        %v3626 = vadd.f32 %v298, %v2065
        %v3627 = vadd.f32 %v299, %v2070
        %v3628 = vadd.f32 %v300, %v2075
        %v3629 = vadd.f32 %v301, %v2080
        %v3630 = vadd.f32 %v302, %v2085
        %v3631 = vadd.f32 %v303, %v2090
        %v3632 = vadd.f32 %v304, %v2095
        %v3633 = vadd.f32 %v297, %v2100
        %v3634 = vadd.f32 %v298, %v2105
        %v3635 = vadd.f32 %v299, %v2110
        %v3636 = vadd.f32 %v300, %v2115
        %v3637 = vadd.f32 %v301, %v2120
        %v3638 = vadd.f32 %v302, %v2125
        %v3639 = vadd.f32 %v303, %v2130
        %v3640 = vadd.f32 %v304, %v2135
        %v3641 = vadd.f32 %v297, %v2140
        %v3642 = vadd.f32 %v298, %v2145
        %v3643 = vadd.f32 %v299, %v2150
        %v3644 = vadd.f32 %v300, %v2155
        %v3645 = vadd.f32 %v301, %v2160
        %v3646 = vadd.f32 %v302, %v2165
        %v3647 = vadd.f32 %v303, %v2170
        %v3648 = vadd.f32 %v304, %v2175
        %v3649 = vadd.f32 %v297, %v2180
        %v3650 = vadd.f32 %v298, %v2185
        %v3651 = vadd.f32 %v299, %v2190
        %v3652 = vadd.f32 %v300, %v2195
        %v3653 = vadd.f32 %v301, %v2200
        %v3654 = vadd.f32 %v302, %v2205
        %v3655 = vadd.f32 %v303, %v2210
        %v3656 = vadd.f32 %v304, %v2215
        %v3657 = vadd.f32 %v297, %v2220
        %v3658 = vadd.f32 %v298, %v2225
        %v3659 = vadd.f32 %v299, %v2230
        %v3660 = vadd.f32 %v300, %v2235
        %v3661 = vadd.f32 %v301, %v2240
        %v3662 = vadd.f32 %v302, %v2245
        %v3663 = vadd.f32 %v303, %v2250
        %v3664 = vadd.f32 %v304, %v2255
        %v3665 = vadd.f32 %v297, %v2260
        %v3666 = vadd.f32 %v298, %v2265
        %v3667 = vadd.f32 %v299, %v2270
        %v3668 = vadd.f32 %v300, %v2275
        %v3669 = vadd.f32 %v301, %v2280
        %v3670 = vadd.f32 %v302, %v2285
        %v3671 = vadd.f32 %v303, %v2290
        %v3672 = vadd.f32 %v304, %v2295
        %v3673 = vadd.f32 %v297, %v2300
        %v3674 = vadd.f32 %v298, %v2305
        %v3675 = vadd.f32 %v299, %v2310
        %v3676 = vadd.f32 %v300, %v2315
        %v3677 = vadd.f32 %v301, %v2320
        %v3678 = vadd.f32 %v302, %v2325
        %v3679 = vadd.f32 %v303, %v2330
        %v3680 = vadd.f32 %v304, %v2335
        %v3681 = vadd.f32 %v297, %v2340
        %v3682 = vadd.f32 %v298, %v2345
        %v3683 = vadd.f32 %v299, %v2350
        %v3684 = vadd.f32 %v300, %v2355
        %v3685 = vadd.f32 %v301, %v2360
        %v3686 = vadd.f32 %v302, %v2365
        %v3687 = vadd.f32 %v303, %v2370
        %v3688 = vadd.f32 %v304, %v2375
        %v3689 = vadd.f32 %v297, %v2380
        %v3690 = vadd.f32 %v298, %v2385
        %v3691 = vadd.f32 %v299, %v2390
        %v3692 = vadd.f32 %v300, %v2395
        %v3693 = vadd.f32 %v301, %v2400
        %v3694 = vadd.f32 %v302, %v2405
        %v3695 = vadd.f32 %v303, %v2410
        %v3696 = vadd.f32 %v304, %v2415
        %v3697 = vadd.f32 %v297, %v2420
        %v3698 = vadd.f32 %v298, %v2425
        %v3699 = vadd.f32 %v299, %v2430
        %v3700 = vadd.f32 %v300, %v2435
        %v3701 = vadd.f32 %v301, %v2440
        %v3702 = vadd.f32 %v302, %v2445
        %v3703 = vadd.f32 %v303, %v2450
        %v3704 = vadd.f32 %v304, %v2455
        %v3705 = vadd.f32 %v297, %v2460
        %v3706 = vadd.f32 %v298, %v2465
        %v3707 = vadd.f32 %v299, %v2470
        %v3708 = vadd.f32 %v300, %v2475
        %v3709 = vadd.f32 %v301, %v2480
        %v3710 = vadd.f32 %v302, %v2485
        %v3711 = vadd.f32 %v303, %v2490
        %v3712 = vadd.f32 %v304, %v2495
        %v3713 = vadd.f32 %v297, %v2500
        %v3714 = vadd.f32 %v298, %v2505
        %v3715 = vadd.f32 %v299, %v2510
        %v3716 = vadd.f32 %v300, %v2515
        %v3717 = vadd.f32 %v301, %v2520
        %v3718 = vadd.f32 %v302, %v2525
        %v3719 = vadd.f32 %v303, %v2530
        %v3720 = vadd.f32 %v304, %v2535
        %v3721 = vadd.f32 %v297, %v2540
        %v3722 = vadd.f32 %v298, %v2545
        %v3723 = vadd.f32 %v299, %v2550
        %v3724 = vadd.f32 %v300, %v2555
        %v3725 = vadd.f32 %v301, %v2560
        %v3726 = vadd.f32 %v302, %v2565
        %v3727 = vadd.f32 %v303, %v2570
        %v3728 = vadd.f32 %v304, %v2575
        %v3729 = vadd.f32 %v297, %v2580
        %v3730 = vadd.f32 %v298, %v2585
        %v3731 = vadd.f32 %v299, %v2590
        %v3732 = vadd.f32 %v300, %v2595
        %v3733 = vadd.f32 %v301, %v2600
        %v3734 = vadd.f32 %v302, %v2605
        %v3735 = vadd.f32 %v303, %v2610
        %v3736 = vadd.f32 %v304, %v2615
        %v3737 = vadd.f32 %v297, %v2620
        %v3738 = vadd.f32 %v298, %v2625
        %v3739 = vadd.f32 %v299, %v2630
        %v3740 = vadd.f32 %v300, %v2635
        %v3741 = vadd.f32 %v301, %v2640
        %v3742 = vadd.f32 %v302, %v2645
        %v3743 = vadd.f32 %v303, %v2650
        %v3744 = vadd.f32 %v304, %v2655
        %v3745 = vadd.f32 %v297, %v2660
        %v3746 = vadd.f32 %v298, %v2665
        %v3747 = vadd.f32 %v299, %v2670
        %v3748 = vadd.f32 %v300, %v2675
        %v3749 = vadd.f32 %v301, %v2680
        %v3750 = vadd.f32 %v302, %v2685
        %v3751 = vadd.f32 %v303, %v2690
        %v3752 = vadd.f32 %v304, %v2695
        %v3753 = vadd.f32 %v297, %v2700
        %v3754 = vadd.f32 %v298, %v2705
        %v3755 = vadd.f32 %v299, %v2710
        %v3756 = vadd.f32 %v300, %v2715
        %v3757 = vadd.f32 %v301, %v2720
        %v3758 = vadd.f32 %v302, %v2725
        %v3759 = vadd.f32 %v303, %v2730
        %v3760 = vadd.f32 %v304, %v2735
        %v3761 = vadd.f32 %v297, %v2740
        %v3762 = vadd.f32 %v298, %v2745
        %v3763 = vadd.f32 %v299, %v2750
        %v3764 = vadd.f32 %v300, %v2755
        %v3765 = vadd.f32 %v301, %v2760
        %v3766 = vadd.f32 %v302, %v2765
        %v3767 = vadd.f32 %v303, %v2770
        %v3768 = vadd.f32 %v304, %v2775
        %v3769 = vadd.f32 %v297, %v2780
        %v3770 = vadd.f32 %v298, %v2785
        %v3771 = vadd.f32 %v299, %v2790
        %v3772 = vadd.f32 %v300, %v2795
        %v3773 = vadd.f32 %v301, %v2800
        %v3774 = vadd.f32 %v302, %v2805
        %v3775 = vadd.f32 %v303, %v2810
        %v3776 = vadd.f32 %v304, %v2815
        %v3777 = vadd.f32 %v297, %v2820
        %v3778 = vadd.f32 %v298, %v2825
        %v3779 = vadd.f32 %v299, %v2830
        %v3780 = vadd.f32 %v300, %v2835
        %v3781 = vadd.f32 %v301, %v2840
        %v3782 = vadd.f32 %v302, %v2845
        %v3783 = vadd.f32 %v303, %v2850
        %v3784 = vadd.f32 %v304, %v2855
        %v3785 = vadd.f32 %v297, %v2860
        %v3786 = vadd.f32 %v298, %v2865
        %v3787 = vadd.f32 %v299, %v2870
        %v3788 = vadd.f32 %v300, %v2875
        %v3789 = vadd.f32 %v301, %v2880
        %v3790 = vadd.f32 %v302, %v2885
        %v3791 = vadd.f32 %v303, %v2890
        %v3792 = vadd.f32 %v304, %v2895
        %v3793 = vadd.f32 %v297, %v2900
        %v3794 = vadd.f32 %v298, %v2905
        %v3795 = vadd.f32 %v299, %v2910
        %v3796 = vadd.f32 %v300, %v2915
        %v3797 = vadd.f32 %v301, %v2920
        %v3798 = vadd.f32 %v302, %v2925
        %v3799 = vadd.f32 %v303, %v2930
        %v3800 = vadd.f32 %v304, %v2935
        %v3801 = vadd.f32 %v297, %v2940
        %v3802 = vadd.f32 %v298, %v2945
        %v3803 = vadd.f32 %v299, %v2950
        %v3804 = vadd.f32 %v300, %v2955
        %v3805 = vadd.f32 %v301, %v2960
        %v3806 = vadd.f32 %v302, %v2965
        %v3807 = vadd.f32 %v303, %v2970
        %v3808 = vadd.f32 %v304, %v2975
        %v3809 = vadd.f32 %v297, %v2980
        %v3810 = vadd.f32 %v298, %v2985
        %v3811 = vadd.f32 %v299, %v2990
        %v3812 = vadd.f32 %v300, %v2995
        %v3813 = vadd.f32 %v301, %v3000
        %v3814 = vadd.f32 %v302, %v3005
        %v3815 = vadd.f32 %v303, %v3010
        %v3816 = vadd.f32 %v304, %v3015
        %v3817 = vadd.f32 %v297, %v3020
        %v3818 = vadd.f32 %v298, %v3025
        %v3819 = vadd.f32 %v299, %v3030
        %v3820 = vadd.f32 %v300, %v3035
        %v3821 = vadd.f32 %v301, %v3040
        %v3822 = vadd.f32 %v302, %v3045
        %v3823 = vadd.f32 %v303, %v3050
        %v3824 = vadd.f32 %v304, %v3055
        %v3825 = vadd.f32 %v297, %v3060
        %v3826 = vadd.f32 %v298, %v3065
        %v3827 = vadd.f32 %v299, %v3070
        %v3828 = vadd.f32 %v300, %v3075
        %v3829 = vadd.f32 %v301, %v3080
        %v3830 = vadd.f32 %v302, %v3085
        %v3831 = vadd.f32 %v303, %v3090
        %v3832 = vadd.f32 %v304, %v3095
        %v3833 = vadd.f32 %v297, %v3100
        %v3834 = vadd.f32 %v298, %v3105
        %v3835 = vadd.f32 %v299, %v3110
        %v3836 = vadd.f32 %v300, %v3115
        %v3837 = vadd.f32 %v301, %v3120
        %v3838 = vadd.f32 %v302, %v3125
        %v3839 = vadd.f32 %v303, %v3130
        %v3840 = vadd.f32 %v304, %v3135
        %v3841 = vadd.f32 %v297, %v3140
        %v3842 = vadd.f32 %v298, %v3145
        %v3843 = vadd.f32 %v299, %v3150
        %v3844 = vadd.f32 %v300, %v3155
        %v3845 = vadd.f32 %v301, %v3160
        %v3846 = vadd.f32 %v302, %v3165
        %v3847 = vadd.f32 %v303, %v3170
        %v3848 = vadd.f32 %v304, %v3175
        %v3849 = vadd.f32 %v297, %v3180
        %v3850 = vadd.f32 %v298, %v3185
        %v3851 = vadd.f32 %v299, %v3190
        %v3852 = vadd.f32 %v300, %v3195
        %v3853 = vadd.f32 %v301, %v3200
        %v3854 = vadd.f32 %v302, %v3205
        %v3855 = vadd.f32 %v303, %v3210
        %v3856 = vadd.f32 %v304, %v3215
        %v3857 = vadd.f32 %v297, %v3220
        %v3858 = vadd.f32 %v298, %v3225
        %v3859 = vadd.f32 %v299, %v3230
        %v3860 = vadd.f32 %v300, %v3235
        %v3861 = vadd.f32 %v301, %v3240
        %v3862 = vadd.f32 %v302, %v3245
        %v3863 = vadd.f32 %v303, %v3250
        %v3864 = vadd.f32 %v304, %v3255
        %v3865 = vadd.f32 %v297, %v3260
        %v3866 = vadd.f32 %v298, %v3265
        %v3867 = vadd.f32 %v299, %v3270
        %v3868 = vadd.f32 %v300, %v3275
        %v3869 = vadd.f32 %v301, %v3280
        %v3870 = vadd.f32 %v302, %v3285
        %v3871 = vadd.f32 %v303, %v3290
        %v3872 = vadd.f32 %v304, %v3295
        %v3873 = vadd.f32 %v297, %v3300
        %v3874 = vadd.f32 %v298, %v3305
        %v3875 = vadd.f32 %v299, %v3310
        %v3876 = vadd.f32 %v300, %v3315
        %v3877 = vadd.f32 %v301, %v3320
        %v3878 = vadd.f32 %v302, %v3325
        %v3879 = vadd.f32 %v303, %v3330
        %v3880 = vadd.f32 %v304, %v3335
        %v3881 = vadd.f32 %v297, %v3340
        %v3882 = vadd.f32 %v298, %v3345
        %v3883 = vadd.f32 %v299, %v3350
        %v3884 = vadd.f32 %v300, %v3355
        %v3885 = vadd.f32 %v301, %v3360
        %v3886 = vadd.f32 %v302, %v3365
        %v3887 = vadd.f32 %v303, %v3370
        %v3888 = vadd.f32 %v304, %v3375
        %v3889 = vmul.f32 %v3377, 0.5
        %v3890 = vmul.f32 %v3378, 0.5
        %v3891 = vmul.f32 %v3379, 0.5
        %v3892 = vmul.f32 %v3380, 0.5
        %v3893 = vmul.f32 %v3381, 0.5
        %v3894 = vmul.f32 %v3382, 0.5
        %v3895 = vmul.f32 %v3383, 0.5
        %v3896 = vmul.f32 %v3384, 0.5
        %v3897 = vmul.f32 %v3385, 0.5
        %v3898 = vmul.f32 %v3386, 0.5
        %v3899 = vmul.f32 %v3387, 0.5
        %v3900 = vmul.f32 %v3388, 0.5
        %v3901 = vmul.f32 %v3389, 0.5
        %v3902 = vmul.f32 %v3390, 0.5
        %v3903 = vmul.f32 %v3391, 0.5
        %v3904 = vmul.f32 %v3392, 0.5
        %v3905 = vmul.f32 %v3393, 0.5
        %v3906 = vmul.f32 %v3394, 0.5
        %v3907 = vmul.f32 %v3395, 0.5
        %v3908 = vmul.f32 %v3396, 0.5
        %v3909 = vmul.f32 %v3397, 0.5
        %v3910 = vmul.f32 %v3398, 0.5
        %v3911 = vmul.f32 %v3399, 0.5
        %v3912 = vmul.f32 %v3400, 0.5
        %v3913 = vmul.f32 %v3401, 0.5
        %v3914 = vmul.f32 %v3402, 0.5
        %v3915 = vmul.f32 %v3403, 0.5
        %v3916 = vmul.f32 %v3404, 0.5
        %v3917 = vmul.f32 %v3405, 0.5
        %v3918 = vmul.f32 %v3406, 0.5
        %v3919 = vmul.f32 %v3407, 0.5
        %v3920 = vmul.f32 %v3408, 0.5
        %v3921 = vmul.f32 %v3409, 0.5
        %v3922 = vmul.f32 %v3410, 0.5
        %v3923 = vmul.f32 %v3411, 0.5
        %v3924 = vmul.f32 %v3412, 0.5
        %v3925 = vmul.f32 %v3413, 0.5
        %v3926 = vmul.f32 %v3414, 0.5
        %v3927 = vmul.f32 %v3415, 0.5
        %v3928 = vmul.f32 %v3416, 0.5
        %v3929 = vmul.f32 %v3417, 0.5
        %v3930 = vmul.f32 %v3418, 0.5
        %v3931 = vmul.f32 %v3419, 0.5
        %v3932 = vmul.f32 %v3420, 0.5
        %v3933 = vmul.f32 %v3421, 0.5
        %v3934 = vmul.f32 %v3422, 0.5
        %v3935 = vmul.f32 %v3423, 0.5
        %v3936 = vmul.f32 %v3424, 0.5
        %v3937 = vmul.f32 %v3425, 0.5
        %v3938 = vmul.f32 %v3426, 0.5
        %v3939 = vmul.f32 %v3427, 0.5
        %v3940 = vmul.f32 %v3428, 0.5
        %v3941 = vmul.f32 %v3429, 0.5
        %v3942 = vmul.f32 %v3430, 0.5
        %v3943 = vmul.f32 %v3431, 0.5
        %v3944 = vmul.f32 %v3432, 0.5
        %v3945 = vmul.f32 %v3433, 0.5
        %v3946 = vmul.f32 %v3434, 0.5
        %v3947 = vmul.f32 %v3435, 0.5
        %v3948 = vmul.f32 %v3436, 0.5
        %v3949 = vmul.f32 %v3437, 0.5
        %v3950 = vmul.f32 %v3438, 0.5
        %v3951 = vmul.f32 %v3439, 0.5
        %v3952 = vmul.f32 %v3440, 0.5
        %v3953 = vmul.f32 %v3441, 0.5
        %v3954 = vmul.f32 %v3442, 0.5
        %v3955 = vmul.f32 %v3443, 0.5
        %v3956 = vmul.f32 %v3444, 0.5
        %v3957 = vmul.f32 %v3445, 0.5
        %v3958 = vmul.f32 %v3446, 0.5
        %v3959 = vmul.f32 %v3447, 0.5
        %v3960 = vmul.f32 %v3448, 0.5
        %v3961 = vmul.f32 %v3449, 0.5
        %v3962 = vmul.f32 %v3450, 0.5
        %v3963 = vmul.f32 %v3451, 0.5
        %v3964 = vmul.f32 %v3452, 0.5
        %v3965 = vmul.f32 %v3453, 0.5
        %v3966 = vmul.f32 %v3454, 0.5
        %v3967 = vmul.f32 %v3455, 0.5
        %v3968 = vmul.f32 %v3456, 0.5
        %v3969 = vmul.f32 %v3457, 0.5
        %v3970 = vmul.f32 %v3458, 0.5
        %v3971 = vmul.f32 %v3459, 0.5
        %v3972 = vmul.f32 %v3460, 0.5
        %v3973 = vmul.f32 %v3461, 0.5
        %v3974 = vmul.f32 %v3462, 0.5
        %v3975 = vmul.f32 %v3463, 0.5
        %v3976 = vmul.f32 %v3464, 0.5
        %v3977 = vmul.f32 %v3465, 0.5
        %v3978 = vmul.f32 %v3466, 0.5
        %v3979 = vmul.f32 %v3467, 0.5
        %v3980 = vmul.f32 %v3468, 0.5
        %v3981 = vmul.f32 %v3469, 0.5
        %v3982 = vmul.f32 %v3470, 0.5
        %v3983 = vmul.f32 %v3471, 0.5
        %v3984 = vmul.f32 %v3472, 0.5
        %v3985 = vmul.f32 %v3473, 0.5
        %v3986 = vmul.f32 %v3474, 0.5
        %v3987 = vmul.f32 %v3475, 0.5
        %v3988 = vmul.f32 %v3476, 0.5
        %v3989 = vmul.f32 %v3477, 0.5
        %v3990 = vmul.f32 %v3478, 0.5
        %v3991 = vmul.f32 %v3479, 0.5
        %v3992 = vmul.f32 %v3480, 0.5
        %v3993 = vmul.f32 %v3481, 0.5
        %v3994 = vmul.f32 %v3482, 0.5
        %v3995 = vmul.f32 %v3483, 0.5
        %v3996 = vmul.f32 %v3484, 0.5
        %v3997 = vmul.f32 %v3485, 0.5
        %v3998 = vmul.f32 %v3486, 0.5
        %v3999 = vmul.f32 %v3487, 0.5
        %v4000 = vmul.f32 %v3488, 0.5
        %v4001 = vmul.f32 %v3489, 0.5
        %v4002 = vmul.f32 %v3490, 0.5
        %v4003 = vmul.f32 %v3491, 0.5
        %v4004 = vmul.f32 %v3492, 0.5
        %v4005 = vmul.f32 %v3493, 0.5
        %v4006 = vmul.f32 %v3494, 0.5
        %v4007 = vmul.f32 %v3495, 0.5
        %v4008 = vmul.f32 %v3496, 0.5
        %v4009 = vmul.f32 %v3497, 0.5
        %v4010 = vmul.f32 %v3498, 0.5
        %v4011 = vmul.f32 %v3499, 0.5
        %v4012 = vmul.f32 %v3500, 0.5
        %v4013 = vmul.f32 %v3501, 0.5
        %v4014 = vmul.f32 %v3502, 0.5
        %v4015 = vmul.f32 %v3503, 0.5
        %v4016 = vmul.f32 %v3504, 0.5
        %v4017 = vmul.f32 %v3505, 0.5
        %v4018 = vmul.f32 %v3506, 0.5
        %v4019 = vmul.f32 %v3507, 0.5
        %v4020 = vmul.f32 %v3508, 0.5
        %v4021 = vmul.f32 %v3509, 0.5
        %v4022 = vmul.f32 %v3510, 0.5
        %v4023 = vmul.f32 %v3511, 0.5
        %v4024 = vmul.f32 %v3512, 0.5
        %v4025 = vmul.f32 %v3513, 0.5
        %v4026 = vmul.f32 %v3514, 0.5
        %v4027 = vmul.f32 %v3515, 0.5
        %v4028 = vmul.f32 %v3516, 0.5
        %v4029 = vmul.f32 %v3517, 0.5
        %v4030 = vmul.f32 %v3518, 0.5
        %v4031 = vmul.f32 %v3519, 0.5
        %v4032 = vmul.f32 %v3520, 0.5
        %v4033 = vmul.f32 %v3521, 0.5
        %v4034 = vmul.f32 %v3522, 0.5
        %v4035 = vmul.f32 %v3523, 0.5
        %v4036 = vmul.f32 %v3524, 0.5
        %v4037 = vmul.f32 %v3525, 0.5
        %v4038 = vmul.f32 %v3526, 0.5
        %v4039 = vmul.f32 %v3527, 0.5
        %v4040 = vmul.f32 %v3528, 0.5
        %v4041 = vmul.f32 %v3529, 0.5
        %v4042 = vmul.f32 %v3530, 0.5
        %v4043 = vmul.f32 %v3531, 0.5
        %v4044 = vmul.f32 %v3532, 0.5
        %v4045 = vmul.f32 %v3533, 0.5
        %v4046 = vmul.f32 %v3534, 0.5
        %v4047 = vmul.f32 %v3535, 0.5
        %v4048 = vmul.f32 %v3536, 0.5
        %v4049 = vmul.f32 %v3537, 0.5
        %v4050 = vmul.f32 %v3538, 0.5
        %v4051 = vmul.f32 %v3539, 0.5
        %v4052 = vmul.f32 %v3540, 0.5
        %v4053 = vmul.f32 %v3541, 0.5
        %v4054 = vmul.f32 %v3542, 0.5
        %v4055 = vmul.f32 %v3543, 0.5
        %v4056 = vmul.f32 %v3544, 0.5
        %v4057 = vmul.f32 %v3545, 0.5
        %v4058 = vmul.f32 %v3546, 0.5
        %v4059 = vmul.f32 %v3547, 0.5
        %v4060 = vmul.f32 %v3548, 0.5
        %v4061 = vmul.f32 %v3549, 0.5
        %v4062 = vmul.f32 %v3550, 0.5
        %v4063 = vmul.f32 %v3551, 0.5
        %v4064 = vmul.f32 %v3552, 0.5
        %v4065 = vmul.f32 %v3553, 0.5
        %v4066 = vmul.f32 %v3554, 0.5
        %v4067 = vmul.f32 %v3555, 0.5
        %v4068 = vmul.f32 %v3556, 0.5
        %v4069 = vmul.f32 %v3557, 0.5
        %v4070 = vmul.f32 %v3558, 0.5
        %v4071 = vmul.f32 %v3559, 0.5
        %v4072 = vmul.f32 %v3560, 0.5
        %v4073 = vmul.f32 %v3561, 0.5
        %v4074 = vmul.f32 %v3562, 0.5
        %v4075 = vmul.f32 %v3563, 0.5
        %v4076 = vmul.f32 %v3564, 0.5
        %v4077 = vmul.f32 %v3565, 0.5
        %v4078 = vmul.f32 %v3566, 0.5
        %v4079 = vmul.f32 %v3567, 0.5
        %v4080 = vmul.f32 %v3568, 0.5
        %v4081 = vmul.f32 %v3569, 0.5
        %v4082 = vmul.f32 %v3570, 0.5
        %v4083 = vmul.f32 %v3571, 0.5
        %v4084 = vmul.f32 %v3572, 0.5
        %v4085 = vmul.f32 %v3573, 0.5
        %v4086 = vmul.f32 %v3574, 0.5
        %v4087 = vmul.f32 %v3575, 0.5
        %v4088 = vmul.f32 %v3576, 0.5
        %v4089 = vmul.f32 %v3577, 0.5
        %v4090 = vmul.f32 %v3578, 0.5
        %v4091 = vmul.f32 %v3579, 0.5
        %v4092 = vmul.f32 %v3580, 0.5
        %v4093 = vmul.f32 %v3581, 0.5
        %v4094 = vmul.f32 %v3582, 0.5
        %v4095 = vmul.f32 %v3583, 0.5
        %v4096 = vmul.f32 %v3584, 0.5
        %v4097 = vmul.f32 %v3585, 0.5
        %v4098 = vmul.f32 %v3586, 0.5
        %v4099 = vmul.f32 %v3587, 0.5
        %v4100 = vmul.f32 %v3588, 0.5
        %v4101 = vmul.f32 %v3589, 0.5
        %v4102 = vmul.f32 %v3590, 0.5
        %v4103 = vmul.f32 %v3591, 0.5
        %v4104 = vmul.f32 %v3592, 0.5
        %v4105 = vmul.f32 %v3593, 0.5
        %v4106 = vmul.f32 %v3594, 0.5
        %v4107 = vmul.f32 %v3595, 0.5
        %v4108 = vmul.f32 %v3596, 0.5
        %v4109 = vmul.f32 %v3597, 0.5
        %v4110 = vmul.f32 %v3598, 0.5
        %v4111 = vmul.f32 %v3599, 0.5
        %v4112 = vmul.f32 %v3600, 0.5
        %v4113 = vmul.f32 %v3601, 0.5
        %v4114 = vmul.f32 %v3602, 0.5
        %v4115 = vmul.f32 %v3603, 0.5
        %v4116 = vmul.f32 %v3604, 0.5
        %v4117 = vmul.f32 %v3605, 0.5
        %v4118 = vmul.f32 %v3606, 0.5
        %v4119 = vmul.f32 %v3607, 0.5
        %v4120 = vmul.f32 %v3608, 0.5
        %v4121 = vmul.f32 %v3609, 0.5
        %v4122 = vmul.f32 %v3610, 0.5
        %v4123 = vmul.f32 %v3611, 0.5
        %v4124 = vmul.f32 %v3612, 0.5
        %v4125 = vmul.f32 %v3613, 0.5
        %v4126 = vmul.f32 %v3614, 0.5
        %v4127 = vmul.f32 %v3615, 0.5
        %v4128 = vmul.f32 %v3616, 0.5
        %v4129 = vmul.f32 %v3617, 0.5
        %v4130 = vmul.f32 %v3618, 0.5
        %v4131 = vmul.f32 %v3619, 0.5
        %v4132 = vmul.f32 %v3620, 0.5
        %v4133 = vmul.f32 %v3621, 0.5
        %v4134 = vmul.f32 %v3622, 0.5
        %v4135 = vmul.f32 %v3623, 0.5
        %v4136 = vmul.f32 %v3624, 0.5
        %v4137 = vmul.f32 %v3625, 0.5
        %v4138 = vmul.f32 %v3626, 0.5
        %v4139 = vmul.f32 %v3627, 0.5
        %v4140 = vmul.f32 %v3628, 0.5
        %v4141 = vmul.f32 %v3629, 0.5
        %v4142 = vmul.f32 %v3630, 0.5
        %v4143 = vmul.f32 %v3631, 0.5
        %v4144 = vmul.f32 %v3632, 0.5
        %v4145 = vmul.f32 %v3633, 0.5
        %v4146 = vmul.f32 %v3634, 0.5
        %v4147 = vmul.f32 %v3635, 0.5
        %v4148 = vmul.f32 %v3636, 0.5
        %v4149 = vmul.f32 %v3637, 0.5
        %v4150 = vmul.f32 %v3638, 0.5
        %v4151 = vmul.f32 %v3639, 0.5
        %v4152 = vmul.f32 %v3640, 0.5
        %v4153 = vmul.f32 %v3641, 0.5
        %v4154 = vmul.f32 %v3642, 0.5
        %v4155 = vmul.f32 %v3643, 0.5
        %v4156 = vmul.f32 %v3644, 0.5
        %v4157 = vmul.f32 %v3645, 0.5
        %v4158 = vmul.f32 %v3646, 0.5
        %v4159 = vmul.f32 %v3647, 0.5
        %v4160 = vmul.f32 %v3648, 0.5
        %v4161 = vmul.f32 %v3649, 0.5
        %v4162 = vmul.f32 %v3650, 0.5
        %v4163 = vmul.f32 %v3651, 0.5
        %v4164 = vmul.f32 %v3652, 0.5
        %v4165 = vmul.f32 %v3653, 0.5
        %v4166 = vmul.f32 %v3654, 0.5
        %v4167 = vmul.f32 %v3655, 0.5
        %v4168 = vmul.f32 %v3656, 0.5
        %v4169 = vmul.f32 %v3657, 0.5
        %v4170 = vmul.f32 %v3658, 0.5
        %v4171 = vmul.f32 %v3659, 0.5
        %v4172 = vmul.f32 %v3660, 0.5
        %v4173 = vmul.f32 %v3661, 0.5
        %v4174 = vmul.f32 %v3662, 0.5
        %v4175 = vmul.f32 %v3663, 0.5
        %v4176 = vmul.f32 %v3664, 0.5
        %v4177 = vmul.f32 %v3665, 0.5
        %v4178 = vmul.f32 %v3666, 0.5
        %v4179 = vmul.f32 %v3667, 0.5
        %v4180 = vmul.f32 %v3668, 0.5
        %v4181 = vmul.f32 %v3669, 0.5
        %v4182 = vmul.f32 %v3670, 0.5
        %v4183 = vmul.f32 %v3671, 0.5
        %v4184 = vmul.f32 %v3672, 0.5
        %v4185 = vmul.f32 %v3673, 0.5
        %v4186 = vmul.f32 %v3674, 0.5
        %v4187 = vmul.f32 %v3675, 0.5
        %v4188 = vmul.f32 %v3676, 0.5
        %v4189 = vmul.f32 %v3677, 0.5
        %v4190 = vmul.f32 %v3678, 0.5
        %v4191 = vmul.f32 %v3679, 0.5
        %v4192 = vmul.f32 %v3680, 0.5
        %v4193 = vmul.f32 %v3681, 0.5
        %v4194 = vmul.f32 %v3682, 0.5
        %v4195 = vmul.f32 %v3683, 0.5
        %v4196 = vmul.f32 %v3684, 0.5
        %v4197 = vmul.f32 %v3685, 0.5
        %v4198 = vmul.f32 %v3686, 0.5
        %v4199 = vmul.f32 %v3687, 0.5
        %v4200 = vmul.f32 %v3688, 0.5
        %v4201 = vmul.f32 %v3689, 0.5
        %v4202 = vmul.f32 %v3690, 0.5
        %v4203 = vmul.f32 %v3691, 0.5
        %v4204 = vmul.f32 %v3692, 0.5
        %v4205 = vmul.f32 %v3693, 0.5
        %v4206 = vmul.f32 %v3694, 0.5
        %v4207 = vmul.f32 %v3695, 0.5
        %v4208 = vmul.f32 %v3696, 0.5
        %v4209 = vmul.f32 %v3697, 0.5
        %v4210 = vmul.f32 %v3698, 0.5
        %v4211 = vmul.f32 %v3699, 0.5
        %v4212 = vmul.f32 %v3700, 0.5
        %v4213 = vmul.f32 %v3701, 0.5
        %v4214 = vmul.f32 %v3702, 0.5
        %v4215 = vmul.f32 %v3703, 0.5
        %v4216 = vmul.f32 %v3704, 0.5
        %v4217 = vmul.f32 %v3705, 0.5
        %v4218 = vmul.f32 %v3706, 0.5
        %v4219 = vmul.f32 %v3707, 0.5
        %v4220 = vmul.f32 %v3708, 0.5
        %v4221 = vmul.f32 %v3709, 0.5
        %v4222 = vmul.f32 %v3710, 0.5
        %v4223 = vmul.f32 %v3711, 0.5
        %v4224 = vmul.f32 %v3712, 0.5
        %v4225 = vmul.f32 %v3713, 0.5
        %v4226 = vmul.f32 %v3714, 0.5
        %v4227 = vmul.f32 %v3715, 0.5
        %v4228 = vmul.f32 %v3716, 0.5
        %v4229 = vmul.f32 %v3717, 0.5
        %v4230 = vmul.f32 %v3718, 0.5
        %v4231 = vmul.f32 %v3719, 0.5
        %v4232 = vmul.f32 %v3720, 0.5
        %v4233 = vmul.f32 %v3721, 0.5
        %v4234 = vmul.f32 %v3722, 0.5
        %v4235 = vmul.f32 %v3723, 0.5
        %v4236 = vmul.f32 %v3724, 0.5
        %v4237 = vmul.f32 %v3725, 0.5
        %v4238 = vmul.f32 %v3726, 0.5
        %v4239 = vmul.f32 %v3727, 0.5
        %v4240 = vmul.f32 %v3728, 0.5
        %v4241 = vmul.f32 %v3729, 0.5
        %v4242 = vmul.f32 %v3730, 0.5
        %v4243 = vmul.f32 %v3731, 0.5
        %v4244 = vmul.f32 %v3732, 0.5
        %v4245 = vmul.f32 %v3733, 0.5
        %v4246 = vmul.f32 %v3734, 0.5
        %v4247 = vmul.f32 %v3735, 0.5
        %v4248 = vmul.f32 %v3736, 0.5
        %v4249 = vmul.f32 %v3737, 0.5
        %v4250 = vmul.f32 %v3738, 0.5
        %v4251 = vmul.f32 %v3739, 0.5
        %v4252 = vmul.f32 %v3740, 0.5
        %v4253 = vmul.f32 %v3741, 0.5
        %v4254 = vmul.f32 %v3742, 0.5
        %v4255 = vmul.f32 %v3743, 0.5
        %v4256 = vmul.f32 %v3744, 0.5
        %v4257 = vmul.f32 %v3745, 0.5
        %v4258 = vmul.f32 %v3746, 0.5
        %v4259 = vmul.f32 %v3747, 0.5
        %v4260 = vmul.f32 %v3748, 0.5
        %v4261 = vmul.f32 %v3749, 0.5
        %v4262 = vmul.f32 %v3750, 0.5
        %v4263 = vmul.f32 %v3751, 0.5
        %v4264 = vmul.f32 %v3752, 0.5
        %v4265 = vmul.f32 %v3753, 0.5
        %v4266 = vmul.f32 %v3754, 0.5
        %v4267 = vmul.f32 %v3755, 0.5
        %v4268 = vmul.f32 %v3756, 0.5
        %v4269 = vmul.f32 %v3757, 0.5
        %v4270 = vmul.f32 %v3758, 0.5
        %v4271 = vmul.f32 %v3759, 0.5
        %v4272 = vmul.f32 %v3760, 0.5
        %v4273 = vmul.f32 %v3761, 0.5
        %v4274 = vmul.f32 %v3762, 0.5
        %v4275 = vmul.f32 %v3763, 0.5
        %v4276 = vmul.f32 %v3764, 0.5
        %v4277 = vmul.f32 %v3765, 0.5
        %v4278 = vmul.f32 %v3766, 0.5
        %v4279 = vmul.f32 %v3767, 0.5
        %v4280 = vmul.f32 %v3768, 0.5
        %v4281 = vmul.f32 %v3769, 0.5
        %v4282 = vmul.f32 %v3770, 0.5
        %v4283 = vmul.f32 %v3771, 0.5
        %v4284 = vmul.f32 %v3772, 0.5
        %v4285 = vmul.f32 %v3773, 0.5
        %v4286 = vmul.f32 %v3774, 0.5
        %v4287 = vmul.f32 %v3775, 0.5
        %v4288 = vmul.f32 %v3776, 0.5
        %v4289 = vmul.f32 %v3777, 0.5
        %v4290 = vmul.f32 %v3778, 0.5
        %v4291 = vmul.f32 %v3779, 0.5
        %v4292 = vmul.f32 %v3780, 0.5
        %v4293 = vmul.f32 %v3781, 0.5
        %v4294 = vmul.f32 %v3782, 0.5
        %v4295 = vmul.f32 %v3783, 0.5
        %v4296 = vmul.f32 %v3784, 0.5
        %v4297 = vmul.f32 %v3785, 0.5
        %v4298 = vmul.f32 %v3786, 0.5
        %v4299 = vmul.f32 %v3787, 0.5
        %v4300 = vmul.f32 %v3788, 0.5
        %v4301 = vmul.f32 %v3789, 0.5
        %v4302 = vmul.f32 %v3790, 0.5
        %v4303 = vmul.f32 %v3791, 0.5
        %v4304 = vmul.f32 %v3792, 0.5
        %v4305 = vmul.f32 %v3793, 0.5
        %v4306 = vmul.f32 %v3794, 0.5
        %v4307 = vmul.f32 %v3795, 0.5
        %v4308 = vmul.f32 %v3796, 0.5
        %v4309 = vmul.f32 %v3797, 0.5
        %v4310 = vmul.f32 %v3798, 0.5
        %v4311 = vmul.f32 %v3799, 0.5
        %v4312 = vmul.f32 %v3800, 0.5
        %v4313 = vmul.f32 %v3801, 0.5
        %v4314 = vmul.f32 %v3802, 0.5
        %v4315 = vmul.f32 %v3803, 0.5
        %v4316 = vmul.f32 %v3804, 0.5
        %v4317 = vmul.f32 %v3805, 0.5
        %v4318 = vmul.f32 %v3806, 0.5
        %v4319 = vmul.f32 %v3807, 0.5
        %v4320 = vmul.f32 %v3808, 0.5
        %v4321 = vmul.f32 %v3809, 0.5
        %v4322 = vmul.f32 %v3810, 0.5
        %v4323 = vmul.f32 %v3811, 0.5
        %v4324 = vmul.f32 %v3812, 0.5
        %v4325 = vmul.f32 %v3813, 0.5
        %v4326 = vmul.f32 %v3814, 0.5
        %v4327 = vmul.f32 %v3815, 0.5
        %v4328 = vmul.f32 %v3816, 0.5
        %v4329 = vmul.f32 %v3817, 0.5
        %v4330 = vmul.f32 %v3818, 0.5
        %v4331 = vmul.f32 %v3819, 0.5
        %v4332 = vmul.f32 %v3820, 0.5
        %v4333 = vmul.f32 %v3821, 0.5
        %v4334 = vmul.f32 %v3822, 0.5
        %v4335 = vmul.f32 %v3823, 0.5
        %v4336 = vmul.f32 %v3824, 0.5
        %v4337 = vmul.f32 %v3825, 0.5
        %v4338 = vmul.f32 %v3826, 0.5
        %v4339 = vmul.f32 %v3827, 0.5
        %v4340 = vmul.f32 %v3828, 0.5
        %v4341 = vmul.f32 %v3829, 0.5
        %v4342 = vmul.f32 %v3830, 0.5
        %v4343 = vmul.f32 %v3831, 0.5
        %v4344 = vmul.f32 %v3832, 0.5
        %v4345 = vmul.f32 %v3833, 0.5
        %v4346 = vmul.f32 %v3834, 0.5
        %v4347 = vmul.f32 %v3835, 0.5
        %v4348 = vmul.f32 %v3836, 0.5
        %v4349 = vmul.f32 %v3837, 0.5
        %v4350 = vmul.f32 %v3838, 0.5
        %v4351 = vmul.f32 %v3839, 0.5
        %v4352 = vmul.f32 %v3840, 0.5
        %v4353 = vmul.f32 %v3841, 0.5
        %v4354 = vmul.f32 %v3842, 0.5
        %v4355 = vmul.f32 %v3843, 0.5
        %v4356 = vmul.f32 %v3844, 0.5
        %v4357 = vmul.f32 %v3845, 0.5
        %v4358 = vmul.f32 %v3846, 0.5
        %v4359 = vmul.f32 %v3847, 0.5
        %v4360 = vmul.f32 %v3848, 0.5
        %v4361 = vmul.f32 %v3849, 0.5
        %v4362 = vmul.f32 %v3850, 0.5
        %v4363 = vmul.f32 %v3851, 0.5
        %v4364 = vmul.f32 %v3852, 0.5
        %v4365 = vmul.f32 %v3853, 0.5
        %v4366 = vmul.f32 %v3854, 0.5
        %v4367 = vmul.f32 %v3855, 0.5
        %v4368 = vmul.f32 %v3856, 0.5
        %v4369 = vmul.f32 %v3857, 0.5
        %v4370 = vmul.f32 %v3858, 0.5
        %v4371 = vmul.f32 %v3859, 0.5
        %v4372 = vmul.f32 %v3860, 0.5
        %v4373 = vmul.f32 %v3861, 0.5
        %v4374 = vmul.f32 %v3862, 0.5
        %v4375 = vmul.f32 %v3863, 0.5
        %v4376 = vmul.f32 %v3864, 0.5
        %v4377 = vmul.f32 %v3865, 0.5
        %v4378 = vmul.f32 %v3866, 0.5
        %v4379 = vmul.f32 %v3867, 0.5
        %v4380 = vmul.f32 %v3868, 0.5
        %v4381 = vmul.f32 %v3869, 0.5
        %v4382 = vmul.f32 %v3870, 0.5
        %v4383 = vmul.f32 %v3871, 0.5
        %v4384 = vmul.f32 %v3872, 0.5
        %v4385 = vmul.f32 %v3873, 0.5
        %v4386 = vmul.f32 %v3874, 0.5
        %v4387 = vmul.f32 %v3875, 0.5
        %v4388 = vmul.f32 %v3876, 0.5
        %v4389 = vmul.f32 %v3877, 0.5
        %v4390 = vmul.f32 %v3878, 0.5
        %v4391 = vmul.f32 %v3879, 0.5
        %v4392 = vmul.f32 %v3880, 0.5
        %v4393 = vmul.f32 %v3881, 0.5
        %v4394 = vmul.f32 %v3882, 0.5
        %v4395 = vmul.f32 %v3883, 0.5
        %v4396 = vmul.f32 %v3884, 0.5
        %v4397 = vmul.f32 %v3885, 0.5
        %v4398 = vmul.f32 %v3886, 0.5
        %v4399 = vmul.f32 %v3887, 0.5
        %v4400 = vmul.f32 %v3888, 0.5
        %v4401 = vmul.f32 %v3377, %v3377
        %v4402 = vmul.f32 %v3378, %v3378
        %v4403 = vmul.f32 %v3379, %v3379
        %v4404 = vmul.f32 %v3380, %v3380
        %v4405 = vmul.f32 %v3381, %v3381
        %v4406 = vmul.f32 %v3382, %v3382
        %v4407 = vmul.f32 %v3383, %v3383
        %v4408 = vmul.f32 %v3384, %v3384
        %v4409 = vmul.f32 %v3385, %v3385
        %v4410 = vmul.f32 %v3386, %v3386
        %v4411 = vmul.f32 %v3387, %v3387
        %v4412 = vmul.f32 %v3388, %v3388
        %v4413 = vmul.f32 %v3389, %v3389
        %v4414 = vmul.f32 %v3390, %v3390
        %v4415 = vmul.f32 %v3391, %v3391
        %v4416 = vmul.f32 %v3392, %v3392
        %v4417 = vmul.f32 %v3393, %v3393
        %v4418 = vmul.f32 %v3394, %v3394
        %v4419 = vmul.f32 %v3395, %v3395
        %v4420 = vmul.f32 %v3396, %v3396
        %v4421 = vmul.f32 %v3397, %v3397
        %v4422 = vmul.f32 %v3398, %v3398
        %v4423 = vmul.f32 %v3399, %v3399
        %v4424 = vmul.f32 %v3400, %v3400
        %v4425 = vmul.f32 %v3401, %v3401
        %v4426 = vmul.f32 %v3402, %v3402
        %v4427 = vmul.f32 %v3403, %v3403
        %v4428 = vmul.f32 %v3404, %v3404
        %v4429 = vmul.f32 %v3405, %v3405
        %v4430 = vmul.f32 %v3406, %v3406
        %v4431 = vmul.f32 %v3407, %v3407
        %v4432 = vmul.f32 %v3408, %v3408
        %v4433 = vmul.f32 %v3409, %v3409
        %v4434 = vmul.f32 %v3410, %v3410
        %v4435 = vmul.f32 %v3411, %v3411
        %v4436 = vmul.f32 %v3412, %v3412
        %v4437 = vmul.f32 %v3413, %v3413
        %v4438 = vmul.f32 %v3414, %v3414
        %v4439 = vmul.f32 %v3415, %v3415
        %v4440 = vmul.f32 %v3416, %v3416
        %v4441 = vmul.f32 %v3417, %v3417
        %v4442 = vmul.f32 %v3418, %v3418
        %v4443 = vmul.f32 %v3419, %v3419
        %v4444 = vmul.f32 %v3420, %v3420
        %v4445 = vmul.f32 %v3421, %v3421
        %v4446 = vmul.f32 %v3422, %v3422
        %v4447 = vmul.f32 %v3423, %v3423
        %v4448 = vmul.f32 %v3424, %v3424
        %v4449 = vmul.f32 %v3425, %v3425
        %v4450 = vmul.f32 %v3426, %v3426
        %v4451 = vmul.f32 %v3427, %v3427
        %v4452 = vmul.f32 %v3428, %v3428
        %v4453 = vmul.f32 %v3429, %v3429
        %v4454 = vmul.f32 %v3430, %v3430
        %v4455 = vmul.f32 %v3431, %v3431
        %v4456 = vmul.f32 %v3432, %v3432
        %v4457 = vmul.f32 %v3433, %v3433
        %v4458 = vmul.f32 %v3434, %v3434
        %v4459 = vmul.f32 %v3435, %v3435
        %v4460 = vmul.f32 %v3436, %v3436
        %v4461 = vmul.f32 %v3437, %v3437
        %v4462 = vmul.f32 %v3438, %v3438
        %v4463 = vmul.f32 %v3439, %v3439
        %v4464 = vmul.f32 %v3440, %v3440
        %v4465 = vmul.f32 %v3441, %v3441
        %v4466 = vmul.f32 %v3442, %v3442
        %v4467 = vmul.f32 %v3443, %v3443
        %v4468 = vmul.f32 %v3444, %v3444
        %v4469 = vmul.f32 %v3445, %v3445
        %v4470 = vmul.f32 %v3446, %v3446
        %v4471 = vmul.f32 %v3447, %v3447
        %v4472 = vmul.f32 %v3448, %v3448
        %v4473 = vmul.f32 %v3449, %v3449
        %v4474 = vmul.f32 %v3450, %v3450
        %v4475 = vmul.f32 %v3451, %v3451
        %v4476 = vmul.f32 %v3452, %v3452
        %v4477 = vmul.f32 %v3453, %v3453
        %v4478 = vmul.f32 %v3454, %v3454
        %v4479 = vmul.f32 %v3455, %v3455
        %v4480 = vmul.f32 %v3456, %v3456
        %v4481 = vmul.f32 %v3457, %v3457
        %v4482 = vmul.f32 %v3458, %v3458
        %v4483 = vmul.f32 %v3459, %v3459
        %v4484 = vmul.f32 %v3460, %v3460
        %v4485 = vmul.f32 %v3461, %v3461
        %v4486 = vmul.f32 %v3462, %v3462
        %v4487 = vmul.f32 %v3463, %v3463
        %v4488 = vmul.f32 %v3464, %v3464
        %v4489 = vmul.f32 %v3465, %v3465
        %v4490 = vmul.f32 %v3466, %v3466
        %v4491 = vmul.f32 %v3467, %v3467
        %v4492 = vmul.f32 %v3468, %v3468
        %v4493 = vmul.f32 %v3469, %v3469
        %v4494 = vmul.f32 %v3470, %v3470
        %v4495 = vmul.f32 %v3471, %v3471
        %v4496 = vmul.f32 %v3472, %v3472
        %v4497 = vmul.f32 %v3473, %v3473
        %v4498 = vmul.f32 %v3474, %v3474
        %v4499 = vmul.f32 %v3475, %v3475
        %v4500 = vmul.f32 %v3476, %v3476
        %v4501 = vmul.f32 %v3477, %v3477
        %v4502 = vmul.f32 %v3478, %v3478
        %v4503 = vmul.f32 %v3479, %v3479
        %v4504 = vmul.f32 %v3480, %v3480
        %v4505 = vmul.f32 %v3481, %v3481
        %v4506 = vmul.f32 %v3482, %v3482
        %v4507 = vmul.f32 %v3483, %v3483
        %v4508 = vmul.f32 %v3484, %v3484
        %v4509 = vmul.f32 %v3485, %v3485
        %v4510 = vmul.f32 %v3486, %v3486
        %v4511 = vmul.f32 %v3487, %v3487
        %v4512 = vmul.f32 %v3488, %v3488
        %v4513 = vmul.f32 %v3489, %v3489
        %v4514 = vmul.f32 %v3490, %v3490
        %v4515 = vmul.f32 %v3491, %v3491
        %v4516 = vmul.f32 %v3492, %v3492
        %v4517 = vmul.f32 %v3493, %v3493
        %v4518 = vmul.f32 %v3494, %v3494
        %v4519 = vmul.f32 %v3495, %v3495
        %v4520 = vmul.f32 %v3496, %v3496
        %v4521 = vmul.f32 %v3497, %v3497
        %v4522 = vmul.f32 %v3498, %v3498
        %v4523 = vmul.f32 %v3499, %v3499
        %v4524 = vmul.f32 %v3500, %v3500
        %v4525 = vmul.f32 %v3501, %v3501
        %v4526 = vmul.f32 %v3502, %v3502
        %v4527 = vmul.f32 %v3503, %v3503
        %v4528 = vmul.f32 %v3504, %v3504
        %v4529 = vmul.f32 %v3505, %v3505
        %v4530 = vmul.f32 %v3506, %v3506
        %v4531 = vmul.f32 %v3507, %v3507
        %v4532 = vmul.f32 %v3508, %v3508
        %v4533 = vmul.f32 %v3509, %v3509
        %v4534 = vmul.f32 %v3510, %v3510
        %v4535 = vmul.f32 %v3511, %v3511
        %v4536 = vmul.f32 %v3512, %v3512
        %v4537 = vmul.f32 %v3513, %v3513
        %v4538 = vmul.f32 %v3514, %v3514
        %v4539 = vmul.f32 %v3515, %v3515
        %v4540 = vmul.f32 %v3516, %v3516
        %v4541 = vmul.f32 %v3517, %v3517
        %v4542 = vmul.f32 %v3518, %v3518
        %v4543 = vmul.f32 %v3519, %v3519
        %v4544 = vmul.f32 %v3520, %v3520
        %v4545 = vmul.f32 %v3521, %v3521
        %v4546 = vmul.f32 %v3522, %v3522
        %v4547 = vmul.f32 %v3523, %v3523
        %v4548 = vmul.f32 %v3524, %v3524
        %v4549 = vmul.f32 %v3525, %v3525
        %v4550 = vmul.f32 %v3526, %v3526
        %v4551 = vmul.f32 %v3527, %v3527
        %v4552 = vmul.f32 %v3528, %v3528
        %v4553 = vmul.f32 %v3529, %v3529
        %v4554 = vmul.f32 %v3530, %v3530
        %v4555 = vmul.f32 %v3531, %v3531
        %v4556 = vmul.f32 %v3532, %v3532
        %v4557 = vmul.f32 %v3533, %v3533
        %v4558 = vmul.f32 %v3534, %v3534
        %v4559 = vmul.f32 %v3535, %v3535
        %v4560 = vmul.f32 %v3536, %v3536
        %v4561 = vmul.f32 %v3537, %v3537
        %v4562 = vmul.f32 %v3538, %v3538
        %v4563 = vmul.f32 %v3539, %v3539
        %v4564 = vmul.f32 %v3540, %v3540
        %v4565 = vmul.f32 %v3541, %v3541
        %v4566 = vmul.f32 %v3542, %v3542
        %v4567 = vmul.f32 %v3543, %v3543
        %v4568 = vmul.f32 %v3544, %v3544
        %v4569 = vmul.f32 %v3545, %v3545
        %v4570 = vmul.f32 %v3546, %v3546
        %v4571 = vmul.f32 %v3547, %v3547
        %v4572 = vmul.f32 %v3548, %v3548
        %v4573 = vmul.f32 %v3549, %v3549
        %v4574 = vmul.f32 %v3550, %v3550
        %v4575 = vmul.f32 %v3551, %v3551
        %v4576 = vmul.f32 %v3552, %v3552
        %v4577 = vmul.f32 %v3553, %v3553
        %v4578 = vmul.f32 %v3554, %v3554
        %v4579 = vmul.f32 %v3555, %v3555
        %v4580 = vmul.f32 %v3556, %v3556
        %v4581 = vmul.f32 %v3557, %v3557
        %v4582 = vmul.f32 %v3558, %v3558
        %v4583 = vmul.f32 %v3559, %v3559
        %v4584 = vmul.f32 %v3560, %v3560
        %v4585 = vmul.f32 %v3561, %v3561
        %v4586 = vmul.f32 %v3562, %v3562
        %v4587 = vmul.f32 %v3563, %v3563
        %v4588 = vmul.f32 %v3564, %v3564
        %v4589 = vmul.f32 %v3565, %v3565
        %v4590 = vmul.f32 %v3566, %v3566
        %v4591 = vmul.f32 %v3567, %v3567
        %v4592 = vmul.f32 %v3568, %v3568
        %v4593 = vmul.f32 %v3569, %v3569
        %v4594 = vmul.f32 %v3570, %v3570
        %v4595 = vmul.f32 %v3571, %v3571
        %v4596 = vmul.f32 %v3572, %v3572
        %v4597 = vmul.f32 %v3573, %v3573
        %v4598 = vmul.f32 %v3574, %v3574
        %v4599 = vmul.f32 %v3575, %v3575
        %v4600 = vmul.f32 %v3576, %v3576
        %v4601 = vmul.f32 %v3577, %v3577
        %v4602 = vmul.f32 %v3578, %v3578
        %v4603 = vmul.f32 %v3579, %v3579
        %v4604 = vmul.f32 %v3580, %v3580
        %v4605 = vmul.f32 %v3581, %v3581
        %v4606 = vmul.f32 %v3582, %v3582
        %v4607 = vmul.f32 %v3583, %v3583
        %v4608 = vmul.f32 %v3584, %v3584
        %v4609 = vmul.f32 %v3585, %v3585
        %v4610 = vmul.f32 %v3586, %v3586
        %v4611 = vmul.f32 %v3587, %v3587
        %v4612 = vmul.f32 %v3588, %v3588
        %v4613 = vmul.f32 %v3589, %v3589
        %v4614 = vmul.f32 %v3590, %v3590
        %v4615 = vmul.f32 %v3591, %v3591
        %v4616 = vmul.f32 %v3592, %v3592
        %v4617 = vmul.f32 %v3593, %v3593
        %v4618 = vmul.f32 %v3594, %v3594
        %v4619 = vmul.f32 %v3595, %v3595
        %v4620 = vmul.f32 %v3596, %v3596
        %v4621 = vmul.f32 %v3597, %v3597
        %v4622 = vmul.f32 %v3598, %v3598
        %v4623 = vmul.f32 %v3599, %v3599
        %v4624 = vmul.f32 %v3600, %v3600
        %v4625 = vmul.f32 %v3601, %v3601
        %v4626 = vmul.f32 %v3602, %v3602
        %v4627 = vmul.f32 %v3603, %v3603
        %v4628 = vmul.f32 %v3604, %v3604
        %v4629 = vmul.f32 %v3605, %v3605
        %v4630 = vmul.f32 %v3606, %v3606
        %v4631 = vmul.f32 %v3607, %v3607
        %v4632 = vmul.f32 %v3608, %v3608
        %v4633 = vmul.f32 %v3609, %v3609
        %v4634 = vmul.f32 %v3610, %v3610
        %v4635 = vmul.f32 %v3611, %v3611
        %v4636 = vmul.f32 %v3612, %v3612
        %v4637 = vmul.f32 %v3613, %v3613
        %v4638 = vmul.f32 %v3614, %v3614
        %v4639 = vmul.f32 %v3615, %v3615
        %v4640 = vmul.f32 %v3616, %v3616
        %v4641 = vmul.f32 %v3617, %v3617
        %v4642 = vmul.f32 %v3618, %v3618
        %v4643 = vmul.f32 %v3619, %v3619
        %v4644 = vmul.f32 %v3620, %v3620
        %v4645 = vmul.f32 %v3621, %v3621
        %v4646 = vmul.f32 %v3622, %v3622
        %v4647 = vmul.f32 %v3623, %v3623
        %v4648 = vmul.f32 %v3624, %v3624
        %v4649 = vmul.f32 %v3625, %v3625
        %v4650 = vmul.f32 %v3626, %v3626
        %v4651 = vmul.f32 %v3627, %v3627
        %v4652 = vmul.f32 %v3628, %v3628
        %v4653 = vmul.f32 %v3629, %v3629
        %v4654 = vmul.f32 %v3630, %v3630
        %v4655 = vmul.f32 %v3631, %v3631
        %v4656 = vmul.f32 %v3632, %v3632
        %v4657 = vmul.f32 %v3633, %v3633
        %v4658 = vmul.f32 %v3634, %v3634
        %v4659 = vmul.f32 %v3635, %v3635
        %v4660 = vmul.f32 %v3636, %v3636
        %v4661 = vmul.f32 %v3637, %v3637
        %v4662 = vmul.f32 %v3638, %v3638
        %v4663 = vmul.f32 %v3639, %v3639
        %v4664 = vmul.f32 %v3640, %v3640
        %v4665 = vmul.f32 %v3641, %v3641
        %v4666 = vmul.f32 %v3642, %v3642
        %v4667 = vmul.f32 %v3643, %v3643
        %v4668 = vmul.f32 %v3644, %v3644
        %v4669 = vmul.f32 %v3645, %v3645
        %v4670 = vmul.f32 %v3646, %v3646
        %v4671 = vmul.f32 %v3647, %v3647
        %v4672 = vmul.f32 %v3648, %v3648
        %v4673 = vmul.f32 %v3649, %v3649
        %v4674 = vmul.f32 %v3650, %v3650
        %v4675 = vmul.f32 %v3651, %v3651
        %v4676 = vmul.f32 %v3652, %v3652
        %v4677 = vmul.f32 %v3653, %v3653
        %v4678 = vmul.f32 %v3654, %v3654
        %v4679 = vmul.f32 %v3655, %v3655
        %v4680 = vmul.f32 %v3656, %v3656
        %v4681 = vmul.f32 %v3657, %v3657
        %v4682 = vmul.f32 %v3658, %v3658
        %v4683 = vmul.f32 %v3659, %v3659
        %v4684 = vmul.f32 %v3660, %v3660
        %v4685 = vmul.f32 %v3661, %v3661
        %v4686 = vmul.f32 %v3662, %v3662
        %v4687 = vmul.f32 %v3663, %v3663
        %v4688 = vmul.f32 %v3664, %v3664
        %v4689 = vmul.f32 %v3665, %v3665
        %v4690 = vmul.f32 %v3666, %v3666
        %v4691 = vmul.f32 %v3667, %v3667
        %v4692 = vmul.f32 %v3668, %v3668
        %v4693 = vmul.f32 %v3669, %v3669
        %v4694 = vmul.f32 %v3670, %v3670
        %v4695 = vmul.f32 %v3671, %v3671
        %v4696 = vmul.f32 %v3672, %v3672
        %v4697 = vmul.f32 %v3673, %v3673
        %v4698 = vmul.f32 %v3674, %v3674
        %v4699 = vmul.f32 %v3675, %v3675
        %v4700 = vmul.f32 %v3676, %v3676
        %v4701 = vmul.f32 %v3677, %v3677
        %v4702 = vmul.f32 %v3678, %v3678
        %v4703 = vmul.f32 %v3679, %v3679
        %v4704 = vmul.f32 %v3680, %v3680
        %v4705 = vmul.f32 %v3681, %v3681
        %v4706 = vmul.f32 %v3682, %v3682
        %v4707 = vmul.f32 %v3683, %v3683
        %v4708 = vmul.f32 %v3684, %v3684
        %v4709 = vmul.f32 %v3685, %v3685
        %v4710 = vmul.f32 %v3686, %v3686
        %v4711 = vmul.f32 %v3687, %v3687
        %v4712 = vmul.f32 %v3688, %v3688
        %v4713 = vmul.f32 %v3689, %v3689
        %v4714 = vmul.f32 %v3690, %v3690
        %v4715 = vmul.f32 %v3691, %v3691
        %v4716 = vmul.f32 %v3692, %v3692
        %v4717 = vmul.f32 %v3693, %v3693
        %v4718 = vmul.f32 %v3694, %v3694
        %v4719 = vmul.f32 %v3695, %v3695
        %v4720 = vmul.f32 %v3696, %v3696
        %v4721 = vmul.f32 %v3697, %v3697
        %v4722 = vmul.f32 %v3698, %v3698
        %v4723 = vmul.f32 %v3699, %v3699
        %v4724 = vmul.f32 %v3700, %v3700
        %v4725 = vmul.f32 %v3701, %v3701
        %v4726 = vmul.f32 %v3702, %v3702
        %v4727 = vmul.f32 %v3703, %v3703
        %v4728 = vmul.f32 %v3704, %v3704
        %v4729 = vmul.f32 %v3705, %v3705
        %v4730 = vmul.f32 %v3706, %v3706
        %v4731 = vmul.f32 %v3707, %v3707
        %v4732 = vmul.f32 %v3708, %v3708
        %v4733 = vmul.f32 %v3709, %v3709
        %v4734 = vmul.f32 %v3710, %v3710
        %v4735 = vmul.f32 %v3711, %v3711
        %v4736 = vmul.f32 %v3712, %v3712
        %v4737 = vmul.f32 %v3713, %v3713
        %v4738 = vmul.f32 %v3714, %v3714
        %v4739 = vmul.f32 %v3715, %v3715
        %v4740 = vmul.f32 %v3716, %v3716
        %v4741 = vmul.f32 %v3717, %v3717
        %v4742 = vmul.f32 %v3718, %v3718
        %v4743 = vmul.f32 %v3719, %v3719
        %v4744 = vmul.f32 %v3720, %v3720
        %v4745 = vmul.f32 %v3721, %v3721
        %v4746 = vmul.f32 %v3722, %v3722
        %v4747 = vmul.f32 %v3723, %v3723
        %v4748 = vmul.f32 %v3724, %v3724
        %v4749 = vmul.f32 %v3725, %v3725
        %v4750 = vmul.f32 %v3726, %v3726
        %v4751 = vmul.f32 %v3727, %v3727
        %v4752 = vmul.f32 %v3728, %v3728
        %v4753 = vmul.f32 %v3729, %v3729
        %v4754 = vmul.f32 %v3730, %v3730
        %v4755 = vmul.f32 %v3731, %v3731
        %v4756 = vmul.f32 %v3732, %v3732
        %v4757 = vmul.f32 %v3733, %v3733
        %v4758 = vmul.f32 %v3734, %v3734
        %v4759 = vmul.f32 %v3735, %v3735
        %v4760 = vmul.f32 %v3736, %v3736
        %v4761 = vmul.f32 %v3737, %v3737
        %v4762 = vmul.f32 %v3738, %v3738
        %v4763 = vmul.f32 %v3739, %v3739
        %v4764 = vmul.f32 %v3740, %v3740
        %v4765 = vmul.f32 %v3741, %v3741
        %v4766 = vmul.f32 %v3742, %v3742
        %v4767 = vmul.f32 %v3743, %v3743
        %v4768 = vmul.f32 %v3744, %v3744
        %v4769 = vmul.f32 %v3745, %v3745
        %v4770 = vmul.f32 %v3746, %v3746
        %v4771 = vmul.f32 %v3747, %v3747
        %v4772 = vmul.f32 %v3748, %v3748
        %v4773 = vmul.f32 %v3749, %v3749
        %v4774 = vmul.f32 %v3750, %v3750
        %v4775 = vmul.f32 %v3751, %v3751
        %v4776 = vmul.f32 %v3752, %v3752
        %v4777 = vmul.f32 %v3753, %v3753
        %v4778 = vmul.f32 %v3754, %v3754
        %v4779 = vmul.f32 %v3755, %v3755
        %v4780 = vmul.f32 %v3756, %v3756
        %v4781 = vmul.f32 %v3757, %v3757
        %v4782 = vmul.f32 %v3758, %v3758
        %v4783 = vmul.f32 %v3759, %v3759
        %v4784 = vmul.f32 %v3760, %v3760
        %v4785 = vmul.f32 %v3761, %v3761
        %v4786 = vmul.f32 %v3762, %v3762
        %v4787 = vmul.f32 %v3763, %v3763
        %v4788 = vmul.f32 %v3764, %v3764
        %v4789 = vmul.f32 %v3765, %v3765
        %v4790 = vmul.f32 %v3766, %v3766
        %v4791 = vmul.f32 %v3767, %v3767
        %v4792 = vmul.f32 %v3768, %v3768
        %v4793 = vmul.f32 %v3769, %v3769
        %v4794 = vmul.f32 %v3770, %v3770
        %v4795 = vmul.f32 %v3771, %v3771
        %v4796 = vmul.f32 %v3772, %v3772
        %v4797 = vmul.f32 %v3773, %v3773
        %v4798 = vmul.f32 %v3774, %v3774
        %v4799 = vmul.f32 %v3775, %v3775
        %v4800 = vmul.f32 %v3776, %v3776
        %v4801 = vmul.f32 %v3777, %v3777
        %v4802 = vmul.f32 %v3778, %v3778
        %v4803 = vmul.f32 %v3779, %v3779
        %v4804 = vmul.f32 %v3780, %v3780
        %v4805 = vmul.f32 %v3781, %v3781
        %v4806 = vmul.f32 %v3782, %v3782
        %v4807 = vmul.f32 %v3783, %v3783
        %v4808 = vmul.f32 %v3784, %v3784
        %v4809 = vmul.f32 %v3785, %v3785
        %v4810 = vmul.f32 %v3786, %v3786
        %v4811 = vmul.f32 %v3787, %v3787
        %v4812 = vmul.f32 %v3788, %v3788
        %v4813 = vmul.f32 %v3789, %v3789
        %v4814 = vmul.f32 %v3790, %v3790
        %v4815 = vmul.f32 %v3791, %v3791
        %v4816 = vmul.f32 %v3792, %v3792
        %v4817 = vmul.f32 %v3793, %v3793
        %v4818 = vmul.f32 %v3794, %v3794
        %v4819 = vmul.f32 %v3795, %v3795
        %v4820 = vmul.f32 %v3796, %v3796
        %v4821 = vmul.f32 %v3797, %v3797
        %v4822 = vmul.f32 %v3798, %v3798
        %v4823 = vmul.f32 %v3799, %v3799
        %v4824 = vmul.f32 %v3800, %v3800
        %v4825 = vmul.f32 %v3801, %v3801
        %v4826 = vmul.f32 %v3802, %v3802
        %v4827 = vmul.f32 %v3803, %v3803
        %v4828 = vmul.f32 %v3804, %v3804
        %v4829 = vmul.f32 %v3805, %v3805
        %v4830 = vmul.f32 %v3806, %v3806
        %v4831 = vmul.f32 %v3807, %v3807
        %v4832 = vmul.f32 %v3808, %v3808
        %v4833 = vmul.f32 %v3809, %v3809
        %v4834 = vmul.f32 %v3810, %v3810
        %v4835 = vmul.f32 %v3811, %v3811
        %v4836 = vmul.f32 %v3812, %v3812
        %v4837 = vmul.f32 %v3813, %v3813
        %v4838 = vmul.f32 %v3814, %v3814
        %v4839 = vmul.f32 %v3815, %v3815
        %v4840 = vmul.f32 %v3816, %v3816
        %v4841 = vmul.f32 %v3817, %v3817
        %v4842 = vmul.f32 %v3818, %v3818
        %v4843 = vmul.f32 %v3819, %v3819
        %v4844 = vmul.f32 %v3820, %v3820
        %v4845 = vmul.f32 %v3821, %v3821
        %v4846 = vmul.f32 %v3822, %v3822
        %v4847 = vmul.f32 %v3823, %v3823
        %v4848 = vmul.f32 %v3824, %v3824
        %v4849 = vmul.f32 %v3825, %v3825
        %v4850 = vmul.f32 %v3826, %v3826
        %v4851 = vmul.f32 %v3827, %v3827
        %v4852 = vmul.f32 %v3828, %v3828
        %v4853 = vmul.f32 %v3829, %v3829
        %v4854 = vmul.f32 %v3830, %v3830
        %v4855 = vmul.f32 %v3831, %v3831
        %v4856 = vmul.f32 %v3832, %v3832
        %v4857 = vmul.f32 %v3833, %v3833
        %v4858 = vmul.f32 %v3834, %v3834
        %v4859 = vmul.f32 %v3835, %v3835
        %v4860 = vmul.f32 %v3836, %v3836
        %v4861 = vmul.f32 %v3837, %v3837
        %v4862 = vmul.f32 %v3838, %v3838
        %v4863 = vmul.f32 %v3839, %v3839
        %v4864 = vmul.f32 %v3840, %v3840
        %v4865 = vmul.f32 %v3841, %v3841
        %v4866 = vmul.f32 %v3842, %v3842
        %v4867 = vmul.f32 %v3843, %v3843
        %v4868 = vmul.f32 %v3844, %v3844
        %v4869 = vmul.f32 %v3845, %v3845
        %v4870 = vmul.f32 %v3846, %v3846
        %v4871 = vmul.f32 %v3847, %v3847
        %v4872 = vmul.f32 %v3848, %v3848
        %v4873 = vmul.f32 %v3849, %v3849
        %v4874 = vmul.f32 %v3850, %v3850
        %v4875 = vmul.f32 %v3851, %v3851
        %v4876 = vmul.f32 %v3852, %v3852
        %v4877 = vmul.f32 %v3853, %v3853
        %v4878 = vmul.f32 %v3854, %v3854
        %v4879 = vmul.f32 %v3855, %v3855
        %v4880 = vmul.f32 %v3856, %v3856
        %v4881 = vmul.f32 %v3857, %v3857
        %v4882 = vmul.f32 %v3858, %v3858
        %v4883 = vmul.f32 %v3859, %v3859
        %v4884 = vmul.f32 %v3860, %v3860
        %v4885 = vmul.f32 %v3861, %v3861
        %v4886 = vmul.f32 %v3862, %v3862
        %v4887 = vmul.f32 %v3863, %v3863
        %v4888 = vmul.f32 %v3864, %v3864
        %v4889 = vmul.f32 %v3865, %v3865
        %v4890 = vmul.f32 %v3866, %v3866
        %v4891 = vmul.f32 %v3867, %v3867
        %v4892 = vmul.f32 %v3868, %v3868
        %v4893 = vmul.f32 %v3869, %v3869
        %v4894 = vmul.f32 %v3870, %v3870
        %v4895 = vmul.f32 %v3871, %v3871
        %v4896 = vmul.f32 %v3872, %v3872
        %v4897 = vmul.f32 %v3873, %v3873
        %v4898 = vmul.f32 %v3874, %v3874
        %v4899 = vmul.f32 %v3875, %v3875
        %v4900 = vmul.f32 %v3876, %v3876
        %v4901 = vmul.f32 %v3877, %v3877
        %v4902 = vmul.f32 %v3878, %v3878
        %v4903 = vmul.f32 %v3879, %v3879
        %v4904 = vmul.f32 %v3880, %v3880
        %v4905 = vmul.f32 %v3881, %v3881
        %v4906 = vmul.f32 %v3882, %v3882
        %v4907 = vmul.f32 %v3883, %v3883
        %v4908 = vmul.f32 %v3884, %v3884
        %v4909 = vmul.f32 %v3885, %v3885
        %v4910 = vmul.f32 %v3886, %v3886
        %v4911 = vmul.f32 %v3887, %v3887
        %v4912 = vmul.f32 %v3888, %v3888
        %v4913 = vmul.f32 %v4401, %v3377
        %v4914 = vmul.f32 %v4402, %v3378
        %v4915 = vmul.f32 %v4403, %v3379
        %v4916 = vmul.f32 %v4404, %v3380
        %v4917 = vmul.f32 %v4405, %v3381
        %v4918 = vmul.f32 %v4406, %v3382
        %v4919 = vmul.f32 %v4407, %v3383
        %v4920 = vmul.f32 %v4408, %v3384
        %v4921 = vmul.f32 %v4409, %v3385
        %v4922 = vmul.f32 %v4410, %v3386
        %v4923 = vmul.f32 %v4411, %v3387
        %v4924 = vmul.f32 %v4412, %v3388
        %v4925 = vmul.f32 %v4413, %v3389
        %v4926 = vmul.f32 %v4414, %v3390
        %v4927 = vmul.f32 %v4415, %v3391
        %v4928 = vmul.f32 %v4416, %v3392
        %v4929 = vmul.f32 %v4417, %v3393
        %v4930 = vmul.f32 %v4418, %v3394
        %v4931 = vmul.f32 %v4419, %v3395
        %v4932 = vmul.f32 %v4420, %v3396
        %v4933 = vmul.f32 %v4421, %v3397
        %v4934 = vmul.f32 %v4422, %v3398
        %v4935 = vmul.f32 %v4423, %v3399
        %v4936 = vmul.f32 %v4424, %v3400
        %v4937 = vmul.f32 %v4425, %v3401
        %v4938 = vmul.f32 %v4426, %v3402
        %v4939 = vmul.f32 %v4427, %v3403
        %v4940 = vmul.f32 %v4428, %v3404
        %v4941 = vmul.f32 %v4429, %v3405
        %v4942 = vmul.f32 %v4430, %v3406
        %v4943 = vmul.f32 %v4431, %v3407
        %v4944 = vmul.f32 %v4432, %v3408
        %v4945 = vmul.f32 %v4433, %v3409
        %v4946 = vmul.f32 %v4434, %v3410
        %v4947 = vmul.f32 %v4435, %v3411
        %v4948 = vmul.f32 %v4436, %v3412
        %v4949 = vmul.f32 %v4437, %v3413
        %v4950 = vmul.f32 %v4438, %v3414
        %v4951 = vmul.f32 %v4439, %v3415
        %v4952 = vmul.f32 %v4440, %v3416
        %v4953 = vmul.f32 %v4441, %v3417
        %v4954 = vmul.f32 %v4442, %v3418
        %v4955 = vmul.f32 %v4443, %v3419
        %v4956 = vmul.f32 %v4444, %v3420
        %v4957 = vmul.f32 %v4445, %v3421
        %v4958 = vmul.f32 %v4446, %v3422
        %v4959 = vmul.f32 %v4447, %v3423
        %v4960 = vmul.f32 %v4448, %v3424
        %v4961 = vmul.f32 %v4449, %v3425
        %v4962 = vmul.f32 %v4450, %v3426
        %v4963 = vmul.f32 %v4451, %v3427
        %v4964 = vmul.f32 %v4452, %v3428
        %v4965 = vmul.f32 %v4453, %v3429
        %v4966 = vmul.f32 %v4454, %v3430
        %v4967 = vmul.f32 %v4455, %v3431
        %v4968 = vmul.f32 %v4456, %v3432
        %v4969 = vmul.f32 %v4457, %v3433
        %v4970 = vmul.f32 %v4458, %v3434
        %v4971 = vmul.f32 %v4459, %v3435
        %v4972 = vmul.f32 %v4460, %v3436
        %v4973 = vmul.f32 %v4461, %v3437
        %v4974 = vmul.f32 %v4462, %v3438
        %v4975 = vmul.f32 %v4463, %v3439
        %v4976 = vmul.f32 %v4464, %v3440
        %v4977 = vmul.f32 %v4465, %v3441
        %v4978 = vmul.f32 %v4466, %v3442
        %v4979 = vmul.f32 %v4467, %v3443
        %v4980 = vmul.f32 %v4468, %v3444
        %v4981 = vmul.f32 %v4469, %v3445
        %v4982 = vmul.f32 %v4470, %v3446
        %v4983 = vmul.f32 %v4471, %v3447
        %v4984 = vmul.f32 %v4472, %v3448
        %v4985 = vmul.f32 %v4473, %v3449
        %v4986 = vmul.f32 %v4474, %v3450
        %v4987 = vmul.f32 %v4475, %v3451
        %v4988 = vmul.f32 %v4476, %v3452
        %v4989 = vmul.f32 %v4477, %v3453
        %v4990 = vmul.f32 %v4478, %v3454
        %v4991 = vmul.f32 %v4479, %v3455
        %v4992 = vmul.f32 %v4480, %v3456
        %v4993 = vmul.f32 %v4481, %v3457
        %v4994 = vmul.f32 %v4482, %v3458
        %v4995 = vmul.f32 %v4483, %v3459
        %v4996 = vmul.f32 %v4484, %v3460
        %v4997 = vmul.f32 %v4485, %v3461
        %v4998 = vmul.f32 %v4486, %v3462
        %v4999 = vmul.f32 %v4487, %v3463
        %v5000 = vmul.f32 %v4488, %v3464
        %v5001 = vmul.f32 %v4489, %v3465
        %v5002 = vmul.f32 %v4490, %v3466
        %v5003 = vmul.f32 %v4491, %v3467
        %v5004 = vmul.f32 %v4492, %v3468
        %v5005 = vmul.f32 %v4493, %v3469
        %v5006 = vmul.f32 %v4494, %v3470
        %v5007 = vmul.f32 %v4495, %v3471
        %v5008 = vmul.f32 %v4496, %v3472
        %v5009 = vmul.f32 %v4497, %v3473
        %v5010 = vmul.f32 %v4498, %v3474
        %v5011 = vmul.f32 %v4499, %v3475
        %v5012 = vmul.f32 %v4500, %v3476
        %v5013 = vmul.f32 %v4501, %v3477
        %v5014 = vmul.f32 %v4502, %v3478
        %v5015 = vmul.f32 %v4503, %v3479
        %v5016 = vmul.f32 %v4504, %v3480
        %v5017 = vmul.f32 %v4505, %v3481
        %v5018 = vmul.f32 %v4506, %v3482
        %v5019 = vmul.f32 %v4507, %v3483
        %v5020 = vmul.f32 %v4508, %v3484
        %v5021 = vmul.f32 %v4509, %v3485
        %v5022 = vmul.f32 %v4510, %v3486
        %v5023 = vmul.f32 %v4511, %v3487
        %v5024 = vmul.f32 %v4512, %v3488
        %v5025 = vmul.f32 %v4513, %v3489
        %v5026 = vmul.f32 %v4514, %v3490
        %v5027 = vmul.f32 %v4515, %v3491
        %v5028 = vmul.f32 %v4516, %v3492
        %v5029 = vmul.f32 %v4517, %v3493
        %v5030 = vmul.f32 %v4518, %v3494
        %v5031 = vmul.f32 %v4519, %v3495
        %v5032 = vmul.f32 %v4520, %v3496
        %v5033 = vmul.f32 %v4521, %v3497
        %v5034 = vmul.f32 %v4522, %v3498
        %v5035 = vmul.f32 %v4523, %v3499
        %v5036 = vmul.f32 %v4524, %v3500
        %v5037 = vmul.f32 %v4525, %v3501
        %v5038 = vmul.f32 %v4526, %v3502
        %v5039 = vmul.f32 %v4527, %v3503
        %v5040 = vmul.f32 %v4528, %v3504
        %v5041 = vmul.f32 %v4529, %v3505
        %v5042 = vmul.f32 %v4530, %v3506
        %v5043 = vmul.f32 %v4531, %v3507
        %v5044 = vmul.f32 %v4532, %v3508
        %v5045 = vmul.f32 %v4533, %v3509
        %v5046 = vmul.f32 %v4534, %v3510
        %v5047 = vmul.f32 %v4535, %v3511
        %v5048 = vmul.f32 %v4536, %v3512
        %v5049 = vmul.f32 %v4537, %v3513
        %v5050 = vmul.f32 %v4538, %v3514
        %v5051 = vmul.f32 %v4539, %v3515
        %v5052 = vmul.f32 %v4540, %v3516
        %v5053 = vmul.f32 %v4541, %v3517
        %v5054 = vmul.f32 %v4542, %v3518
        %v5055 = vmul.f32 %v4543, %v3519
        %v5056 = vmul.f32 %v4544, %v3520
        %v5057 = vmul.f32 %v4545, %v3521
        %v5058 = vmul.f32 %v4546, %v3522
        %v5059 = vmul.f32 %v4547, %v3523
        %v5060 = vmul.f32 %v4548, %v3524
        %v5061 = vmul.f32 %v4549, %v3525
        %v5062 = vmul.f32 %v4550, %v3526
        %v5063 = vmul.f32 %v4551, %v3527
        %v5064 = vmul.f32 %v4552, %v3528
        %v5065 = vmul.f32 %v4553, %v3529
        %v5066 = vmul.f32 %v4554, %v3530
        %v5067 = vmul.f32 %v4555, %v3531
        %v5068 = vmul.f32 %v4556, %v3532
        %v5069 = vmul.f32 %v4557, %v3533
        %v5070 = vmul.f32 %v4558, %v3534
        %v5071 = vmul.f32 %v4559, %v3535
        %v5072 = vmul.f32 %v4560, %v3536
        %v5073 = vmul.f32 %v4561, %v3537
        %v5074 = vmul.f32 %v4562, %v3538
        %v5075 = vmul.f32 %v4563, %v3539
        %v5076 = vmul.f32 %v4564, %v3540
        %v5077 = vmul.f32 %v4565, %v3541
        %v5078 = vmul.f32 %v4566, %v3542
        %v5079 = vmul.f32 %v4567, %v3543
        %v5080 = vmul.f32 %v4568, %v3544
        %v5081 = vmul.f32 %v4569, %v3545
        %v5082 = vmul.f32 %v4570, %v3546
        %v5083 = vmul.f32 %v4571, %v3547
        %v5084 = vmul.f32 %v4572, %v3548
        %v5085 = vmul.f32 %v4573, %v3549
        %v5086 = vmul.f32 %v4574, %v3550
        %v5087 = vmul.f32 %v4575, %v3551
        %v5088 = vmul.f32 %v4576, %v3552
        %v5089 = vmul.f32 %v4577, %v3553
        %v5090 = vmul.f32 %v4578, %v3554
        %v5091 = vmul.f32 %v4579, %v3555
        %v5092 = vmul.f32 %v4580, %v3556
        %v5093 = vmul.f32 %v4581, %v3557
        %v5094 = vmul.f32 %v4582, %v3558
        %v5095 = vmul.f32 %v4583, %v3559
        %v5096 = vmul.f32 %v4584, %v3560
        %v5097 = vmul.f32 %v4585, %v3561
        %v5098 = vmul.f32 %v4586, %v3562
        %v5099 = vmul.f32 %v4587, %v3563
        %v5100 = vmul.f32 %v4588, %v3564
        %v5101 = vmul.f32 %v4589, %v3565
        %v5102 = vmul.f32 %v4590, %v3566
        %v5103 = vmul.f32 %v4591, %v3567
        %v5104 = vmul.f32 %v4592, %v3568
        %v5105 = vmul.f32 %v4593, %v3569
        %v5106 = vmul.f32 %v4594, %v3570
        %v5107 = vmul.f32 %v4595, %v3571
        %v5108 = vmul.f32 %v4596, %v3572
        %v5109 = vmul.f32 %v4597, %v3573
        %v5110 = vmul.f32 %v4598, %v3574
        %v5111 = vmul.f32 %v4599, %v3575
        %v5112 = vmul.f32 %v4600, %v3576
        %v5113 = vmul.f32 %v4601, %v3577
        %v5114 = vmul.f32 %v4602, %v3578
        %v5115 = vmul.f32 %v4603, %v3579
        %v5116 = vmul.f32 %v4604, %v3580
        %v5117 = vmul.f32 %v4605, %v3581
        %v5118 = vmul.f32 %v4606, %v3582
        %v5119 = vmul.f32 %v4607, %v3583
        %v5120 = vmul.f32 %v4608, %v3584
        %v5121 = vmul.f32 %v4609, %v3585
        %v5122 = vmul.f32 %v4610, %v3586
        %v5123 = vmul.f32 %v4611, %v3587
        %v5124 = vmul.f32 %v4612, %v3588
        %v5125 = vmul.f32 %v4613, %v3589
        %v5126 = vmul.f32 %v4614, %v3590
        %v5127 = vmul.f32 %v4615, %v3591
        %v5128 = vmul.f32 %v4616, %v3592
        %v5129 = vmul.f32 %v4617, %v3593
        %v5130 = vmul.f32 %v4618, %v3594
        %v5131 = vmul.f32 %v4619, %v3595
        %v5132 = vmul.f32 %v4620, %v3596
        %v5133 = vmul.f32 %v4621, %v3597
        %v5134 = vmul.f32 %v4622, %v3598
        %v5135 = vmul.f32 %v4623, %v3599
        %v5136 = vmul.f32 %v4624, %v3600
        %v5137 = vmul.f32 %v4625, %v3601
        %v5138 = vmul.f32 %v4626, %v3602
        %v5139 = vmul.f32 %v4627, %v3603
        %v5140 = vmul.f32 %v4628, %v3604
        %v5141 = vmul.f32 %v4629, %v3605
        %v5142 = vmul.f32 %v4630, %v3606
        %v5143 = vmul.f32 %v4631, %v3607
        %v5144 = vmul.f32 %v4632, %v3608
        %v5145 = vmul.f32 %v4633, %v3609
        %v5146 = vmul.f32 %v4634, %v3610
        %v5147 = vmul.f32 %v4635, %v3611
        %v5148 = vmul.f32 %v4636, %v3612
        %v5149 = vmul.f32 %v4637, %v3613
        %v5150 = vmul.f32 %v4638, %v3614
        %v5151 = vmul.f32 %v4639, %v3615
        %v5152 = vmul.f32 %v4640, %v3616
        %v5153 = vmul.f32 %v4641, %v3617
        %v5154 = vmul.f32 %v4642, %v3618
        %v5155 = vmul.f32 %v4643, %v3619
        %v5156 = vmul.f32 %v4644, %v3620
        %v5157 = vmul.f32 %v4645, %v3621
        %v5158 = vmul.f32 %v4646, %v3622
        %v5159 = vmul.f32 %v4647, %v3623
        %v5160 = vmul.f32 %v4648, %v3624
        %v5161 = vmul.f32 %v4649, %v3625
        %v5162 = vmul.f32 %v4650, %v3626
        %v5163 = vmul.f32 %v4651, %v3627
        %v5164 = vmul.f32 %v4652, %v3628
        %v5165 = vmul.f32 %v4653, %v3629
        %v5166 = vmul.f32 %v4654, %v3630
        %v5167 = vmul.f32 %v4655, %v3631
        %v5168 = vmul.f32 %v4656, %v3632
        %v5169 = vmul.f32 %v4657, %v3633
        %v5170 = vmul.f32 %v4658, %v3634
        %v5171 = vmul.f32 %v4659, %v3635
        %v5172 = vmul.f32 %v4660, %v3636
        %v5173 = vmul.f32 %v4661, %v3637
        %v5174 = vmul.f32 %v4662, %v3638
        %v5175 = vmul.f32 %v4663, %v3639
        %v5176 = vmul.f32 %v4664, %v3640
        %v5177 = vmul.f32 %v4665, %v3641
        %v5178 = vmul.f32 %v4666, %v3642
        %v5179 = vmul.f32 %v4667, %v3643
        %v5180 = vmul.f32 %v4668, %v3644
        %v5181 = vmul.f32 %v4669, %v3645
        %v5182 = vmul.f32 %v4670, %v3646
        %v5183 = vmul.f32 %v4671, %v3647
        %v5184 = vmul.f32 %v4672, %v3648
        %v5185 = vmul.f32 %v4673, %v3649
        %v5186 = vmul.f32 %v4674, %v3650
        %v5187 = vmul.f32 %v4675, %v3651
        %v5188 = vmul.f32 %v4676, %v3652
        %v5189 = vmul.f32 %v4677, %v3653
        %v5190 = vmul.f32 %v4678, %v3654
        %v5191 = vmul.f32 %v4679, %v3655
        %v5192 = vmul.f32 %v4680, %v3656
        %v5193 = vmul.f32 %v4681, %v3657
        %v5194 = vmul.f32 %v4682, %v3658
        %v5195 = vmul.f32 %v4683, %v3659
        %v5196 = vmul.f32 %v4684, %v3660
        %v5197 = vmul.f32 %v4685, %v3661
        %v5198 = vmul.f32 %v4686, %v3662
        %v5199 = vmul.f32 %v4687, %v3663
        %v5200 = vmul.f32 %v4688, %v3664
        %v5201 = vmul.f32 %v4689, %v3665
        %v5202 = vmul.f32 %v4690, %v3666
        %v5203 = vmul.f32 %v4691, %v3667
        %v5204 = vmul.f32 %v4692, %v3668
        %v5205 = vmul.f32 %v4693, %v3669
        %v5206 = vmul.f32 %v4694, %v3670
        %v5207 = vmul.f32 %v4695, %v3671
        %v5208 = vmul.f32 %v4696, %v3672
        %v5209 = vmul.f32 %v4697, %v3673
        %v5210 = vmul.f32 %v4698, %v3674
        %v5211 = vmul.f32 %v4699, %v3675
        %v5212 = vmul.f32 %v4700, %v3676
        %v5213 = vmul.f32 %v4701, %v3677
        %v5214 = vmul.f32 %v4702, %v3678
        %v5215 = vmul.f32 %v4703, %v3679
        %v5216 = vmul.f32 %v4704, %v3680
        %v5217 = vmul.f32 %v4705, %v3681
        %v5218 = vmul.f32 %v4706, %v3682
        %v5219 = vmul.f32 %v4707, %v3683
        %v5220 = vmul.f32 %v4708, %v3684
        %v5221 = vmul.f32 %v4709, %v3685
        %v5222 = vmul.f32 %v4710, %v3686
        %v5223 = vmul.f32 %v4711, %v3687
        %v5224 = vmul.f32 %v4712, %v3688
        %v5225 = vmul.f32 %v4713, %v3689
        %v5226 = vmul.f32 %v4714, %v3690
        %v5227 = vmul.f32 %v4715, %v3691
        %v5228 = vmul.f32 %v4716, %v3692
        %v5229 = vmul.f32 %v4717, %v3693
        %v5230 = vmul.f32 %v4718, %v3694
        %v5231 = vmul.f32 %v4719, %v3695
        %v5232 = vmul.f32 %v4720, %v3696
        %v5233 = vmul.f32 %v4721, %v3697
        %v5234 = vmul.f32 %v4722, %v3698
        %v5235 = vmul.f32 %v4723, %v3699
        %v5236 = vmul.f32 %v4724, %v3700
        %v5237 = vmul.f32 %v4725, %v3701
        %v5238 = vmul.f32 %v4726, %v3702
        %v5239 = vmul.f32 %v4727, %v3703
        %v5240 = vmul.f32 %v4728, %v3704
        %v5241 = vmul.f32 %v4729, %v3705
        %v5242 = vmul.f32 %v4730, %v3706
        %v5243 = vmul.f32 %v4731, %v3707
        %v5244 = vmul.f32 %v4732, %v3708
        %v5245 = vmul.f32 %v4733, %v3709
        %v5246 = vmul.f32 %v4734, %v3710
        %v5247 = vmul.f32 %v4735, %v3711
        %v5248 = vmul.f32 %v4736, %v3712
        %v5249 = vmul.f32 %v4737, %v3713
        %v5250 = vmul.f32 %v4738, %v3714
        %v5251 = vmul.f32 %v4739, %v3715
        %v5252 = vmul.f32 %v4740, %v3716
        %v5253 = vmul.f32 %v4741, %v3717
        %v5254 = vmul.f32 %v4742, %v3718
        %v5255 = vmul.f32 %v4743, %v3719
        %v5256 = vmul.f32 %v4744, %v3720
        %v5257 = vmul.f32 %v4745, %v3721
        %v5258 = vmul.f32 %v4746, %v3722
        %v5259 = vmul.f32 %v4747, %v3723
        %v5260 = vmul.f32 %v4748, %v3724
        %v5261 = vmul.f32 %v4749, %v3725
        %v5262 = vmul.f32 %v4750, %v3726
        %v5263 = vmul.f32 %v4751, %v3727
        %v5264 = vmul.f32 %v4752, %v3728
        %v5265 = vmul.f32 %v4753, %v3729
        %v5266 = vmul.f32 %v4754, %v3730
        %v5267 = vmul.f32 %v4755, %v3731
        %v5268 = vmul.f32 %v4756, %v3732
        %v5269 = vmul.f32 %v4757, %v3733
        %v5270 = vmul.f32 %v4758, %v3734
        %v5271 = vmul.f32 %v4759, %v3735
        %v5272 = vmul.f32 %v4760, %v3736
        %v5273 = vmul.f32 %v4761, %v3737
        %v5274 = vmul.f32 %v4762, %v3738
        %v5275 = vmul.f32 %v4763, %v3739
        %v5276 = vmul.f32 %v4764, %v3740
        %v5277 = vmul.f32 %v4765, %v3741
        %v5278 = vmul.f32 %v4766, %v3742
        %v5279 = vmul.f32 %v4767, %v3743
        %v5280 = vmul.f32 %v4768, %v3744
        %v5281 = vmul.f32 %v4769, %v3745
        %v5282 = vmul.f32 %v4770, %v3746
        %v5283 = vmul.f32 %v4771, %v3747
        %v5284 = vmul.f32 %v4772, %v3748
        %v5285 = vmul.f32 %v4773, %v3749
        %v5286 = vmul.f32 %v4774, %v3750
        %v5287 = vmul.f32 %v4775, %v3751
        %v5288 = vmul.f32 %v4776, %v3752
        %v5289 = vmul.f32 %v4777, %v3753
        %v5290 = vmul.f32 %v4778, %v3754
        %v5291 = vmul.f32 %v4779, %v3755
        %v5292 = vmul.f32 %v4780, %v3756
        %v5293 = vmul.f32 %v4781, %v3757
        %v5294 = vmul.f32 %v4782, %v3758
        %v5295 = vmul.f32 %v4783, %v3759
        %v5296 = vmul.f32 %v4784, %v3760
        %v5297 = vmul.f32 %v4785, %v3761
        %v5298 = vmul.f32 %v4786, %v3762
        %v5299 = vmul.f32 %v4787, %v3763
        %v5300 = vmul.f32 %v4788, %v3764
        %v5301 = vmul.f32 %v4789, %v3765
        %v5302 = vmul.f32 %v4790, %v3766
        %v5303 = vmul.f32 %v4791, %v3767
        %v5304 = vmul.f32 %v4792, %v3768
        %v5305 = vmul.f32 %v4793, %v3769
        %v5306 = vmul.f32 %v4794, %v3770
        %v5307 = vmul.f32 %v4795, %v3771
        %v5308 = vmul.f32 %v4796, %v3772
        %v5309 = vmul.f32 %v4797, %v3773
        %v5310 = vmul.f32 %v4798, %v3774
        %v5311 = vmul.f32 %v4799, %v3775
        %v5312 = vmul.f32 %v4800, %v3776
        %v5313 = vmul.f32 %v4801, %v3777
        %v5314 = vmul.f32 %v4802, %v3778
        %v5315 = vmul.f32 %v4803, %v3779
        %v5316 = vmul.f32 %v4804, %v3780
        %v5317 = vmul.f32 %v4805, %v3781
        %v5318 = vmul.f32 %v4806, %v3782
        %v5319 = vmul.f32 %v4807, %v3783
        %v5320 = vmul.f32 %v4808, %v3784
        %v5321 = vmul.f32 %v4809, %v3785
        %v5322 = vmul.f32 %v4810, %v3786
        %v5323 = vmul.f32 %v4811, %v3787
        %v5324 = vmul.f32 %v4812, %v3788
        %v5325 = vmul.f32 %v4813, %v3789
        %v5326 = vmul.f32 %v4814, %v3790
        %v5327 = vmul.f32 %v4815, %v3791
        %v5328 = vmul.f32 %v4816, %v3792
        %v5329 = vmul.f32 %v4817, %v3793
        %v5330 = vmul.f32 %v4818, %v3794
        %v5331 = vmul.f32 %v4819, %v3795
        %v5332 = vmul.f32 %v4820, %v3796
        %v5333 = vmul.f32 %v4821, %v3797
        %v5334 = vmul.f32 %v4822, %v3798
        %v5335 = vmul.f32 %v4823, %v3799
        %v5336 = vmul.f32 %v4824, %v3800
        %v5337 = vmul.f32 %v4825, %v3801
        %v5338 = vmul.f32 %v4826, %v3802
        %v5339 = vmul.f32 %v4827, %v3803
        %v5340 = vmul.f32 %v4828, %v3804
        %v5341 = vmul.f32 %v4829, %v3805
        %v5342 = vmul.f32 %v4830, %v3806
        %v5343 = vmul.f32 %v4831, %v3807
        %v5344 = vmul.f32 %v4832, %v3808
        %v5345 = vmul.f32 %v4833, %v3809
        %v5346 = vmul.f32 %v4834, %v3810
        %v5347 = vmul.f32 %v4835, %v3811
        %v5348 = vmul.f32 %v4836, %v3812
        %v5349 = vmul.f32 %v4837, %v3813
        %v5350 = vmul.f32 %v4838, %v3814
        %v5351 = vmul.f32 %v4839, %v3815
        %v5352 = vmul.f32 %v4840, %v3816
        %v5353 = vmul.f32 %v4841, %v3817
        %v5354 = vmul.f32 %v4842, %v3818
        %v5355 = vmul.f32 %v4843, %v3819
        %v5356 = vmul.f32 %v4844, %v3820
        %v5357 = vmul.f32 %v4845, %v3821
        %v5358 = vmul.f32 %v4846, %v3822
        %v5359 = vmul.f32 %v4847, %v3823
        %v5360 = vmul.f32 %v4848, %v3824
        %v5361 = vmul.f32 %v4849, %v3825
        %v5362 = vmul.f32 %v4850, %v3826
        %v5363 = vmul.f32 %v4851, %v3827
        %v5364 = vmul.f32 %v4852, %v3828
        %v5365 = vmul.f32 %v4853, %v3829
        %v5366 = vmul.f32 %v4854, %v3830
        %v5367 = vmul.f32 %v4855, %v3831
        %v5368 = vmul.f32 %v4856, %v3832
        %v5369 = vmul.f32 %v4857, %v3833
        %v5370 = vmul.f32 %v4858, %v3834
        %v5371 = vmul.f32 %v4859, %v3835
        %v5372 = vmul.f32 %v4860, %v3836
        %v5373 = vmul.f32 %v4861, %v3837
        %v5374 = vmul.f32 %v4862, %v3838
        %v5375 = vmul.f32 %v4863, %v3839
        %v5376 = vmul.f32 %v4864, %v3840
        %v5377 = vmul.f32 %v4865, %v3841
        %v5378 = vmul.f32 %v4866, %v3842
        %v5379 = vmul.f32 %v4867, %v3843
        %v5380 = vmul.f32 %v4868, %v3844
        %v5381 = vmul.f32 %v4869, %v3845
        %v5382 = vmul.f32 %v4870, %v3846
        %v5383 = vmul.f32 %v4871, %v3847
        %v5384 = vmul.f32 %v4872, %v3848
        %v5385 = vmul.f32 %v4873, %v3849
        %v5386 = vmul.f32 %v4874, %v3850
        %v5387 = vmul.f32 %v4875, %v3851
        %v5388 = vmul.f32 %v4876, %v3852
        %v5389 = vmul.f32 %v4877, %v3853
        %v5390 = vmul.f32 %v4878, %v3854
        %v5391 = vmul.f32 %v4879, %v3855
        %v5392 = vmul.f32 %v4880, %v3856
        %v5393 = vmul.f32 %v4881, %v3857
        %v5394 = vmul.f32 %v4882, %v3858
        %v5395 = vmul.f32 %v4883, %v3859
        %v5396 = vmul.f32 %v4884, %v3860
        %v5397 = vmul.f32 %v4885, %v3861
        %v5398 = vmul.f32 %v4886, %v3862
        %v5399 = vmul.f32 %v4887, %v3863
        %v5400 = vmul.f32 %v4888, %v3864
        %v5401 = vmul.f32 %v4889, %v3865
        %v5402 = vmul.f32 %v4890, %v3866
        %v5403 = vmul.f32 %v4891, %v3867
        %v5404 = vmul.f32 %v4892, %v3868
        %v5405 = vmul.f32 %v4893, %v3869
        %v5406 = vmul.f32 %v4894, %v3870
        %v5407 = vmul.f32 %v4895, %v3871
        %v5408 = vmul.f32 %v4896, %v3872
        %v5409 = vmul.f32 %v4897, %v3873
        %v5410 = vmul.f32 %v4898, %v3874
        %v5411 = vmul.f32 %v4899, %v3875
        %v5412 = vmul.f32 %v4900, %v3876
        %v5413 = vmul.f32 %v4901, %v3877
        %v5414 = vmul.f32 %v4902, %v3878
        %v5415 = vmul.f32 %v4903, %v3879
        %v5416 = vmul.f32 %v4904, %v3880
        %v5417 = vmul.f32 %v4905, %v3881
        %v5418 = vmul.f32 %v4906, %v3882
        %v5419 = vmul.f32 %v4907, %v3883
        %v5420 = vmul.f32 %v4908, %v3884
        %v5421 = vmul.f32 %v4909, %v3885
        %v5422 = vmul.f32 %v4910, %v3886
        %v5423 = vmul.f32 %v4911, %v3887
        %v5424 = vmul.f32 %v4912, %v3888
        %v5425 = vmul.f32 %v4913, 0.044715
        %v5426 = vmul.f32 %v4914, 0.044715
        %v5427 = vmul.f32 %v4915, 0.044715
        %v5428 = vmul.f32 %v4916, 0.044715
        %v5429 = vmul.f32 %v4917, 0.044715
        %v5430 = vmul.f32 %v4918, 0.044715
        %v5431 = vmul.f32 %v4919, 0.044715
        %v5432 = vmul.f32 %v4920, 0.044715
        %v5433 = vmul.f32 %v4921, 0.044715
        %v5434 = vmul.f32 %v4922, 0.044715
        %v5435 = vmul.f32 %v4923, 0.044715
        %v5436 = vmul.f32 %v4924, 0.044715
        %v5437 = vmul.f32 %v4925, 0.044715
        %v5438 = vmul.f32 %v4926, 0.044715
        %v5439 = vmul.f32 %v4927, 0.044715
        %v5440 = vmul.f32 %v4928, 0.044715
        %v5441 = vmul.f32 %v4929, 0.044715
        %v5442 = vmul.f32 %v4930, 0.044715
        %v5443 = vmul.f32 %v4931, 0.044715
        %v5444 = vmul.f32 %v4932, 0.044715
        %v5445 = vmul.f32 %v4933, 0.044715
        %v5446 = vmul.f32 %v4934, 0.044715
        %v5447 = vmul.f32 %v4935, 0.044715
        %v5448 = vmul.f32 %v4936, 0.044715
        %v5449 = vmul.f32 %v4937, 0.044715
        %v5450 = vmul.f32 %v4938, 0.044715
        %v5451 = vmul.f32 %v4939, 0.044715
        %v5452 = vmul.f32 %v4940, 0.044715
        %v5453 = vmul.f32 %v4941, 0.044715
        %v5454 = vmul.f32 %v4942, 0.044715
        %v5455 = vmul.f32 %v4943, 0.044715
        %v5456 = vmul.f32 %v4944, 0.044715
        %v5457 = vmul.f32 %v4945, 0.044715
        %v5458 = vmul.f32 %v4946, 0.044715
        %v5459 = vmul.f32 %v4947, 0.044715
        %v5460 = vmul.f32 %v4948, 0.044715
        %v5461 = vmul.f32 %v4949, 0.044715
        %v5462 = vmul.f32 %v4950, 0.044715
        %v5463 = vmul.f32 %v4951, 0.044715
        %v5464 = vmul.f32 %v4952, 0.044715
        %v5465 = vmul.f32 %v4953, 0.044715
        %v5466 = vmul.f32 %v4954, 0.044715
        %v5467 = vmul.f32 %v4955, 0.044715
        %v5468 = vmul.f32 %v4956, 0.044715
        %v5469 = vmul.f32 %v4957, 0.044715
        %v5470 = vmul.f32 %v4958, 0.044715
        %v5471 = vmul.f32 %v4959, 0.044715
        %v5472 = vmul.f32 %v4960, 0.044715
        %v5473 = vmul.f32 %v4961, 0.044715
        %v5474 = vmul.f32 %v4962, 0.044715
        %v5475 = vmul.f32 %v4963, 0.044715
        %v5476 = vmul.f32 %v4964, 0.044715
        %v5477 = vmul.f32 %v4965, 0.044715
        %v5478 = vmul.f32 %v4966, 0.044715
        %v5479 = vmul.f32 %v4967, 0.044715
        %v5480 = vmul.f32 %v4968, 0.044715
        %v5481 = vmul.f32 %v4969, 0.044715
        %v5482 = vmul.f32 %v4970, 0.044715
        %v5483 = vmul.f32 %v4971, 0.044715
        %v5484 = vmul.f32 %v4972, 0.044715
        %v5485 = vmul.f32 %v4973, 0.044715
        %v5486 = vmul.f32 %v4974, 0.044715
        %v5487 = vmul.f32 %v4975, 0.044715
        %v5488 = vmul.f32 %v4976, 0.044715
        %v5489 = vmul.f32 %v4977, 0.044715
        %v5490 = vmul.f32 %v4978, 0.044715
        %v5491 = vmul.f32 %v4979, 0.044715
        %v5492 = vmul.f32 %v4980, 0.044715
        %v5493 = vmul.f32 %v4981, 0.044715
        %v5494 = vmul.f32 %v4982, 0.044715
        %v5495 = vmul.f32 %v4983, 0.044715
        %v5496 = vmul.f32 %v4984, 0.044715
        %v5497 = vmul.f32 %v4985, 0.044715
        %v5498 = vmul.f32 %v4986, 0.044715
        %v5499 = vmul.f32 %v4987, 0.044715
        %v5500 = vmul.f32 %v4988, 0.044715
        %v5501 = vmul.f32 %v4989, 0.044715
        %v5502 = vmul.f32 %v4990, 0.044715
        %v5503 = vmul.f32 %v4991, 0.044715
        %v5504 = vmul.f32 %v4992, 0.044715
        %v5505 = vmul.f32 %v4993, 0.044715
        %v5506 = vmul.f32 %v4994, 0.044715
        %v5507 = vmul.f32 %v4995, 0.044715
        %v5508 = vmul.f32 %v4996, 0.044715
        %v5509 = vmul.f32 %v4997, 0.044715
        %v5510 = vmul.f32 %v4998, 0.044715
        %v5511 = vmul.f32 %v4999, 0.044715
        %v5512 = vmul.f32 %v5000, 0.044715
        %v5513 = vmul.f32 %v5001, 0.044715
        %v5514 = vmul.f32 %v5002, 0.044715
        %v5515 = vmul.f32 %v5003, 0.044715
        %v5516 = vmul.f32 %v5004, 0.044715
        %v5517 = vmul.f32 %v5005, 0.044715
        %v5518 = vmul.f32 %v5006, 0.044715
        %v5519 = vmul.f32 %v5007, 0.044715
        %v5520 = vmul.f32 %v5008, 0.044715
        %v5521 = vmul.f32 %v5009, 0.044715
        %v5522 = vmul.f32 %v5010, 0.044715
        %v5523 = vmul.f32 %v5011, 0.044715
        %v5524 = vmul.f32 %v5012, 0.044715
        %v5525 = vmul.f32 %v5013, 0.044715
        %v5526 = vmul.f32 %v5014, 0.044715
        %v5527 = vmul.f32 %v5015, 0.044715
        %v5528 = vmul.f32 %v5016, 0.044715
        %v5529 = vmul.f32 %v5017, 0.044715
        %v5530 = vmul.f32 %v5018, 0.044715
        %v5531 = vmul.f32 %v5019, 0.044715
        %v5532 = vmul.f32 %v5020, 0.044715
        %v5533 = vmul.f32 %v5021, 0.044715
        %v5534 = vmul.f32 %v5022, 0.044715
        %v5535 = vmul.f32 %v5023, 0.044715
        %v5536 = vmul.f32 %v5024, 0.044715
        %v5537 = vmul.f32 %v5025, 0.044715
        %v5538 = vmul.f32 %v5026, 0.044715
        %v5539 = vmul.f32 %v5027, 0.044715
        %v5540 = vmul.f32 %v5028, 0.044715
        %v5541 = vmul.f32 %v5029, 0.044715
        %v5542 = vmul.f32 %v5030, 0.044715
        %v5543 = vmul.f32 %v5031, 0.044715
        %v5544 = vmul.f32 %v5032, 0.044715
        %v5545 = vmul.f32 %v5033, 0.044715
        %v5546 = vmul.f32 %v5034, 0.044715
        %v5547 = vmul.f32 %v5035, 0.044715
        %v5548 = vmul.f32 %v5036, 0.044715
        %v5549 = vmul.f32 %v5037, 0.044715
        %v5550 = vmul.f32 %v5038, 0.044715
        %v5551 = vmul.f32 %v5039, 0.044715
        %v5552 = vmul.f32 %v5040, 0.044715
        %v5553 = vmul.f32 %v5041, 0.044715
        %v5554 = vmul.f32 %v5042, 0.044715
        %v5555 = vmul.f32 %v5043, 0.044715
        %v5556 = vmul.f32 %v5044, 0.044715
        %v5557 = vmul.f32 %v5045, 0.044715
        %v5558 = vmul.f32 %v5046, 0.044715
        %v5559 = vmul.f32 %v5047, 0.044715
        %v5560 = vmul.f32 %v5048, 0.044715
        %v5561 = vmul.f32 %v5049, 0.044715
        %v5562 = vmul.f32 %v5050, 0.044715
        %v5563 = vmul.f32 %v5051, 0.044715
        %v5564 = vmul.f32 %v5052, 0.044715
        %v5565 = vmul.f32 %v5053, 0.044715
        %v5566 = vmul.f32 %v5054, 0.044715
        %v5567 = vmul.f32 %v5055, 0.044715
        %v5568 = vmul.f32 %v5056, 0.044715
        %v5569 = vmul.f32 %v5057, 0.044715
        %v5570 = vmul.f32 %v5058, 0.044715
        %v5571 = vmul.f32 %v5059, 0.044715
        %v5572 = vmul.f32 %v5060, 0.044715
        %v5573 = vmul.f32 %v5061, 0.044715
        %v5574 = vmul.f32 %v5062, 0.044715
        %v5575 = vmul.f32 %v5063, 0.044715
        %v5576 = vmul.f32 %v5064, 0.044715
        %v5577 = vmul.f32 %v5065, 0.044715
        %v5578 = vmul.f32 %v5066, 0.044715
        %v5579 = vmul.f32 %v5067, 0.044715
        %v5580 = vmul.f32 %v5068, 0.044715
        %v5581 = vmul.f32 %v5069, 0.044715
        %v5582 = vmul.f32 %v5070, 0.044715
        %v5583 = vmul.f32 %v5071, 0.044715
        %v5584 = vmul.f32 %v5072, 0.044715
        %v5585 = vmul.f32 %v5073, 0.044715
        %v5586 = vmul.f32 %v5074, 0.044715
        %v5587 = vmul.f32 %v5075, 0.044715
        %v5588 = vmul.f32 %v5076, 0.044715
        %v5589 = vmul.f32 %v5077, 0.044715
        %v5590 = vmul.f32 %v5078, 0.044715
        %v5591 = vmul.f32 %v5079, 0.044715
        %v5592 = vmul.f32 %v5080, 0.044715
        %v5593 = vmul.f32 %v5081, 0.044715
        %v5594 = vmul.f32 %v5082, 0.044715
        %v5595 = vmul.f32 %v5083, 0.044715
        %v5596 = vmul.f32 %v5084, 0.044715
        %v5597 = vmul.f32 %v5085, 0.044715
        %v5598 = vmul.f32 %v5086, 0.044715
        %v5599 = vmul.f32 %v5087, 0.044715
        %v5600 = vmul.f32 %v5088, 0.044715
        %v5601 = vmul.f32 %v5089, 0.044715
        %v5602 = vmul.f32 %v5090, 0.044715
        %v5603 = vmul.f32 %v5091, 0.044715
        %v5604 = vmul.f32 %v5092, 0.044715
        %v5605 = vmul.f32 %v5093, 0.044715
        %v5606 = vmul.f32 %v5094, 0.044715
        %v5607 = vmul.f32 %v5095, 0.044715
        %v5608 = vmul.f32 %v5096, 0.044715
        %v5609 = vmul.f32 %v5097, 0.044715
        %v5610 = vmul.f32 %v5098, 0.044715
        %v5611 = vmul.f32 %v5099, 0.044715
        %v5612 = vmul.f32 %v5100, 0.044715
        %v5613 = vmul.f32 %v5101, 0.044715
        %v5614 = vmul.f32 %v5102, 0.044715
        %v5615 = vmul.f32 %v5103, 0.044715
        %v5616 = vmul.f32 %v5104, 0.044715
        %v5617 = vmul.f32 %v5105, 0.044715
        %v5618 = vmul.f32 %v5106, 0.044715
        %v5619 = vmul.f32 %v5107, 0.044715
        %v5620 = vmul.f32 %v5108, 0.044715
        %v5621 = vmul.f32 %v5109, 0.044715
        %v5622 = vmul.f32 %v5110, 0.044715
        %v5623 = vmul.f32 %v5111, 0.044715
        %v5624 = vmul.f32 %v5112, 0.044715
        %v5625 = vmul.f32 %v5113, 0.044715
        %v5626 = vmul.f32 %v5114, 0.044715
        %v5627 = vmul.f32 %v5115, 0.044715
        %v5628 = vmul.f32 %v5116, 0.044715
        %v5629 = vmul.f32 %v5117, 0.044715
        %v5630 = vmul.f32 %v5118, 0.044715
        %v5631 = vmul.f32 %v5119, 0.044715
        %v5632 = vmul.f32 %v5120, 0.044715
        %v5633 = vmul.f32 %v5121, 0.044715
        %v5634 = vmul.f32 %v5122, 0.044715
        %v5635 = vmul.f32 %v5123, 0.044715
        %v5636 = vmul.f32 %v5124, 0.044715
        %v5637 = vmul.f32 %v5125, 0.044715
        %v5638 = vmul.f32 %v5126, 0.044715
        %v5639 = vmul.f32 %v5127, 0.044715
        %v5640 = vmul.f32 %v5128, 0.044715
        %v5641 = vmul.f32 %v5129, 0.044715
        %v5642 = vmul.f32 %v5130, 0.044715
        %v5643 = vmul.f32 %v5131, 0.044715
        %v5644 = vmul.f32 %v5132, 0.044715
        %v5645 = vmul.f32 %v5133, 0.044715
        %v5646 = vmul.f32 %v5134, 0.044715
        %v5647 = vmul.f32 %v5135, 0.044715
        %v5648 = vmul.f32 %v5136, 0.044715
        %v5649 = vmul.f32 %v5137, 0.044715
        %v5650 = vmul.f32 %v5138, 0.044715
        %v5651 = vmul.f32 %v5139, 0.044715
        %v5652 = vmul.f32 %v5140, 0.044715
        %v5653 = vmul.f32 %v5141, 0.044715
        %v5654 = vmul.f32 %v5142, 0.044715
        %v5655 = vmul.f32 %v5143, 0.044715
        %v5656 = vmul.f32 %v5144, 0.044715
        %v5657 = vmul.f32 %v5145, 0.044715
        %v5658 = vmul.f32 %v5146, 0.044715
        %v5659 = vmul.f32 %v5147, 0.044715
        %v5660 = vmul.f32 %v5148, 0.044715
        %v5661 = vmul.f32 %v5149, 0.044715
        %v5662 = vmul.f32 %v5150, 0.044715
        %v5663 = vmul.f32 %v5151, 0.044715
        %v5664 = vmul.f32 %v5152, 0.044715
        %v5665 = vmul.f32 %v5153, 0.044715
        %v5666 = vmul.f32 %v5154, 0.044715
        %v5667 = vmul.f32 %v5155, 0.044715
        %v5668 = vmul.f32 %v5156, 0.044715
        %v5669 = vmul.f32 %v5157, 0.044715
        %v5670 = vmul.f32 %v5158, 0.044715
        %v5671 = vmul.f32 %v5159, 0.044715
        %v5672 = vmul.f32 %v5160, 0.044715
        %v5673 = vmul.f32 %v5161, 0.044715
        %v5674 = vmul.f32 %v5162, 0.044715
        %v5675 = vmul.f32 %v5163, 0.044715
        %v5676 = vmul.f32 %v5164, 0.044715
        %v5677 = vmul.f32 %v5165, 0.044715
        %v5678 = vmul.f32 %v5166, 0.044715
        %v5679 = vmul.f32 %v5167, 0.044715
        %v5680 = vmul.f32 %v5168, 0.044715
        %v5681 = vmul.f32 %v5169, 0.044715
        %v5682 = vmul.f32 %v5170, 0.044715
        %v5683 = vmul.f32 %v5171, 0.044715
        %v5684 = vmul.f32 %v5172, 0.044715
        %v5685 = vmul.f32 %v5173, 0.044715
        %v5686 = vmul.f32 %v5174, 0.044715
        %v5687 = vmul.f32 %v5175, 0.044715
        %v5688 = vmul.f32 %v5176, 0.044715
        %v5689 = vmul.f32 %v5177, 0.044715
        %v5690 = vmul.f32 %v5178, 0.044715
        %v5691 = vmul.f32 %v5179, 0.044715
        %v5692 = vmul.f32 %v5180, 0.044715
        %v5693 = vmul.f32 %v5181, 0.044715
        %v5694 = vmul.f32 %v5182, 0.044715
        %v5695 = vmul.f32 %v5183, 0.044715
        %v5696 = vmul.f32 %v5184, 0.044715
        %v5697 = vmul.f32 %v5185, 0.044715
        %v5698 = vmul.f32 %v5186, 0.044715
        %v5699 = vmul.f32 %v5187, 0.044715
        %v5700 = vmul.f32 %v5188, 0.044715
        %v5701 = vmul.f32 %v5189, 0.044715
        %v5702 = vmul.f32 %v5190, 0.044715
        %v5703 = vmul.f32 %v5191, 0.044715
        %v5704 = vmul.f32 %v5192, 0.044715
        %v5705 = vmul.f32 %v5193, 0.044715
        %v5706 = vmul.f32 %v5194, 0.044715
        %v5707 = vmul.f32 %v5195, 0.044715
        %v5708 = vmul.f32 %v5196, 0.044715
        %v5709 = vmul.f32 %v5197, 0.044715
        %v5710 = vmul.f32 %v5198, 0.044715
        %v5711 = vmul.f32 %v5199, 0.044715
        %v5712 = vmul.f32 %v5200, 0.044715
        %v5713 = vmul.f32 %v5201, 0.044715
        %v5714 = vmul.f32 %v5202, 0.044715
        %v5715 = vmul.f32 %v5203, 0.044715
        %v5716 = vmul.f32 %v5204, 0.044715
        %v5717 = vmul.f32 %v5205, 0.044715
        %v5718 = vmul.f32 %v5206, 0.044715
        %v5719 = vmul.f32 %v5207, 0.044715
        %v5720 = vmul.f32 %v5208, 0.044715
        %v5721 = vmul.f32 %v5209, 0.044715
        %v5722 = vmul.f32 %v5210, 0.044715
        %v5723 = vmul.f32 %v5211, 0.044715
        %v5724 = vmul.f32 %v5212, 0.044715
        %v5725 = vmul.f32 %v5213, 0.044715
        %v5726 = vmul.f32 %v5214, 0.044715
        %v5727 = vmul.f32 %v5215, 0.044715
        %v5728 = vmul.f32 %v5216, 0.044715
        %v5729 = vmul.f32 %v5217, 0.044715
        %v5730 = vmul.f32 %v5218, 0.044715
        %v5731 = vmul.f32 %v5219, 0.044715
        %v5732 = vmul.f32 %v5220, 0.044715
        %v5733 = vmul.f32 %v5221, 0.044715
        %v5734 = vmul.f32 %v5222, 0.044715
        %v5735 = vmul.f32 %v5223, 0.044715
        %v5736 = vmul.f32 %v5224, 0.044715
        %v5737 = vmul.f32 %v5225, 0.044715
        %v5738 = vmul.f32 %v5226, 0.044715
        %v5739 = vmul.f32 %v5227, 0.044715
        %v5740 = vmul.f32 %v5228, 0.044715
        %v5741 = vmul.f32 %v5229, 0.044715
        %v5742 = vmul.f32 %v5230, 0.044715
        %v5743 = vmul.f32 %v5231, 0.044715
        %v5744 = vmul.f32 %v5232, 0.044715
        %v5745 = vmul.f32 %v5233, 0.044715
        %v5746 = vmul.f32 %v5234, 0.044715
        %v5747 = vmul.f32 %v5235, 0.044715
        %v5748 = vmul.f32 %v5236, 0.044715
        %v5749 = vmul.f32 %v5237, 0.044715
        %v5750 = vmul.f32 %v5238, 0.044715
        %v5751 = vmul.f32 %v5239, 0.044715
        %v5752 = vmul.f32 %v5240, 0.044715
        %v5753 = vmul.f32 %v5241, 0.044715
        %v5754 = vmul.f32 %v5242, 0.044715
        %v5755 = vmul.f32 %v5243, 0.044715
        %v5756 = vmul.f32 %v5244, 0.044715
        %v5757 = vmul.f32 %v5245, 0.044715
        %v5758 = vmul.f32 %v5246, 0.044715
        %v5759 = vmul.f32 %v5247, 0.044715
        %v5760 = vmul.f32 %v5248, 0.044715
        %v5761 = vmul.f32 %v5249, 0.044715
        %v5762 = vmul.f32 %v5250, 0.044715
        %v5763 = vmul.f32 %v5251, 0.044715
        %v5764 = vmul.f32 %v5252, 0.044715
        %v5765 = vmul.f32 %v5253, 0.044715
        %v5766 = vmul.f32 %v5254, 0.044715
        %v5767 = vmul.f32 %v5255, 0.044715
        %v5768 = vmul.f32 %v5256, 0.044715
        %v5769 = vmul.f32 %v5257, 0.044715
        %v5770 = vmul.f32 %v5258, 0.044715
        %v5771 = vmul.f32 %v5259, 0.044715
        %v5772 = vmul.f32 %v5260, 0.044715
        %v5773 = vmul.f32 %v5261, 0.044715
        %v5774 = vmul.f32 %v5262, 0.044715
        %v5775 = vmul.f32 %v5263, 0.044715
        %v5776 = vmul.f32 %v5264, 0.044715
        %v5777 = vmul.f32 %v5265, 0.044715
        %v5778 = vmul.f32 %v5266, 0.044715
        %v5779 = vmul.f32 %v5267, 0.044715
        %v5780 = vmul.f32 %v5268, 0.044715
        %v5781 = vmul.f32 %v5269, 0.044715
        %v5782 = vmul.f32 %v5270, 0.044715
        %v5783 = vmul.f32 %v5271, 0.044715
        %v5784 = vmul.f32 %v5272, 0.044715
        %v5785 = vmul.f32 %v5273, 0.044715
        %v5786 = vmul.f32 %v5274, 0.044715
        %v5787 = vmul.f32 %v5275, 0.044715
        %v5788 = vmul.f32 %v5276, 0.044715
        %v5789 = vmul.f32 %v5277, 0.044715
        %v5790 = vmul.f32 %v5278, 0.044715
        %v5791 = vmul.f32 %v5279, 0.044715
        %v5792 = vmul.f32 %v5280, 0.044715
        %v5793 = vmul.f32 %v5281, 0.044715
        %v5794 = vmul.f32 %v5282, 0.044715
        %v5795 = vmul.f32 %v5283, 0.044715
        %v5796 = vmul.f32 %v5284, 0.044715
        %v5797 = vmul.f32 %v5285, 0.044715
        %v5798 = vmul.f32 %v5286, 0.044715
        %v5799 = vmul.f32 %v5287, 0.044715
        %v5800 = vmul.f32 %v5288, 0.044715
        %v5801 = vmul.f32 %v5289, 0.044715
        %v5802 = vmul.f32 %v5290, 0.044715
        %v5803 = vmul.f32 %v5291, 0.044715
        %v5804 = vmul.f32 %v5292, 0.044715
        %v5805 = vmul.f32 %v5293, 0.044715
        %v5806 = vmul.f32 %v5294, 0.044715
        %v5807 = vmul.f32 %v5295, 0.044715
        %v5808 = vmul.f32 %v5296, 0.044715
        %v5809 = vmul.f32 %v5297, 0.044715
        %v5810 = vmul.f32 %v5298, 0.044715
        %v5811 = vmul.f32 %v5299, 0.044715
        %v5812 = vmul.f32 %v5300, 0.044715
        %v5813 = vmul.f32 %v5301, 0.044715
        %v5814 = vmul.f32 %v5302, 0.044715
        %v5815 = vmul.f32 %v5303, 0.044715
        %v5816 = vmul.f32 %v5304, 0.044715
        %v5817 = vmul.f32 %v5305, 0.044715
        %v5818 = vmul.f32 %v5306, 0.044715
        %v5819 = vmul.f32 %v5307, 0.044715
        %v5820 = vmul.f32 %v5308, 0.044715
        %v5821 = vmul.f32 %v5309, 0.044715
        %v5822 = vmul.f32 %v5310, 0.044715
        %v5823 = vmul.f32 %v5311, 0.044715
        %v5824 = vmul.f32 %v5312, 0.044715
        %v5825 = vmul.f32 %v5313, 0.044715
        %v5826 = vmul.f32 %v5314, 0.044715
        %v5827 = vmul.f32 %v5315, 0.044715
        %v5828 = vmul.f32 %v5316, 0.044715
        %v5829 = vmul.f32 %v5317, 0.044715
        %v5830 = vmul.f32 %v5318, 0.044715
        %v5831 = vmul.f32 %v5319, 0.044715
        %v5832 = vmul.f32 %v5320, 0.044715
        %v5833 = vmul.f32 %v5321, 0.044715
        %v5834 = vmul.f32 %v5322, 0.044715
        %v5835 = vmul.f32 %v5323, 0.044715
        %v5836 = vmul.f32 %v5324, 0.044715
        %v5837 = vmul.f32 %v5325, 0.044715
        %v5838 = vmul.f32 %v5326, 0.044715
        %v5839 = vmul.f32 %v5327, 0.044715
        %v5840 = vmul.f32 %v5328, 0.044715
        %v5841 = vmul.f32 %v5329, 0.044715
        %v5842 = vmul.f32 %v5330, 0.044715
        %v5843 = vmul.f32 %v5331, 0.044715
        %v5844 = vmul.f32 %v5332, 0.044715
        %v5845 = vmul.f32 %v5333, 0.044715
        %v5846 = vmul.f32 %v5334, 0.044715
        %v5847 = vmul.f32 %v5335, 0.044715
        %v5848 = vmul.f32 %v5336, 0.044715
        %v5849 = vmul.f32 %v5337, 0.044715
        %v5850 = vmul.f32 %v5338, 0.044715
        %v5851 = vmul.f32 %v5339, 0.044715
        %v5852 = vmul.f32 %v5340, 0.044715
        %v5853 = vmul.f32 %v5341, 0.044715
        %v5854 = vmul.f32 %v5342, 0.044715
        %v5855 = vmul.f32 %v5343, 0.044715
        %v5856 = vmul.f32 %v5344, 0.044715
        %v5857 = vmul.f32 %v5345, 0.044715
        %v5858 = vmul.f32 %v5346, 0.044715
        %v5859 = vmul.f32 %v5347, 0.044715
        %v5860 = vmul.f32 %v5348, 0.044715
        %v5861 = vmul.f32 %v5349, 0.044715
        %v5862 = vmul.f32 %v5350, 0.044715
        %v5863 = vmul.f32 %v5351, 0.044715
        %v5864 = vmul.f32 %v5352, 0.044715
        %v5865 = vmul.f32 %v5353, 0.044715
        %v5866 = vmul.f32 %v5354, 0.044715
        %v5867 = vmul.f32 %v5355, 0.044715
        %v5868 = vmul.f32 %v5356, 0.044715
        %v5869 = vmul.f32 %v5357, 0.044715
        %v5870 = vmul.f32 %v5358, 0.044715
        %v5871 = vmul.f32 %v5359, 0.044715
        %v5872 = vmul.f32 %v5360, 0.044715
        %v5873 = vmul.f32 %v5361, 0.044715
        %v5874 = vmul.f32 %v5362, 0.044715
        %v5875 = vmul.f32 %v5363, 0.044715
        %v5876 = vmul.f32 %v5364, 0.044715
        %v5877 = vmul.f32 %v5365, 0.044715
        %v5878 = vmul.f32 %v5366, 0.044715
        %v5879 = vmul.f32 %v5367, 0.044715
        %v5880 = vmul.f32 %v5368, 0.044715
        %v5881 = vmul.f32 %v5369, 0.044715
        %v5882 = vmul.f32 %v5370, 0.044715
        %v5883 = vmul.f32 %v5371, 0.044715
        %v5884 = vmul.f32 %v5372, 0.044715
        %v5885 = vmul.f32 %v5373, 0.044715
        %v5886 = vmul.f32 %v5374, 0.044715
        %v5887 = vmul.f32 %v5375, 0.044715
        %v5888 = vmul.f32 %v5376, 0.044715
        %v5889 = vmul.f32 %v5377, 0.044715
        %v5890 = vmul.f32 %v5378, 0.044715
        %v5891 = vmul.f32 %v5379, 0.044715
        %v5892 = vmul.f32 %v5380, 0.044715
        %v5893 = vmul.f32 %v5381, 0.044715
        %v5894 = vmul.f32 %v5382, 0.044715
        %v5895 = vmul.f32 %v5383, 0.044715
        %v5896 = vmul.f32 %v5384, 0.044715
        %v5897 = vmul.f32 %v5385, 0.044715
        %v5898 = vmul.f32 %v5386, 0.044715
        %v5899 = vmul.f32 %v5387, 0.044715
        %v5900 = vmul.f32 %v5388, 0.044715
        %v5901 = vmul.f32 %v5389, 0.044715
        %v5902 = vmul.f32 %v5390, 0.044715
        %v5903 = vmul.f32 %v5391, 0.044715
        %v5904 = vmul.f32 %v5392, 0.044715
        %v5905 = vmul.f32 %v5393, 0.044715
        %v5906 = vmul.f32 %v5394, 0.044715
        %v5907 = vmul.f32 %v5395, 0.044715
        %v5908 = vmul.f32 %v5396, 0.044715
        %v5909 = vmul.f32 %v5397, 0.044715
        %v5910 = vmul.f32 %v5398, 0.044715
        %v5911 = vmul.f32 %v5399, 0.044715
        %v5912 = vmul.f32 %v5400, 0.044715
        %v5913 = vmul.f32 %v5401, 0.044715
        %v5914 = vmul.f32 %v5402, 0.044715
        %v5915 = vmul.f32 %v5403, 0.044715
        %v5916 = vmul.f32 %v5404, 0.044715
        %v5917 = vmul.f32 %v5405, 0.044715
        %v5918 = vmul.f32 %v5406, 0.044715
        %v5919 = vmul.f32 %v5407, 0.044715
        %v5920 = vmul.f32 %v5408, 0.044715
        %v5921 = vmul.f32 %v5409, 0.044715
        %v5922 = vmul.f32 %v5410, 0.044715
        %v5923 = vmul.f32 %v5411, 0.044715
        %v5924 = vmul.f32 %v5412, 0.044715
        %v5925 = vmul.f32 %v5413, 0.044715
        %v5926 = vmul.f32 %v5414, 0.044715
        %v5927 = vmul.f32 %v5415, 0.044715
        %v5928 = vmul.f32 %v5416, 0.044715
        %v5929 = vmul.f32 %v5417, 0.044715
        %v5930 = vmul.f32 %v5418, 0.044715
        %v5931 = vmul.f32 %v5419, 0.044715
        %v5932 = vmul.f32 %v5420, 0.044715
        %v5933 = vmul.f32 %v5421, 0.044715
        %v5934 = vmul.f32 %v5422, 0.044715
        %v5935 = vmul.f32 %v5423, 0.044715
        %v5936 = vmul.f32 %v5424, 0.044715
        %v5937 = vadd.f32 %v3377, %v5425
        %v5938 = vadd.f32 %v3378, %v5426
        %v5939 = vadd.f32 %v3379, %v5427
        %v5940 = vadd.f32 %v3380, %v5428
        %v5941 = vadd.f32 %v3381, %v5429
        %v5942 = vadd.f32 %v3382, %v5430
        %v5943 = vadd.f32 %v3383, %v5431
        %v5944 = vadd.f32 %v3384, %v5432
        %v5945 = vadd.f32 %v3385, %v5433
        %v5946 = vadd.f32 %v3386, %v5434
        %v5947 = vadd.f32 %v3387, %v5435
        %v5948 = vadd.f32 %v3388, %v5436
        %v5949 = vadd.f32 %v3389, %v5437
        %v5950 = vadd.f32 %v3390, %v5438
        %v5951 = vadd.f32 %v3391, %v5439
        %v5952 = vadd.f32 %v3392, %v5440
        %v5953 = vadd.f32 %v3393, %v5441
        %v5954 = vadd.f32 %v3394, %v5442
        %v5955 = vadd.f32 %v3395, %v5443
        %v5956 = vadd.f32 %v3396, %v5444
        %v5957 = vadd.f32 %v3397, %v5445
        %v5958 = vadd.f32 %v3398, %v5446
        %v5959 = vadd.f32 %v3399, %v5447
        %v5960 = vadd.f32 %v3400, %v5448
        %v5961 = vadd.f32 %v3401, %v5449
        %v5962 = vadd.f32 %v3402, %v5450
        %v5963 = vadd.f32 %v3403, %v5451
        %v5964 = vadd.f32 %v3404, %v5452
        %v5965 = vadd.f32 %v3405, %v5453
        %v5966 = vadd.f32 %v3406, %v5454
        %v5967 = vadd.f32 %v3407, %v5455
        %v5968 = vadd.f32 %v3408, %v5456
        %v5969 = vadd.f32 %v3409, %v5457
        %v5970 = vadd.f32 %v3410, %v5458
        %v5971 = vadd.f32 %v3411, %v5459
        %v5972 = vadd.f32 %v3412, %v5460
        %v5973 = vadd.f32 %v3413, %v5461
        %v5974 = vadd.f32 %v3414, %v5462
        %v5975 = vadd.f32 %v3415, %v5463
        %v5976 = vadd.f32 %v3416, %v5464
        %v5977 = vadd.f32 %v3417, %v5465
        %v5978 = vadd.f32 %v3418, %v5466
        %v5979 = vadd.f32 %v3419, %v5467
        %v5980 = vadd.f32 %v3420, %v5468
        %v5981 = vadd.f32 %v3421, %v5469
        %v5982 = vadd.f32 %v3422, %v5470
        %v5983 = vadd.f32 %v3423, %v5471
        %v5984 = vadd.f32 %v3424, %v5472
        %v5985 = vadd.f32 %v3425, %v5473
        %v5986 = vadd.f32 %v3426, %v5474
        %v5987 = vadd.f32 %v3427, %v5475
        %v5988 = vadd.f32 %v3428, %v5476
        %v5989 = vadd.f32 %v3429, %v5477
        %v5990 = vadd.f32 %v3430, %v5478
        %v5991 = vadd.f32 %v3431, %v5479
        %v5992 = vadd.f32 %v3432, %v5480
        %v5993 = vadd.f32 %v3433, %v5481
        %v5994 = vadd.f32 %v3434, %v5482
        %v5995 = vadd.f32 %v3435, %v5483
        %v5996 = vadd.f32 %v3436, %v5484
        %v5997 = vadd.f32 %v3437, %v5485
        %v5998 = vadd.f32 %v3438, %v5486
        %v5999 = vadd.f32 %v3439, %v5487
        %v6000 = vadd.f32 %v3440, %v5488
        %v6001 = vadd.f32 %v3441, %v5489
        %v6002 = vadd.f32 %v3442, %v5490
        %v6003 = vadd.f32 %v3443, %v5491
        %v6004 = vadd.f32 %v3444, %v5492
        %v6005 = vadd.f32 %v3445, %v5493
        %v6006 = vadd.f32 %v3446, %v5494
        %v6007 = vadd.f32 %v3447, %v5495
        %v6008 = vadd.f32 %v3448, %v5496
        %v6009 = vadd.f32 %v3449, %v5497
        %v6010 = vadd.f32 %v3450, %v5498
        %v6011 = vadd.f32 %v3451, %v5499
        %v6012 = vadd.f32 %v3452, %v5500
        %v6013 = vadd.f32 %v3453, %v5501
        %v6014 = vadd.f32 %v3454, %v5502
        %v6015 = vadd.f32 %v3455, %v5503
        %v6016 = vadd.f32 %v3456, %v5504
        %v6017 = vadd.f32 %v3457, %v5505
        %v6018 = vadd.f32 %v3458, %v5506
        %v6019 = vadd.f32 %v3459, %v5507
        %v6020 = vadd.f32 %v3460, %v5508
        %v6021 = vadd.f32 %v3461, %v5509
        %v6022 = vadd.f32 %v3462, %v5510
        %v6023 = vadd.f32 %v3463, %v5511
        %v6024 = vadd.f32 %v3464, %v5512
        %v6025 = vadd.f32 %v3465, %v5513
        %v6026 = vadd.f32 %v3466, %v5514
        %v6027 = vadd.f32 %v3467, %v5515
        %v6028 = vadd.f32 %v3468, %v5516
        %v6029 = vadd.f32 %v3469, %v5517
        %v6030 = vadd.f32 %v3470, %v5518
        %v6031 = vadd.f32 %v3471, %v5519
        %v6032 = vadd.f32 %v3472, %v5520
        %v6033 = vadd.f32 %v3473, %v5521
        %v6034 = vadd.f32 %v3474, %v5522
        %v6035 = vadd.f32 %v3475, %v5523
        %v6036 = vadd.f32 %v3476, %v5524
        %v6037 = vadd.f32 %v3477, %v5525
        %v6038 = vadd.f32 %v3478, %v5526
        %v6039 = vadd.f32 %v3479, %v5527
        %v6040 = vadd.f32 %v3480, %v5528
        %v6041 = vadd.f32 %v3481, %v5529
        %v6042 = vadd.f32 %v3482, %v5530
        %v6043 = vadd.f32 %v3483, %v5531
        %v6044 = vadd.f32 %v3484, %v5532
        %v6045 = vadd.f32 %v3485, %v5533
        %v6046 = vadd.f32 %v3486, %v5534
        %v6047 = vadd.f32 %v3487, %v5535
        %v6048 = vadd.f32 %v3488, %v5536
        %v6049 = vadd.f32 %v3489, %v5537
        %v6050 = vadd.f32 %v3490, %v5538
        %v6051 = vadd.f32 %v3491, %v5539
        %v6052 = vadd.f32 %v3492, %v5540
        %v6053 = vadd.f32 %v3493, %v5541
        %v6054 = vadd.f32 %v3494, %v5542
        %v6055 = vadd.f32 %v3495, %v5543
        %v6056 = vadd.f32 %v3496, %v5544
        %v6057 = vadd.f32 %v3497, %v5545
        %v6058 = vadd.f32 %v3498, %v5546
        %v6059 = vadd.f32 %v3499, %v5547
        %v6060 = vadd.f32 %v3500, %v5548
        %v6061 = vadd.f32 %v3501, %v5549
        %v6062 = vadd.f32 %v3502, %v5550
        %v6063 = vadd.f32 %v3503, %v5551
        %v6064 = vadd.f32 %v3504, %v5552
        %v6065 = vadd.f32 %v3505, %v5553
        %v6066 = vadd.f32 %v3506, %v5554
        %v6067 = vadd.f32 %v3507, %v5555
        %v6068 = vadd.f32 %v3508, %v5556
        %v6069 = vadd.f32 %v3509, %v5557
        %v6070 = vadd.f32 %v3510, %v5558
        %v6071 = vadd.f32 %v3511, %v5559
        %v6072 = vadd.f32 %v3512, %v5560
        %v6073 = vadd.f32 %v3513, %v5561
        %v6074 = vadd.f32 %v3514, %v5562
        %v6075 = vadd.f32 %v3515, %v5563
        %v6076 = vadd.f32 %v3516, %v5564
        %v6077 = vadd.f32 %v3517, %v5565
        %v6078 = vadd.f32 %v3518, %v5566
        %v6079 = vadd.f32 %v3519, %v5567
        %v6080 = vadd.f32 %v3520, %v5568
        %v6081 = vadd.f32 %v3521, %v5569
        %v6082 = vadd.f32 %v3522, %v5570
        %v6083 = vadd.f32 %v3523, %v5571
        %v6084 = vadd.f32 %v3524, %v5572
        %v6085 = vadd.f32 %v3525, %v5573
        %v6086 = vadd.f32 %v3526, %v5574
        %v6087 = vadd.f32 %v3527, %v5575
        %v6088 = vadd.f32 %v3528, %v5576
        %v6089 = vadd.f32 %v3529, %v5577
        %v6090 = vadd.f32 %v3530, %v5578
        %v6091 = vadd.f32 %v3531, %v5579
        %v6092 = vadd.f32 %v3532, %v5580
        %v6093 = vadd.f32 %v3533, %v5581
        %v6094 = vadd.f32 %v3534, %v5582
        %v6095 = vadd.f32 %v3535, %v5583
        %v6096 = vadd.f32 %v3536, %v5584
        %v6097 = vadd.f32 %v3537, %v5585
        %v6098 = vadd.f32 %v3538, %v5586
        %v6099 = vadd.f32 %v3539, %v5587
        %v6100 = vadd.f32 %v3540, %v5588
        %v6101 = vadd.f32 %v3541, %v5589
        %v6102 = vadd.f32 %v3542, %v5590
        %v6103 = vadd.f32 %v3543, %v5591
        %v6104 = vadd.f32 %v3544, %v5592
        %v6105 = vadd.f32 %v3545, %v5593
        %v6106 = vadd.f32 %v3546, %v5594
        %v6107 = vadd.f32 %v3547, %v5595
        %v6108 = vadd.f32 %v3548, %v5596
        %v6109 = vadd.f32 %v3549, %v5597
        %v6110 = vadd.f32 %v3550, %v5598
        %v6111 = vadd.f32 %v3551, %v5599
        %v6112 = vadd.f32 %v3552, %v5600
        %v6113 = vadd.f32 %v3553, %v5601
        %v6114 = vadd.f32 %v3554, %v5602
        %v6115 = vadd.f32 %v3555, %v5603
        %v6116 = vadd.f32 %v3556, %v5604
        %v6117 = vadd.f32 %v3557, %v5605
        %v6118 = vadd.f32 %v3558, %v5606
        %v6119 = vadd.f32 %v3559, %v5607
        %v6120 = vadd.f32 %v3560, %v5608
        %v6121 = vadd.f32 %v3561, %v5609
        %v6122 = vadd.f32 %v3562, %v5610
        %v6123 = vadd.f32 %v3563, %v5611
        %v6124 = vadd.f32 %v3564, %v5612
        %v6125 = vadd.f32 %v3565, %v5613
        %v6126 = vadd.f32 %v3566, %v5614
        %v6127 = vadd.f32 %v3567, %v5615
        %v6128 = vadd.f32 %v3568, %v5616
        %v6129 = vadd.f32 %v3569, %v5617
        %v6130 = vadd.f32 %v3570, %v5618
        %v6131 = vadd.f32 %v3571, %v5619
        %v6132 = vadd.f32 %v3572, %v5620
        %v6133 = vadd.f32 %v3573, %v5621
        %v6134 = vadd.f32 %v3574, %v5622
        %v6135 = vadd.f32 %v3575, %v5623
        %v6136 = vadd.f32 %v3576, %v5624
        %v6137 = vadd.f32 %v3577, %v5625
        %v6138 = vadd.f32 %v3578, %v5626
        %v6139 = vadd.f32 %v3579, %v5627
        %v6140 = vadd.f32 %v3580, %v5628
        %v6141 = vadd.f32 %v3581, %v5629
        %v6142 = vadd.f32 %v3582, %v5630
        %v6143 = vadd.f32 %v3583, %v5631
        %v6144 = vadd.f32 %v3584, %v5632
        %v6145 = vadd.f32 %v3585, %v5633
        %v6146 = vadd.f32 %v3586, %v5634
        %v6147 = vadd.f32 %v3587, %v5635
        %v6148 = vadd.f32 %v3588, %v5636
        %v6149 = vadd.f32 %v3589, %v5637
        %v6150 = vadd.f32 %v3590, %v5638
        %v6151 = vadd.f32 %v3591, %v5639
        %v6152 = vadd.f32 %v3592, %v5640
        %v6153 = vadd.f32 %v3593, %v5641
        %v6154 = vadd.f32 %v3594, %v5642
        %v6155 = vadd.f32 %v3595, %v5643
        %v6156 = vadd.f32 %v3596, %v5644
        %v6157 = vadd.f32 %v3597, %v5645
        %v6158 = vadd.f32 %v3598, %v5646
        %v6159 = vadd.f32 %v3599, %v5647
        %v6160 = vadd.f32 %v3600, %v5648
        %v6161 = vadd.f32 %v3601, %v5649
        %v6162 = vadd.f32 %v3602, %v5650
        %v6163 = vadd.f32 %v3603, %v5651
        %v6164 = vadd.f32 %v3604, %v5652
        %v6165 = vadd.f32 %v3605, %v5653
        %v6166 = vadd.f32 %v3606, %v5654
        %v6167 = vadd.f32 %v3607, %v5655
        %v6168 = vadd.f32 %v3608, %v5656
        %v6169 = vadd.f32 %v3609, %v5657
        %v6170 = vadd.f32 %v3610, %v5658
        %v6171 = vadd.f32 %v3611, %v5659
        %v6172 = vadd.f32 %v3612, %v5660
        %v6173 = vadd.f32 %v3613, %v5661
        %v6174 = vadd.f32 %v3614, %v5662
        %v6175 = vadd.f32 %v3615, %v5663
        %v6176 = vadd.f32 %v3616, %v5664
        %v6177 = vadd.f32 %v3617, %v5665
        %v6178 = vadd.f32 %v3618, %v5666
        %v6179 = vadd.f32 %v3619, %v5667
        %v6180 = vadd.f32 %v3620, %v5668
        %v6181 = vadd.f32 %v3621, %v5669
        %v6182 = vadd.f32 %v3622, %v5670
        %v6183 = vadd.f32 %v3623, %v5671
        %v6184 = vadd.f32 %v3624, %v5672
        %v6185 = vadd.f32 %v3625, %v5673
        %v6186 = vadd.f32 %v3626, %v5674
        %v6187 = vadd.f32 %v3627, %v5675
        %v6188 = vadd.f32 %v3628, %v5676
        %v6189 = vadd.f32 %v3629, %v5677
        %v6190 = vadd.f32 %v3630, %v5678
        %v6191 = vadd.f32 %v3631, %v5679
        %v6192 = vadd.f32 %v3632, %v5680
        %v6193 = vadd.f32 %v3633, %v5681
        %v6194 = vadd.f32 %v3634, %v5682
        %v6195 = vadd.f32 %v3635, %v5683
        %v6196 = vadd.f32 %v3636, %v5684
        %v6197 = vadd.f32 %v3637, %v5685
        %v6198 = vadd.f32 %v3638, %v5686
        %v6199 = vadd.f32 %v3639, %v5687
        %v6200 = vadd.f32 %v3640, %v5688
        %v6201 = vadd.f32 %v3641, %v5689
        %v6202 = vadd.f32 %v3642, %v5690
        %v6203 = vadd.f32 %v3643, %v5691
        %v6204 = vadd.f32 %v3644, %v5692
        %v6205 = vadd.f32 %v3645, %v5693
        %v6206 = vadd.f32 %v3646, %v5694
        %v6207 = vadd.f32 %v3647, %v5695
        %v6208 = vadd.f32 %v3648, %v5696
        %v6209 = vadd.f32 %v3649, %v5697
        %v6210 = vadd.f32 %v3650, %v5698
        %v6211 = vadd.f32 %v3651, %v5699
        %v6212 = vadd.f32 %v3652, %v5700
        %v6213 = vadd.f32 %v3653, %v5701
        %v6214 = vadd.f32 %v3654, %v5702
        %v6215 = vadd.f32 %v3655, %v5703
        %v6216 = vadd.f32 %v3656, %v5704
        %v6217 = vadd.f32 %v3657, %v5705
        %v6218 = vadd.f32 %v3658, %v5706
        %v6219 = vadd.f32 %v3659, %v5707
        %v6220 = vadd.f32 %v3660, %v5708
        %v6221 = vadd.f32 %v3661, %v5709
        %v6222 = vadd.f32 %v3662, %v5710
        %v6223 = vadd.f32 %v3663, %v5711
        %v6224 = vadd.f32 %v3664, %v5712
        %v6225 = vadd.f32 %v3665, %v5713
        %v6226 = vadd.f32 %v3666, %v5714
        %v6227 = vadd.f32 %v3667, %v5715
        %v6228 = vadd.f32 %v3668, %v5716
        %v6229 = vadd.f32 %v3669, %v5717
        %v6230 = vadd.f32 %v3670, %v5718
        %v6231 = vadd.f32 %v3671, %v5719
        %v6232 = vadd.f32 %v3672, %v5720
        %v6233 = vadd.f32 %v3673, %v5721
        %v6234 = vadd.f32 %v3674, %v5722
        %v6235 = vadd.f32 %v3675, %v5723
        %v6236 = vadd.f32 %v3676, %v5724
        %v6237 = vadd.f32 %v3677, %v5725
        %v6238 = vadd.f32 %v3678, %v5726
        %v6239 = vadd.f32 %v3679, %v5727
        %v6240 = vadd.f32 %v3680, %v5728
        %v6241 = vadd.f32 %v3681, %v5729
        %v6242 = vadd.f32 %v3682, %v5730
        %v6243 = vadd.f32 %v3683, %v5731
        %v6244 = vadd.f32 %v3684, %v5732
        %v6245 = vadd.f32 %v3685, %v5733
        %v6246 = vadd.f32 %v3686, %v5734
        %v6247 = vadd.f32 %v3687, %v5735
        %v6248 = vadd.f32 %v3688, %v5736
        %v6249 = vadd.f32 %v3689, %v5737
        %v6250 = vadd.f32 %v3690, %v5738
        %v6251 = vadd.f32 %v3691, %v5739
        %v6252 = vadd.f32 %v3692, %v5740
        %v6253 = vadd.f32 %v3693, %v5741
        %v6254 = vadd.f32 %v3694, %v5742
        %v6255 = vadd.f32 %v3695, %v5743
        %v6256 = vadd.f32 %v3696, %v5744
        %v6257 = vadd.f32 %v3697, %v5745
        %v6258 = vadd.f32 %v3698, %v5746
        %v6259 = vadd.f32 %v3699, %v5747
        %v6260 = vadd.f32 %v3700, %v5748
        %v6261 = vadd.f32 %v3701, %v5749
        %v6262 = vadd.f32 %v3702, %v5750
        %v6263 = vadd.f32 %v3703, %v5751
        %v6264 = vadd.f32 %v3704, %v5752
        %v6265 = vadd.f32 %v3705, %v5753
        %v6266 = vadd.f32 %v3706, %v5754
        %v6267 = vadd.f32 %v3707, %v5755
        %v6268 = vadd.f32 %v3708, %v5756
        %v6269 = vadd.f32 %v3709, %v5757
        %v6270 = vadd.f32 %v3710, %v5758
        %v6271 = vadd.f32 %v3711, %v5759
        %v6272 = vadd.f32 %v3712, %v5760
        %v6273 = vadd.f32 %v3713, %v5761
        %v6274 = vadd.f32 %v3714, %v5762
        %v6275 = vadd.f32 %v3715, %v5763
        %v6276 = vadd.f32 %v3716, %v5764
        %v6277 = vadd.f32 %v3717, %v5765
        %v6278 = vadd.f32 %v3718, %v5766
        %v6279 = vadd.f32 %v3719, %v5767
        %v6280 = vadd.f32 %v3720, %v5768
        %v6281 = vadd.f32 %v3721, %v5769
        %v6282 = vadd.f32 %v3722, %v5770
        %v6283 = vadd.f32 %v3723, %v5771
        %v6284 = vadd.f32 %v3724, %v5772
        %v6285 = vadd.f32 %v3725, %v5773
        %v6286 = vadd.f32 %v3726, %v5774
        %v6287 = vadd.f32 %v3727, %v5775
        %v6288 = vadd.f32 %v3728, %v5776
        %v6289 = vadd.f32 %v3729, %v5777
        %v6290 = vadd.f32 %v3730, %v5778
        %v6291 = vadd.f32 %v3731, %v5779
        %v6292 = vadd.f32 %v3732, %v5780
        %v6293 = vadd.f32 %v3733, %v5781
        %v6294 = vadd.f32 %v3734, %v5782
        %v6295 = vadd.f32 %v3735, %v5783
        %v6296 = vadd.f32 %v3736, %v5784
        %v6297 = vadd.f32 %v3737, %v5785
        %v6298 = vadd.f32 %v3738, %v5786
        %v6299 = vadd.f32 %v3739, %v5787
        %v6300 = vadd.f32 %v3740, %v5788
        %v6301 = vadd.f32 %v3741, %v5789
        %v6302 = vadd.f32 %v3742, %v5790
        %v6303 = vadd.f32 %v3743, %v5791
        %v6304 = vadd.f32 %v3744, %v5792
        %v6305 = vadd.f32 %v3745, %v5793
        %v6306 = vadd.f32 %v3746, %v5794
        %v6307 = vadd.f32 %v3747, %v5795
        %v6308 = vadd.f32 %v3748, %v5796
        %v6309 = vadd.f32 %v3749, %v5797
        %v6310 = vadd.f32 %v3750, %v5798
        %v6311 = vadd.f32 %v3751, %v5799
        %v6312 = vadd.f32 %v3752, %v5800
        %v6313 = vadd.f32 %v3753, %v5801
        %v6314 = vadd.f32 %v3754, %v5802
        %v6315 = vadd.f32 %v3755, %v5803
        %v6316 = vadd.f32 %v3756, %v5804
        %v6317 = vadd.f32 %v3757, %v5805
        %v6318 = vadd.f32 %v3758, %v5806
        %v6319 = vadd.f32 %v3759, %v5807
        %v6320 = vadd.f32 %v3760, %v5808
        %v6321 = vadd.f32 %v3761, %v5809
        %v6322 = vadd.f32 %v3762, %v5810
        %v6323 = vadd.f32 %v3763, %v5811
        %v6324 = vadd.f32 %v3764, %v5812
        %v6325 = vadd.f32 %v3765, %v5813
        %v6326 = vadd.f32 %v3766, %v5814
        %v6327 = vadd.f32 %v3767, %v5815
        %v6328 = vadd.f32 %v3768, %v5816
        %v6329 = vadd.f32 %v3769, %v5817
        %v6330 = vadd.f32 %v3770, %v5818
        %v6331 = vadd.f32 %v3771, %v5819
        %v6332 = vadd.f32 %v3772, %v5820
        %v6333 = vadd.f32 %v3773, %v5821
        %v6334 = vadd.f32 %v3774, %v5822
        %v6335 = vadd.f32 %v3775, %v5823
        %v6336 = vadd.f32 %v3776, %v5824
        %v6337 = vadd.f32 %v3777, %v5825
        %v6338 = vadd.f32 %v3778, %v5826
        %v6339 = vadd.f32 %v3779, %v5827
        %v6340 = vadd.f32 %v3780, %v5828
        %v6341 = vadd.f32 %v3781, %v5829
        %v6342 = vadd.f32 %v3782, %v5830
        %v6343 = vadd.f32 %v3783, %v5831
        %v6344 = vadd.f32 %v3784, %v5832
        %v6345 = vadd.f32 %v3785, %v5833
        %v6346 = vadd.f32 %v3786, %v5834
        %v6347 = vadd.f32 %v3787, %v5835
        %v6348 = vadd.f32 %v3788, %v5836
        %v6349 = vadd.f32 %v3789, %v5837
        %v6350 = vadd.f32 %v3790, %v5838
        %v6351 = vadd.f32 %v3791, %v5839
        %v6352 = vadd.f32 %v3792, %v5840
        %v6353 = vadd.f32 %v3793, %v5841
        %v6354 = vadd.f32 %v3794, %v5842
        %v6355 = vadd.f32 %v3795, %v5843
        %v6356 = vadd.f32 %v3796, %v5844
        %v6357 = vadd.f32 %v3797, %v5845
        %v6358 = vadd.f32 %v3798, %v5846
        %v6359 = vadd.f32 %v3799, %v5847
        %v6360 = vadd.f32 %v3800, %v5848
        %v6361 = vadd.f32 %v3801, %v5849
        %v6362 = vadd.f32 %v3802, %v5850
        %v6363 = vadd.f32 %v3803, %v5851
        %v6364 = vadd.f32 %v3804, %v5852
        %v6365 = vadd.f32 %v3805, %v5853
        %v6366 = vadd.f32 %v3806, %v5854
        %v6367 = vadd.f32 %v3807, %v5855
        %v6368 = vadd.f32 %v3808, %v5856
        %v6369 = vadd.f32 %v3809, %v5857
        %v6370 = vadd.f32 %v3810, %v5858
        %v6371 = vadd.f32 %v3811, %v5859
        %v6372 = vadd.f32 %v3812, %v5860
        %v6373 = vadd.f32 %v3813, %v5861
        %v6374 = vadd.f32 %v3814, %v5862
        %v6375 = vadd.f32 %v3815, %v5863
        %v6376 = vadd.f32 %v3816, %v5864
        %v6377 = vadd.f32 %v3817, %v5865
        %v6378 = vadd.f32 %v3818, %v5866
        %v6379 = vadd.f32 %v3819, %v5867
        %v6380 = vadd.f32 %v3820, %v5868
        %v6381 = vadd.f32 %v3821, %v5869
        %v6382 = vadd.f32 %v3822, %v5870
        %v6383 = vadd.f32 %v3823, %v5871
        %v6384 = vadd.f32 %v3824, %v5872
        %v6385 = vadd.f32 %v3825, %v5873
        %v6386 = vadd.f32 %v3826, %v5874
        %v6387 = vadd.f32 %v3827, %v5875
        %v6388 = vadd.f32 %v3828, %v5876
        %v6389 = vadd.f32 %v3829, %v5877
        %v6390 = vadd.f32 %v3830, %v5878
        %v6391 = vadd.f32 %v3831, %v5879
        %v6392 = vadd.f32 %v3832, %v5880
        %v6393 = vadd.f32 %v3833, %v5881
        %v6394 = vadd.f32 %v3834, %v5882
        %v6395 = vadd.f32 %v3835, %v5883
        %v6396 = vadd.f32 %v3836, %v5884
        %v6397 = vadd.f32 %v3837, %v5885
        %v6398 = vadd.f32 %v3838, %v5886
        %v6399 = vadd.f32 %v3839, %v5887
        %v6400 = vadd.f32 %v3840, %v5888
        %v6401 = vadd.f32 %v3841, %v5889
        %v6402 = vadd.f32 %v3842, %v5890
        %v6403 = vadd.f32 %v3843, %v5891
        %v6404 = vadd.f32 %v3844, %v5892
        %v6405 = vadd.f32 %v3845, %v5893
        %v6406 = vadd.f32 %v3846, %v5894
        %v6407 = vadd.f32 %v3847, %v5895
        %v6408 = vadd.f32 %v3848, %v5896
        %v6409 = vadd.f32 %v3849, %v5897
        %v6410 = vadd.f32 %v3850, %v5898
        %v6411 = vadd.f32 %v3851, %v5899
        %v6412 = vadd.f32 %v3852, %v5900
        %v6413 = vadd.f32 %v3853, %v5901
        %v6414 = vadd.f32 %v3854, %v5902
        %v6415 = vadd.f32 %v3855, %v5903
        %v6416 = vadd.f32 %v3856, %v5904
        %v6417 = vadd.f32 %v3857, %v5905
        %v6418 = vadd.f32 %v3858, %v5906
        %v6419 = vadd.f32 %v3859, %v5907
        %v6420 = vadd.f32 %v3860, %v5908
        %v6421 = vadd.f32 %v3861, %v5909
        %v6422 = vadd.f32 %v3862, %v5910
        %v6423 = vadd.f32 %v3863, %v5911
        %v6424 = vadd.f32 %v3864, %v5912
        %v6425 = vadd.f32 %v3865, %v5913
        %v6426 = vadd.f32 %v3866, %v5914
        %v6427 = vadd.f32 %v3867, %v5915
        %v6428 = vadd.f32 %v3868, %v5916
        %v6429 = vadd.f32 %v3869, %v5917
        %v6430 = vadd.f32 %v3870, %v5918
        %v6431 = vadd.f32 %v3871, %v5919
        %v6432 = vadd.f32 %v3872, %v5920
        %v6433 = vadd.f32 %v3873, %v5921
        %v6434 = vadd.f32 %v3874, %v5922
        %v6435 = vadd.f32 %v3875, %v5923
        %v6436 = vadd.f32 %v3876, %v5924
        %v6437 = vadd.f32 %v3877, %v5925
        %v6438 = vadd.f32 %v3878, %v5926
        %v6439 = vadd.f32 %v3879, %v5927
        %v6440 = vadd.f32 %v3880, %v5928
        %v6441 = vadd.f32 %v3881, %v5929
        %v6442 = vadd.f32 %v3882, %v5930
        %v6443 = vadd.f32 %v3883, %v5931
        %v6444 = vadd.f32 %v3884, %v5932
        %v6445 = vadd.f32 %v3885, %v5933
        %v6446 = vadd.f32 %v3886, %v5934
        %v6447 = vadd.f32 %v3887, %v5935
        %v6448 = vadd.f32 %v3888, %v5936
        %v6449 = vmul.f32 %v5937, 0.7978846
        %v6450 = vmul.f32 %v5938, 0.7978846
        %v6451 = vmul.f32 %v5939, 0.7978846
        %v6452 = vmul.f32 %v5940, 0.7978846
        %v6453 = vmul.f32 %v5941, 0.7978846
        %v6454 = vmul.f32 %v5942, 0.7978846
        %v6455 = vmul.f32 %v5943, 0.7978846
        %v6456 = vmul.f32 %v5944, 0.7978846
        %v6457 = vmul.f32 %v5945, 0.7978846
        %v6458 = vmul.f32 %v5946, 0.7978846
        %v6459 = vmul.f32 %v5947, 0.7978846
        %v6460 = vmul.f32 %v5948, 0.7978846
        %v6461 = vmul.f32 %v5949, 0.7978846
        %v6462 = vmul.f32 %v5950, 0.7978846
        %v6463 = vmul.f32 %v5951, 0.7978846
        %v6464 = vmul.f32 %v5952, 0.7978846
        %v6465 = vmul.f32 %v5953, 0.7978846
        %v6466 = vmul.f32 %v5954, 0.7978846
        %v6467 = vmul.f32 %v5955, 0.7978846
        %v6468 = vmul.f32 %v5956, 0.7978846
        %v6469 = vmul.f32 %v5957, 0.7978846
        %v6470 = vmul.f32 %v5958, 0.7978846
        %v6471 = vmul.f32 %v5959, 0.7978846
        %v6472 = vmul.f32 %v5960, 0.7978846
        %v6473 = vmul.f32 %v5961, 0.7978846
        %v6474 = vmul.f32 %v5962, 0.7978846
        %v6475 = vmul.f32 %v5963, 0.7978846
        %v6476 = vmul.f32 %v5964, 0.7978846
        %v6477 = vmul.f32 %v5965, 0.7978846
        %v6478 = vmul.f32 %v5966, 0.7978846
        %v6479 = vmul.f32 %v5967, 0.7978846
        %v6480 = vmul.f32 %v5968, 0.7978846
        %v6481 = vmul.f32 %v5969, 0.7978846
        %v6482 = vmul.f32 %v5970, 0.7978846
        %v6483 = vmul.f32 %v5971, 0.7978846
        %v6484 = vmul.f32 %v5972, 0.7978846
        %v6485 = vmul.f32 %v5973, 0.7978846
        %v6486 = vmul.f32 %v5974, 0.7978846
        %v6487 = vmul.f32 %v5975, 0.7978846
        %v6488 = vmul.f32 %v5976, 0.7978846
        %v6489 = vmul.f32 %v5977, 0.7978846
        %v6490 = vmul.f32 %v5978, 0.7978846
        %v6491 = vmul.f32 %v5979, 0.7978846
        %v6492 = vmul.f32 %v5980, 0.7978846
        %v6493 = vmul.f32 %v5981, 0.7978846
        %v6494 = vmul.f32 %v5982, 0.7978846
        %v6495 = vmul.f32 %v5983, 0.7978846
        %v6496 = vmul.f32 %v5984, 0.7978846
        %v6497 = vmul.f32 %v5985, 0.7978846
        %v6498 = vmul.f32 %v5986, 0.7978846
        %v6499 = vmul.f32 %v5987, 0.7978846
        %v6500 = vmul.f32 %v5988, 0.7978846
        %v6501 = vmul.f32 %v5989, 0.7978846
        %v6502 = vmul.f32 %v5990, 0.7978846
        %v6503 = vmul.f32 %v5991, 0.7978846
        %v6504 = vmul.f32 %v5992, 0.7978846
        %v6505 = vmul.f32 %v5993, 0.7978846
        %v6506 = vmul.f32 %v5994, 0.7978846
        %v6507 = vmul.f32 %v5995, 0.7978846
        %v6508 = vmul.f32 %v5996, 0.7978846
        %v6509 = vmul.f32 %v5997, 0.7978846
        %v6510 = vmul.f32 %v5998, 0.7978846
        %v6511 = vmul.f32 %v5999, 0.7978846
        %v6512 = vmul.f32 %v6000, 0.7978846
        %v6513 = vmul.f32 %v6001, 0.7978846
        %v6514 = vmul.f32 %v6002, 0.7978846
        %v6515 = vmul.f32 %v6003, 0.7978846
        %v6516 = vmul.f32 %v6004, 0.7978846
        %v6517 = vmul.f32 %v6005, 0.7978846
        %v6518 = vmul.f32 %v6006, 0.7978846
        %v6519 = vmul.f32 %v6007, 0.7978846
        %v6520 = vmul.f32 %v6008, 0.7978846
        %v6521 = vmul.f32 %v6009, 0.7978846
        %v6522 = vmul.f32 %v6010, 0.7978846
        %v6523 = vmul.f32 %v6011, 0.7978846
        %v6524 = vmul.f32 %v6012, 0.7978846
        %v6525 = vmul.f32 %v6013, 0.7978846
        %v6526 = vmul.f32 %v6014, 0.7978846
        %v6527 = vmul.f32 %v6015, 0.7978846
        %v6528 = vmul.f32 %v6016, 0.7978846
        %v6529 = vmul.f32 %v6017, 0.7978846
        %v6530 = vmul.f32 %v6018, 0.7978846
        %v6531 = vmul.f32 %v6019, 0.7978846
        %v6532 = vmul.f32 %v6020, 0.7978846
        %v6533 = vmul.f32 %v6021, 0.7978846
        %v6534 = vmul.f32 %v6022, 0.7978846
        %v6535 = vmul.f32 %v6023, 0.7978846
        %v6536 = vmul.f32 %v6024, 0.7978846
        %v6537 = vmul.f32 %v6025, 0.7978846
        %v6538 = vmul.f32 %v6026, 0.7978846
        %v6539 = vmul.f32 %v6027, 0.7978846
        %v6540 = vmul.f32 %v6028, 0.7978846
        %v6541 = vmul.f32 %v6029, 0.7978846
        %v6542 = vmul.f32 %v6030, 0.7978846
        %v6543 = vmul.f32 %v6031, 0.7978846
        %v6544 = vmul.f32 %v6032, 0.7978846
        %v6545 = vmul.f32 %v6033, 0.7978846
        %v6546 = vmul.f32 %v6034, 0.7978846
        %v6547 = vmul.f32 %v6035, 0.7978846
        %v6548 = vmul.f32 %v6036, 0.7978846
        %v6549 = vmul.f32 %v6037, 0.7978846
        %v6550 = vmul.f32 %v6038, 0.7978846
        %v6551 = vmul.f32 %v6039, 0.7978846
        %v6552 = vmul.f32 %v6040, 0.7978846
        %v6553 = vmul.f32 %v6041, 0.7978846
        %v6554 = vmul.f32 %v6042, 0.7978846
        %v6555 = vmul.f32 %v6043, 0.7978846
        %v6556 = vmul.f32 %v6044, 0.7978846
        %v6557 = vmul.f32 %v6045, 0.7978846
        %v6558 = vmul.f32 %v6046, 0.7978846
        %v6559 = vmul.f32 %v6047, 0.7978846
        %v6560 = vmul.f32 %v6048, 0.7978846
        %v6561 = vmul.f32 %v6049, 0.7978846
        %v6562 = vmul.f32 %v6050, 0.7978846
        %v6563 = vmul.f32 %v6051, 0.7978846
        %v6564 = vmul.f32 %v6052, 0.7978846
        %v6565 = vmul.f32 %v6053, 0.7978846
        %v6566 = vmul.f32 %v6054, 0.7978846
        %v6567 = vmul.f32 %v6055, 0.7978846
        %v6568 = vmul.f32 %v6056, 0.7978846
        %v6569 = vmul.f32 %v6057, 0.7978846
        %v6570 = vmul.f32 %v6058, 0.7978846
        %v6571 = vmul.f32 %v6059, 0.7978846
        %v6572 = vmul.f32 %v6060, 0.7978846
        %v6573 = vmul.f32 %v6061, 0.7978846
        %v6574 = vmul.f32 %v6062, 0.7978846
        %v6575 = vmul.f32 %v6063, 0.7978846
        %v6576 = vmul.f32 %v6064, 0.7978846
        %v6577 = vmul.f32 %v6065, 0.7978846
        %v6578 = vmul.f32 %v6066, 0.7978846
        %v6579 = vmul.f32 %v6067, 0.7978846
        %v6580 = vmul.f32 %v6068, 0.7978846
        %v6581 = vmul.f32 %v6069, 0.7978846
        %v6582 = vmul.f32 %v6070, 0.7978846
        %v6583 = vmul.f32 %v6071, 0.7978846
        %v6584 = vmul.f32 %v6072, 0.7978846
        %v6585 = vmul.f32 %v6073, 0.7978846
        %v6586 = vmul.f32 %v6074, 0.7978846
        %v6587 = vmul.f32 %v6075, 0.7978846
        %v6588 = vmul.f32 %v6076, 0.7978846
        %v6589 = vmul.f32 %v6077, 0.7978846
        %v6590 = vmul.f32 %v6078, 0.7978846
        %v6591 = vmul.f32 %v6079, 0.7978846
        %v6592 = vmul.f32 %v6080, 0.7978846
        %v6593 = vmul.f32 %v6081, 0.7978846
        %v6594 = vmul.f32 %v6082, 0.7978846
        %v6595 = vmul.f32 %v6083, 0.7978846
        %v6596 = vmul.f32 %v6084, 0.7978846
        %v6597 = vmul.f32 %v6085, 0.7978846
        %v6598 = vmul.f32 %v6086, 0.7978846
        %v6599 = vmul.f32 %v6087, 0.7978846
        %v6600 = vmul.f32 %v6088, 0.7978846
        %v6601 = vmul.f32 %v6089, 0.7978846
        %v6602 = vmul.f32 %v6090, 0.7978846
        %v6603 = vmul.f32 %v6091, 0.7978846
        %v6604 = vmul.f32 %v6092, 0.7978846
        %v6605 = vmul.f32 %v6093, 0.7978846
        %v6606 = vmul.f32 %v6094, 0.7978846
        %v6607 = vmul.f32 %v6095, 0.7978846
        %v6608 = vmul.f32 %v6096, 0.7978846
        %v6609 = vmul.f32 %v6097, 0.7978846
        %v6610 = vmul.f32 %v6098, 0.7978846
        %v6611 = vmul.f32 %v6099, 0.7978846
        %v6612 = vmul.f32 %v6100, 0.7978846
        %v6613 = vmul.f32 %v6101, 0.7978846
        %v6614 = vmul.f32 %v6102, 0.7978846
        %v6615 = vmul.f32 %v6103, 0.7978846
        %v6616 = vmul.f32 %v6104, 0.7978846
        %v6617 = vmul.f32 %v6105, 0.7978846
        %v6618 = vmul.f32 %v6106, 0.7978846
        %v6619 = vmul.f32 %v6107, 0.7978846
        %v6620 = vmul.f32 %v6108, 0.7978846
        %v6621 = vmul.f32 %v6109, 0.7978846
        %v6622 = vmul.f32 %v6110, 0.7978846
        %v6623 = vmul.f32 %v6111, 0.7978846
        %v6624 = vmul.f32 %v6112, 0.7978846
        %v6625 = vmul.f32 %v6113, 0.7978846
        %v6626 = vmul.f32 %v6114, 0.7978846
        %v6627 = vmul.f32 %v6115, 0.7978846
        %v6628 = vmul.f32 %v6116, 0.7978846
        %v6629 = vmul.f32 %v6117, 0.7978846
        %v6630 = vmul.f32 %v6118, 0.7978846
        %v6631 = vmul.f32 %v6119, 0.7978846
        %v6632 = vmul.f32 %v6120, 0.7978846
        %v6633 = vmul.f32 %v6121, 0.7978846
        %v6634 = vmul.f32 %v6122, 0.7978846
        %v6635 = vmul.f32 %v6123, 0.7978846
        %v6636 = vmul.f32 %v6124, 0.7978846
        %v6637 = vmul.f32 %v6125, 0.7978846
        %v6638 = vmul.f32 %v6126, 0.7978846
        %v6639 = vmul.f32 %v6127, 0.7978846
        %v6640 = vmul.f32 %v6128, 0.7978846
        %v6641 = vmul.f32 %v6129, 0.7978846
        %v6642 = vmul.f32 %v6130, 0.7978846
        %v6643 = vmul.f32 %v6131, 0.7978846
        %v6644 = vmul.f32 %v6132, 0.7978846
        %v6645 = vmul.f32 %v6133, 0.7978846
        %v6646 = vmul.f32 %v6134, 0.7978846
        %v6647 = vmul.f32 %v6135, 0.7978846
        %v6648 = vmul.f32 %v6136, 0.7978846
        %v6649 = vmul.f32 %v6137, 0.7978846
        %v6650 = vmul.f32 %v6138, 0.7978846
        %v6651 = vmul.f32 %v6139, 0.7978846
        %v6652 = vmul.f32 %v6140, 0.7978846
        %v6653 = vmul.f32 %v6141, 0.7978846
        %v6654 = vmul.f32 %v6142, 0.7978846
        %v6655 = vmul.f32 %v6143, 0.7978846
        %v6656 = vmul.f32 %v6144, 0.7978846
        %v6657 = vmul.f32 %v6145, 0.7978846
        %v6658 = vmul.f32 %v6146, 0.7978846
        %v6659 = vmul.f32 %v6147, 0.7978846
        %v6660 = vmul.f32 %v6148, 0.7978846
        %v6661 = vmul.f32 %v6149, 0.7978846
        %v6662 = vmul.f32 %v6150, 0.7978846
        %v6663 = vmul.f32 %v6151, 0.7978846
        %v6664 = vmul.f32 %v6152, 0.7978846
        %v6665 = vmul.f32 %v6153, 0.7978846
        %v6666 = vmul.f32 %v6154, 0.7978846
        %v6667 = vmul.f32 %v6155, 0.7978846
        %v6668 = vmul.f32 %v6156, 0.7978846
        %v6669 = vmul.f32 %v6157, 0.7978846
        %v6670 = vmul.f32 %v6158, 0.7978846
        %v6671 = vmul.f32 %v6159, 0.7978846
        %v6672 = vmul.f32 %v6160, 0.7978846
        %v6673 = vmul.f32 %v6161, 0.7978846
        %v6674 = vmul.f32 %v6162, 0.7978846
        %v6675 = vmul.f32 %v6163, 0.7978846
        %v6676 = vmul.f32 %v6164, 0.7978846
        %v6677 = vmul.f32 %v6165, 0.7978846
        %v6678 = vmul.f32 %v6166, 0.7978846
        %v6679 = vmul.f32 %v6167, 0.7978846
        %v6680 = vmul.f32 %v6168, 0.7978846
        %v6681 = vmul.f32 %v6169, 0.7978846
        %v6682 = vmul.f32 %v6170, 0.7978846
        %v6683 = vmul.f32 %v6171, 0.7978846
        %v6684 = vmul.f32 %v6172, 0.7978846
        %v6685 = vmul.f32 %v6173, 0.7978846
        %v6686 = vmul.f32 %v6174, 0.7978846
        %v6687 = vmul.f32 %v6175, 0.7978846
        %v6688 = vmul.f32 %v6176, 0.7978846
        %v6689 = vmul.f32 %v6177, 0.7978846
        %v6690 = vmul.f32 %v6178, 0.7978846
        %v6691 = vmul.f32 %v6179, 0.7978846
        %v6692 = vmul.f32 %v6180, 0.7978846
        %v6693 = vmul.f32 %v6181, 0.7978846
        %v6694 = vmul.f32 %v6182, 0.7978846
        %v6695 = vmul.f32 %v6183, 0.7978846
        %v6696 = vmul.f32 %v6184, 0.7978846
        %v6697 = vmul.f32 %v6185, 0.7978846
        %v6698 = vmul.f32 %v6186, 0.7978846
        %v6699 = vmul.f32 %v6187, 0.7978846
        %v6700 = vmul.f32 %v6188, 0.7978846
        %v6701 = vmul.f32 %v6189, 0.7978846
        %v6702 = vmul.f32 %v6190, 0.7978846
        %v6703 = vmul.f32 %v6191, 0.7978846
        %v6704 = vmul.f32 %v6192, 0.7978846
        %v6705 = vmul.f32 %v6193, 0.7978846
        %v6706 = vmul.f32 %v6194, 0.7978846
        %v6707 = vmul.f32 %v6195, 0.7978846
        %v6708 = vmul.f32 %v6196, 0.7978846
        %v6709 = vmul.f32 %v6197, 0.7978846
        %v6710 = vmul.f32 %v6198, 0.7978846
        %v6711 = vmul.f32 %v6199, 0.7978846
        %v6712 = vmul.f32 %v6200, 0.7978846
        %v6713 = vmul.f32 %v6201, 0.7978846
        %v6714 = vmul.f32 %v6202, 0.7978846
        %v6715 = vmul.f32 %v6203, 0.7978846
        %v6716 = vmul.f32 %v6204, 0.7978846
        %v6717 = vmul.f32 %v6205, 0.7978846
        %v6718 = vmul.f32 %v6206, 0.7978846
        %v6719 = vmul.f32 %v6207, 0.7978846
        %v6720 = vmul.f32 %v6208, 0.7978846
        %v6721 = vmul.f32 %v6209, 0.7978846
        %v6722 = vmul.f32 %v6210, 0.7978846
        %v6723 = vmul.f32 %v6211, 0.7978846
        %v6724 = vmul.f32 %v6212, 0.7978846
        %v6725 = vmul.f32 %v6213, 0.7978846
        %v6726 = vmul.f32 %v6214, 0.7978846
        %v6727 = vmul.f32 %v6215, 0.7978846
        %v6728 = vmul.f32 %v6216, 0.7978846
        %v6729 = vmul.f32 %v6217, 0.7978846
        %v6730 = vmul.f32 %v6218, 0.7978846
        %v6731 = vmul.f32 %v6219, 0.7978846
        %v6732 = vmul.f32 %v6220, 0.7978846
        %v6733 = vmul.f32 %v6221, 0.7978846
        %v6734 = vmul.f32 %v6222, 0.7978846
        %v6735 = vmul.f32 %v6223, 0.7978846
        %v6736 = vmul.f32 %v6224, 0.7978846
        %v6737 = vmul.f32 %v6225, 0.7978846
        %v6738 = vmul.f32 %v6226, 0.7978846
        %v6739 = vmul.f32 %v6227, 0.7978846
        %v6740 = vmul.f32 %v6228, 0.7978846
        %v6741 = vmul.f32 %v6229, 0.7978846
        %v6742 = vmul.f32 %v6230, 0.7978846
        %v6743 = vmul.f32 %v6231, 0.7978846
        %v6744 = vmul.f32 %v6232, 0.7978846
        %v6745 = vmul.f32 %v6233, 0.7978846
        %v6746 = vmul.f32 %v6234, 0.7978846
        %v6747 = vmul.f32 %v6235, 0.7978846
        %v6748 = vmul.f32 %v6236, 0.7978846
        %v6749 = vmul.f32 %v6237, 0.7978846
        %v6750 = vmul.f32 %v6238, 0.7978846
        %v6751 = vmul.f32 %v6239, 0.7978846
        %v6752 = vmul.f32 %v6240, 0.7978846
        %v6753 = vmul.f32 %v6241, 0.7978846
        %v6754 = vmul.f32 %v6242, 0.7978846
        %v6755 = vmul.f32 %v6243, 0.7978846
        %v6756 = vmul.f32 %v6244, 0.7978846
        %v6757 = vmul.f32 %v6245, 0.7978846
        %v6758 = vmul.f32 %v6246, 0.7978846
        %v6759 = vmul.f32 %v6247, 0.7978846
        %v6760 = vmul.f32 %v6248, 0.7978846
        %v6761 = vmul.f32 %v6249, 0.7978846
        %v6762 = vmul.f32 %v6250, 0.7978846
        %v6763 = vmul.f32 %v6251, 0.7978846
        %v6764 = vmul.f32 %v6252, 0.7978846
        %v6765 = vmul.f32 %v6253, 0.7978846
        %v6766 = vmul.f32 %v6254, 0.7978846
        %v6767 = vmul.f32 %v6255, 0.7978846
        %v6768 = vmul.f32 %v6256, 0.7978846
        %v6769 = vmul.f32 %v6257, 0.7978846
        %v6770 = vmul.f32 %v6258, 0.7978846
        %v6771 = vmul.f32 %v6259, 0.7978846
        %v6772 = vmul.f32 %v6260, 0.7978846
        %v6773 = vmul.f32 %v6261, 0.7978846
        %v6774 = vmul.f32 %v6262, 0.7978846
        %v6775 = vmul.f32 %v6263, 0.7978846
        %v6776 = vmul.f32 %v6264, 0.7978846
        %v6777 = vmul.f32 %v6265, 0.7978846
        %v6778 = vmul.f32 %v6266, 0.7978846
        %v6779 = vmul.f32 %v6267, 0.7978846
        %v6780 = vmul.f32 %v6268, 0.7978846
        %v6781 = vmul.f32 %v6269, 0.7978846
        %v6782 = vmul.f32 %v6270, 0.7978846
        %v6783 = vmul.f32 %v6271, 0.7978846
        %v6784 = vmul.f32 %v6272, 0.7978846
        %v6785 = vmul.f32 %v6273, 0.7978846
        %v6786 = vmul.f32 %v6274, 0.7978846
        %v6787 = vmul.f32 %v6275, 0.7978846
        %v6788 = vmul.f32 %v6276, 0.7978846
        %v6789 = vmul.f32 %v6277, 0.7978846
        %v6790 = vmul.f32 %v6278, 0.7978846
        %v6791 = vmul.f32 %v6279, 0.7978846
        %v6792 = vmul.f32 %v6280, 0.7978846
        %v6793 = vmul.f32 %v6281, 0.7978846
        %v6794 = vmul.f32 %v6282, 0.7978846
        %v6795 = vmul.f32 %v6283, 0.7978846
        %v6796 = vmul.f32 %v6284, 0.7978846
        %v6797 = vmul.f32 %v6285, 0.7978846
        %v6798 = vmul.f32 %v6286, 0.7978846
        %v6799 = vmul.f32 %v6287, 0.7978846
        %v6800 = vmul.f32 %v6288, 0.7978846
        %v6801 = vmul.f32 %v6289, 0.7978846
        %v6802 = vmul.f32 %v6290, 0.7978846
        %v6803 = vmul.f32 %v6291, 0.7978846
        %v6804 = vmul.f32 %v6292, 0.7978846
        %v6805 = vmul.f32 %v6293, 0.7978846
        %v6806 = vmul.f32 %v6294, 0.7978846
        %v6807 = vmul.f32 %v6295, 0.7978846
        %v6808 = vmul.f32 %v6296, 0.7978846
        %v6809 = vmul.f32 %v6297, 0.7978846
        %v6810 = vmul.f32 %v6298, 0.7978846
        %v6811 = vmul.f32 %v6299, 0.7978846
        %v6812 = vmul.f32 %v6300, 0.7978846
        %v6813 = vmul.f32 %v6301, 0.7978846
        %v6814 = vmul.f32 %v6302, 0.7978846
        %v6815 = vmul.f32 %v6303, 0.7978846
        %v6816 = vmul.f32 %v6304, 0.7978846
        %v6817 = vmul.f32 %v6305, 0.7978846
        %v6818 = vmul.f32 %v6306, 0.7978846
        %v6819 = vmul.f32 %v6307, 0.7978846
        %v6820 = vmul.f32 %v6308, 0.7978846
        %v6821 = vmul.f32 %v6309, 0.7978846
        %v6822 = vmul.f32 %v6310, 0.7978846
        %v6823 = vmul.f32 %v6311, 0.7978846
        %v6824 = vmul.f32 %v6312, 0.7978846
        %v6825 = vmul.f32 %v6313, 0.7978846
        %v6826 = vmul.f32 %v6314, 0.7978846
        %v6827 = vmul.f32 %v6315, 0.7978846
        %v6828 = vmul.f32 %v6316, 0.7978846
        %v6829 = vmul.f32 %v6317, 0.7978846
        %v6830 = vmul.f32 %v6318, 0.7978846
        %v6831 = vmul.f32 %v6319, 0.7978846
        %v6832 = vmul.f32 %v6320, 0.7978846
        %v6833 = vmul.f32 %v6321, 0.7978846
        %v6834 = vmul.f32 %v6322, 0.7978846
        %v6835 = vmul.f32 %v6323, 0.7978846
        %v6836 = vmul.f32 %v6324, 0.7978846
        %v6837 = vmul.f32 %v6325, 0.7978846
        %v6838 = vmul.f32 %v6326, 0.7978846
        %v6839 = vmul.f32 %v6327, 0.7978846
        %v6840 = vmul.f32 %v6328, 0.7978846
        %v6841 = vmul.f32 %v6329, 0.7978846
        %v6842 = vmul.f32 %v6330, 0.7978846
        %v6843 = vmul.f32 %v6331, 0.7978846
        %v6844 = vmul.f32 %v6332, 0.7978846
        %v6845 = vmul.f32 %v6333, 0.7978846
        %v6846 = vmul.f32 %v6334, 0.7978846
        %v6847 = vmul.f32 %v6335, 0.7978846
        %v6848 = vmul.f32 %v6336, 0.7978846
        %v6849 = vmul.f32 %v6337, 0.7978846
        %v6850 = vmul.f32 %v6338, 0.7978846
        %v6851 = vmul.f32 %v6339, 0.7978846
        %v6852 = vmul.f32 %v6340, 0.7978846
        %v6853 = vmul.f32 %v6341, 0.7978846
        %v6854 = vmul.f32 %v6342, 0.7978846
        %v6855 = vmul.f32 %v6343, 0.7978846
        %v6856 = vmul.f32 %v6344, 0.7978846
        %v6857 = vmul.f32 %v6345, 0.7978846
        %v6858 = vmul.f32 %v6346, 0.7978846
        %v6859 = vmul.f32 %v6347, 0.7978846
        %v6860 = vmul.f32 %v6348, 0.7978846
        %v6861 = vmul.f32 %v6349, 0.7978846
        %v6862 = vmul.f32 %v6350, 0.7978846
        %v6863 = vmul.f32 %v6351, 0.7978846
        %v6864 = vmul.f32 %v6352, 0.7978846
        %v6865 = vmul.f32 %v6353, 0.7978846
        %v6866 = vmul.f32 %v6354, 0.7978846
        %v6867 = vmul.f32 %v6355, 0.7978846
        %v6868 = vmul.f32 %v6356, 0.7978846
        %v6869 = vmul.f32 %v6357, 0.7978846
        %v6870 = vmul.f32 %v6358, 0.7978846
        %v6871 = vmul.f32 %v6359, 0.7978846
        %v6872 = vmul.f32 %v6360, 0.7978846
        %v6873 = vmul.f32 %v6361, 0.7978846
        %v6874 = vmul.f32 %v6362, 0.7978846
        %v6875 = vmul.f32 %v6363, 0.7978846
        %v6876 = vmul.f32 %v6364, 0.7978846
        %v6877 = vmul.f32 %v6365, 0.7978846
        %v6878 = vmul.f32 %v6366, 0.7978846
        %v6879 = vmul.f32 %v6367, 0.7978846
        %v6880 = vmul.f32 %v6368, 0.7978846
        %v6881 = vmul.f32 %v6369, 0.7978846
        %v6882 = vmul.f32 %v6370, 0.7978846
        %v6883 = vmul.f32 %v6371, 0.7978846
        %v6884 = vmul.f32 %v6372, 0.7978846
        %v6885 = vmul.f32 %v6373, 0.7978846
        %v6886 = vmul.f32 %v6374, 0.7978846
        %v6887 = vmul.f32 %v6375, 0.7978846
        %v6888 = vmul.f32 %v6376, 0.7978846
        %v6889 = vmul.f32 %v6377, 0.7978846
        %v6890 = vmul.f32 %v6378, 0.7978846
        %v6891 = vmul.f32 %v6379, 0.7978846
        %v6892 = vmul.f32 %v6380, 0.7978846
        %v6893 = vmul.f32 %v6381, 0.7978846
        %v6894 = vmul.f32 %v6382, 0.7978846
        %v6895 = vmul.f32 %v6383, 0.7978846
        %v6896 = vmul.f32 %v6384, 0.7978846
        %v6897 = vmul.f32 %v6385, 0.7978846
        %v6898 = vmul.f32 %v6386, 0.7978846
        %v6899 = vmul.f32 %v6387, 0.7978846
        %v6900 = vmul.f32 %v6388, 0.7978846
        %v6901 = vmul.f32 %v6389, 0.7978846
        %v6902 = vmul.f32 %v6390, 0.7978846
        %v6903 = vmul.f32 %v6391, 0.7978846
        %v6904 = vmul.f32 %v6392, 0.7978846
        %v6905 = vmul.f32 %v6393, 0.7978846
        %v6906 = vmul.f32 %v6394, 0.7978846
        %v6907 = vmul.f32 %v6395, 0.7978846
        %v6908 = vmul.f32 %v6396, 0.7978846
        %v6909 = vmul.f32 %v6397, 0.7978846
        %v6910 = vmul.f32 %v6398, 0.7978846
        %v6911 = vmul.f32 %v6399, 0.7978846
        %v6912 = vmul.f32 %v6400, 0.7978846
        %v6913 = vmul.f32 %v6401, 0.7978846
        %v6914 = vmul.f32 %v6402, 0.7978846
        %v6915 = vmul.f32 %v6403, 0.7978846
        %v6916 = vmul.f32 %v6404, 0.7978846
        %v6917 = vmul.f32 %v6405, 0.7978846
        %v6918 = vmul.f32 %v6406, 0.7978846
        %v6919 = vmul.f32 %v6407, 0.7978846
        %v6920 = vmul.f32 %v6408, 0.7978846
        %v6921 = vmul.f32 %v6409, 0.7978846
        %v6922 = vmul.f32 %v6410, 0.7978846
        %v6923 = vmul.f32 %v6411, 0.7978846
        %v6924 = vmul.f32 %v6412, 0.7978846
        %v6925 = vmul.f32 %v6413, 0.7978846
        %v6926 = vmul.f32 %v6414, 0.7978846
        %v6927 = vmul.f32 %v6415, 0.7978846
        %v6928 = vmul.f32 %v6416, 0.7978846
        %v6929 = vmul.f32 %v6417, 0.7978846
        %v6930 = vmul.f32 %v6418, 0.7978846
        %v6931 = vmul.f32 %v6419, 0.7978846
        %v6932 = vmul.f32 %v6420, 0.7978846
        %v6933 = vmul.f32 %v6421, 0.7978846
        %v6934 = vmul.f32 %v6422, 0.7978846
        %v6935 = vmul.f32 %v6423, 0.7978846
        %v6936 = vmul.f32 %v6424, 0.7978846
        %v6937 = vmul.f32 %v6425, 0.7978846
        %v6938 = vmul.f32 %v6426, 0.7978846
        %v6939 = vmul.f32 %v6427, 0.7978846
        %v6940 = vmul.f32 %v6428, 0.7978846
        %v6941 = vmul.f32 %v6429, 0.7978846
        %v6942 = vmul.f32 %v6430, 0.7978846
        %v6943 = vmul.f32 %v6431, 0.7978846
        %v6944 = vmul.f32 %v6432, 0.7978846
        %v6945 = vmul.f32 %v6433, 0.7978846
        %v6946 = vmul.f32 %v6434, 0.7978846
        %v6947 = vmul.f32 %v6435, 0.7978846
        %v6948 = vmul.f32 %v6436, 0.7978846
        %v6949 = vmul.f32 %v6437, 0.7978846
        %v6950 = vmul.f32 %v6438, 0.7978846
        %v6951 = vmul.f32 %v6439, 0.7978846
        %v6952 = vmul.f32 %v6440, 0.7978846
        %v6953 = vmul.f32 %v6441, 0.7978846
        %v6954 = vmul.f32 %v6442, 0.7978846
        %v6955 = vmul.f32 %v6443, 0.7978846
        %v6956 = vmul.f32 %v6444, 0.7978846
        %v6957 = vmul.f32 %v6445, 0.7978846
        %v6958 = vmul.f32 %v6446, 0.7978846
        %v6959 = vmul.f32 %v6447, 0.7978846
        %v6960 = vmul.f32 %v6448, 0.7978846
        %v6961 = vtanh.pop %v6449
        %v6962 = vtanh.pop %v6450
        %v6963 = vtanh.pop %v6451
        %v6964 = vtanh.pop %v6452
        %v6965 = vtanh.pop %v6453
        %v6966 = vtanh.pop %v6454
        %v6967 = vtanh.pop %v6455
        %v6968 = vtanh.pop %v6456
        %v6969 = vtanh.pop %v6457
        %v6970 = vtanh.pop %v6458
        %v6971 = vtanh.pop %v6459
        %v6972 = vtanh.pop %v6460
        %v6973 = vtanh.pop %v6461
        %v6974 = vtanh.pop %v6462
        %v6975 = vtanh.pop %v6463
        %v6976 = vtanh.pop %v6464
        %v6977 = vtanh.pop %v6465
        %v6978 = vtanh.pop %v6466
        %v6979 = vtanh.pop %v6467
        %v6980 = vtanh.pop %v6468
        %v6981 = vtanh.pop %v6469
        %v6982 = vtanh.pop %v6470
        %v6983 = vtanh.pop %v6471
        %v6984 = vtanh.pop %v6472
        %v6985 = vtanh.pop %v6473
        %v6986 = vtanh.pop %v6474
        %v6987 = vtanh.pop %v6475
        %v6988 = vtanh.pop %v6476
        %v6989 = vtanh.pop %v6477
        %v6990 = vtanh.pop %v6478
        %v6991 = vtanh.pop %v6479
        %v6992 = vtanh.pop %v6480
        %v6993 = vtanh.pop %v6481
        %v6994 = vtanh.pop %v6482
        %v6995 = vtanh.pop %v6483
        %v6996 = vtanh.pop %v6484
        %v6997 = vtanh.pop %v6485
        %v6998 = vtanh.pop %v6486
        %v6999 = vtanh.pop %v6487
        %v7000 = vtanh.pop %v6488
        %v7001 = vtanh.pop %v6489
        %v7002 = vtanh.pop %v6490
        %v7003 = vtanh.pop %v6491
        %v7004 = vtanh.pop %v6492
        %v7005 = vtanh.pop %v6493
        %v7006 = vtanh.pop %v6494
        %v7007 = vtanh.pop %v6495
        %v7008 = vtanh.pop %v6496
        %v7009 = vtanh.pop %v6497
        %v7010 = vtanh.pop %v6498
        %v7011 = vtanh.pop %v6499
        %v7012 = vtanh.pop %v6500
        %v7013 = vtanh.pop %v6501
        %v7014 = vtanh.pop %v6502
        %v7015 = vtanh.pop %v6503
        %v7016 = vtanh.pop %v6504
        %v7017 = vtanh.pop %v6505
        %v7018 = vtanh.pop %v6506
        %v7019 = vtanh.pop %v6507
        %v7020 = vtanh.pop %v6508
        %v7021 = vtanh.pop %v6509
        %v7022 = vtanh.pop %v6510
        %v7023 = vtanh.pop %v6511
        %v7024 = vtanh.pop %v6512
        %v7025 = vtanh.pop %v6513
        %v7026 = vtanh.pop %v6514
        %v7027 = vtanh.pop %v6515
        %v7028 = vtanh.pop %v6516
        %v7029 = vtanh.pop %v6517
        %v7030 = vtanh.pop %v6518
        %v7031 = vtanh.pop %v6519
        %v7032 = vtanh.pop %v6520
        %v7033 = vtanh.pop %v6521
        %v7034 = vtanh.pop %v6522
        %v7035 = vtanh.pop %v6523
        %v7036 = vtanh.pop %v6524
        %v7037 = vtanh.pop %v6525
        %v7038 = vtanh.pop %v6526
        %v7039 = vtanh.pop %v6527
        %v7040 = vtanh.pop %v6528
        %v7041 = vtanh.pop %v6529
        %v7042 = vtanh.pop %v6530
        %v7043 = vtanh.pop %v6531
        %v7044 = vtanh.pop %v6532
        %v7045 = vtanh.pop %v6533
        %v7046 = vtanh.pop %v6534
        %v7047 = vtanh.pop %v6535
        %v7048 = vtanh.pop %v6536
        %v7049 = vtanh.pop %v6537
        %v7050 = vtanh.pop %v6538
        %v7051 = vtanh.pop %v6539
        %v7052 = vtanh.pop %v6540
        %v7053 = vtanh.pop %v6541
        %v7054 = vtanh.pop %v6542
        %v7055 = vtanh.pop %v6543
        %v7056 = vtanh.pop %v6544
        %v7057 = vtanh.pop %v6545
        %v7058 = vtanh.pop %v6546
        %v7059 = vtanh.pop %v6547
        %v7060 = vtanh.pop %v6548
        %v7061 = vtanh.pop %v6549
        %v7062 = vtanh.pop %v6550
        %v7063 = vtanh.pop %v6551
        %v7064 = vtanh.pop %v6552
        %v7065 = vtanh.pop %v6553
        %v7066 = vtanh.pop %v6554
        %v7067 = vtanh.pop %v6555
        %v7068 = vtanh.pop %v6556
        %v7069 = vtanh.pop %v6557
        %v7070 = vtanh.pop %v6558
        %v7071 = vtanh.pop %v6559
        %v7072 = vtanh.pop %v6560
        %v7073 = vtanh.pop %v6561
        %v7074 = vtanh.pop %v6562
        %v7075 = vtanh.pop %v6563
        %v7076 = vtanh.pop %v6564
        %v7077 = vtanh.pop %v6565
        %v7078 = vtanh.pop %v6566
        %v7079 = vtanh.pop %v6567
        %v7080 = vtanh.pop %v6568
        %v7081 = vtanh.pop %v6569
        %v7082 = vtanh.pop %v6570
        %v7083 = vtanh.pop %v6571
        %v7084 = vtanh.pop %v6572
        %v7085 = vtanh.pop %v6573
        %v7086 = vtanh.pop %v6574
        %v7087 = vtanh.pop %v6575
        %v7088 = vtanh.pop %v6576
        %v7089 = vtanh.pop %v6577
        %v7090 = vtanh.pop %v6578
        %v7091 = vtanh.pop %v6579
        %v7092 = vtanh.pop %v6580
        %v7093 = vtanh.pop %v6581
        %v7094 = vtanh.pop %v6582
        %v7095 = vtanh.pop %v6583
        %v7096 = vtanh.pop %v6584
        %v7097 = vtanh.pop %v6585
        %v7098 = vtanh.pop %v6586
        %v7099 = vtanh.pop %v6587
        %v7100 = vtanh.pop %v6588
        %v7101 = vtanh.pop %v6589
        %v7102 = vtanh.pop %v6590
        %v7103 = vtanh.pop %v6591
        %v7104 = vtanh.pop %v6592
        %v7105 = vtanh.pop %v6593
        %v7106 = vtanh.pop %v6594
        %v7107 = vtanh.pop %v6595
        %v7108 = vtanh.pop %v6596
        %v7109 = vtanh.pop %v6597
        %v7110 = vtanh.pop %v6598
        %v7111 = vtanh.pop %v6599
        %v7112 = vtanh.pop %v6600
        %v7113 = vtanh.pop %v6601
        %v7114 = vtanh.pop %v6602
        %v7115 = vtanh.pop %v6603
        %v7116 = vtanh.pop %v6604
        %v7117 = vtanh.pop %v6605
        %v7118 = vtanh.pop %v6606
        %v7119 = vtanh.pop %v6607
        %v7120 = vtanh.pop %v6608
        %v7121 = vtanh.pop %v6609
        %v7122 = vtanh.pop %v6610
        %v7123 = vtanh.pop %v6611
        %v7124 = vtanh.pop %v6612
        %v7125 = vtanh.pop %v6613
        %v7126 = vtanh.pop %v6614
        %v7127 = vtanh.pop %v6615
        %v7128 = vtanh.pop %v6616
        %v7129 = vtanh.pop %v6617
        %v7130 = vtanh.pop %v6618
        %v7131 = vtanh.pop %v6619
        %v7132 = vtanh.pop %v6620
        %v7133 = vtanh.pop %v6621
        %v7134 = vtanh.pop %v6622
        %v7135 = vtanh.pop %v6623
        %v7136 = vtanh.pop %v6624
        %v7137 = vtanh.pop %v6625
        %v7138 = vtanh.pop %v6626
        %v7139 = vtanh.pop %v6627
        %v7140 = vtanh.pop %v6628
        %v7141 = vtanh.pop %v6629
        %v7142 = vtanh.pop %v6630
        %v7143 = vtanh.pop %v6631
        %v7144 = vtanh.pop %v6632
        %v7145 = vtanh.pop %v6633
        %v7146 = vtanh.pop %v6634
        %v7147 = vtanh.pop %v6635
        %v7148 = vtanh.pop %v6636
        %v7149 = vtanh.pop %v6637
        %v7150 = vtanh.pop %v6638
        %v7151 = vtanh.pop %v6639
        %v7152 = vtanh.pop %v6640
        %v7153 = vtanh.pop %v6641
        %v7154 = vtanh.pop %v6642
        %v7155 = vtanh.pop %v6643
        %v7156 = vtanh.pop %v6644
        %v7157 = vtanh.pop %v6645
        %v7158 = vtanh.pop %v6646
        %v7159 = vtanh.pop %v6647
        %v7160 = vtanh.pop %v6648
        %v7161 = vtanh.pop %v6649
        %v7162 = vtanh.pop %v6650
        %v7163 = vtanh.pop %v6651
        %v7164 = vtanh.pop %v6652
        %v7165 = vtanh.pop %v6653
        %v7166 = vtanh.pop %v6654
        %v7167 = vtanh.pop %v6655
        %v7168 = vtanh.pop %v6656
        %v7169 = vtanh.pop %v6657
        %v7170 = vtanh.pop %v6658
        %v7171 = vtanh.pop %v6659
        %v7172 = vtanh.pop %v6660
        %v7173 = vtanh.pop %v6661
        %v7174 = vtanh.pop %v6662
        %v7175 = vtanh.pop %v6663
        %v7176 = vtanh.pop %v6664
        %v7177 = vtanh.pop %v6665
        %v7178 = vtanh.pop %v6666
        %v7179 = vtanh.pop %v6667
        %v7180 = vtanh.pop %v6668
        %v7181 = vtanh.pop %v6669
        %v7182 = vtanh.pop %v6670
        %v7183 = vtanh.pop %v6671
        %v7184 = vtanh.pop %v6672
        %v7185 = vtanh.pop %v6673
        %v7186 = vtanh.pop %v6674
        %v7187 = vtanh.pop %v6675
        %v7188 = vtanh.pop %v6676
        %v7189 = vtanh.pop %v6677
        %v7190 = vtanh.pop %v6678
        %v7191 = vtanh.pop %v6679
        %v7192 = vtanh.pop %v6680
        %v7193 = vtanh.pop %v6681
        %v7194 = vtanh.pop %v6682
        %v7195 = vtanh.pop %v6683
        %v7196 = vtanh.pop %v6684
        %v7197 = vtanh.pop %v6685
        %v7198 = vtanh.pop %v6686
        %v7199 = vtanh.pop %v6687
        %v7200 = vtanh.pop %v6688
        %v7201 = vtanh.pop %v6689
        %v7202 = vtanh.pop %v6690
        %v7203 = vtanh.pop %v6691
        %v7204 = vtanh.pop %v6692
        %v7205 = vtanh.pop %v6693
        %v7206 = vtanh.pop %v6694
        %v7207 = vtanh.pop %v6695
        %v7208 = vtanh.pop %v6696
        %v7209 = vtanh.pop %v6697
        %v7210 = vtanh.pop %v6698
        %v7211 = vtanh.pop %v6699
        %v7212 = vtanh.pop %v6700
        %v7213 = vtanh.pop %v6701
        %v7214 = vtanh.pop %v6702
        %v7215 = vtanh.pop %v6703
        %v7216 = vtanh.pop %v6704
        %v7217 = vtanh.pop %v6705
        %v7218 = vtanh.pop %v6706
        %v7219 = vtanh.pop %v6707
        %v7220 = vtanh.pop %v6708
        %v7221 = vtanh.pop %v6709
        %v7222 = vtanh.pop %v6710
        %v7223 = vtanh.pop %v6711
        %v7224 = vtanh.pop %v6712
        %v7225 = vtanh.pop %v6713
        %v7226 = vtanh.pop %v6714
        %v7227 = vtanh.pop %v6715
        %v7228 = vtanh.pop %v6716
        %v7229 = vtanh.pop %v6717
        %v7230 = vtanh.pop %v6718
        %v7231 = vtanh.pop %v6719
        %v7232 = vtanh.pop %v6720
        %v7233 = vtanh.pop %v6721
        %v7234 = vtanh.pop %v6722
        %v7235 = vtanh.pop %v6723
        %v7236 = vtanh.pop %v6724
        %v7237 = vtanh.pop %v6725
        %v7238 = vtanh.pop %v6726
        %v7239 = vtanh.pop %v6727
        %v7240 = vtanh.pop %v6728
        %v7241 = vtanh.pop %v6729
        %v7242 = vtanh.pop %v6730
        %v7243 = vtanh.pop %v6731
        %v7244 = vtanh.pop %v6732
        %v7245 = vtanh.pop %v6733
        %v7246 = vtanh.pop %v6734
        %v7247 = vtanh.pop %v6735
        %v7248 = vtanh.pop %v6736
        %v7249 = vtanh.pop %v6737
        %v7250 = vtanh.pop %v6738
        %v7251 = vtanh.pop %v6739
        %v7252 = vtanh.pop %v6740
        %v7253 = vtanh.pop %v6741
        %v7254 = vtanh.pop %v6742
        %v7255 = vtanh.pop %v6743
        %v7256 = vtanh.pop %v6744
        %v7257 = vtanh.pop %v6745
        %v7258 = vtanh.pop %v6746
        %v7259 = vtanh.pop %v6747
        %v7260 = vtanh.pop %v6748
        %v7261 = vtanh.pop %v6749
        %v7262 = vtanh.pop %v6750
        %v7263 = vtanh.pop %v6751
        %v7264 = vtanh.pop %v6752
        %v7265 = vtanh.pop %v6753
        %v7266 = vtanh.pop %v6754
        %v7267 = vtanh.pop %v6755
        %v7268 = vtanh.pop %v6756
        %v7269 = vtanh.pop %v6757
        %v7270 = vtanh.pop %v6758
        %v7271 = vtanh.pop %v6759
        %v7272 = vtanh.pop %v6760
        %v7273 = vtanh.pop %v6761
        %v7274 = vtanh.pop %v6762
        %v7275 = vtanh.pop %v6763
        %v7276 = vtanh.pop %v6764
        %v7277 = vtanh.pop %v6765
        %v7278 = vtanh.pop %v6766
        %v7279 = vtanh.pop %v6767
        %v7280 = vtanh.pop %v6768
        %v7281 = vtanh.pop %v6769
        %v7282 = vtanh.pop %v6770
        %v7283 = vtanh.pop %v6771
        %v7284 = vtanh.pop %v6772
        %v7285 = vtanh.pop %v6773
        %v7286 = vtanh.pop %v6774
        %v7287 = vtanh.pop %v6775
        %v7288 = vtanh.pop %v6776
        %v7289 = vtanh.pop %v6777
        %v7290 = vtanh.pop %v6778
        %v7291 = vtanh.pop %v6779
        %v7292 = vtanh.pop %v6780
        %v7293 = vtanh.pop %v6781
        %v7294 = vtanh.pop %v6782
        %v7295 = vtanh.pop %v6783
        %v7296 = vtanh.pop %v6784
        %v7297 = vtanh.pop %v6785
        %v7298 = vtanh.pop %v6786
        %v7299 = vtanh.pop %v6787
        %v7300 = vtanh.pop %v6788
        %v7301 = vtanh.pop %v6789
        %v7302 = vtanh.pop %v6790
        %v7303 = vtanh.pop %v6791
        %v7304 = vtanh.pop %v6792
        %v7305 = vtanh.pop %v6793
        %v7306 = vtanh.pop %v6794
        %v7307 = vtanh.pop %v6795
        %v7308 = vtanh.pop %v6796
        %v7309 = vtanh.pop %v6797
        %v7310 = vtanh.pop %v6798
        %v7311 = vtanh.pop %v6799
        %v7312 = vtanh.pop %v6800
        %v7313 = vtanh.pop %v6801
        %v7314 = vtanh.pop %v6802
        %v7315 = vtanh.pop %v6803
        %v7316 = vtanh.pop %v6804
        %v7317 = vtanh.pop %v6805
        %v7318 = vtanh.pop %v6806
        %v7319 = vtanh.pop %v6807
        %v7320 = vtanh.pop %v6808
        %v7321 = vtanh.pop %v6809
        %v7322 = vtanh.pop %v6810
        %v7323 = vtanh.pop %v6811
        %v7324 = vtanh.pop %v6812
        %v7325 = vtanh.pop %v6813
        %v7326 = vtanh.pop %v6814
        %v7327 = vtanh.pop %v6815
        %v7328 = vtanh.pop %v6816
        %v7329 = vtanh.pop %v6817
        %v7330 = vtanh.pop %v6818
        %v7331 = vtanh.pop %v6819
        %v7332 = vtanh.pop %v6820
        %v7333 = vtanh.pop %v6821
        %v7334 = vtanh.pop %v6822
        %v7335 = vtanh.pop %v6823
        %v7336 = vtanh.pop %v6824
        %v7337 = vtanh.pop %v6825
        %v7338 = vtanh.pop %v6826
        %v7339 = vtanh.pop %v6827
        %v7340 = vtanh.pop %v6828
        %v7341 = vtanh.pop %v6829
        %v7342 = vtanh.pop %v6830
        %v7343 = vtanh.pop %v6831
        %v7344 = vtanh.pop %v6832
        %v7345 = vtanh.pop %v6833
        %v7346 = vtanh.pop %v6834
        %v7347 = vtanh.pop %v6835
        %v7348 = vtanh.pop %v6836
        %v7349 = vtanh.pop %v6837
        %v7350 = vtanh.pop %v6838
        %v7351 = vtanh.pop %v6839
        %v7352 = vtanh.pop %v6840
        %v7353 = vtanh.pop %v6841
        %v7354 = vtanh.pop %v6842
        %v7355 = vtanh.pop %v6843
        %v7356 = vtanh.pop %v6844
        %v7357 = vtanh.pop %v6845
        %v7358 = vtanh.pop %v6846
        %v7359 = vtanh.pop %v6847
        %v7360 = vtanh.pop %v6848
        %v7361 = vtanh.pop %v6849
        %v7362 = vtanh.pop %v6850
        %v7363 = vtanh.pop %v6851
        %v7364 = vtanh.pop %v6852
        %v7365 = vtanh.pop %v6853
        %v7366 = vtanh.pop %v6854
        %v7367 = vtanh.pop %v6855
        %v7368 = vtanh.pop %v6856
        %v7369 = vtanh.pop %v6857
        %v7370 = vtanh.pop %v6858
        %v7371 = vtanh.pop %v6859
        %v7372 = vtanh.pop %v6860
        %v7373 = vtanh.pop %v6861
        %v7374 = vtanh.pop %v6862
        %v7375 = vtanh.pop %v6863
        %v7376 = vtanh.pop %v6864
        %v7377 = vtanh.pop %v6865
        %v7378 = vtanh.pop %v6866
        %v7379 = vtanh.pop %v6867
        %v7380 = vtanh.pop %v6868
        %v7381 = vtanh.pop %v6869
        %v7382 = vtanh.pop %v6870
        %v7383 = vtanh.pop %v6871
        %v7384 = vtanh.pop %v6872
        %v7385 = vtanh.pop %v6873
        %v7386 = vtanh.pop %v6874
        %v7387 = vtanh.pop %v6875
        %v7388 = vtanh.pop %v6876
        %v7389 = vtanh.pop %v6877
        %v7390 = vtanh.pop %v6878
        %v7391 = vtanh.pop %v6879
        %v7392 = vtanh.pop %v6880
        %v7393 = vtanh.pop %v6881
        %v7394 = vtanh.pop %v6882
        %v7395 = vtanh.pop %v6883
        %v7396 = vtanh.pop %v6884
        %v7397 = vtanh.pop %v6885
        %v7398 = vtanh.pop %v6886
        %v7399 = vtanh.pop %v6887
        %v7400 = vtanh.pop %v6888
        %v7401 = vtanh.pop %v6889
        %v7402 = vtanh.pop %v6890
        %v7403 = vtanh.pop %v6891
        %v7404 = vtanh.pop %v6892
        %v7405 = vtanh.pop %v6893
        %v7406 = vtanh.pop %v6894
        %v7407 = vtanh.pop %v6895
        %v7408 = vtanh.pop %v6896
        %v7409 = vtanh.pop %v6897
        %v7410 = vtanh.pop %v6898
        %v7411 = vtanh.pop %v6899
        %v7412 = vtanh.pop %v6900
        %v7413 = vtanh.pop %v6901
        %v7414 = vtanh.pop %v6902
        %v7415 = vtanh.pop %v6903
        %v7416 = vtanh.pop %v6904
        %v7417 = vtanh.pop %v6905
        %v7418 = vtanh.pop %v6906
        %v7419 = vtanh.pop %v6907
        %v7420 = vtanh.pop %v6908
        %v7421 = vtanh.pop %v6909
        %v7422 = vtanh.pop %v6910
        %v7423 = vtanh.pop %v6911
        %v7424 = vtanh.pop %v6912
        %v7425 = vtanh.pop %v6913
        %v7426 = vtanh.pop %v6914
        %v7427 = vtanh.pop %v6915
        %v7428 = vtanh.pop %v6916
        %v7429 = vtanh.pop %v6917
        %v7430 = vtanh.pop %v6918
        %v7431 = vtanh.pop %v6919
        %v7432 = vtanh.pop %v6920
        %v7433 = vtanh.pop %v6921
        %v7434 = vtanh.pop %v6922
        %v7435 = vtanh.pop %v6923
        %v7436 = vtanh.pop %v6924
        %v7437 = vtanh.pop %v6925
        %v7438 = vtanh.pop %v6926
        %v7439 = vtanh.pop %v6927
        %v7440 = vtanh.pop %v6928
        %v7441 = vtanh.pop %v6929
        %v7442 = vtanh.pop %v6930
        %v7443 = vtanh.pop %v6931
        %v7444 = vtanh.pop %v6932
        %v7445 = vtanh.pop %v6933
        %v7446 = vtanh.pop %v6934
        %v7447 = vtanh.pop %v6935
        %v7448 = vtanh.pop %v6936
        %v7449 = vtanh.pop %v6937
        %v7450 = vtanh.pop %v6938
        %v7451 = vtanh.pop %v6939
        %v7452 = vtanh.pop %v6940
        %v7453 = vtanh.pop %v6941
        %v7454 = vtanh.pop %v6942
        %v7455 = vtanh.pop %v6943
        %v7456 = vtanh.pop %v6944
        %v7457 = vtanh.pop %v6945
        %v7458 = vtanh.pop %v6946
        %v7459 = vtanh.pop %v6947
        %v7460 = vtanh.pop %v6948
        %v7461 = vtanh.pop %v6949
        %v7462 = vtanh.pop %v6950
        %v7463 = vtanh.pop %v6951
        %v7464 = vtanh.pop %v6952
        %v7465 = vtanh.pop %v6953
        %v7466 = vtanh.pop %v6954
        %v7467 = vtanh.pop %v6955
        %v7468 = vtanh.pop %v6956
        %v7469 = vtanh.pop %v6957
        %v7470 = vtanh.pop %v6958
        %v7471 = vtanh.pop %v6959
        %v7472 = vtanh.pop %v6960
        %v7473 = vadd.f32 %v6961, 1.0
        %v7474 = vadd.f32 %v6962, 1.0
        %v7475 = vadd.f32 %v6963, 1.0
        %v7476 = vadd.f32 %v6964, 1.0
        %v7477 = vadd.f32 %v6965, 1.0
        %v7478 = vadd.f32 %v6966, 1.0
        %v7479 = vadd.f32 %v6967, 1.0
        %v7480 = vadd.f32 %v6968, 1.0
        %v7481 = vadd.f32 %v6969, 1.0
        %v7482 = vadd.f32 %v6970, 1.0
        %v7483 = vadd.f32 %v6971, 1.0
        %v7484 = vadd.f32 %v6972, 1.0
        %v7485 = vadd.f32 %v6973, 1.0
        %v7486 = vadd.f32 %v6974, 1.0
        %v7487 = vadd.f32 %v6975, 1.0
        %v7488 = vadd.f32 %v6976, 1.0
        %v7489 = vadd.f32 %v6977, 1.0
        %v7490 = vadd.f32 %v6978, 1.0
        %v7491 = vadd.f32 %v6979, 1.0
        %v7492 = vadd.f32 %v6980, 1.0
        %v7493 = vadd.f32 %v6981, 1.0
        %v7494 = vadd.f32 %v6982, 1.0
        %v7495 = vadd.f32 %v6983, 1.0
        %v7496 = vadd.f32 %v6984, 1.0
        %v7497 = vadd.f32 %v6985, 1.0
        %v7498 = vadd.f32 %v6986, 1.0
        %v7499 = vadd.f32 %v6987, 1.0
        %v7500 = vadd.f32 %v6988, 1.0
        %v7501 = vadd.f32 %v6989, 1.0
        %v7502 = vadd.f32 %v6990, 1.0
        %v7503 = vadd.f32 %v6991, 1.0
        %v7504 = vadd.f32 %v6992, 1.0
        %v7505 = vadd.f32 %v6993, 1.0
        %v7506 = vadd.f32 %v6994, 1.0
        %v7507 = vadd.f32 %v6995, 1.0
        %v7508 = vadd.f32 %v6996, 1.0
        %v7509 = vadd.f32 %v6997, 1.0
        %v7510 = vadd.f32 %v6998, 1.0
        %v7511 = vadd.f32 %v6999, 1.0
        %v7512 = vadd.f32 %v7000, 1.0
        %v7513 = vadd.f32 %v7001, 1.0
        %v7514 = vadd.f32 %v7002, 1.0
        %v7515 = vadd.f32 %v7003, 1.0
        %v7516 = vadd.f32 %v7004, 1.0
        %v7517 = vadd.f32 %v7005, 1.0
        %v7518 = vadd.f32 %v7006, 1.0
        %v7519 = vadd.f32 %v7007, 1.0
        %v7520 = vadd.f32 %v7008, 1.0
        %v7521 = vadd.f32 %v7009, 1.0
        %v7522 = vadd.f32 %v7010, 1.0
        %v7523 = vadd.f32 %v7011, 1.0
        %v7524 = vadd.f32 %v7012, 1.0
        %v7525 = vadd.f32 %v7013, 1.0
        %v7526 = vadd.f32 %v7014, 1.0
        %v7527 = vadd.f32 %v7015, 1.0
        %v7528 = vadd.f32 %v7016, 1.0
        %v7529 = vadd.f32 %v7017, 1.0
        %v7530 = vadd.f32 %v7018, 1.0
        %v7531 = vadd.f32 %v7019, 1.0
        %v7532 = vadd.f32 %v7020, 1.0
        %v7533 = vadd.f32 %v7021, 1.0
        %v7534 = vadd.f32 %v7022, 1.0
        %v7535 = vadd.f32 %v7023, 1.0
        %v7536 = vadd.f32 %v7024, 1.0
        %v7537 = vadd.f32 %v7025, 1.0
        %v7538 = vadd.f32 %v7026, 1.0
        %v7539 = vadd.f32 %v7027, 1.0
        %v7540 = vadd.f32 %v7028, 1.0
        %v7541 = vadd.f32 %v7029, 1.0
        %v7542 = vadd.f32 %v7030, 1.0
        %v7543 = vadd.f32 %v7031, 1.0
        %v7544 = vadd.f32 %v7032, 1.0
        %v7545 = vadd.f32 %v7033, 1.0
        %v7546 = vadd.f32 %v7034, 1.0
        %v7547 = vadd.f32 %v7035, 1.0
        %v7548 = vadd.f32 %v7036, 1.0
        %v7549 = vadd.f32 %v7037, 1.0
        %v7550 = vadd.f32 %v7038, 1.0
        %v7551 = vadd.f32 %v7039, 1.0
        %v7552 = vadd.f32 %v7040, 1.0
        %v7553 = vadd.f32 %v7041, 1.0
        %v7554 = vadd.f32 %v7042, 1.0
        %v7555 = vadd.f32 %v7043, 1.0
        %v7556 = vadd.f32 %v7044, 1.0
        %v7557 = vadd.f32 %v7045, 1.0
        %v7558 = vadd.f32 %v7046, 1.0
        %v7559 = vadd.f32 %v7047, 1.0
        %v7560 = vadd.f32 %v7048, 1.0
        %v7561 = vadd.f32 %v7049, 1.0
        %v7562 = vadd.f32 %v7050, 1.0
        %v7563 = vadd.f32 %v7051, 1.0
        %v7564 = vadd.f32 %v7052, 1.0
        %v7565 = vadd.f32 %v7053, 1.0
        %v7566 = vadd.f32 %v7054, 1.0
        %v7567 = vadd.f32 %v7055, 1.0
        %v7568 = vadd.f32 %v7056, 1.0
        %v7569 = vadd.f32 %v7057, 1.0
        %v7570 = vadd.f32 %v7058, 1.0
        %v7571 = vadd.f32 %v7059, 1.0
        %v7572 = vadd.f32 %v7060, 1.0
        %v7573 = vadd.f32 %v7061, 1.0
        %v7574 = vadd.f32 %v7062, 1.0
        %v7575 = vadd.f32 %v7063, 1.0
        %v7576 = vadd.f32 %v7064, 1.0
        %v7577 = vadd.f32 %v7065, 1.0
        %v7578 = vadd.f32 %v7066, 1.0
        %v7579 = vadd.f32 %v7067, 1.0
        %v7580 = vadd.f32 %v7068, 1.0
        %v7581 = vadd.f32 %v7069, 1.0
        %v7582 = vadd.f32 %v7070, 1.0
        %v7583 = vadd.f32 %v7071, 1.0
        %v7584 = vadd.f32 %v7072, 1.0
        %v7585 = vadd.f32 %v7073, 1.0
        %v7586 = vadd.f32 %v7074, 1.0
        %v7587 = vadd.f32 %v7075, 1.0
        %v7588 = vadd.f32 %v7076, 1.0
        %v7589 = vadd.f32 %v7077, 1.0
        %v7590 = vadd.f32 %v7078, 1.0
        %v7591 = vadd.f32 %v7079, 1.0
        %v7592 = vadd.f32 %v7080, 1.0
        %v7593 = vadd.f32 %v7081, 1.0
        %v7594 = vadd.f32 %v7082, 1.0
        %v7595 = vadd.f32 %v7083, 1.0
        %v7596 = vadd.f32 %v7084, 1.0
        %v7597 = vadd.f32 %v7085, 1.0
        %v7598 = vadd.f32 %v7086, 1.0
        %v7599 = vadd.f32 %v7087, 1.0
        %v7600 = vadd.f32 %v7088, 1.0
        %v7601 = vadd.f32 %v7089, 1.0
        %v7602 = vadd.f32 %v7090, 1.0
        %v7603 = vadd.f32 %v7091, 1.0
        %v7604 = vadd.f32 %v7092, 1.0
        %v7605 = vadd.f32 %v7093, 1.0
        %v7606 = vadd.f32 %v7094, 1.0
        %v7607 = vadd.f32 %v7095, 1.0
        %v7608 = vadd.f32 %v7096, 1.0
        %v7609 = vadd.f32 %v7097, 1.0
        %v7610 = vadd.f32 %v7098, 1.0
        %v7611 = vadd.f32 %v7099, 1.0
        %v7612 = vadd.f32 %v7100, 1.0
        %v7613 = vadd.f32 %v7101, 1.0
        %v7614 = vadd.f32 %v7102, 1.0
        %v7615 = vadd.f32 %v7103, 1.0
        %v7616 = vadd.f32 %v7104, 1.0
        %v7617 = vadd.f32 %v7105, 1.0
        %v7618 = vadd.f32 %v7106, 1.0
        %v7619 = vadd.f32 %v7107, 1.0
        %v7620 = vadd.f32 %v7108, 1.0
        %v7621 = vadd.f32 %v7109, 1.0
        %v7622 = vadd.f32 %v7110, 1.0
        %v7623 = vadd.f32 %v7111, 1.0
        %v7624 = vadd.f32 %v7112, 1.0
        %v7625 = vadd.f32 %v7113, 1.0
        %v7626 = vadd.f32 %v7114, 1.0
        %v7627 = vadd.f32 %v7115, 1.0
        %v7628 = vadd.f32 %v7116, 1.0
        %v7629 = vadd.f32 %v7117, 1.0
        %v7630 = vadd.f32 %v7118, 1.0
        %v7631 = vadd.f32 %v7119, 1.0
        %v7632 = vadd.f32 %v7120, 1.0
        %v7633 = vadd.f32 %v7121, 1.0
        %v7634 = vadd.f32 %v7122, 1.0
        %v7635 = vadd.f32 %v7123, 1.0
        %v7636 = vadd.f32 %v7124, 1.0
        %v7637 = vadd.f32 %v7125, 1.0
        %v7638 = vadd.f32 %v7126, 1.0
        %v7639 = vadd.f32 %v7127, 1.0
        %v7640 = vadd.f32 %v7128, 1.0
        %v7641 = vadd.f32 %v7129, 1.0
        %v7642 = vadd.f32 %v7130, 1.0
        %v7643 = vadd.f32 %v7131, 1.0
        %v7644 = vadd.f32 %v7132, 1.0
        %v7645 = vadd.f32 %v7133, 1.0
        %v7646 = vadd.f32 %v7134, 1.0
        %v7647 = vadd.f32 %v7135, 1.0
        %v7648 = vadd.f32 %v7136, 1.0
        %v7649 = vadd.f32 %v7137, 1.0
        %v7650 = vadd.f32 %v7138, 1.0
        %v7651 = vadd.f32 %v7139, 1.0
        %v7652 = vadd.f32 %v7140, 1.0
        %v7653 = vadd.f32 %v7141, 1.0
        %v7654 = vadd.f32 %v7142, 1.0
        %v7655 = vadd.f32 %v7143, 1.0
        %v7656 = vadd.f32 %v7144, 1.0
        %v7657 = vadd.f32 %v7145, 1.0
        %v7658 = vadd.f32 %v7146, 1.0
        %v7659 = vadd.f32 %v7147, 1.0
        %v7660 = vadd.f32 %v7148, 1.0
        %v7661 = vadd.f32 %v7149, 1.0
        %v7662 = vadd.f32 %v7150, 1.0
        %v7663 = vadd.f32 %v7151, 1.0
        %v7664 = vadd.f32 %v7152, 1.0
        %v7665 = vadd.f32 %v7153, 1.0
        %v7666 = vadd.f32 %v7154, 1.0
        %v7667 = vadd.f32 %v7155, 1.0
        %v7668 = vadd.f32 %v7156, 1.0
        %v7669 = vadd.f32 %v7157, 1.0
        %v7670 = vadd.f32 %v7158, 1.0
        %v7671 = vadd.f32 %v7159, 1.0
        %v7672 = vadd.f32 %v7160, 1.0
        %v7673 = vadd.f32 %v7161, 1.0
        %v7674 = vadd.f32 %v7162, 1.0
        %v7675 = vadd.f32 %v7163, 1.0
        %v7676 = vadd.f32 %v7164, 1.0
        %v7677 = vadd.f32 %v7165, 1.0
        %v7678 = vadd.f32 %v7166, 1.0
        %v7679 = vadd.f32 %v7167, 1.0
        %v7680 = vadd.f32 %v7168, 1.0
        %v7681 = vadd.f32 %v7169, 1.0
        %v7682 = vadd.f32 %v7170, 1.0
        %v7683 = vadd.f32 %v7171, 1.0
        %v7684 = vadd.f32 %v7172, 1.0
        %v7685 = vadd.f32 %v7173, 1.0
        %v7686 = vadd.f32 %v7174, 1.0
        %v7687 = vadd.f32 %v7175, 1.0
        %v7688 = vadd.f32 %v7176, 1.0
        %v7689 = vadd.f32 %v7177, 1.0
        %v7690 = vadd.f32 %v7178, 1.0
        %v7691 = vadd.f32 %v7179, 1.0
        %v7692 = vadd.f32 %v7180, 1.0
        %v7693 = vadd.f32 %v7181, 1.0
        %v7694 = vadd.f32 %v7182, 1.0
        %v7695 = vadd.f32 %v7183, 1.0
        %v7696 = vadd.f32 %v7184, 1.0
        %v7697 = vadd.f32 %v7185, 1.0
        %v7698 = vadd.f32 %v7186, 1.0
        %v7699 = vadd.f32 %v7187, 1.0
        %v7700 = vadd.f32 %v7188, 1.0
        %v7701 = vadd.f32 %v7189, 1.0
        %v7702 = vadd.f32 %v7190, 1.0
        %v7703 = vadd.f32 %v7191, 1.0
        %v7704 = vadd.f32 %v7192, 1.0
        %v7705 = vadd.f32 %v7193, 1.0
        %v7706 = vadd.f32 %v7194, 1.0
        %v7707 = vadd.f32 %v7195, 1.0
        %v7708 = vadd.f32 %v7196, 1.0
        %v7709 = vadd.f32 %v7197, 1.0
        %v7710 = vadd.f32 %v7198, 1.0
        %v7711 = vadd.f32 %v7199, 1.0
        %v7712 = vadd.f32 %v7200, 1.0
        %v7713 = vadd.f32 %v7201, 1.0
        %v7714 = vadd.f32 %v7202, 1.0
        %v7715 = vadd.f32 %v7203, 1.0
        %v7716 = vadd.f32 %v7204, 1.0
        %v7717 = vadd.f32 %v7205, 1.0
        %v7718 = vadd.f32 %v7206, 1.0
        %v7719 = vadd.f32 %v7207, 1.0
        %v7720 = vadd.f32 %v7208, 1.0
        %v7721 = vadd.f32 %v7209, 1.0
        %v7722 = vadd.f32 %v7210, 1.0
        %v7723 = vadd.f32 %v7211, 1.0
        %v7724 = vadd.f32 %v7212, 1.0
        %v7725 = vadd.f32 %v7213, 1.0
        %v7726 = vadd.f32 %v7214, 1.0
        %v7727 = vadd.f32 %v7215, 1.0
        %v7728 = vadd.f32 %v7216, 1.0
        %v7729 = vadd.f32 %v7217, 1.0
        %v7730 = vadd.f32 %v7218, 1.0
        %v7731 = vadd.f32 %v7219, 1.0
        %v7732 = vadd.f32 %v7220, 1.0
        %v7733 = vadd.f32 %v7221, 1.0
        %v7734 = vadd.f32 %v7222, 1.0
        %v7735 = vadd.f32 %v7223, 1.0
        %v7736 = vadd.f32 %v7224, 1.0
        %v7737 = vadd.f32 %v7225, 1.0
        %v7738 = vadd.f32 %v7226, 1.0
        %v7739 = vadd.f32 %v7227, 1.0
        %v7740 = vadd.f32 %v7228, 1.0
        %v7741 = vadd.f32 %v7229, 1.0
        %v7742 = vadd.f32 %v7230, 1.0
        %v7743 = vadd.f32 %v7231, 1.0
        %v7744 = vadd.f32 %v7232, 1.0
        %v7745 = vadd.f32 %v7233, 1.0
        %v7746 = vadd.f32 %v7234, 1.0
        %v7747 = vadd.f32 %v7235, 1.0
        %v7748 = vadd.f32 %v7236, 1.0
        %v7749 = vadd.f32 %v7237, 1.0
        %v7750 = vadd.f32 %v7238, 1.0
        %v7751 = vadd.f32 %v7239, 1.0
        %v7752 = vadd.f32 %v7240, 1.0
        %v7753 = vadd.f32 %v7241, 1.0
        %v7754 = vadd.f32 %v7242, 1.0
        %v7755 = vadd.f32 %v7243, 1.0
        %v7756 = vadd.f32 %v7244, 1.0
        %v7757 = vadd.f32 %v7245, 1.0
        %v7758 = vadd.f32 %v7246, 1.0
        %v7759 = vadd.f32 %v7247, 1.0
        %v7760 = vadd.f32 %v7248, 1.0
        %v7761 = vadd.f32 %v7249, 1.0
        %v7762 = vadd.f32 %v7250, 1.0
        %v7763 = vadd.f32 %v7251, 1.0
        %v7764 = vadd.f32 %v7252, 1.0
        %v7765 = vadd.f32 %v7253, 1.0
        %v7766 = vadd.f32 %v7254, 1.0
        %v7767 = vadd.f32 %v7255, 1.0
        %v7768 = vadd.f32 %v7256, 1.0
        %v7769 = vadd.f32 %v7257, 1.0
        %v7770 = vadd.f32 %v7258, 1.0
        %v7771 = vadd.f32 %v7259, 1.0
        %v7772 = vadd.f32 %v7260, 1.0
        %v7773 = vadd.f32 %v7261, 1.0
        %v7774 = vadd.f32 %v7262, 1.0
        %v7775 = vadd.f32 %v7263, 1.0
        %v7776 = vadd.f32 %v7264, 1.0
        %v7777 = vadd.f32 %v7265, 1.0
        %v7778 = vadd.f32 %v7266, 1.0
        %v7779 = vadd.f32 %v7267, 1.0
        %v7780 = vadd.f32 %v7268, 1.0
        %v7781 = vadd.f32 %v7269, 1.0
        %v7782 = vadd.f32 %v7270, 1.0
        %v7783 = vadd.f32 %v7271, 1.0
        %v7784 = vadd.f32 %v7272, 1.0
        %v7785 = vadd.f32 %v7273, 1.0
        %v7786 = vadd.f32 %v7274, 1.0
        %v7787 = vadd.f32 %v7275, 1.0
        %v7788 = vadd.f32 %v7276, 1.0
        %v7789 = vadd.f32 %v7277, 1.0
        %v7790 = vadd.f32 %v7278, 1.0
        %v7791 = vadd.f32 %v7279, 1.0
        %v7792 = vadd.f32 %v7280, 1.0
        %v7793 = vadd.f32 %v7281, 1.0
        %v7794 = vadd.f32 %v7282, 1.0
        %v7795 = vadd.f32 %v7283, 1.0
        %v7796 = vadd.f32 %v7284, 1.0
        %v7797 = vadd.f32 %v7285, 1.0
        %v7798 = vadd.f32 %v7286, 1.0
        %v7799 = vadd.f32 %v7287, 1.0
        %v7800 = vadd.f32 %v7288, 1.0
        %v7801 = vadd.f32 %v7289, 1.0
        %v7802 = vadd.f32 %v7290, 1.0
        %v7803 = vadd.f32 %v7291, 1.0
        %v7804 = vadd.f32 %v7292, 1.0
        %v7805 = vadd.f32 %v7293, 1.0
        %v7806 = vadd.f32 %v7294, 1.0
        %v7807 = vadd.f32 %v7295, 1.0
        %v7808 = vadd.f32 %v7296, 1.0
        %v7809 = vadd.f32 %v7297, 1.0
        %v7810 = vadd.f32 %v7298, 1.0
        %v7811 = vadd.f32 %v7299, 1.0
        %v7812 = vadd.f32 %v7300, 1.0
        %v7813 = vadd.f32 %v7301, 1.0
        %v7814 = vadd.f32 %v7302, 1.0
        %v7815 = vadd.f32 %v7303, 1.0
        %v7816 = vadd.f32 %v7304, 1.0
        %v7817 = vadd.f32 %v7305, 1.0
        %v7818 = vadd.f32 %v7306, 1.0
        %v7819 = vadd.f32 %v7307, 1.0
        %v7820 = vadd.f32 %v7308, 1.0
        %v7821 = vadd.f32 %v7309, 1.0
        %v7822 = vadd.f32 %v7310, 1.0
        %v7823 = vadd.f32 %v7311, 1.0
        %v7824 = vadd.f32 %v7312, 1.0
        %v7825 = vadd.f32 %v7313, 1.0
        %v7826 = vadd.f32 %v7314, 1.0
        %v7827 = vadd.f32 %v7315, 1.0
        %v7828 = vadd.f32 %v7316, 1.0
        %v7829 = vadd.f32 %v7317, 1.0
        %v7830 = vadd.f32 %v7318, 1.0
        %v7831 = vadd.f32 %v7319, 1.0
        %v7832 = vadd.f32 %v7320, 1.0
        %v7833 = vadd.f32 %v7321, 1.0
        %v7834 = vadd.f32 %v7322, 1.0
        %v7835 = vadd.f32 %v7323, 1.0
        %v7836 = vadd.f32 %v7324, 1.0
        %v7837 = vadd.f32 %v7325, 1.0
        %v7838 = vadd.f32 %v7326, 1.0
        %v7839 = vadd.f32 %v7327, 1.0
        %v7840 = vadd.f32 %v7328, 1.0
        %v7841 = vadd.f32 %v7329, 1.0
        %v7842 = vadd.f32 %v7330, 1.0
        %v7843 = vadd.f32 %v7331, 1.0
        %v7844 = vadd.f32 %v7332, 1.0
        %v7845 = vadd.f32 %v7333, 1.0
        %v7846 = vadd.f32 %v7334, 1.0
        %v7847 = vadd.f32 %v7335, 1.0
        %v7848 = vadd.f32 %v7336, 1.0
        %v7849 = vadd.f32 %v7337, 1.0
        %v7850 = vadd.f32 %v7338, 1.0
        %v7851 = vadd.f32 %v7339, 1.0
        %v7852 = vadd.f32 %v7340, 1.0
        %v7853 = vadd.f32 %v7341, 1.0
        %v7854 = vadd.f32 %v7342, 1.0
        %v7855 = vadd.f32 %v7343, 1.0
        %v7856 = vadd.f32 %v7344, 1.0
        %v7857 = vadd.f32 %v7345, 1.0
        %v7858 = vadd.f32 %v7346, 1.0
        %v7859 = vadd.f32 %v7347, 1.0
        %v7860 = vadd.f32 %v7348, 1.0
        %v7861 = vadd.f32 %v7349, 1.0
        %v7862 = vadd.f32 %v7350, 1.0
        %v7863 = vadd.f32 %v7351, 1.0
        %v7864 = vadd.f32 %v7352, 1.0
        %v7865 = vadd.f32 %v7353, 1.0
        %v7866 = vadd.f32 %v7354, 1.0
        %v7867 = vadd.f32 %v7355, 1.0
        %v7868 = vadd.f32 %v7356, 1.0
        %v7869 = vadd.f32 %v7357, 1.0
        %v7870 = vadd.f32 %v7358, 1.0
        %v7871 = vadd.f32 %v7359, 1.0
        %v7872 = vadd.f32 %v7360, 1.0
        %v7873 = vadd.f32 %v7361, 1.0
        %v7874 = vadd.f32 %v7362, 1.0
        %v7875 = vadd.f32 %v7363, 1.0
        %v7876 = vadd.f32 %v7364, 1.0
        %v7877 = vadd.f32 %v7365, 1.0
        %v7878 = vadd.f32 %v7366, 1.0
        %v7879 = vadd.f32 %v7367, 1.0
        %v7880 = vadd.f32 %v7368, 1.0
        %v7881 = vadd.f32 %v7369, 1.0
        %v7882 = vadd.f32 %v7370, 1.0
        %v7883 = vadd.f32 %v7371, 1.0
        %v7884 = vadd.f32 %v7372, 1.0
        %v7885 = vadd.f32 %v7373, 1.0
        %v7886 = vadd.f32 %v7374, 1.0
        %v7887 = vadd.f32 %v7375, 1.0
        %v7888 = vadd.f32 %v7376, 1.0
        %v7889 = vadd.f32 %v7377, 1.0
        %v7890 = vadd.f32 %v7378, 1.0
        %v7891 = vadd.f32 %v7379, 1.0
        %v7892 = vadd.f32 %v7380, 1.0
        %v7893 = vadd.f32 %v7381, 1.0
        %v7894 = vadd.f32 %v7382, 1.0
        %v7895 = vadd.f32 %v7383, 1.0
        %v7896 = vadd.f32 %v7384, 1.0
        %v7897 = vadd.f32 %v7385, 1.0
        %v7898 = vadd.f32 %v7386, 1.0
        %v7899 = vadd.f32 %v7387, 1.0
        %v7900 = vadd.f32 %v7388, 1.0
        %v7901 = vadd.f32 %v7389, 1.0
        %v7902 = vadd.f32 %v7390, 1.0
        %v7903 = vadd.f32 %v7391, 1.0
        %v7904 = vadd.f32 %v7392, 1.0
        %v7905 = vadd.f32 %v7393, 1.0
        %v7906 = vadd.f32 %v7394, 1.0
        %v7907 = vadd.f32 %v7395, 1.0
        %v7908 = vadd.f32 %v7396, 1.0
        %v7909 = vadd.f32 %v7397, 1.0
        %v7910 = vadd.f32 %v7398, 1.0
        %v7911 = vadd.f32 %v7399, 1.0
        %v7912 = vadd.f32 %v7400, 1.0
        %v7913 = vadd.f32 %v7401, 1.0
        %v7914 = vadd.f32 %v7402, 1.0
        %v7915 = vadd.f32 %v7403, 1.0
        %v7916 = vadd.f32 %v7404, 1.0
        %v7917 = vadd.f32 %v7405, 1.0
        %v7918 = vadd.f32 %v7406, 1.0
        %v7919 = vadd.f32 %v7407, 1.0
        %v7920 = vadd.f32 %v7408, 1.0
        %v7921 = vadd.f32 %v7409, 1.0
        %v7922 = vadd.f32 %v7410, 1.0
        %v7923 = vadd.f32 %v7411, 1.0
        %v7924 = vadd.f32 %v7412, 1.0
        %v7925 = vadd.f32 %v7413, 1.0
        %v7926 = vadd.f32 %v7414, 1.0
        %v7927 = vadd.f32 %v7415, 1.0
        %v7928 = vadd.f32 %v7416, 1.0
        %v7929 = vadd.f32 %v7417, 1.0
        %v7930 = vadd.f32 %v7418, 1.0
        %v7931 = vadd.f32 %v7419, 1.0
        %v7932 = vadd.f32 %v7420, 1.0
        %v7933 = vadd.f32 %v7421, 1.0
        %v7934 = vadd.f32 %v7422, 1.0
        %v7935 = vadd.f32 %v7423, 1.0
        %v7936 = vadd.f32 %v7424, 1.0
        %v7937 = vadd.f32 %v7425, 1.0
        %v7938 = vadd.f32 %v7426, 1.0
        %v7939 = vadd.f32 %v7427, 1.0
        %v7940 = vadd.f32 %v7428, 1.0
        %v7941 = vadd.f32 %v7429, 1.0
        %v7942 = vadd.f32 %v7430, 1.0
        %v7943 = vadd.f32 %v7431, 1.0
        %v7944 = vadd.f32 %v7432, 1.0
        %v7945 = vadd.f32 %v7433, 1.0
        %v7946 = vadd.f32 %v7434, 1.0
        %v7947 = vadd.f32 %v7435, 1.0
        %v7948 = vadd.f32 %v7436, 1.0
        %v7949 = vadd.f32 %v7437, 1.0
        %v7950 = vadd.f32 %v7438, 1.0
        %v7951 = vadd.f32 %v7439, 1.0
        %v7952 = vadd.f32 %v7440, 1.0
        %v7953 = vadd.f32 %v7441, 1.0
        %v7954 = vadd.f32 %v7442, 1.0
        %v7955 = vadd.f32 %v7443, 1.0
        %v7956 = vadd.f32 %v7444, 1.0
        %v7957 = vadd.f32 %v7445, 1.0
        %v7958 = vadd.f32 %v7446, 1.0
        %v7959 = vadd.f32 %v7447, 1.0
        %v7960 = vadd.f32 %v7448, 1.0
        %v7961 = vadd.f32 %v7449, 1.0
        %v7962 = vadd.f32 %v7450, 1.0
        %v7963 = vadd.f32 %v7451, 1.0
        %v7964 = vadd.f32 %v7452, 1.0
        %v7965 = vadd.f32 %v7453, 1.0
        %v7966 = vadd.f32 %v7454, 1.0
        %v7967 = vadd.f32 %v7455, 1.0
        %v7968 = vadd.f32 %v7456, 1.0
        %v7969 = vadd.f32 %v7457, 1.0
        %v7970 = vadd.f32 %v7458, 1.0
        %v7971 = vadd.f32 %v7459, 1.0
        %v7972 = vadd.f32 %v7460, 1.0
        %v7973 = vadd.f32 %v7461, 1.0
        %v7974 = vadd.f32 %v7462, 1.0
        %v7975 = vadd.f32 %v7463, 1.0
        %v7976 = vadd.f32 %v7464, 1.0
        %v7977 = vadd.f32 %v7465, 1.0
        %v7978 = vadd.f32 %v7466, 1.0
        %v7979 = vadd.f32 %v7467, 1.0
        %v7980 = vadd.f32 %v7468, 1.0
        %v7981 = vadd.f32 %v7469, 1.0
        %v7982 = vadd.f32 %v7470, 1.0
        %v7983 = vadd.f32 %v7471, 1.0
        %v7984 = vadd.f32 %v7472, 1.0
        %v7985 = vmul.f32 %v3889, %v7473
        %v7986 = vmul.f32 %v3890, %v7474
        %v7987 = vmul.f32 %v3891, %v7475
        %v7988 = vmul.f32 %v3892, %v7476
        %v7989 = vmul.f32 %v3893, %v7477
        %v7990 = vmul.f32 %v3894, %v7478
        %v7991 = vmul.f32 %v3895, %v7479
        %v7992 = vmul.f32 %v3896, %v7480
        %v7993 = vmul.f32 %v3897, %v7481
        %v7994 = vmul.f32 %v3898, %v7482
        %v7995 = vmul.f32 %v3899, %v7483
        %v7996 = vmul.f32 %v3900, %v7484
        %v7997 = vmul.f32 %v3901, %v7485
        %v7998 = vmul.f32 %v3902, %v7486
        %v7999 = vmul.f32 %v3903, %v7487
        %v8000 = vmul.f32 %v3904, %v7488
        %v8001 = vmul.f32 %v3905, %v7489
        %v8002 = vmul.f32 %v3906, %v7490
        %v8003 = vmul.f32 %v3907, %v7491
        %v8004 = vmul.f32 %v3908, %v7492
        %v8005 = vmul.f32 %v3909, %v7493
        %v8006 = vmul.f32 %v3910, %v7494
        %v8007 = vmul.f32 %v3911, %v7495
        %v8008 = vmul.f32 %v3912, %v7496
        %v8009 = vmul.f32 %v3913, %v7497
        %v8010 = vmul.f32 %v3914, %v7498
        %v8011 = vmul.f32 %v3915, %v7499
        %v8012 = vmul.f32 %v3916, %v7500
        %v8013 = vmul.f32 %v3917, %v7501
        %v8014 = vmul.f32 %v3918, %v7502
        %v8015 = vmul.f32 %v3919, %v7503
        %v8016 = vmul.f32 %v3920, %v7504
        %v8017 = vmul.f32 %v3921, %v7505
        %v8018 = vmul.f32 %v3922, %v7506
        %v8019 = vmul.f32 %v3923, %v7507
        %v8020 = vmul.f32 %v3924, %v7508
        %v8021 = vmul.f32 %v3925, %v7509
        %v8022 = vmul.f32 %v3926, %v7510
        %v8023 = vmul.f32 %v3927, %v7511
        %v8024 = vmul.f32 %v3928, %v7512
        %v8025 = vmul.f32 %v3929, %v7513
        %v8026 = vmul.f32 %v3930, %v7514
        %v8027 = vmul.f32 %v3931, %v7515
        %v8028 = vmul.f32 %v3932, %v7516
        %v8029 = vmul.f32 %v3933, %v7517
        %v8030 = vmul.f32 %v3934, %v7518
        %v8031 = vmul.f32 %v3935, %v7519
        %v8032 = vmul.f32 %v3936, %v7520
        %v8033 = vmul.f32 %v3937, %v7521
        %v8034 = vmul.f32 %v3938, %v7522
        %v8035 = vmul.f32 %v3939, %v7523
        %v8036 = vmul.f32 %v3940, %v7524
        %v8037 = vmul.f32 %v3941, %v7525
        %v8038 = vmul.f32 %v3942, %v7526
        %v8039 = vmul.f32 %v3943, %v7527
        %v8040 = vmul.f32 %v3944, %v7528
        %v8041 = vmul.f32 %v3945, %v7529
        %v8042 = vmul.f32 %v3946, %v7530
        %v8043 = vmul.f32 %v3947, %v7531
        %v8044 = vmul.f32 %v3948, %v7532
        %v8045 = vmul.f32 %v3949, %v7533
        %v8046 = vmul.f32 %v3950, %v7534
        %v8047 = vmul.f32 %v3951, %v7535
        %v8048 = vmul.f32 %v3952, %v7536
        %v8049 = vmul.f32 %v3953, %v7537
        %v8050 = vmul.f32 %v3954, %v7538
        %v8051 = vmul.f32 %v3955, %v7539
        %v8052 = vmul.f32 %v3956, %v7540
        %v8053 = vmul.f32 %v3957, %v7541
        %v8054 = vmul.f32 %v3958, %v7542
        %v8055 = vmul.f32 %v3959, %v7543
        %v8056 = vmul.f32 %v3960, %v7544
        %v8057 = vmul.f32 %v3961, %v7545
        %v8058 = vmul.f32 %v3962, %v7546
        %v8059 = vmul.f32 %v3963, %v7547
        %v8060 = vmul.f32 %v3964, %v7548
        %v8061 = vmul.f32 %v3965, %v7549
        %v8062 = vmul.f32 %v3966, %v7550
        %v8063 = vmul.f32 %v3967, %v7551
        %v8064 = vmul.f32 %v3968, %v7552
        %v8065 = vmul.f32 %v3969, %v7553
        %v8066 = vmul.f32 %v3970, %v7554
        %v8067 = vmul.f32 %v3971, %v7555
        %v8068 = vmul.f32 %v3972, %v7556
        %v8069 = vmul.f32 %v3973, %v7557
        %v8070 = vmul.f32 %v3974, %v7558
        %v8071 = vmul.f32 %v3975, %v7559
        %v8072 = vmul.f32 %v3976, %v7560
        %v8073 = vmul.f32 %v3977, %v7561
        %v8074 = vmul.f32 %v3978, %v7562
        %v8075 = vmul.f32 %v3979, %v7563
        %v8076 = vmul.f32 %v3980, %v7564
        %v8077 = vmul.f32 %v3981, %v7565
        %v8078 = vmul.f32 %v3982, %v7566
        %v8079 = vmul.f32 %v3983, %v7567
        %v8080 = vmul.f32 %v3984, %v7568
        %v8081 = vmul.f32 %v3985, %v7569
        %v8082 = vmul.f32 %v3986, %v7570
        %v8083 = vmul.f32 %v3987, %v7571
        %v8084 = vmul.f32 %v3988, %v7572
        %v8085 = vmul.f32 %v3989, %v7573
        %v8086 = vmul.f32 %v3990, %v7574
        %v8087 = vmul.f32 %v3991, %v7575
        %v8088 = vmul.f32 %v3992, %v7576
        %v8089 = vmul.f32 %v3993, %v7577
        %v8090 = vmul.f32 %v3994, %v7578
        %v8091 = vmul.f32 %v3995, %v7579
        %v8092 = vmul.f32 %v3996, %v7580
        %v8093 = vmul.f32 %v3997, %v7581
        %v8094 = vmul.f32 %v3998, %v7582
        %v8095 = vmul.f32 %v3999, %v7583
        %v8096 = vmul.f32 %v4000, %v7584
        %v8097 = vmul.f32 %v4001, %v7585
        %v8098 = vmul.f32 %v4002, %v7586
        %v8099 = vmul.f32 %v4003, %v7587
        %v8100 = vmul.f32 %v4004, %v7588
        %v8101 = vmul.f32 %v4005, %v7589
        %v8102 = vmul.f32 %v4006, %v7590
        %v8103 = vmul.f32 %v4007, %v7591
        %v8104 = vmul.f32 %v4008, %v7592
        %v8105 = vmul.f32 %v4009, %v7593
        %v8106 = vmul.f32 %v4010, %v7594
        %v8107 = vmul.f32 %v4011, %v7595
        %v8108 = vmul.f32 %v4012, %v7596
        %v8109 = vmul.f32 %v4013, %v7597
        %v8110 = vmul.f32 %v4014, %v7598
        %v8111 = vmul.f32 %v4015, %v7599
        %v8112 = vmul.f32 %v4016, %v7600
        %v8113 = vmul.f32 %v4017, %v7601
        %v8114 = vmul.f32 %v4018, %v7602
        %v8115 = vmul.f32 %v4019, %v7603
        %v8116 = vmul.f32 %v4020, %v7604
        %v8117 = vmul.f32 %v4021, %v7605
        %v8118 = vmul.f32 %v4022, %v7606
        %v8119 = vmul.f32 %v4023, %v7607
        %v8120 = vmul.f32 %v4024, %v7608
        %v8121 = vmul.f32 %v4025, %v7609
        %v8122 = vmul.f32 %v4026, %v7610
        %v8123 = vmul.f32 %v4027, %v7611
        %v8124 = vmul.f32 %v4028, %v7612
        %v8125 = vmul.f32 %v4029, %v7613
        %v8126 = vmul.f32 %v4030, %v7614
        %v8127 = vmul.f32 %v4031, %v7615
        %v8128 = vmul.f32 %v4032, %v7616
        %v8129 = vmul.f32 %v4033, %v7617
        %v8130 = vmul.f32 %v4034, %v7618
        %v8131 = vmul.f32 %v4035, %v7619
        %v8132 = vmul.f32 %v4036, %v7620
        %v8133 = vmul.f32 %v4037, %v7621
        %v8134 = vmul.f32 %v4038, %v7622
        %v8135 = vmul.f32 %v4039, %v7623
        %v8136 = vmul.f32 %v4040, %v7624
        %v8137 = vmul.f32 %v4041, %v7625
        %v8138 = vmul.f32 %v4042, %v7626
        %v8139 = vmul.f32 %v4043, %v7627
        %v8140 = vmul.f32 %v4044, %v7628
        %v8141 = vmul.f32 %v4045, %v7629
        %v8142 = vmul.f32 %v4046, %v7630
        %v8143 = vmul.f32 %v4047, %v7631
        %v8144 = vmul.f32 %v4048, %v7632
        %v8145 = vmul.f32 %v4049, %v7633
        %v8146 = vmul.f32 %v4050, %v7634
        %v8147 = vmul.f32 %v4051, %v7635
        %v8148 = vmul.f32 %v4052, %v7636
        %v8149 = vmul.f32 %v4053, %v7637
        %v8150 = vmul.f32 %v4054, %v7638
        %v8151 = vmul.f32 %v4055, %v7639
        %v8152 = vmul.f32 %v4056, %v7640
        %v8153 = vmul.f32 %v4057, %v7641
        %v8154 = vmul.f32 %v4058, %v7642
        %v8155 = vmul.f32 %v4059, %v7643
        %v8156 = vmul.f32 %v4060, %v7644
        %v8157 = vmul.f32 %v4061, %v7645
        %v8158 = vmul.f32 %v4062, %v7646
        %v8159 = vmul.f32 %v4063, %v7647
        %v8160 = vmul.f32 %v4064, %v7648
        %v8161 = vmul.f32 %v4065, %v7649
        %v8162 = vmul.f32 %v4066, %v7650
        %v8163 = vmul.f32 %v4067, %v7651
        %v8164 = vmul.f32 %v4068, %v7652
        %v8165 = vmul.f32 %v4069, %v7653
        %v8166 = vmul.f32 %v4070, %v7654
        %v8167 = vmul.f32 %v4071, %v7655
        %v8168 = vmul.f32 %v4072, %v7656
        %v8169 = vmul.f32 %v4073, %v7657
        %v8170 = vmul.f32 %v4074, %v7658
        %v8171 = vmul.f32 %v4075, %v7659
        %v8172 = vmul.f32 %v4076, %v7660
        %v8173 = vmul.f32 %v4077, %v7661
        %v8174 = vmul.f32 %v4078, %v7662
        %v8175 = vmul.f32 %v4079, %v7663
        %v8176 = vmul.f32 %v4080, %v7664
        %v8177 = vmul.f32 %v4081, %v7665
        %v8178 = vmul.f32 %v4082, %v7666
        %v8179 = vmul.f32 %v4083, %v7667
        %v8180 = vmul.f32 %v4084, %v7668
        %v8181 = vmul.f32 %v4085, %v7669
        %v8182 = vmul.f32 %v4086, %v7670
        %v8183 = vmul.f32 %v4087, %v7671
        %v8184 = vmul.f32 %v4088, %v7672
        %v8185 = vmul.f32 %v4089, %v7673
        %v8186 = vmul.f32 %v4090, %v7674
        %v8187 = vmul.f32 %v4091, %v7675
        %v8188 = vmul.f32 %v4092, %v7676
        %v8189 = vmul.f32 %v4093, %v7677
        %v8190 = vmul.f32 %v4094, %v7678
        %v8191 = vmul.f32 %v4095, %v7679
        %v8192 = vmul.f32 %v4096, %v7680
        %v8193 = vmul.f32 %v4097, %v7681
        %v8194 = vmul.f32 %v4098, %v7682
        %v8195 = vmul.f32 %v4099, %v7683
        %v8196 = vmul.f32 %v4100, %v7684
        %v8197 = vmul.f32 %v4101, %v7685
        %v8198 = vmul.f32 %v4102, %v7686
        %v8199 = vmul.f32 %v4103, %v7687
        %v8200 = vmul.f32 %v4104, %v7688
        %v8201 = vmul.f32 %v4105, %v7689
        %v8202 = vmul.f32 %v4106, %v7690
        %v8203 = vmul.f32 %v4107, %v7691
        %v8204 = vmul.f32 %v4108, %v7692
        %v8205 = vmul.f32 %v4109, %v7693
        %v8206 = vmul.f32 %v4110, %v7694
        %v8207 = vmul.f32 %v4111, %v7695
        %v8208 = vmul.f32 %v4112, %v7696
        %v8209 = vmul.f32 %v4113, %v7697
        %v8210 = vmul.f32 %v4114, %v7698
        %v8211 = vmul.f32 %v4115, %v7699
        %v8212 = vmul.f32 %v4116, %v7700
        %v8213 = vmul.f32 %v4117, %v7701
        %v8214 = vmul.f32 %v4118, %v7702
        %v8215 = vmul.f32 %v4119, %v7703
        %v8216 = vmul.f32 %v4120, %v7704
        %v8217 = vmul.f32 %v4121, %v7705
        %v8218 = vmul.f32 %v4122, %v7706
        %v8219 = vmul.f32 %v4123, %v7707
        %v8220 = vmul.f32 %v4124, %v7708
        %v8221 = vmul.f32 %v4125, %v7709
        %v8222 = vmul.f32 %v4126, %v7710
        %v8223 = vmul.f32 %v4127, %v7711
        %v8224 = vmul.f32 %v4128, %v7712
        %v8225 = vmul.f32 %v4129, %v7713
        %v8226 = vmul.f32 %v4130, %v7714
        %v8227 = vmul.f32 %v4131, %v7715
        %v8228 = vmul.f32 %v4132, %v7716
        %v8229 = vmul.f32 %v4133, %v7717
        %v8230 = vmul.f32 %v4134, %v7718
        %v8231 = vmul.f32 %v4135, %v7719
        %v8232 = vmul.f32 %v4136, %v7720
        %v8233 = vmul.f32 %v4137, %v7721
        %v8234 = vmul.f32 %v4138, %v7722
        %v8235 = vmul.f32 %v4139, %v7723
        %v8236 = vmul.f32 %v4140, %v7724
        %v8237 = vmul.f32 %v4141, %v7725
        %v8238 = vmul.f32 %v4142, %v7726
        %v8239 = vmul.f32 %v4143, %v7727
        %v8240 = vmul.f32 %v4144, %v7728
        %v8241 = vmul.f32 %v4145, %v7729
        %v8242 = vmul.f32 %v4146, %v7730
        %v8243 = vmul.f32 %v4147, %v7731
        %v8244 = vmul.f32 %v4148, %v7732
        %v8245 = vmul.f32 %v4149, %v7733
        %v8246 = vmul.f32 %v4150, %v7734
        %v8247 = vmul.f32 %v4151, %v7735
        %v8248 = vmul.f32 %v4152, %v7736
        %v8249 = vmul.f32 %v4153, %v7737
        %v8250 = vmul.f32 %v4154, %v7738
        %v8251 = vmul.f32 %v4155, %v7739
        %v8252 = vmul.f32 %v4156, %v7740
        %v8253 = vmul.f32 %v4157, %v7741
        %v8254 = vmul.f32 %v4158, %v7742
        %v8255 = vmul.f32 %v4159, %v7743
        %v8256 = vmul.f32 %v4160, %v7744
        %v8257 = vmul.f32 %v4161, %v7745
        %v8258 = vmul.f32 %v4162, %v7746
        %v8259 = vmul.f32 %v4163, %v7747
        %v8260 = vmul.f32 %v4164, %v7748
        %v8261 = vmul.f32 %v4165, %v7749
        %v8262 = vmul.f32 %v4166, %v7750
        %v8263 = vmul.f32 %v4167, %v7751
        %v8264 = vmul.f32 %v4168, %v7752
        %v8265 = vmul.f32 %v4169, %v7753
        %v8266 = vmul.f32 %v4170, %v7754
        %v8267 = vmul.f32 %v4171, %v7755
        %v8268 = vmul.f32 %v4172, %v7756
        %v8269 = vmul.f32 %v4173, %v7757
        %v8270 = vmul.f32 %v4174, %v7758
        %v8271 = vmul.f32 %v4175, %v7759
        %v8272 = vmul.f32 %v4176, %v7760
        %v8273 = vmul.f32 %v4177, %v7761
        %v8274 = vmul.f32 %v4178, %v7762
        %v8275 = vmul.f32 %v4179, %v7763
        %v8276 = vmul.f32 %v4180, %v7764
        %v8277 = vmul.f32 %v4181, %v7765
        %v8278 = vmul.f32 %v4182, %v7766
        %v8279 = vmul.f32 %v4183, %v7767
        %v8280 = vmul.f32 %v4184, %v7768
        %v8281 = vmul.f32 %v4185, %v7769
        %v8282 = vmul.f32 %v4186, %v7770
        %v8283 = vmul.f32 %v4187, %v7771
        %v8284 = vmul.f32 %v4188, %v7772
        %v8285 = vmul.f32 %v4189, %v7773
        %v8286 = vmul.f32 %v4190, %v7774
        %v8287 = vmul.f32 %v4191, %v7775
        %v8288 = vmul.f32 %v4192, %v7776
        %v8289 = vmul.f32 %v4193, %v7777
        %v8290 = vmul.f32 %v4194, %v7778
        %v8291 = vmul.f32 %v4195, %v7779
        %v8292 = vmul.f32 %v4196, %v7780
        %v8293 = vmul.f32 %v4197, %v7781
        %v8294 = vmul.f32 %v4198, %v7782
        %v8295 = vmul.f32 %v4199, %v7783
        %v8296 = vmul.f32 %v4200, %v7784
        %v8297 = vmul.f32 %v4201, %v7785
        %v8298 = vmul.f32 %v4202, %v7786
        %v8299 = vmul.f32 %v4203, %v7787
        %v8300 = vmul.f32 %v4204, %v7788
        %v8301 = vmul.f32 %v4205, %v7789
        %v8302 = vmul.f32 %v4206, %v7790
        %v8303 = vmul.f32 %v4207, %v7791
        %v8304 = vmul.f32 %v4208, %v7792
        %v8305 = vmul.f32 %v4209, %v7793
        %v8306 = vmul.f32 %v4210, %v7794
        %v8307 = vmul.f32 %v4211, %v7795
        %v8308 = vmul.f32 %v4212, %v7796
        %v8309 = vmul.f32 %v4213, %v7797
        %v8310 = vmul.f32 %v4214, %v7798
        %v8311 = vmul.f32 %v4215, %v7799
        %v8312 = vmul.f32 %v4216, %v7800
        %v8313 = vmul.f32 %v4217, %v7801
        %v8314 = vmul.f32 %v4218, %v7802
        %v8315 = vmul.f32 %v4219, %v7803
        %v8316 = vmul.f32 %v4220, %v7804
        %v8317 = vmul.f32 %v4221, %v7805
        %v8318 = vmul.f32 %v4222, %v7806
        %v8319 = vmul.f32 %v4223, %v7807
        %v8320 = vmul.f32 %v4224, %v7808
        %v8321 = vmul.f32 %v4225, %v7809
        %v8322 = vmul.f32 %v4226, %v7810
        %v8323 = vmul.f32 %v4227, %v7811
        %v8324 = vmul.f32 %v4228, %v7812
        %v8325 = vmul.f32 %v4229, %v7813
        %v8326 = vmul.f32 %v4230, %v7814
        %v8327 = vmul.f32 %v4231, %v7815
        %v8328 = vmul.f32 %v4232, %v7816
        %v8329 = vmul.f32 %v4233, %v7817
        %v8330 = vmul.f32 %v4234, %v7818
        %v8331 = vmul.f32 %v4235, %v7819
        %v8332 = vmul.f32 %v4236, %v7820
        %v8333 = vmul.f32 %v4237, %v7821
        %v8334 = vmul.f32 %v4238, %v7822
        %v8335 = vmul.f32 %v4239, %v7823
        %v8336 = vmul.f32 %v4240, %v7824
        %v8337 = vmul.f32 %v4241, %v7825
        %v8338 = vmul.f32 %v4242, %v7826
        %v8339 = vmul.f32 %v4243, %v7827
        %v8340 = vmul.f32 %v4244, %v7828
        %v8341 = vmul.f32 %v4245, %v7829
        %v8342 = vmul.f32 %v4246, %v7830
        %v8343 = vmul.f32 %v4247, %v7831
        %v8344 = vmul.f32 %v4248, %v7832
        %v8345 = vmul.f32 %v4249, %v7833
        %v8346 = vmul.f32 %v4250, %v7834
        %v8347 = vmul.f32 %v4251, %v7835
        %v8348 = vmul.f32 %v4252, %v7836
        %v8349 = vmul.f32 %v4253, %v7837
        %v8350 = vmul.f32 %v4254, %v7838
        %v8351 = vmul.f32 %v4255, %v7839
        %v8352 = vmul.f32 %v4256, %v7840
        %v8353 = vmul.f32 %v4257, %v7841
        %v8354 = vmul.f32 %v4258, %v7842
        %v8355 = vmul.f32 %v4259, %v7843
        %v8356 = vmul.f32 %v4260, %v7844
        %v8357 = vmul.f32 %v4261, %v7845
        %v8358 = vmul.f32 %v4262, %v7846
        %v8359 = vmul.f32 %v4263, %v7847
        %v8360 = vmul.f32 %v4264, %v7848
        %v8361 = vmul.f32 %v4265, %v7849
        %v8362 = vmul.f32 %v4266, %v7850
        %v8363 = vmul.f32 %v4267, %v7851
        %v8364 = vmul.f32 %v4268, %v7852
        %v8365 = vmul.f32 %v4269, %v7853
        %v8366 = vmul.f32 %v4270, %v7854
        %v8367 = vmul.f32 %v4271, %v7855
        %v8368 = vmul.f32 %v4272, %v7856
        %v8369 = vmul.f32 %v4273, %v7857
        %v8370 = vmul.f32 %v4274, %v7858
        %v8371 = vmul.f32 %v4275, %v7859
        %v8372 = vmul.f32 %v4276, %v7860
        %v8373 = vmul.f32 %v4277, %v7861
        %v8374 = vmul.f32 %v4278, %v7862
        %v8375 = vmul.f32 %v4279, %v7863
        %v8376 = vmul.f32 %v4280, %v7864
        %v8377 = vmul.f32 %v4281, %v7865
        %v8378 = vmul.f32 %v4282, %v7866
        %v8379 = vmul.f32 %v4283, %v7867
        %v8380 = vmul.f32 %v4284, %v7868
        %v8381 = vmul.f32 %v4285, %v7869
        %v8382 = vmul.f32 %v4286, %v7870
        %v8383 = vmul.f32 %v4287, %v7871
        %v8384 = vmul.f32 %v4288, %v7872
        %v8385 = vmul.f32 %v4289, %v7873
        %v8386 = vmul.f32 %v4290, %v7874
        %v8387 = vmul.f32 %v4291, %v7875
        %v8388 = vmul.f32 %v4292, %v7876
        %v8389 = vmul.f32 %v4293, %v7877
        %v8390 = vmul.f32 %v4294, %v7878
        %v8391 = vmul.f32 %v4295, %v7879
        %v8392 = vmul.f32 %v4296, %v7880
        %v8393 = vmul.f32 %v4297, %v7881
        %v8394 = vmul.f32 %v4298, %v7882
        %v8395 = vmul.f32 %v4299, %v7883
        %v8396 = vmul.f32 %v4300, %v7884
        %v8397 = vmul.f32 %v4301, %v7885
        %v8398 = vmul.f32 %v4302, %v7886
        %v8399 = vmul.f32 %v4303, %v7887
        %v8400 = vmul.f32 %v4304, %v7888
        %v8401 = vmul.f32 %v4305, %v7889
        %v8402 = vmul.f32 %v4306, %v7890
        %v8403 = vmul.f32 %v4307, %v7891
        %v8404 = vmul.f32 %v4308, %v7892
        %v8405 = vmul.f32 %v4309, %v7893
        %v8406 = vmul.f32 %v4310, %v7894
        %v8407 = vmul.f32 %v4311, %v7895
        %v8408 = vmul.f32 %v4312, %v7896
        %v8409 = vmul.f32 %v4313, %v7897
        %v8410 = vmul.f32 %v4314, %v7898
        %v8411 = vmul.f32 %v4315, %v7899
        %v8412 = vmul.f32 %v4316, %v7900
        %v8413 = vmul.f32 %v4317, %v7901
        %v8414 = vmul.f32 %v4318, %v7902
        %v8415 = vmul.f32 %v4319, %v7903
        %v8416 = vmul.f32 %v4320, %v7904
        %v8417 = vmul.f32 %v4321, %v7905
        %v8418 = vmul.f32 %v4322, %v7906
        %v8419 = vmul.f32 %v4323, %v7907
        %v8420 = vmul.f32 %v4324, %v7908
        %v8421 = vmul.f32 %v4325, %v7909
        %v8422 = vmul.f32 %v4326, %v7910
        %v8423 = vmul.f32 %v4327, %v7911
        %v8424 = vmul.f32 %v4328, %v7912
        %v8425 = vmul.f32 %v4329, %v7913
        %v8426 = vmul.f32 %v4330, %v7914
        %v8427 = vmul.f32 %v4331, %v7915
        %v8428 = vmul.f32 %v4332, %v7916
        %v8429 = vmul.f32 %v4333, %v7917
        %v8430 = vmul.f32 %v4334, %v7918
        %v8431 = vmul.f32 %v4335, %v7919
        %v8432 = vmul.f32 %v4336, %v7920
        %v8433 = vmul.f32 %v4337, %v7921
        %v8434 = vmul.f32 %v4338, %v7922
        %v8435 = vmul.f32 %v4339, %v7923
        %v8436 = vmul.f32 %v4340, %v7924
        %v8437 = vmul.f32 %v4341, %v7925
        %v8438 = vmul.f32 %v4342, %v7926
        %v8439 = vmul.f32 %v4343, %v7927
        %v8440 = vmul.f32 %v4344, %v7928
        %v8441 = vmul.f32 %v4345, %v7929
        %v8442 = vmul.f32 %v4346, %v7930
        %v8443 = vmul.f32 %v4347, %v7931
        %v8444 = vmul.f32 %v4348, %v7932
        %v8445 = vmul.f32 %v4349, %v7933
        %v8446 = vmul.f32 %v4350, %v7934
        %v8447 = vmul.f32 %v4351, %v7935
        %v8448 = vmul.f32 %v4352, %v7936
        %v8449 = vmul.f32 %v4353, %v7937
        %v8450 = vmul.f32 %v4354, %v7938
        %v8451 = vmul.f32 %v4355, %v7939
        %v8452 = vmul.f32 %v4356, %v7940
        %v8453 = vmul.f32 %v4357, %v7941
        %v8454 = vmul.f32 %v4358, %v7942
        %v8455 = vmul.f32 %v4359, %v7943
        %v8456 = vmul.f32 %v4360, %v7944
        %v8457 = vmul.f32 %v4361, %v7945
        %v8458 = vmul.f32 %v4362, %v7946
        %v8459 = vmul.f32 %v4363, %v7947
        %v8460 = vmul.f32 %v4364, %v7948
        %v8461 = vmul.f32 %v4365, %v7949
        %v8462 = vmul.f32 %v4366, %v7950
        %v8463 = vmul.f32 %v4367, %v7951
        %v8464 = vmul.f32 %v4368, %v7952
        %v8465 = vmul.f32 %v4369, %v7953
        %v8466 = vmul.f32 %v4370, %v7954
        %v8467 = vmul.f32 %v4371, %v7955
        %v8468 = vmul.f32 %v4372, %v7956
        %v8469 = vmul.f32 %v4373, %v7957
        %v8470 = vmul.f32 %v4374, %v7958
        %v8471 = vmul.f32 %v4375, %v7959
        %v8472 = vmul.f32 %v4376, %v7960
        %v8473 = vmul.f32 %v4377, %v7961
        %v8474 = vmul.f32 %v4378, %v7962
        %v8475 = vmul.f32 %v4379, %v7963
        %v8476 = vmul.f32 %v4380, %v7964
        %v8477 = vmul.f32 %v4381, %v7965
        %v8478 = vmul.f32 %v4382, %v7966
        %v8479 = vmul.f32 %v4383, %v7967
        %v8480 = vmul.f32 %v4384, %v7968
        %v8481 = vmul.f32 %v4385, %v7969
        %v8482 = vmul.f32 %v4386, %v7970
        %v8483 = vmul.f32 %v4387, %v7971
        %v8484 = vmul.f32 %v4388, %v7972
        %v8485 = vmul.f32 %v4389, %v7973
        %v8486 = vmul.f32 %v4390, %v7974
        %v8487 = vmul.f32 %v4391, %v7975
        %v8488 = vmul.f32 %v4392, %v7976
        %v8489 = vmul.f32 %v4393, %v7977
        %v8490 = vmul.f32 %v4394, %v7978
        %v8491 = vmul.f32 %v4395, %v7979
        %v8492 = vmul.f32 %v4396, %v7980
        %v8493 = vmul.f32 %v4397, %v7981
        %v8494 = vmul.f32 %v4398, %v7982
        %v8495 = vmul.f32 %v4399, %v7983
        %v8496 = vmul.f32 %v4400, %v7984
        %s8497 = smul.u32 %s23, 4096
        %s8498 = sshra.s32 %s8497, 7
        %s8499 = sand.u32 %s8497, 127
        %s8500 = smul.addr %s8498, 8
        %s8501 = scalar_lea.vmem %s2, %s8500
        %v8502 = vld [vmem:[%s8501] sm:$0xff]
        %v8503 = vld [vmem:[%s8501 + $0x8] sm:$0xff]
        %v8504 = vld [vmem:[%s8501 + $0x10] sm:$0xff]
        %v8505 = vld [vmem:[%s8501 + $0x18] sm:$0xff]
        %v8506 = vld [vmem:[%s8501 + $0x20] sm:$0xff]
        %v8507 = vld [vmem:[%s8501 + $0x28] sm:$0xff]
        %v8508 = vld [vmem:[%s8501 + $0x30] sm:$0xff]
        %v8509 = vld [vmem:[%s8501 + $0x38] sm:$0xff]
        %v8510 = vld [vmem:[%s8501 + $0x40] sm:$0xff]
        %v8511 = vld [vmem:[%s8501 + $0x48] sm:$0xff]
        %v8512 = vld [vmem:[%s8501 + $0x50] sm:$0xff]
        %v8513 = vld [vmem:[%s8501 + $0x58] sm:$0xff]
        %v8514 = vld [vmem:[%s8501 + $0x60] sm:$0xff]
        %v8515 = vld [vmem:[%s8501 + $0x68] sm:$0xff]
        %v8516 = vld [vmem:[%s8501 + $0x70] sm:$0xff]
        %v8517 = vld [vmem:[%s8501 + $0x78] sm:$0xff]
        %v8518 = vld [vmem:[%s8501 + $0x80] sm:$0xff]
        %v8519 = vld [vmem:[%s8501 + $0x88] sm:$0xff]
        %v8520 = vld [vmem:[%s8501 + $0x90] sm:$0xff]
        %v8521 = vld [vmem:[%s8501 + $0x98] sm:$0xff]
        %v8522 = vld [vmem:[%s8501 + $0xa0] sm:$0xff]
        %v8523 = vld [vmem:[%s8501 + $0xa8] sm:$0xff]
        %v8524 = vld [vmem:[%s8501 + $0xb0] sm:$0xff]
        %v8525 = vld [vmem:[%s8501 + $0xb8] sm:$0xff]
        %v8526 = vld [vmem:[%s8501 + $0xc0] sm:$0xff]
        %v8527 = vld [vmem:[%s8501 + $0xc8] sm:$0xff]
        %v8528 = vld [vmem:[%s8501 + $0xd0] sm:$0xff]
        %v8529 = vld [vmem:[%s8501 + $0xd8] sm:$0xff]
        %v8530 = vld [vmem:[%s8501 + $0xe0] sm:$0xff]
        %v8531 = vld [vmem:[%s8501 + $0xe8] sm:$0xff]
        %v8532 = vld [vmem:[%s8501 + $0xf0] sm:$0xff]
        %v8533 = vld [vmem:[%s8501 + $0xf8] sm:$0xff]
        %v8534 = vld [vmem:[%s285] sm:$0xff]
        %8535 = vmatprep.subr.mxu0 0.0
        %8536 = vmatpush1.msra.mxu0 %v7985
        %8537 = vmatprep.subr.mxu0 0.0
        %8538 = vmatpush1.msra.mxu0 %v7986
        %8539 = vmatprep.subr.mxu0 0.0
        %8540 = vmatpush1.msra.mxu0 %v7987
        %8541 = vmatprep.subr.mxu0 0.0
        %8542 = vmatpush1.msra.mxu0 %v7988
        %8543 = vmatprep.subr.mxu0 0.0
        %8544 = vmatpush1.msra.mxu0 %v7989
        %8545 = vmatprep.subr.mxu0 0.0
        %8546 = vmatpush1.msra.mxu0 %v7990
        %8547 = vmatprep.subr.mxu0 0.0
        %8548 = vmatpush1.msra.mxu0 %v7991
        %8549 = vmatprep.subr.mxu0 0.0
        %8550 = vmatpush1.msra.mxu0 %v7992
        %8551 = vmatprep.subr.mxu0 0.0
        %8552 = vmatpush1.msra.mxu0 %v7993
        %8553 = vmatprep.subr.mxu0 0.0
        %8554 = vmatpush1.msra.mxu0 %v7994
        %8555 = vmatprep.subr.mxu0 0.0
        %8556 = vmatpush1.msra.mxu0 %v7995
        %8557 = vmatprep.subr.mxu0 0.0
        %8558 = vmatpush1.msra.mxu0 %v7996
        %8559 = vmatprep.subr.mxu0 0.0
        %8560 = vmatpush1.msra.mxu0 %v7997
        %8561 = vmatprep.subr.mxu0 0.0
        %8562 = vmatpush1.msra.mxu0 %v7998
        %8563 = vmatprep.subr.mxu0 0.0
        %8564 = vmatpush1.msra.mxu0 %v7999
        %8565 = vmatprep.subr.mxu0 0.0
        %8566 = vmatpush1.msra.mxu0 %v8000
        %8567 = vmatprep.subr.mxu0 0.0
        %8568 = vmatpush1.msra.mxu0 %v8001
        %8569 = vmatprep.subr.mxu0 0.0
        %8570 = vmatpush1.msra.mxu0 %v8002
        %8571 = vmatprep.subr.mxu0 0.0
        %8572 = vmatpush1.msra.mxu0 %v8003
        %8573 = vmatprep.subr.mxu0 0.0
        %8574 = vmatpush1.msra.mxu0 %v8004
        %8575 = vmatprep.subr.mxu0 0.0
        %8576 = vmatpush1.msra.mxu0 %v8005
        %8577 = vmatprep.subr.mxu0 0.0
        %8578 = vmatpush1.msra.mxu0 %v8006
        %8579 = vmatprep.subr.mxu0 0.0
        %8580 = vmatpush1.msra.mxu0 %v8007
        %8581 = vmatprep.subr.mxu0 0.0
        %8582 = vmatpush1.msra.mxu0 %v8008
        %8583 = vmatprep.subr.mxu0 0.0
        %8584 = vmatpush1.msra.mxu0 %v8009
        %8585 = vmatprep.subr.mxu0 0.0
        %8586 = vmatpush1.msra.mxu0 %v8010
        %8587 = vmatprep.subr.mxu0 0.0
        %8588 = vmatpush1.msra.mxu0 %v8011
        %8589 = vmatprep.subr.mxu0 0.0
        %8590 = vmatpush1.msra.mxu0 %v8012
        %8591 = vmatprep.subr.mxu0 0.0
        %8592 = vmatpush1.msra.mxu0 %v8013
        %8593 = vmatprep.subr.mxu0 0.0
        %8594 = vmatpush1.msra.mxu0 %v8014
        %8595 = vmatprep.subr.mxu0 0.0
        %8596 = vmatpush1.msra.mxu0 %v8015
        %8597 = vmatprep.subr.mxu0 0.0
        %8598 = vmatpush1.msra.mxu0 %v8016
        %8599 = vmatprep.mubr.f32.mxu0 %v8503
        %8600 = vmatmul.mubr.f32.gmra.mrb[0].mxu0 %v8502
        %v8601 = vpop.f32.mrb[0].mxu0
        %v8602 = vadd.f32 0.0, %v8601
        %v8603 = vpop.f32.mrb[0].mxu0
        %8604 = vdwg.mxu0
        %8605 = vmatprep.subr.mxu0 0.0
        %8606 = vmatpush1.msra.mxu0 %v8017
        %8607 = vmatprep.subr.mxu0 0.0
        %8608 = vmatpush1.msra.mxu0 %v8018
        %8609 = vmatprep.subr.mxu0 0.0
        %8610 = vmatpush1.msra.mxu0 %v8019
        %8611 = vmatprep.subr.mxu0 0.0
        %8612 = vmatpush1.msra.mxu0 %v8020
        %8613 = vmatprep.subr.mxu0 0.0
        %8614 = vmatpush1.msra.mxu0 %v8021
        %8615 = vmatprep.subr.mxu0 0.0
        %8616 = vmatpush1.msra.mxu0 %v8022
        %8617 = vmatprep.subr.mxu0 0.0
        %8618 = vmatpush1.msra.mxu0 %v8023
        %8619 = vmatprep.subr.mxu0 0.0
        %8620 = vmatpush1.msra.mxu0 %v8024
        %8621 = vmatprep.subr.mxu0 0.0
        %8622 = vmatpush1.msra.mxu0 %v8025
        %8623 = vmatprep.subr.mxu0 0.0
        %8624 = vmatpush1.msra.mxu0 %v8026
        %8625 = vmatprep.subr.mxu0 0.0
        %8626 = vmatpush1.msra.mxu0 %v8027
        %8627 = vmatprep.subr.mxu0 0.0
        %8628 = vmatpush1.msra.mxu0 %v8028
        %8629 = vmatprep.subr.mxu0 0.0
        %8630 = vmatpush1.msra.mxu0 %v8029
        %8631 = vmatprep.subr.mxu0 0.0
        %8632 = vmatpush1.msra.mxu0 %v8030
        %8633 = vmatprep.subr.mxu0 0.0
        %8634 = vmatpush1.msra.mxu0 %v8031
        %8635 = vmatprep.subr.mxu0 0.0
        %8636 = vmatpush1.msra.mxu0 %v8032
        %8637 = vmatprep.subr.mxu0 0.0
        %8638 = vmatpush1.msra.mxu0 %v8033
        %8639 = vmatprep.subr.mxu0 0.0
        %8640 = vmatpush1.msra.mxu0 %v8034
        %8641 = vmatprep.subr.mxu0 0.0
        %8642 = vmatpush1.msra.mxu0 %v8035
        %8643 = vmatprep.subr.mxu0 0.0
        %8644 = vmatpush1.msra.mxu0 %v8036
        %8645 = vmatprep.subr.mxu0 0.0
        %8646 = vmatpush1.msra.mxu0 %v8037
        %8647 = vmatprep.subr.mxu0 0.0
        %8648 = vmatpush1.msra.mxu0 %v8038
        %8649 = vmatprep.subr.mxu0 0.0
        %8650 = vmatpush1.msra.mxu0 %v8039
        %8651 = vmatprep.subr.mxu0 0.0
        %8652 = vmatpush1.msra.mxu0 %v8040
        %8653 = vmatprep.subr.mxu0 0.0
        %8654 = vmatpush1.msra.mxu0 %v8041
        %8655 = vmatprep.subr.mxu0 0.0
        %8656 = vmatpush1.msra.mxu0 %v8042
        %8657 = vmatprep.subr.mxu0 0.0
        %8658 = vmatpush1.msra.mxu0 %v8043
        %8659 = vmatprep.subr.mxu0 0.0
        %8660 = vmatpush1.msra.mxu0 %v8044
        %8661 = vmatprep.subr.mxu0 0.0
        %8662 = vmatpush1.msra.mxu0 %v8045
        %8663 = vmatprep.subr.mxu0 0.0
        %8664 = vmatpush1.msra.mxu0 %v8046
        %8665 = vmatprep.subr.mxu0 0.0
        %8666 = vmatpush1.msra.mxu0 %v8047
        %8667 = vmatprep.subr.mxu0 0.0
        %8668 = vmatpush1.msra.mxu0 %v8048
        %8669 = vmatprep.mubr.f32.mxu0 %v8505
        %8670 = vmatmul.mubr.f32.gmra.mrb[0].mxu0 %v8504
        %v8671 = vpop.f32.mrb[0].mxu0
        %v8672 = vadd.f32 %v8602, %v8671
        %v8673 = vpop.f32.mrb[0].mxu0
        %8674 = vdwg.mxu0
        %8675 = vmatprep.subr.mxu0 0.0
        %8676 = vmatpush1.msra.mxu0 %v8049
        %8677 = vmatprep.subr.mxu0 0.0
        %8678 = vmatpush1.msra.mxu0 %v8050
        %8679 = vmatprep.subr.mxu0 0.0
        %8680 = vmatpush1.msra.mxu0 %v8051
        %8681 = vmatprep.subr.mxu0 0.0
        %8682 = vmatpush1.msra.mxu0 %v8052
        %8683 = vmatprep.subr.mxu0 0.0
        %8684 = vmatpush1.msra.mxu0 %v8053
        %8685 = vmatprep.subr.mxu0 0.0
        %8686 = vmatpush1.msra.mxu0 %v8054
        %8687 = vmatprep.subr.mxu0 0.0
        %8688 = vmatpush1.msra.mxu0 %v8055
        %8689 = vmatprep.subr.mxu0 0.0
        %8690 = vmatpush1.msra.mxu0 %v8056
        %8691 = vmatprep.subr.mxu0 0.0
        %8692 = vmatpush1.msra.mxu0 %v8057
        %8693 = vmatprep.subr.mxu0 0.0
        %8694 = vmatpush1.msra.mxu0 %v8058
        %8695 = vmatprep.subr.mxu0 0.0
        %8696 = vmatpush1.msra.mxu0 %v8059
        %8697 = vmatprep.subr.mxu0 0.0
        %8698 = vmatpush1.msra.mxu0 %v8060
        %8699 = vmatprep.subr.mxu0 0.0
        %8700 = vmatpush1.msra.mxu0 %v8061
        %8701 = vmatprep.subr.mxu0 0.0
        %8702 = vmatpush1.msra.mxu0 %v8062
        %8703 = vmatprep.subr.mxu0 0.0
        %8704 = vmatpush1.msra.mxu0 %v8063
        %8705 = vmatprep.subr.mxu0 0.0
        %8706 = vmatpush1.msra.mxu0 %v8064
        %8707 = vmatprep.subr.mxu0 0.0
        %8708 = vmatpush1.msra.mxu0 %v8065
        %8709 = vmatprep.subr.mxu0 0.0
        %8710 = vmatpush1.msra.mxu0 %v8066
        %8711 = vmatprep.subr.mxu0 0.0
        %8712 = vmatpush1.msra.mxu0 %v8067
        %8713 = vmatprep.subr.mxu0 0.0
        %8714 = vmatpush1.msra.mxu0 %v8068
        %8715 = vmatprep.subr.mxu0 0.0
        %8716 = vmatpush1.msra.mxu0 %v8069
        %8717 = vmatprep.subr.mxu0 0.0
        %8718 = vmatpush1.msra.mxu0 %v8070
        %8719 = vmatprep.subr.mxu0 0.0
        %8720 = vmatpush1.msra.mxu0 %v8071
        %8721 = vmatprep.subr.mxu0 0.0
        %8722 = vmatpush1.msra.mxu0 %v8072
        %8723 = vmatprep.subr.mxu0 0.0
        %8724 = vmatpush1.msra.mxu0 %v8073
        %8725 = vmatprep.subr.mxu0 0.0
        %8726 = vmatpush1.msra.mxu0 %v8074
        %8727 = vmatprep.subr.mxu0 0.0
        %8728 = vmatpush1.msra.mxu0 %v8075
        %8729 = vmatprep.subr.mxu0 0.0
        %8730 = vmatpush1.msra.mxu0 %v8076
        %8731 = vmatprep.subr.mxu0 0.0
        %8732 = vmatpush1.msra.mxu0 %v8077
        %8733 = vmatprep.subr.mxu0 0.0
        %8734 = vmatpush1.msra.mxu0 %v8078
        %8735 = vmatprep.subr.mxu0 0.0
        %8736 = vmatpush1.msra.mxu0 %v8079
        %8737 = vmatprep.subr.mxu0 0.0
        %8738 = vmatpush1.msra.mxu0 %v8080
        %8739 = vmatprep.mubr.f32.mxu0 %v8507
        %8740 = vmatmul.mubr.f32.gmra.mrb[0].mxu0 %v8506
        %v8741 = vpop.f32.mrb[0].mxu0
        %v8742 = vadd.f32 %v8672, %v8741
        %v8743 = vpop.f32.mrb[0].mxu0
        %8744 = vdwg.mxu0
        %8745 = vmatprep.subr.mxu0 0.0
        %8746 = vmatpush1.msra.mxu0 %v8081
        %8747 = vmatprep.subr.mxu0 0.0
        %8748 = vmatpush1.msra.mxu0 %v8082
        %8749 = vmatprep.subr.mxu0 0.0
        %8750 = vmatpush1.msra.mxu0 %v8083
        %8751 = vmatprep.subr.mxu0 0.0
        %8752 = vmatpush1.msra.mxu0 %v8084
        %8753 = vmatprep.subr.mxu0 0.0
        %8754 = vmatpush1.msra.mxu0 %v8085
        %8755 = vmatprep.subr.mxu0 0.0
        %8756 = vmatpush1.msra.mxu0 %v8086
        %8757 = vmatprep.subr.mxu0 0.0
        %8758 = vmatpush1.msra.mxu0 %v8087
        %8759 = vmatprep.subr.mxu0 0.0
        %8760 = vmatpush1.msra.mxu0 %v8088
        %8761 = vmatprep.subr.mxu0 0.0
        %8762 = vmatpush1.msra.mxu0 %v8089
        %8763 = vmatprep.subr.mxu0 0.0
        %8764 = vmatpush1.msra.mxu0 %v8090
        %8765 = vmatprep.subr.mxu0 0.0
        %8766 = vmatpush1.msra.mxu0 %v8091
        %8767 = vmatprep.subr.mxu0 0.0
        %8768 = vmatpush1.msra.mxu0 %v8092
        %8769 = vmatprep.subr.mxu0 0.0
        %8770 = vmatpush1.msra.mxu0 %v8093
        %8771 = vmatprep.subr.mxu0 0.0
        %8772 = vmatpush1.msra.mxu0 %v8094
        %8773 = vmatprep.subr.mxu0 0.0
        %8774 = vmatpush1.msra.mxu0 %v8095
        %8775 = vmatprep.subr.mxu0 0.0
        %8776 = vmatpush1.msra.mxu0 %v8096
        %8777 = vmatprep.subr.mxu0 0.0
        %8778 = vmatpush1.msra.mxu0 %v8097
        %8779 = vmatprep.subr.mxu0 0.0
        %8780 = vmatpush1.msra.mxu0 %v8098
        %8781 = vmatprep.subr.mxu0 0.0
        %8782 = vmatpush1.msra.mxu0 %v8099
        %8783 = vmatprep.subr.mxu0 0.0
        %8784 = vmatpush1.msra.mxu0 %v8100
        %8785 = vmatprep.subr.mxu0 0.0
        %8786 = vmatpush1.msra.mxu0 %v8101
        %8787 = vmatprep.subr.mxu0 0.0
        %8788 = vmatpush1.msra.mxu0 %v8102
        %8789 = vmatprep.subr.mxu0 0.0
        %8790 = vmatpush1.msra.mxu0 %v8103
        %8791 = vmatprep.subr.mxu0 0.0
        %8792 = vmatpush1.msra.mxu0 %v8104
        %8793 = vmatprep.subr.mxu0 0.0
        %8794 = vmatpush1.msra.mxu0 %v8105
        %8795 = vmatprep.subr.mxu0 0.0
        %8796 = vmatpush1.msra.mxu0 %v8106
        %8797 = vmatprep.subr.mxu0 0.0
        %8798 = vmatpush1.msra.mxu0 %v8107
        %8799 = vmatprep.subr.mxu0 0.0
        %8800 = vmatpush1.msra.mxu0 %v8108
        %8801 = vmatprep.subr.mxu0 0.0
        %8802 = vmatpush1.msra.mxu0 %v8109
        %8803 = vmatprep.subr.mxu0 0.0
        %8804 = vmatpush1.msra.mxu0 %v8110
        %8805 = vmatprep.subr.mxu0 0.0
        %8806 = vmatpush1.msra.mxu0 %v8111
        %8807 = vmatprep.subr.mxu0 0.0
        %8808 = vmatpush1.msra.mxu0 %v8112
        %8809 = vmatprep.mubr.f32.mxu0 %v8509
        %8810 = vmatmul.mubr.f32.gmra.mrb[0].mxu0 %v8508
        %v8811 = vpop.f32.mrb[0].mxu0
        %v8812 = vadd.f32 %v8742, %v8811
        %v8813 = vpop.f32.mrb[0].mxu0
        %8814 = vdwg.mxu0
        %8815 = vmatprep.subr.mxu0 0.0
        %8816 = vmatpush1.msra.mxu0 %v8113
        %8817 = vmatprep.subr.mxu0 0.0
        %8818 = vmatpush1.msra.mxu0 %v8114
        %8819 = vmatprep.subr.mxu0 0.0
        %8820 = vmatpush1.msra.mxu0 %v8115
        %8821 = vmatprep.subr.mxu0 0.0
        %8822 = vmatpush1.msra.mxu0 %v8116
        %8823 = vmatprep.subr.mxu0 0.0
        %8824 = vmatpush1.msra.mxu0 %v8117
        %8825 = vmatprep.subr.mxu0 0.0
        %8826 = vmatpush1.msra.mxu0 %v8118
        %8827 = vmatprep.subr.mxu0 0.0
        %8828 = vmatpush1.msra.mxu0 %v8119
        %8829 = vmatprep.subr.mxu0 0.0
        %8830 = vmatpush1.msra.mxu0 %v8120
        %8831 = vmatprep.subr.mxu0 0.0
        %8832 = vmatpush1.msra.mxu0 %v8121
        %8833 = vmatprep.subr.mxu0 0.0
        %8834 = vmatpush1.msra.mxu0 %v8122
        %8835 = vmatprep.subr.mxu0 0.0
        %8836 = vmatpush1.msra.mxu0 %v8123
        %8837 = vmatprep.subr.mxu0 0.0
        %8838 = vmatpush1.msra.mxu0 %v8124
        %8839 = vmatprep.subr.mxu0 0.0
        %8840 = vmatpush1.msra.mxu0 %v8125
        %8841 = vmatprep.subr.mxu0 0.0
        %8842 = vmatpush1.msra.mxu0 %v8126
        %8843 = vmatprep.subr.mxu0 0.0
        %8844 = vmatpush1.msra.mxu0 %v8127
        %8845 = vmatprep.subr.mxu0 0.0
        %8846 = vmatpush1.msra.mxu0 %v8128
        %8847 = vmatprep.subr.mxu0 0.0
        %8848 = vmatpush1.msra.mxu0 %v8129
        %8849 = vmatprep.subr.mxu0 0.0
        %8850 = vmatpush1.msra.mxu0 %v8130
        %8851 = vmatprep.subr.mxu0 0.0
        %8852 = vmatpush1.msra.mxu0 %v8131
        %8853 = vmatprep.subr.mxu0 0.0
        %8854 = vmatpush1.msra.mxu0 %v8132
        %8855 = vmatprep.subr.mxu0 0.0
        %8856 = vmatpush1.msra.mxu0 %v8133
        %8857 = vmatprep.subr.mxu0 0.0
        %8858 = vmatpush1.msra.mxu0 %v8134
        %8859 = vmatprep.subr.mxu0 0.0
        %8860 = vmatpush1.msra.mxu0 %v8135
        %8861 = vmatprep.subr.mxu0 0.0
        %8862 = vmatpush1.msra.mxu0 %v8136
        %8863 = vmatprep.subr.mxu0 0.0
        %8864 = vmatpush1.msra.mxu0 %v8137
        %8865 = vmatprep.subr.mxu0 0.0
        %8866 = vmatpush1.msra.mxu0 %v8138
        %8867 = vmatprep.subr.mxu0 0.0
        %8868 = vmatpush1.msra.mxu0 %v8139
        %8869 = vmatprep.subr.mxu0 0.0
        %8870 = vmatpush1.msra.mxu0 %v8140
        %8871 = vmatprep.subr.mxu0 0.0
        %8872 = vmatpush1.msra.mxu0 %v8141
        %8873 = vmatprep.subr.mxu0 0.0
        %8874 = vmatpush1.msra.mxu0 %v8142
        %8875 = vmatprep.subr.mxu0 0.0
        %8876 = vmatpush1.msra.mxu0 %v8143
        %8877 = vmatprep.subr.mxu0 0.0
        %8878 = vmatpush1.msra.mxu0 %v8144
        %8879 = vmatprep.mubr.f32.mxu0 %v8511
        %8880 = vmatmul.mubr.f32.gmra.mrb[0].mxu0 %v8510
        %v8881 = vpop.f32.mrb[0].mxu0
        %v8882 = vadd.f32 %v8812, %v8881
        %v8883 = vpop.f32.mrb[0].mxu0
        %8884 = vdwg.mxu0
        %8885 = vmatprep.subr.mxu0 0.0
        %8886 = vmatpush1.msra.mxu0 %v8145
        %8887 = vmatprep.subr.mxu0 0.0
        %8888 = vmatpush1.msra.mxu0 %v8146
        %8889 = vmatprep.subr.mxu0 0.0
        %8890 = vmatpush1.msra.mxu0 %v8147
        %8891 = vmatprep.subr.mxu0 0.0
        %8892 = vmatpush1.msra.mxu0 %v8148
        %8893 = vmatprep.subr.mxu0 0.0
        %8894 = vmatpush1.msra.mxu0 %v8149
        %8895 = vmatprep.subr.mxu0 0.0
        %8896 = vmatpush1.msra.mxu0 %v8150
        %8897 = vmatprep.subr.mxu0 0.0
        %8898 = vmatpush1.msra.mxu0 %v8151
        %8899 = vmatprep.subr.mxu0 0.0
        %8900 = vmatpush1.msra.mxu0 %v8152
        %8901 = vmatprep.subr.mxu0 0.0
        %8902 = vmatpush1.msra.mxu0 %v8153
        %8903 = vmatprep.subr.mxu0 0.0
        %8904 = vmatpush1.msra.mxu0 %v8154
        %8905 = vmatprep.subr.mxu0 0.0
        %8906 = vmatpush1.msra.mxu0 %v8155
        %8907 = vmatprep.subr.mxu0 0.0
        %8908 = vmatpush1.msra.mxu0 %v8156
        %8909 = vmatprep.subr.mxu0 0.0
        %8910 = vmatpush1.msra.mxu0 %v8157
        %8911 = vmatprep.subr.mxu0 0.0
        %8912 = vmatpush1.msra.mxu0 %v8158
        %8913 = vmatprep.subr.mxu0 0.0
        %8914 = vmatpush1.msra.mxu0 %v8159
        %8915 = vmatprep.subr.mxu0 0.0
        %8916 = vmatpush1.msra.mxu0 %v8160
        %8917 = vmatprep.subr.mxu0 0.0
        %8918 = vmatpush1.msra.mxu0 %v8161
        %8919 = vmatprep.subr.mxu0 0.0
        %8920 = vmatpush1.msra.mxu0 %v8162
        %8921 = vmatprep.subr.mxu0 0.0
        %8922 = vmatpush1.msra.mxu0 %v8163
        %8923 = vmatprep.subr.mxu0 0.0
        %8924 = vmatpush1.msra.mxu0 %v8164
        %8925 = vmatprep.subr.mxu0 0.0
        %8926 = vmatpush1.msra.mxu0 %v8165
        %8927 = vmatprep.subr.mxu0 0.0
        %8928 = vmatpush1.msra.mxu0 %v8166
        %8929 = vmatprep.subr.mxu0 0.0
        %8930 = vmatpush1.msra.mxu0 %v8167
        %8931 = vmatprep.subr.mxu0 0.0
        %8932 = vmatpush1.msra.mxu0 %v8168
        %8933 = vmatprep.subr.mxu0 0.0
        %8934 = vmatpush1.msra.mxu0 %v8169
        %8935 = vmatprep.subr.mxu0 0.0
        %8936 = vmatpush1.msra.mxu0 %v8170
        %8937 = vmatprep.subr.mxu0 0.0
        %8938 = vmatpush1.msra.mxu0 %v8171
        %8939 = vmatprep.subr.mxu0 0.0
        %8940 = vmatpush1.msra.mxu0 %v8172
        %8941 = vmatprep.subr.mxu0 0.0
        %8942 = vmatpush1.msra.mxu0 %v8173
        %8943 = vmatprep.subr.mxu0 0.0
        %8944 = vmatpush1.msra.mxu0 %v8174
        %8945 = vmatprep.subr.mxu0 0.0
        %8946 = vmatpush1.msra.mxu0 %v8175
        %8947 = vmatprep.subr.mxu0 0.0
        %8948 = vmatpush1.msra.mxu0 %v8176
        %8949 = vmatprep.mubr.f32.mxu0 %v8513
        %8950 = vmatmul.mubr.f32.gmra.mrb[0].mxu0 %v8512
        %v8951 = vpop.f32.mrb[0].mxu0
        %v8952 = vadd.f32 %v8882, %v8951
        %v8953 = vpop.f32.mrb[0].mxu0
        %8954 = vdwg.mxu0
        %8955 = vmatprep.subr.mxu0 0.0
        %8956 = vmatpush1.msra.mxu0 %v8177
        %8957 = vmatprep.subr.mxu0 0.0
        %8958 = vmatpush1.msra.mxu0 %v8178
        %8959 = vmatprep.subr.mxu0 0.0
        %8960 = vmatpush1.msra.mxu0 %v8179
        %8961 = vmatprep.subr.mxu0 0.0
        %8962 = vmatpush1.msra.mxu0 %v8180
        %8963 = vmatprep.subr.mxu0 0.0
        %8964 = vmatpush1.msra.mxu0 %v8181
        %8965 = vmatprep.subr.mxu0 0.0
        %8966 = vmatpush1.msra.mxu0 %v8182
        %8967 = vmatprep.subr.mxu0 0.0
        %8968 = vmatpush1.msra.mxu0 %v8183
        %8969 = vmatprep.subr.mxu0 0.0
        %8970 = vmatpush1.msra.mxu0 %v8184
        %8971 = vmatprep.subr.mxu0 0.0
        %8972 = vmatpush1.msra.mxu0 %v8185
        %8973 = vmatprep.subr.mxu0 0.0
        %8974 = vmatpush1.msra.mxu0 %v8186
        %8975 = vmatprep.subr.mxu0 0.0
        %8976 = vmatpush1.msra.mxu0 %v8187
        %8977 = vmatprep.subr.mxu0 0.0
        %8978 = vmatpush1.msra.mxu0 %v8188
        %8979 = vmatprep.subr.mxu0 0.0
        %8980 = vmatpush1.msra.mxu0 %v8189
        %8981 = vmatprep.subr.mxu0 0.0
        %8982 = vmatpush1.msra.mxu0 %v8190
        %8983 = vmatprep.subr.mxu0 0.0
        %8984 = vmatpush1.msra.mxu0 %v8191
        %8985 = vmatprep.subr.mxu0 0.0
        %8986 = vmatpush1.msra.mxu0 %v8192
        %8987 = vmatprep.subr.mxu0 0.0
        %8988 = vmatpush1.msra.mxu0 %v8193
        %8989 = vmatprep.subr.mxu0 0.0
        %8990 = vmatpush1.msra.mxu0 %v8194
        %8991 = vmatprep.subr.mxu0 0.0
        %8992 = vmatpush1.msra.mxu0 %v8195
        %8993 = vmatprep.subr.mxu0 0.0
        %8994 = vmatpush1.msra.mxu0 %v8196
        %8995 = vmatprep.subr.mxu0 0.0
        %8996 = vmatpush1.msra.mxu0 %v8197
        %8997 = vmatprep.subr.mxu0 0.0
        %8998 = vmatpush1.msra.mxu0 %v8198
        %8999 = vmatprep.subr.mxu0 0.0
        %9000 = vmatpush1.msra.mxu0 %v8199
        %9001 = vmatprep.subr.mxu0 0.0
        %9002 = vmatpush1.msra.mxu0 %v8200
        %9003 = vmatprep.subr.mxu0 0.0
        %9004 = vmatpush1.msra.mxu0 %v8201
        %9005 = vmatprep.subr.mxu0 0.0
        %9006 = vmatpush1.msra.mxu0 %v8202
        %9007 = vmatprep.subr.mxu0 0.0
        %9008 = vmatpush1.msra.mxu0 %v8203
        %9009 = vmatprep.subr.mxu0 0.0
        %9010 = vmatpush1.msra.mxu0 %v8204
        %9011 = vmatprep.subr.mxu0 0.0
        %9012 = vmatpush1.msra.mxu0 %v8205
        %9013 = vmatprep.subr.mxu0 0.0
        %9014 = vmatpush1.msra.mxu0 %v8206
        %9015 = vmatprep.subr.mxu0 0.0
        %9016 = vmatpush1.msra.mxu0 %v8207
        %9017 = vmatprep.subr.mxu0 0.0
        %9018 = vmatpush1.msra.mxu0 %v8208
        %9019 = vmatprep.mubr.f32.mxu0 %v8515
        %9020 = vmatmul.mubr.f32.gmra.mrb[0].mxu0 %v8514
        %v9021 = vpop.f32.mrb[0].mxu0
        %v9022 = vadd.f32 %v8952, %v9021
        %v9023 = vpop.f32.mrb[0].mxu0
        %9024 = vdwg.mxu0
        %9025 = vmatprep.subr.mxu0 0.0
        %9026 = vmatpush1.msra.mxu0 %v8209
        %9027 = vmatprep.subr.mxu0 0.0
        %9028 = vmatpush1.msra.mxu0 %v8210
        %9029 = vmatprep.subr.mxu0 0.0
        %9030 = vmatpush1.msra.mxu0 %v8211
        %9031 = vmatprep.subr.mxu0 0.0
        %9032 = vmatpush1.msra.mxu0 %v8212
        %9033 = vmatprep.subr.mxu0 0.0
        %9034 = vmatpush1.msra.mxu0 %v8213
        %9035 = vmatprep.subr.mxu0 0.0
        %9036 = vmatpush1.msra.mxu0 %v8214
        %9037 = vmatprep.subr.mxu0 0.0
        %9038 = vmatpush1.msra.mxu0 %v8215
        %9039 = vmatprep.subr.mxu0 0.0
        %9040 = vmatpush1.msra.mxu0 %v8216
        %9041 = vmatprep.subr.mxu0 0.0
        %9042 = vmatpush1.msra.mxu0 %v8217
        %9043 = vmatprep.subr.mxu0 0.0
        %9044 = vmatpush1.msra.mxu0 %v8218
        %9045 = vmatprep.subr.mxu0 0.0
        %9046 = vmatpush1.msra.mxu0 %v8219
        %9047 = vmatprep.subr.mxu0 0.0
        %9048 = vmatpush1.msra.mxu0 %v8220
        %9049 = vmatprep.subr.mxu0 0.0
        %9050 = vmatpush1.msra.mxu0 %v8221
        %9051 = vmatprep.subr.mxu0 0.0
        %9052 = vmatpush1.msra.mxu0 %v8222
        %9053 = vmatprep.subr.mxu0 0.0
        %9054 = vmatpush1.msra.mxu0 %v8223
        %9055 = vmatprep.subr.mxu0 0.0
        %9056 = vmatpush1.msra.mxu0 %v8224
        %9057 = vmatprep.subr.mxu0 0.0
        %9058 = vmatpush1.msra.mxu0 %v8225
        %9059 = vmatprep.subr.mxu0 0.0
        %9060 = vmatpush1.msra.mxu0 %v8226
        %9061 = vmatprep.subr.mxu0 0.0
        %9062 = vmatpush1.msra.mxu0 %v8227
        %9063 = vmatprep.subr.mxu0 0.0
        %9064 = vmatpush1.msra.mxu0 %v8228
        %9065 = vmatprep.subr.mxu0 0.0
        %9066 = vmatpush1.msra.mxu0 %v8229
        %9067 = vmatprep.subr.mxu0 0.0
        %9068 = vmatpush1.msra.mxu0 %v8230
        %9069 = vmatprep.subr.mxu0 0.0
        %9070 = vmatpush1.msra.mxu0 %v8231
        %9071 = vmatprep.subr.mxu0 0.0
        %9072 = vmatpush1.msra.mxu0 %v8232
        %9073 = vmatprep.subr.mxu0 0.0
        %9074 = vmatpush1.msra.mxu0 %v8233
        %9075 = vmatprep.subr.mxu0 0.0
        %9076 = vmatpush1.msra.mxu0 %v8234
        %9077 = vmatprep.subr.mxu0 0.0
        %9078 = vmatpush1.msra.mxu0 %v8235
        %9079 = vmatprep.subr.mxu0 0.0
        %9080 = vmatpush1.msra.mxu0 %v8236
        %9081 = vmatprep.subr.mxu0 0.0
        %9082 = vmatpush1.msra.mxu0 %v8237
        %9083 = vmatprep.subr.mxu0 0.0
        %9084 = vmatpush1.msra.mxu0 %v8238
        %9085 = vmatprep.subr.mxu0 0.0
        %9086 = vmatpush1.msra.mxu0 %v8239
        %9087 = vmatprep.subr.mxu0 0.0
        %9088 = vmatpush1.msra.mxu0 %v8240
        %9089 = vmatprep.mubr.f32.mxu0 %v8517
        %9090 = vmatmul.mubr.f32.gmra.mrb[0].mxu0 %v8516
        %v9091 = vpop.f32.mrb[0].mxu0
        %v9092 = vadd.f32 %v9022, %v9091
        %v9093 = vpop.f32.mrb[0].mxu0
        %9094 = vdwg.mxu0
        %9095 = vmatprep.subr.mxu0 0.0
        %9096 = vmatpush1.msra.mxu0 %v8241
        %9097 = vmatprep.subr.mxu0 0.0
        %9098 = vmatpush1.msra.mxu0 %v8242
        %9099 = vmatprep.subr.mxu0 0.0
        %9100 = vmatpush1.msra.mxu0 %v8243
        %9101 = vmatprep.subr.mxu0 0.0
        %9102 = vmatpush1.msra.mxu0 %v8244
        %9103 = vmatprep.subr.mxu0 0.0
        %9104 = vmatpush1.msra.mxu0 %v8245
        %9105 = vmatprep.subr.mxu0 0.0
        %9106 = vmatpush1.msra.mxu0 %v8246
        %9107 = vmatprep.subr.mxu0 0.0
        %9108 = vmatpush1.msra.mxu0 %v8247
        %9109 = vmatprep.subr.mxu0 0.0
        %9110 = vmatpush1.msra.mxu0 %v8248
        %9111 = vmatprep.subr.mxu0 0.0
        %9112 = vmatpush1.msra.mxu0 %v8249
        %9113 = vmatprep.subr.mxu0 0.0
        %9114 = vmatpush1.msra.mxu0 %v8250
        %9115 = vmatprep.subr.mxu0 0.0
        %9116 = vmatpush1.msra.mxu0 %v8251
        %9117 = vmatprep.subr.mxu0 0.0
        %9118 = vmatpush1.msra.mxu0 %v8252
        %9119 = vmatprep.subr.mxu0 0.0
        %9120 = vmatpush1.msra.mxu0 %v8253
        %9121 = vmatprep.subr.mxu0 0.0
        %9122 = vmatpush1.msra.mxu0 %v8254
        %9123 = vmatprep.subr.mxu0 0.0
        %9124 = vmatpush1.msra.mxu0 %v8255
        %9125 = vmatprep.subr.mxu0 0.0
        %9126 = vmatpush1.msra.mxu0 %v8256
        %9127 = vmatprep.subr.mxu0 0.0
        %9128 = vmatpush1.msra.mxu0 %v8257
        %9129 = vmatprep.subr.mxu0 0.0
        %9130 = vmatpush1.msra.mxu0 %v8258
        %9131 = vmatprep.subr.mxu0 0.0
        %9132 = vmatpush1.msra.mxu0 %v8259
        %9133 = vmatprep.subr.mxu0 0.0
        %9134 = vmatpush1.msra.mxu0 %v8260
        %9135 = vmatprep.subr.mxu0 0.0
        %9136 = vmatpush1.msra.mxu0 %v8261
        %9137 = vmatprep.subr.mxu0 0.0
        %9138 = vmatpush1.msra.mxu0 %v8262
        %9139 = vmatprep.subr.mxu0 0.0
        %9140 = vmatpush1.msra.mxu0 %v8263
        %9141 = vmatprep.subr.mxu0 0.0
        %9142 = vmatpush1.msra.mxu0 %v8264
        %9143 = vmatprep.subr.mxu0 0.0
        %9144 = vmatpush1.msra.mxu0 %v8265
        %9145 = vmatprep.subr.mxu0 0.0
        %9146 = vmatpush1.msra.mxu0 %v8266
        %9147 = vmatprep.subr.mxu0 0.0
        %9148 = vmatpush1.msra.mxu0 %v8267
        %9149 = vmatprep.subr.mxu0 0.0
        %9150 = vmatpush1.msra.mxu0 %v8268
        %9151 = vmatprep.subr.mxu0 0.0
        %9152 = vmatpush1.msra.mxu0 %v8269
        %9153 = vmatprep.subr.mxu0 0.0
        %9154 = vmatpush1.msra.mxu0 %v8270
        %9155 = vmatprep.subr.mxu0 0.0
        %9156 = vmatpush1.msra.mxu0 %v8271
        %9157 = vmatprep.subr.mxu0 0.0
        %9158 = vmatpush1.msra.mxu0 %v8272
        %9159 = vmatprep.mubr.f32.mxu0 %v8519
        %9160 = vmatmul.mubr.f32.gmra.mrb[0].mxu0 %v8518
        %v9161 = vpop.f32.mrb[0].mxu0
        %v9162 = vadd.f32 %v9092, %v9161
        %v9163 = vpop.f32.mrb[0].mxu0
        %9164 = vdwg.mxu0
        %9165 = vmatprep.subr.mxu0 0.0
        %9166 = vmatpush1.msra.mxu0 %v8273
        %9167 = vmatprep.subr.mxu0 0.0
        %9168 = vmatpush1.msra.mxu0 %v8274
        %9169 = vmatprep.subr.mxu0 0.0
        %9170 = vmatpush1.msra.mxu0 %v8275
        %9171 = vmatprep.subr.mxu0 0.0
        %9172 = vmatpush1.msra.mxu0 %v8276
        %9173 = vmatprep.subr.mxu0 0.0
        %9174 = vmatpush1.msra.mxu0 %v8277
        %9175 = vmatprep.subr.mxu0 0.0
        %9176 = vmatpush1.msra.mxu0 %v8278
        %9177 = vmatprep.subr.mxu0 0.0
        %9178 = vmatpush1.msra.mxu0 %v8279
        %9179 = vmatprep.subr.mxu0 0.0
        %9180 = vmatpush1.msra.mxu0 %v8280
        %9181 = vmatprep.subr.mxu0 0.0
        %9182 = vmatpush1.msra.mxu0 %v8281
        %9183 = vmatprep.subr.mxu0 0.0
        %9184 = vmatpush1.msra.mxu0 %v8282
        %9185 = vmatprep.subr.mxu0 0.0
        %9186 = vmatpush1.msra.mxu0 %v8283
        %9187 = vmatprep.subr.mxu0 0.0
        %9188 = vmatpush1.msra.mxu0 %v8284
        %9189 = vmatprep.subr.mxu0 0.0
        %9190 = vmatpush1.msra.mxu0 %v8285
        %9191 = vmatprep.subr.mxu0 0.0
        %9192 = vmatpush1.msra.mxu0 %v8286
        %9193 = vmatprep.subr.mxu0 0.0
        %9194 = vmatpush1.msra.mxu0 %v8287
        %9195 = vmatprep.subr.mxu0 0.0
        %9196 = vmatpush1.msra.mxu0 %v8288
        %9197 = vmatprep.subr.mxu0 0.0
        %9198 = vmatpush1.msra.mxu0 %v8289
        %9199 = vmatprep.subr.mxu0 0.0
        %9200 = vmatpush1.msra.mxu0 %v8290
        %9201 = vmatprep.subr.mxu0 0.0
        %9202 = vmatpush1.msra.mxu0 %v8291
        %9203 = vmatprep.subr.mxu0 0.0
        %9204 = vmatpush1.msra.mxu0 %v8292
        %9205 = vmatprep.subr.mxu0 0.0
        %9206 = vmatpush1.msra.mxu0 %v8293
        %9207 = vmatprep.subr.mxu0 0.0
        %9208 = vmatpush1.msra.mxu0 %v8294
        %9209 = vmatprep.subr.mxu0 0.0
        %9210 = vmatpush1.msra.mxu0 %v8295
        %9211 = vmatprep.subr.mxu0 0.0
        %9212 = vmatpush1.msra.mxu0 %v8296
        %9213 = vmatprep.subr.mxu0 0.0
        %9214 = vmatpush1.msra.mxu0 %v8297
        %9215 = vmatprep.subr.mxu0 0.0
        %9216 = vmatpush1.msra.mxu0 %v8298
        %9217 = vmatprep.subr.mxu0 0.0
        %9218 = vmatpush1.msra.mxu0 %v8299
        %9219 = vmatprep.subr.mxu0 0.0
        %9220 = vmatpush1.msra.mxu0 %v8300
        %9221 = vmatprep.subr.mxu0 0.0
        %9222 = vmatpush1.msra.mxu0 %v8301
        %9223 = vmatprep.subr.mxu0 0.0
        %9224 = vmatpush1.msra.mxu0 %v8302
        %9225 = vmatprep.subr.mxu0 0.0
        %9226 = vmatpush1.msra.mxu0 %v8303
        %9227 = vmatprep.subr.mxu0 0.0
        %9228 = vmatpush1.msra.mxu0 %v8304
        %9229 = vmatprep.mubr.f32.mxu0 %v8521
        %9230 = vmatmul.mubr.f32.gmra.mrb[0].mxu0 %v8520
        %v9231 = vpop.f32.mrb[0].mxu0
        %v9232 = vadd.f32 %v9162, %v9231
        %v9233 = vpop.f32.mrb[0].mxu0
        %9234 = vdwg.mxu0
        %9235 = vmatprep.subr.mxu0 0.0
        %9236 = vmatpush1.msra.mxu0 %v8305
        %9237 = vmatprep.subr.mxu0 0.0
        %9238 = vmatpush1.msra.mxu0 %v8306
        %9239 = vmatprep.subr.mxu0 0.0
        %9240 = vmatpush1.msra.mxu0 %v8307
        %9241 = vmatprep.subr.mxu0 0.0
        %9242 = vmatpush1.msra.mxu0 %v8308
        %9243 = vmatprep.subr.mxu0 0.0
        %9244 = vmatpush1.msra.mxu0 %v8309
        %9245 = vmatprep.subr.mxu0 0.0
        %9246 = vmatpush1.msra.mxu0 %v8310
        %9247 = vmatprep.subr.mxu0 0.0
        %9248 = vmatpush1.msra.mxu0 %v8311
        %9249 = vmatprep.subr.mxu0 0.0
        %9250 = vmatpush1.msra.mxu0 %v8312
        %9251 = vmatprep.subr.mxu0 0.0
        %9252 = vmatpush1.msra.mxu0 %v8313
        %9253 = vmatprep.subr.mxu0 0.0
        %9254 = vmatpush1.msra.mxu0 %v8314
        %9255 = vmatprep.subr.mxu0 0.0
        %9256 = vmatpush1.msra.mxu0 %v8315
        %9257 = vmatprep.subr.mxu0 0.0
        %9258 = vmatpush1.msra.mxu0 %v8316
        %9259 = vmatprep.subr.mxu0 0.0
        %9260 = vmatpush1.msra.mxu0 %v8317
        %9261 = vmatprep.subr.mxu0 0.0
        %9262 = vmatpush1.msra.mxu0 %v8318
        %9263 = vmatprep.subr.mxu0 0.0
        %9264 = vmatpush1.msra.mxu0 %v8319
        %9265 = vmatprep.subr.mxu0 0.0
        %9266 = vmatpush1.msra.mxu0 %v8320
        %9267 = vmatprep.subr.mxu0 0.0
        %9268 = vmatpush1.msra.mxu0 %v8321
        %9269 = vmatprep.subr.mxu0 0.0
        %9270 = vmatpush1.msra.mxu0 %v8322
        %9271 = vmatprep.subr.mxu0 0.0
        %9272 = vmatpush1.msra.mxu0 %v8323
        %9273 = vmatprep.subr.mxu0 0.0
        %9274 = vmatpush1.msra.mxu0 %v8324
        %9275 = vmatprep.subr.mxu0 0.0
        %9276 = vmatpush1.msra.mxu0 %v8325
        %9277 = vmatprep.subr.mxu0 0.0
        %9278 = vmatpush1.msra.mxu0 %v8326
        %9279 = vmatprep.subr.mxu0 0.0
        %9280 = vmatpush1.msra.mxu0 %v8327
        %9281 = vmatprep.subr.mxu0 0.0
        %9282 = vmatpush1.msra.mxu0 %v8328
        %9283 = vmatprep.subr.mxu0 0.0
        %9284 = vmatpush1.msra.mxu0 %v8329
        %9285 = vmatprep.subr.mxu0 0.0
        %9286 = vmatpush1.msra.mxu0 %v8330
        %9287 = vmatprep.subr.mxu0 0.0
        %9288 = vmatpush1.msra.mxu0 %v8331
        %9289 = vmatprep.subr.mxu0 0.0
        %9290 = vmatpush1.msra.mxu0 %v8332
        %9291 = vmatprep.subr.mxu0 0.0
        %9292 = vmatpush1.msra.mxu0 %v8333
        %9293 = vmatprep.subr.mxu0 0.0
        %9294 = vmatpush1.msra.mxu0 %v8334
        %9295 = vmatprep.subr.mxu0 0.0
        %9296 = vmatpush1.msra.mxu0 %v8335
        %9297 = vmatprep.subr.mxu0 0.0
        %9298 = vmatpush1.msra.mxu0 %v8336
        %9299 = vmatprep.mubr.f32.mxu0 %v8523
        %9300 = vmatmul.mubr.f32.gmra.mrb[0].mxu0 %v8522
        %v9301 = vpop.f32.mrb[0].mxu0
        %v9302 = vadd.f32 %v9232, %v9301
        %v9303 = vpop.f32.mrb[0].mxu0
        %9304 = vdwg.mxu0
        %9305 = vmatprep.subr.mxu0 0.0
        %9306 = vmatpush1.msra.mxu0 %v8337
        %9307 = vmatprep.subr.mxu0 0.0
        %9308 = vmatpush1.msra.mxu0 %v8338
        %9309 = vmatprep.subr.mxu0 0.0
        %9310 = vmatpush1.msra.mxu0 %v8339
        %9311 = vmatprep.subr.mxu0 0.0
        %9312 = vmatpush1.msra.mxu0 %v8340
        %9313 = vmatprep.subr.mxu0 0.0
        %9314 = vmatpush1.msra.mxu0 %v8341
        %9315 = vmatprep.subr.mxu0 0.0
        %9316 = vmatpush1.msra.mxu0 %v8342
        %9317 = vmatprep.subr.mxu0 0.0
        %9318 = vmatpush1.msra.mxu0 %v8343
        %9319 = vmatprep.subr.mxu0 0.0
        %9320 = vmatpush1.msra.mxu0 %v8344
        %9321 = vmatprep.subr.mxu0 0.0
        %9322 = vmatpush1.msra.mxu0 %v8345
        %9323 = vmatprep.subr.mxu0 0.0
        %9324 = vmatpush1.msra.mxu0 %v8346
        %9325 = vmatprep.subr.mxu0 0.0
        %9326 = vmatpush1.msra.mxu0 %v8347
        %9327 = vmatprep.subr.mxu0 0.0
        %9328 = vmatpush1.msra.mxu0 %v8348
        %9329 = vmatprep.subr.mxu0 0.0
        %9330 = vmatpush1.msra.mxu0 %v8349
        %9331 = vmatprep.subr.mxu0 0.0
        %9332 = vmatpush1.msra.mxu0 %v8350
        %9333 = vmatprep.subr.mxu0 0.0
        %9334 = vmatpush1.msra.mxu0 %v8351
        %9335 = vmatprep.subr.mxu0 0.0
        %9336 = vmatpush1.msra.mxu0 %v8352
        %9337 = vmatprep.subr.mxu0 0.0
        %9338 = vmatpush1.msra.mxu0 %v8353
        %9339 = vmatprep.subr.mxu0 0.0
        %9340 = vmatpush1.msra.mxu0 %v8354
        %9341 = vmatprep.subr.mxu0 0.0
        %9342 = vmatpush1.msra.mxu0 %v8355
        %9343 = vmatprep.subr.mxu0 0.0
        %9344 = vmatpush1.msra.mxu0 %v8356
        %9345 = vmatprep.subr.mxu0 0.0
        %9346 = vmatpush1.msra.mxu0 %v8357
        %9347 = vmatprep.subr.mxu0 0.0
        %9348 = vmatpush1.msra.mxu0 %v8358
        %9349 = vmatprep.subr.mxu0 0.0
        %9350 = vmatpush1.msra.mxu0 %v8359
        %9351 = vmatprep.subr.mxu0 0.0
        %9352 = vmatpush1.msra.mxu0 %v8360
        %9353 = vmatprep.subr.mxu0 0.0
        %9354 = vmatpush1.msra.mxu0 %v8361
        %9355 = vmatprep.subr.mxu0 0.0
        %9356 = vmatpush1.msra.mxu0 %v8362
        %9357 = vmatprep.subr.mxu0 0.0
        %9358 = vmatpush1.msra.mxu0 %v8363
        %9359 = vmatprep.subr.mxu0 0.0
        %9360 = vmatpush1.msra.mxu0 %v8364
        %9361 = vmatprep.subr.mxu0 0.0
        %9362 = vmatpush1.msra.mxu0 %v8365
        %9363 = vmatprep.subr.mxu0 0.0
        %9364 = vmatpush1.msra.mxu0 %v8366
        %9365 = vmatprep.subr.mxu0 0.0
        %9366 = vmatpush1.msra.mxu0 %v8367
        %9367 = vmatprep.subr.mxu0 0.0
        %9368 = vmatpush1.msra.mxu0 %v8368
        %9369 = vmatprep.mubr.f32.mxu0 %v8525
        %9370 = vmatmul.mubr.f32.gmra.mrb[0].mxu0 %v8524
        %v9371 = vpop.f32.mrb[0].mxu0
        %v9372 = vadd.f32 %v9302, %v9371
        %v9373 = vpop.f32.mrb[0].mxu0
        %9374 = vdwg.mxu0
        %9375 = vmatprep.subr.mxu0 0.0
        %9376 = vmatpush1.msra.mxu0 %v8369
        %9377 = vmatprep.subr.mxu0 0.0
        %9378 = vmatpush1.msra.mxu0 %v8370
        %9379 = vmatprep.subr.mxu0 0.0
        %9380 = vmatpush1.msra.mxu0 %v8371
        %9381 = vmatprep.subr.mxu0 0.0
        %9382 = vmatpush1.msra.mxu0 %v8372
        %9383 = vmatprep.subr.mxu0 0.0
        %9384 = vmatpush1.msra.mxu0 %v8373
        %9385 = vmatprep.subr.mxu0 0.0
        %9386 = vmatpush1.msra.mxu0 %v8374
        %9387 = vmatprep.subr.mxu0 0.0
        %9388 = vmatpush1.msra.mxu0 %v8375
        %9389 = vmatprep.subr.mxu0 0.0
        %9390 = vmatpush1.msra.mxu0 %v8376
        %9391 = vmatprep.subr.mxu0 0.0
        %9392 = vmatpush1.msra.mxu0 %v8377
        %9393 = vmatprep.subr.mxu0 0.0
        %9394 = vmatpush1.msra.mxu0 %v8378
        %9395 = vmatprep.subr.mxu0 0.0
        %9396 = vmatpush1.msra.mxu0 %v8379
        %9397 = vmatprep.subr.mxu0 0.0
        %9398 = vmatpush1.msra.mxu0 %v8380
        %9399 = vmatprep.subr.mxu0 0.0
        %9400 = vmatpush1.msra.mxu0 %v8381
        %9401 = vmatprep.subr.mxu0 0.0
        %9402 = vmatpush1.msra.mxu0 %v8382
        %9403 = vmatprep.subr.mxu0 0.0
        %9404 = vmatpush1.msra.mxu0 %v8383
        %9405 = vmatprep.subr.mxu0 0.0
        %9406 = vmatpush1.msra.mxu0 %v8384
        %9407 = vmatprep.subr.mxu0 0.0
        %9408 = vmatpush1.msra.mxu0 %v8385
        %9409 = vmatprep.subr.mxu0 0.0
        %9410 = vmatpush1.msra.mxu0 %v8386
        %9411 = vmatprep.subr.mxu0 0.0
        %9412 = vmatpush1.msra.mxu0 %v8387
        %9413 = vmatprep.subr.mxu0 0.0
        %9414 = vmatpush1.msra.mxu0 %v8388
        %9415 = vmatprep.subr.mxu0 0.0
        %9416 = vmatpush1.msra.mxu0 %v8389
        %9417 = vmatprep.subr.mxu0 0.0
        %9418 = vmatpush1.msra.mxu0 %v8390
        %9419 = vmatprep.subr.mxu0 0.0
        %9420 = vmatpush1.msra.mxu0 %v8391
        %9421 = vmatprep.subr.mxu0 0.0
        %9422 = vmatpush1.msra.mxu0 %v8392
        %9423 = vmatprep.subr.mxu0 0.0
        %9424 = vmatpush1.msra.mxu0 %v8393
        %9425 = vmatprep.subr.mxu0 0.0
        %9426 = vmatpush1.msra.mxu0 %v8394
        %9427 = vmatprep.subr.mxu0 0.0
        %9428 = vmatpush1.msra.mxu0 %v8395
        %9429 = vmatprep.subr.mxu0 0.0
        %9430 = vmatpush1.msra.mxu0 %v8396
        %9431 = vmatprep.subr.mxu0 0.0
        %9432 = vmatpush1.msra.mxu0 %v8397
        %9433 = vmatprep.subr.mxu0 0.0
        %9434 = vmatpush1.msra.mxu0 %v8398
        %9435 = vmatprep.subr.mxu0 0.0
        %9436 = vmatpush1.msra.mxu0 %v8399
        %9437 = vmatprep.subr.mxu0 0.0
        %9438 = vmatpush1.msra.mxu0 %v8400
        %9439 = vmatprep.mubr.f32.mxu0 %v8527
        %9440 = vmatmul.mubr.f32.gmra.mrb[0].mxu0 %v8526
        %v9441 = vpop.f32.mrb[0].mxu0
        %v9442 = vadd.f32 %v9372, %v9441
        %v9443 = vpop.f32.mrb[0].mxu0
        %9444 = vdwg.mxu0
        %9445 = vmatprep.subr.mxu0 0.0
        %9446 = vmatpush1.msra.mxu0 %v8401
        %9447 = vmatprep.subr.mxu0 0.0
        %9448 = vmatpush1.msra.mxu0 %v8402
        %9449 = vmatprep.subr.mxu0 0.0
        %9450 = vmatpush1.msra.mxu0 %v8403
        %9451 = vmatprep.subr.mxu0 0.0
        %9452 = vmatpush1.msra.mxu0 %v8404
        %9453 = vmatprep.subr.mxu0 0.0
        %9454 = vmatpush1.msra.mxu0 %v8405
        %9455 = vmatprep.subr.mxu0 0.0
        %9456 = vmatpush1.msra.mxu0 %v8406
        %9457 = vmatprep.subr.mxu0 0.0
        %9458 = vmatpush1.msra.mxu0 %v8407
        %9459 = vmatprep.subr.mxu0 0.0
        %9460 = vmatpush1.msra.mxu0 %v8408
        %9461 = vmatprep.subr.mxu0 0.0
        %9462 = vmatpush1.msra.mxu0 %v8409
        %9463 = vmatprep.subr.mxu0 0.0
        %9464 = vmatpush1.msra.mxu0 %v8410
        %9465 = vmatprep.subr.mxu0 0.0
        %9466 = vmatpush1.msra.mxu0 %v8411
        %9467 = vmatprep.subr.mxu0 0.0
        %9468 = vmatpush1.msra.mxu0 %v8412
        %9469 = vmatprep.subr.mxu0 0.0
        %9470 = vmatpush1.msra.mxu0 %v8413
        %9471 = vmatprep.subr.mxu0 0.0
        %9472 = vmatpush1.msra.mxu0 %v8414
        %9473 = vmatprep.subr.mxu0 0.0
        %9474 = vmatpush1.msra.mxu0 %v8415
        %9475 = vmatprep.subr.mxu0 0.0
        %9476 = vmatpush1.msra.mxu0 %v8416
        %9477 = vmatprep.subr.mxu0 0.0
        %9478 = vmatpush1.msra.mxu0 %v8417
        %9479 = vmatprep.subr.mxu0 0.0
        %9480 = vmatpush1.msra.mxu0 %v8418
        %9481 = vmatprep.subr.mxu0 0.0
        %9482 = vmatpush1.msra.mxu0 %v8419
        %9483 = vmatprep.subr.mxu0 0.0
        %9484 = vmatpush1.msra.mxu0 %v8420
        %9485 = vmatprep.subr.mxu0 0.0
        %9486 = vmatpush1.msra.mxu0 %v8421
        %9487 = vmatprep.subr.mxu0 0.0
        %9488 = vmatpush1.msra.mxu0 %v8422
        %9489 = vmatprep.subr.mxu0 0.0
        %9490 = vmatpush1.msra.mxu0 %v8423
        %9491 = vmatprep.subr.mxu0 0.0
        %9492 = vmatpush1.msra.mxu0 %v8424
        %9493 = vmatprep.subr.mxu0 0.0
        %9494 = vmatpush1.msra.mxu0 %v8425
        %9495 = vmatprep.subr.mxu0 0.0
        %9496 = vmatpush1.msra.mxu0 %v8426
        %9497 = vmatprep.subr.mxu0 0.0
        %9498 = vmatpush1.msra.mxu0 %v8427
        %9499 = vmatprep.subr.mxu0 0.0
        %9500 = vmatpush1.msra.mxu0 %v8428
        %9501 = vmatprep.subr.mxu0 0.0
        %9502 = vmatpush1.msra.mxu0 %v8429
        %9503 = vmatprep.subr.mxu0 0.0
        %9504 = vmatpush1.msra.mxu0 %v8430
        %9505 = vmatprep.subr.mxu0 0.0
        %9506 = vmatpush1.msra.mxu0 %v8431
        %9507 = vmatprep.subr.mxu0 0.0
        %9508 = vmatpush1.msra.mxu0 %v8432
        %9509 = vmatprep.mubr.f32.mxu0 %v8529
        %9510 = vmatmul.mubr.f32.gmra.mrb[0].mxu0 %v8528
        %v9511 = vpop.f32.mrb[0].mxu0
        %v9512 = vadd.f32 %v9442, %v9511
        %v9513 = vpop.f32.mrb[0].mxu0
        %9514 = vdwg.mxu0
        %9515 = vmatprep.subr.mxu0 0.0
        %9516 = vmatpush1.msra.mxu0 %v8433
        %9517 = vmatprep.subr.mxu0 0.0
        %9518 = vmatpush1.msra.mxu0 %v8434
        %9519 = vmatprep.subr.mxu0 0.0
        %9520 = vmatpush1.msra.mxu0 %v8435
        %9521 = vmatprep.subr.mxu0 0.0
        %9522 = vmatpush1.msra.mxu0 %v8436
        %9523 = vmatprep.subr.mxu0 0.0
        %9524 = vmatpush1.msra.mxu0 %v8437
        %9525 = vmatprep.subr.mxu0 0.0
        %9526 = vmatpush1.msra.mxu0 %v8438
        %9527 = vmatprep.subr.mxu0 0.0
        %9528 = vmatpush1.msra.mxu0 %v8439
        %9529 = vmatprep.subr.mxu0 0.0
        %9530 = vmatpush1.msra.mxu0 %v8440
        %9531 = vmatprep.subr.mxu0 0.0
        %9532 = vmatpush1.msra.mxu0 %v8441
        %9533 = vmatprep.subr.mxu0 0.0
        %9534 = vmatpush1.msra.mxu0 %v8442
        %9535 = vmatprep.subr.mxu0 0.0
        %9536 = vmatpush1.msra.mxu0 %v8443
        %9537 = vmatprep.subr.mxu0 0.0
        %9538 = vmatpush1.msra.mxu0 %v8444
        %9539 = vmatprep.subr.mxu0 0.0
        %9540 = vmatpush1.msra.mxu0 %v8445
        %9541 = vmatprep.subr.mxu0 0.0
        %9542 = vmatpush1.msra.mxu0 %v8446
        %9543 = vmatprep.subr.mxu0 0.0
        %9544 = vmatpush1.msra.mxu0 %v8447
        %9545 = vmatprep.subr.mxu0 0.0
        %9546 = vmatpush1.msra.mxu0 %v8448
        %9547 = vmatprep.subr.mxu0 0.0
        %9548 = vmatpush1.msra.mxu0 %v8449
        %9549 = vmatprep.subr.mxu0 0.0
        %9550 = vmatpush1.msra.mxu0 %v8450
        %9551 = vmatprep.subr.mxu0 0.0
        %9552 = vmatpush1.msra.mxu0 %v8451
        %9553 = vmatprep.subr.mxu0 0.0
        %9554 = vmatpush1.msra.mxu0 %v8452
        %9555 = vmatprep.subr.mxu0 0.0
        %9556 = vmatpush1.msra.mxu0 %v8453
        %9557 = vmatprep.subr.mxu0 0.0
        %9558 = vmatpush1.msra.mxu0 %v8454
        %9559 = vmatprep.subr.mxu0 0.0
        %9560 = vmatpush1.msra.mxu0 %v8455
        %9561 = vmatprep.subr.mxu0 0.0
        %9562 = vmatpush1.msra.mxu0 %v8456
        %9563 = vmatprep.subr.mxu0 0.0
        %9564 = vmatpush1.msra.mxu0 %v8457
        %9565 = vmatprep.subr.mxu0 0.0
        %9566 = vmatpush1.msra.mxu0 %v8458
        %9567 = vmatprep.subr.mxu0 0.0
        %9568 = vmatpush1.msra.mxu0 %v8459
        %9569 = vmatprep.subr.mxu0 0.0
        %9570 = vmatpush1.msra.mxu0 %v8460
        %9571 = vmatprep.subr.mxu0 0.0
        %9572 = vmatpush1.msra.mxu0 %v8461
        %9573 = vmatprep.subr.mxu0 0.0
        %9574 = vmatpush1.msra.mxu0 %v8462
        %9575 = vmatprep.subr.mxu0 0.0
        %9576 = vmatpush1.msra.mxu0 %v8463
        %9577 = vmatprep.subr.mxu0 0.0
        %9578 = vmatpush1.msra.mxu0 %v8464
        %9579 = vmatprep.mubr.f32.mxu0 %v8531
        %9580 = vmatmul.mubr.f32.gmra.mrb[0].mxu0 %v8530
        %v9581 = vpop.f32.mrb[0].mxu0
        %v9582 = vadd.f32 %v9512, %v9581
        %v9583 = vpop.f32.mrb[0].mxu0
        %9584 = vdwg.mxu0
        %9585 = vmatprep.subr.mxu0 0.0
        %9586 = vmatpush1.msra.mxu0 %v8465
        %9587 = vmatprep.subr.mxu0 0.0
        %9588 = vmatpush1.msra.mxu0 %v8466
        %9589 = vmatprep.subr.mxu0 0.0
        %9590 = vmatpush1.msra.mxu0 %v8467
        %9591 = vmatprep.subr.mxu0 0.0
        %9592 = vmatpush1.msra.mxu0 %v8468
        %9593 = vmatprep.subr.mxu0 0.0
        %9594 = vmatpush1.msra.mxu0 %v8469
        %9595 = vmatprep.subr.mxu0 0.0
        %9596 = vmatpush1.msra.mxu0 %v8470
        %9597 = vmatprep.subr.mxu0 0.0
        %9598 = vmatpush1.msra.mxu0 %v8471
        %9599 = vmatprep.subr.mxu0 0.0
        %9600 = vmatpush1.msra.mxu0 %v8472
        %9601 = vmatprep.subr.mxu0 0.0
        %9602 = vmatpush1.msra.mxu0 %v8473
        %9603 = vmatprep.subr.mxu0 0.0
        %9604 = vmatpush1.msra.mxu0 %v8474
        %9605 = vmatprep.subr.mxu0 0.0
        %9606 = vmatpush1.msra.mxu0 %v8475
        %9607 = vmatprep.subr.mxu0 0.0
        %9608 = vmatpush1.msra.mxu0 %v8476
        %9609 = vmatprep.subr.mxu0 0.0
        %9610 = vmatpush1.msra.mxu0 %v8477
        %9611 = vmatprep.subr.mxu0 0.0
        %9612 = vmatpush1.msra.mxu0 %v8478
        %9613 = vmatprep.subr.mxu0 0.0
        %9614 = vmatpush1.msra.mxu0 %v8479
        %9615 = vmatprep.subr.mxu0 0.0
        %9616 = vmatpush1.msra.mxu0 %v8480
        %9617 = vmatprep.subr.mxu0 0.0
        %9618 = vmatpush1.msra.mxu0 %v8481
        %9619 = vmatprep.subr.mxu0 0.0
        %9620 = vmatpush1.msra.mxu0 %v8482
        %9621 = vmatprep.subr.mxu0 0.0
        %9622 = vmatpush1.msra.mxu0 %v8483
        %9623 = vmatprep.subr.mxu0 0.0
        %9624 = vmatpush1.msra.mxu0 %v8484
        %9625 = vmatprep.subr.mxu0 0.0
        %9626 = vmatpush1.msra.mxu0 %v8485
        %9627 = vmatprep.subr.mxu0 0.0
        %9628 = vmatpush1.msra.mxu0 %v8486
        %9629 = vmatprep.subr.mxu0 0.0
        %9630 = vmatpush1.msra.mxu0 %v8487
        %9631 = vmatprep.subr.mxu0 0.0
        %9632 = vmatpush1.msra.mxu0 %v8488
        %9633 = vmatprep.subr.mxu0 0.0
        %9634 = vmatpush1.msra.mxu0 %v8489
        %9635 = vmatprep.subr.mxu0 0.0
        %9636 = vmatpush1.msra.mxu0 %v8490
        %9637 = vmatprep.subr.mxu0 0.0
        %9638 = vmatpush1.msra.mxu0 %v8491
        %9639 = vmatprep.subr.mxu0 0.0
        %9640 = vmatpush1.msra.mxu0 %v8492
        %9641 = vmatprep.subr.mxu0 0.0
        %9642 = vmatpush1.msra.mxu0 %v8493
        %9643 = vmatprep.subr.mxu0 0.0
        %9644 = vmatpush1.msra.mxu0 %v8494
        %9645 = vmatprep.subr.mxu0 0.0
        %9646 = vmatpush1.msra.mxu0 %v8495
        %9647 = vmatprep.subr.mxu0 0.0
        %9648 = vmatpush1.msra.mxu0 %v8496
        %9649 = vmatprep.mubr.f32.mxu0 %v8533
        %9650 = vmatmul.mubr.f32.gmra.mrb[0].mxu0 %v8532
        %v9651 = vpop.f32.mrb[0].mxu0
        %v9652 = vadd.f32 %v9582, %v9651
        %v9653 = vpop.f32.mrb[0].mxu0
        %9654 = vdwg.mxu0
        %v9655 = vadd.f32 %v8534, %v9652
        %9656 = vst [vmem:[%s285] sm:$0xff] %v9655
        %p9657 = scmp.eq.s32.totalorder %s23, 3
        // Predicated region
        $region79: #{tpu_custom_call.1} parent=69 // pred_check
          %p9658 = pneg %p9657
        $region80: #{tpu_custom_call.1} parent=69 // pred_check_branch
          %9660 = sbr.rel (%p9658) target = $region82
        $region81: #{tpu_custom_call.1} parent=69 // pred_region
          %v9661 = vld [vmem:[%s285] sm:$0xff]
          %v9662 = vld [vmem:[%s3] sm:$0xff]
          %9664 = vset.pattern.permute.xlu0 0
          %9665 = vperm.xlu0 %9664, %v9662
          %v9666 = vpop.permute.xlu0 %9665
          %v9668 = vadd.f32 %v9661, %v9666
          %9669 = vst [vmem:[%s285] sm:$0xff] %v9668
        $region82: #{tpu_custom_call.1} parent=69 // pred_fallthru
          _
        %s9670 = sand.u32 %s132, 1
        %s9671 = scalar_lea.sflag [#allocation4], %s9670
        %s9672 = sand.u32 %s132, 1
        %s9673 = smul.addr %s9672, 8
        %s9674 = scalar_lea.vmem [#allocation3], %s9673
        // Predicated region
        $region83: #{tpu_custom_call.1} parent=69 // pred_check
          %p9675 = pneg %p142
        $region84: #{tpu_custom_call.1} parent=69 // pred_check_branch
          %9677 = sbr.rel (%p9675) target = $region86
        $region85: #{tpu_custom_call.1} parent=69 // pred_region
          %s9679 = ssub.s32 128, 128
          %9680 = vsyncadd %s9671, %s9679
          %s9681 = smul.addr %s22, 128
          %s9682 = scalar_lea.hbm %s4, %s9681
          %s9684 = sshll.u32 %s9674, 4
          %s9685 = int_to_ptr.vmem [resolvable:$true] %s9684
          %9687 = dma.vmem_to_hbm [thread:$0]  %s9685, 128, %s9682, %s9671
        $region86: #{tpu_custom_call.1} parent=69 // pred_fallthru
          _
      $region70: #{tpu_custom_call.1} parent=5 // pred_fallthru
        _
      %p9688 = scmp.le.s32.totalorder 2, %s13
      // Predicated region
      $region87: #{tpu_custom_call.1} parent=5 // pred_check
        %p9689 = pneg %p9688
      $region88: #{tpu_custom_call.1} parent=5 // pred_check_branch
        %9691 = sbr.rel (%p9689) target = $region90
      $region89: #{tpu_custom_call.1} parent=5 // pred_region
        %s9692 = ssub.s32 %s13, 2
        // Predicated region
        $region91: #{tpu_custom_call.1} parent=89 // pred_check
          %p9693 = pneg %p148
        $region92: #{tpu_custom_call.1} parent=89 // pred_check_branch
          %9695 = sbr.rel (%p9693) target = $region94
        $region93: #{tpu_custom_call.1} parent=89 // pred_region
          %s9696 = sand.u32 %s133, 1
          %s9697 = scalar_lea.sflag [#allocation4], %s9696
          %s9698 = sand.u32 %s133, 1
          %s9699 = smul.addr %s9698, 8
          %s9700 = scalar_lea.vmem [#allocation3], %s9699
          %9701 = dma.done %s9697, 128
        $region94: #{tpu_custom_call.1} parent=89 // pred_fallthru
          _
      $region90: #{tpu_custom_call.1} parent=5 // pred_fallthru
        _
    $region6: #{tpu_custom_call.1} parent=1 // loop_footer
      %s17 = sadd.s32 1, %s13
    $region7: #{tpu_custom_call.1} parent=1 // loop_footer_branch
      %12 = sbr.rel target = $region3
    $region8: #{tpu_custom_call.1} parent=1 // loop_exit
      _
    %9702 = vsyncpa [#allocation4], 1
    %s9703 = scalar_lea.sflag [#allocation4], 1
    %9704 = vsyncpa %s9703, 1

</llo_original>
